<compile_context>
chip_gen: v7x
topology: tpu7x:2x2x1
jax: 0.10.0
libtpu: 0.0.40
codegen_flags: <defaults>
</compile_context>

<pallas_src>
import jax
import jax.numpy as jnp
from jax.experimental import pallas as pl
from jax.experimental.pallas import tpu as pltpu

HIDDEN = 1024        # ruBert-large hidden size
MID = 768            # linear(1024, 768)
NUM_CLASSES = 6      # linear2(768, 6)
CLS_PAD = 128        # class dim padded to one full lane group (lane-dense store)
DROPOUT = 0.1        # inference mode -> identity


def emotion_head_kernel(cls_ref, wp_ref, bp_ref, w1_ref, b1_ref, w2_ref, b2_ref,
                        out_ref):
    # Activations arrive as bf16 (matmul operands); accumulation + all
    # elementwise math in f32.
    x = cls_ref[...]                                                   # bf16 [bt, 1024]

    # BERT pooler: tanh(cls @ Wp + bp)
    pooled = jnp.tanh(
        jnp.dot(x, wp_ref[...], preferred_element_type=jnp.float32) + bp_ref[...])

    # self.linear (1024 -> 768) + ReLU
    h = jnp.dot(pooled.astype(jnp.bfloat16), w1_ref[...],
                preferred_element_type=jnp.float32) + b1_ref[...]
    h = jnp.maximum(h, 0.0)

    # self.dropout(p=0.1): identity in inference (eval) mode.

    # self.linear2 (768 -> 6); class dim zero-padded to 128 lanes, with the
    # lane mask already folded into b2 (padded columns are -1e30).
    logits = jnp.dot(h.astype(jnp.bfloat16), w2_ref[...],
                     preferred_element_type=jnp.float32) + b2_ref[...]

    # self.softmax = LogSoftmax(dim=1)  (class dimension)
    m = jnp.max(logits, axis=1, keepdims=True)
    shifted = logits - m
    lse = jnp.log(jnp.sum(jnp.exp(shifted), axis=1, keepdims=True))
    out_ref[...] = shifted - lse


def _build_specs(bt, weight_mode):
    """BlockSpecs: activations streamed per tile, weights VMEM-resident."""
    wkw = {} if weight_mode is None else {"pipeline_mode": weight_mode}
    in_specs = [
        pl.BlockSpec((bt, HIDDEN), lambda i: (i, 0)),               # CLS activations (streamed)
        pl.BlockSpec((HIDDEN, HIDDEN), lambda i: (0, 0), **wkw),    # Wp  (resident)
        pl.BlockSpec((1, HIDDEN), lambda i: (0, 0), **wkw),         # bp
        pl.BlockSpec((HIDDEN, MID), lambda i: (0, 0), **wkw),       # W1  (resident)
        pl.BlockSpec((1, MID), lambda i: (0, 0), **wkw),            # b1
        pl.BlockSpec((MID, CLS_PAD), lambda i: (0, 0), **wkw),      # W2 padded (resident)
        pl.BlockSpec((1, CLS_PAD), lambda i: (0, 0), **wkw),        # b2 padded (mask folded in)
    ]
    out_spec = pl.BlockSpec((bt, CLS_PAD), lambda i: (i, 0))
    return in_specs, out_spec


def emotion_classifier_head(cls_hidden, wp, bp, w1, b1, w2, b2, *,
                            batch_tile=512):
    """Head forward. Weight matrices are [in, out] (PyTorch W transposed)."""
    B = cls_hidden.shape[0]

    # bf16 activations + weights (bandwidth), f32 biases (elementwise path).
    x = cls_hidden.astype(jnp.bfloat16)
    wp_bf = wp.astype(jnp.bfloat16)
    w1_bf = w1.astype(jnp.bfloat16)
    w2_bf = jnp.zeros((MID, CLS_PAD), jnp.bfloat16).at[:, :NUM_CLASSES].set(
        w2.astype(jnp.bfloat16))
    bp_f = bp.reshape(1, HIDDEN).astype(jnp.float32)
    b1_f = b1.reshape(1, MID).astype(jnp.float32)
    # Class-lane mask folded into the bias: padded classes sit at -1e30 so they
    # vanish under the log-softmax (W2's padded columns are exactly zero).
    b2_f = jnp.full((1, CLS_PAD), -1e30, jnp.float32).at[:, :NUM_CLASSES].set(
        b2.reshape(1, NUM_CLASSES).astype(jnp.float32))

    # Batch tiling: one grid step for small B; otherwise stream batch_tile rows
    # per step with the weights held VMEM-resident across steps.  Ragged last
    # tile (B % bt != 0) is handled by Pallas block clipping — the math is
    # per-row and out-of-bounds stores are dropped, so no host-side jnp.pad.
    bt = B if B <= batch_tile else batch_tile
    n_tiles = pl.cdiv(B, bt)

    # Megacore: only split the batch axis when activation traffic dominates the
    # per-core-duplicated weight working set (v7x TCs share one HBM pipe).
    weight_bytes = 2 * (HIDDEN * HIDDEN + HIDDEN * MID + MID * CLS_PAD)
    act_bytes = B * HIDDEN * 2
    semantics = (("parallel",) if (n_tiles > 1 and act_bytes > 2 * weight_bytes)
                 else ("arbitrary",))

    def run(weight_mode):
        in_specs, out_spec = _build_specs(bt, weight_mode)
        return pl.pallas_call(
            emotion_head_kernel,
            out_shape=jax.ShapeDtypeStruct((B, CLS_PAD), jnp.float32),
            grid=(n_tiles,),
            in_specs=in_specs,
            out_specs=out_spec,
            compiler_params=pltpu.CompilerParams(dimension_semantics=semantics),
        )(x, wp_bf, bp_f, w1_bf, b1_f, w2_bf, b2_f)

    try:
        out = run(pl.Buffered(1))      # single-buffer the resident weight specs
    except Exception:                  # pragma: no cover — older Pallas builds
        out = run(None)                # without pipeline_mode on pallas_call specs

    return out[:, :NUM_CLASSES]


def _reference_f32(cls_hidden, wp, bp, w1, b1, w2, b2):
    pooled = jnp.tanh(cls_hidden @ wp + bp)
    h = jnp.maximum(pooled @ w1 + b1, 0.0)
    logits = h @ w2 + b2
    return jax.nn.log_softmax(logits, axis=1)


def _reference_bf16(cls_hidden, wp, bp, w1, b1, w2, b2):
    # Same mixed precision as the kernel (bf16 matmul operands, f32 accumulate).
    def mm(a, w):
        return jnp.dot(a.astype(jnp.bfloat16), w.astype(jnp.bfloat16),
                       preferred_element_type=jnp.float32)
    pooled = jnp.tanh(mm(cls_hidden, wp) + bp)
    h = jnp.maximum(mm(pooled, w1) + b1, 0.0)
    logits = mm(h, w2) + b2
    return jax.nn.log_softmax(logits, axis=1)


if __name__ == "__main__":
    key = jax.random.PRNGKey(0)
    k_x, k_wp, k_bp, k_w1, k_b1, k_w2, k_b2 = jax.random.split(key, 7)

    # Deterministic synthetic parameters (shapes from the module __init__),
    # already transposed to [in, out] for the kernel's x @ W convention.
    wp = jax.random.normal(k_wp, (HIDDEN, HIDDEN), dtype=jnp.float32) * 0.02
    bp = jax.random.normal(k_bp, (1, HIDDEN), dtype=jnp.float32) * 0.02
    w1 = jax.random.normal(k_w1, (HIDDEN, MID), dtype=jnp.float32) * 0.02
    b1 = jax.random.normal(k_b1, (1, MID), dtype=jnp.float32) * 0.02
    w2 = jax.random.normal(k_w2, (MID, NUM_CLASSES), dtype=jnp.float32) * 0.02
    b2 = jax.random.normal(k_b2, (1, NUM_CLASSES), dtype=jnp.float32) * 0.02

    def check(B, batch_tile):
        cls_hidden = jax.random.normal(k_x, (B, HIDDEN), dtype=jnp.float32)
        out = jax.block_until_ready(
            emotion_classifier_head(cls_hidden, wp, bp, w1, b1, w2, b2,
                                    batch_tile=batch_tile))
        ref_bf16 = _reference_bf16(cls_hidden, wp, bp, w1, b1, w2, b2)
        ref_f32 = _reference_f32(cls_hidden, wp, bp, w1, b1, w2, b2)
        assert out.shape == (B, NUM_CLASSES)
        assert bool(jnp.all(jnp.isfinite(out)))
        # Tight match against a precision-matched (bf16-operand) reference.
        assert bool(jnp.allclose(out, ref_bf16, atol=5e-3, rtol=5e-3))
        # Loose match against the full-f32 reference (bf16 quantization).
        assert bool(jnp.allclose(out, ref_f32, atol=5e-2, rtol=5e-2))

    check(B=8, batch_tile=512)    # small batch: collapses to a single grid step
    check(B=48, batch_tile=16)    # multi-tile: weights resident across 3 steps

    print("KERNEL_OK")
</pallas_src>

<mosaic_0001>
module attributes {stable_mosaic.version = 11 : i64} {
  func.func @emotion_head_kernel(%arg0: i32, %arg1: memref<8x1024xbf16, #tpu.memory_space<vmem>>, %arg2: memref<1024x1024xbf16, #tpu.memory_space<vmem>>, %arg3: memref<1x1024xf32, #tpu.memory_space<vmem>>, %arg4: memref<1024x768xbf16, #tpu.memory_space<vmem>>, %arg5: memref<1x768xf32, #tpu.memory_space<vmem>>, %arg6: memref<768x128xbf16, #tpu.memory_space<vmem>>, %arg7: memref<1x128xf32, #tpu.memory_space<vmem>>, %arg8: memref<8x128xf32, #tpu.memory_space<vmem>>) attributes {dimension_semantics = [#tpu.dimension_semantics<arbitrary>], iteration_bounds = array<i64: 1>, scalar_prefetch = 0 : i64, scratch_operands = 0 : i64, tpu.core_type = #tpu.core_type<tc>, window_params = [{transform_indices = @transform_0, window_bounds = array<i64: 8, 1024>}, {pipeline_mode = #tpu.pipeline_mode<synchronous>, transform_indices = @transform_1, window_bounds = array<i64: 1024, 1024>}, {pipeline_mode = #tpu.pipeline_mode<synchronous>, transform_indices = @transform_2, window_bounds = array<i64: 1, 1024>}, {pipeline_mode = #tpu.pipeline_mode<synchronous>, transform_indices = @transform_3, window_bounds = array<i64: 1024, 768>}, {pipeline_mode = #tpu.pipeline_mode<synchronous>, transform_indices = @transform_4, window_bounds = array<i64: 1, 768>}, {pipeline_mode = #tpu.pipeline_mode<synchronous>, transform_indices = @transform_5, window_bounds = array<i64: 768, 128>}, {pipeline_mode = #tpu.pipeline_mode<synchronous>, transform_indices = @transform_6, window_bounds = array<i64: 1, 128>}, {transform_indices = @transform_7, window_bounds = array<i64: 8, 128>}]} {
    %c0 = arith.constant 0 : index
    %c0_0 = arith.constant 0 : index
    %0 = vector.load %arg1[%c0, %c0_0] : memref<8x1024xbf16, #tpu.memory_space<vmem>>, vector<8x1024xbf16>
    %c0_1 = arith.constant 0 : index
    %c0_2 = arith.constant 0 : index
    %1 = vector.load %arg2[%c0_1, %c0_2] : memref<1024x1024xbf16, #tpu.memory_space<vmem>>, vector<1024x1024xbf16>
    %cst = arith.constant dense<0.000000e+00> : vector<8x1024xf32>
    %2 = tpu.matmul %0, %1, %cst {dimension_numbers = #tpu.dot_dimension_numbers<[1], [0], [0], [1], [0, 0, 1, 1], [], []>} : vector<8x1024xbf16>, vector<1024x1024xbf16>, vector<8x1024xf32> -> vector<8x1024xf32>
    %c0_3 = arith.constant 0 : index
    %c0_4 = arith.constant 0 : index
    %3 = vector.load %arg3[%c0_3, %c0_4] : memref<1x1024xf32, #tpu.memory_space<vmem>>, vector<1x1024xf32>
    %4 = vector.broadcast %3 : vector<1x1024xf32> to vector<8x1024xf32>
    %5 = arith.addf %2, %4 : vector<8x1024xf32>
    %6 = math.tanh %5 : vector<8x1024xf32>
    %7 = arith.truncf %6 : vector<8x1024xf32> to vector<8x1024xbf16>
    %c0_5 = arith.constant 0 : index
    %c0_6 = arith.constant 0 : index
    %8 = vector.load %arg4[%c0_5, %c0_6] : memref<1024x768xbf16, #tpu.memory_space<vmem>>, vector<1024x768xbf16>
    %cst_7 = arith.constant dense<0.000000e+00> : vector<8x768xf32>
    %9 = tpu.matmul %7, %8, %cst_7 {dimension_numbers = #tpu.dot_dimension_numbers<[1], [0], [0], [1], [0, 0, 1, 1], [], []>} : vector<8x1024xbf16>, vector<1024x768xbf16>, vector<8x768xf32> -> vector<8x768xf32>
    %c0_8 = arith.constant 0 : index
    %c0_9 = arith.constant 0 : index
    %10 = vector.load %arg5[%c0_8, %c0_9] : memref<1x768xf32, #tpu.memory_space<vmem>>, vector<1x768xf32>
    %11 = vector.broadcast %10 : vector<1x768xf32> to vector<8x768xf32>
    %12 = arith.addf %9, %11 : vector<8x768xf32>
    %cst_10 = arith.constant 0.000000e+00 : f32
    %13 = vector.broadcast %cst_10 : f32 to vector<8x768xf32>
    %14 = arith.maximumf %12, %13 : vector<8x768xf32>
    %15 = arith.truncf %14 : vector<8x768xf32> to vector<8x768xbf16>
    %c0_11 = arith.constant 0 : index
    %c0_12 = arith.constant 0 : index
    %16 = vector.load %arg6[%c0_11, %c0_12] : memref<768x128xbf16, #tpu.memory_space<vmem>>, vector<768x128xbf16>
    %cst_13 = arith.constant dense<0.000000e+00> : vector<8x128xf32>
    %17 = tpu.matmul %15, %16, %cst_13 {dimension_numbers = #tpu.dot_dimension_numbers<[1], [0], [0], [1], [0, 0, 1, 1], [], []>} : vector<8x768xbf16>, vector<768x128xbf16>, vector<8x128xf32> -> vector<8x128xf32>
    %c0_14 = arith.constant 0 : index
    %c0_15 = arith.constant 0 : index
    %18 = vector.load %arg7[%c0_14, %c0_15] : memref<1x128xf32, #tpu.memory_space<vmem>>, vector<1x128xf32>
    %19 = vector.broadcast %18 : vector<1x128xf32> to vector<8x128xf32>
    %20 = arith.addf %17, %19 : vector<8x128xf32>
    %cst_16 = arith.constant dense<0xFF800000> : vector<8xf32>
    %21 = vector.multi_reduction <maximumf>, %20, %cst_16 [1] : vector<8x128xf32> to vector<8xf32>
    %22 = vector.shape_cast %21 : vector<8xf32> to vector<8x1xf32>
    %23 = vector.broadcast %22 : vector<8x1xf32> to vector<8x128xf32>
    %24 = arith.subf %20, %23 : vector<8x128xf32>
    %25 = math.exp %24 : vector<8x128xf32>
    %cst_17 = arith.constant dense<0.000000e+00> : vector<8xf32>
    %26 = vector.multi_reduction <add>, %25, %cst_17 [1] : vector<8x128xf32> to vector<8xf32>
    %27 = vector.shape_cast %26 : vector<8xf32> to vector<8x1xf32>
    %28 = math.log %27 : vector<8x1xf32>
    %29 = vector.broadcast %28 : vector<8x1xf32> to vector<8x128xf32>
    %30 = arith.subf %24, %29 : vector<8x128xf32>
    %c0_18 = arith.constant 0 : index
    %c0_19 = arith.constant 0 : index
    %31 = vector.load %arg8[%c0_18, %c0_19] : memref<8x128xf32, #tpu.memory_space<vmem>>, vector<8x128xf32>
    tpu.vector_store %arg8[%c0_18, %c0_19], %30 {strides = array<i32>} : memref<8x128xf32, #tpu.memory_space<vmem>>, vector<8x128xf32>,
    return
  }
  func.func @transform_0(%arg0: i32) -> (i32, i32) {
    %c0_i32 = arith.constant 0 : i32
    %c0_i32_0 = arith.constant 0 : i32
    return %arg0, %c0_i32 : i32, i32
  }
  func.func @transform_1(%arg0: i32) -> (i32, i32) {
    %c0_i32 = arith.constant 0 : i32
    %c0_i32_0 = arith.constant 0 : i32
    %c0_i32_1 = arith.constant 0 : i32
    return %c0_i32, %c0_i32_0 : i32, i32
  }
  func.func @transform_2(%arg0: i32) -> (i32, i32) {
    %c0_i32 = arith.constant 0 : i32
    %c0_i32_0 = arith.constant 0 : i32
    %c0_i32_1 = arith.constant 0 : i32
    return %c0_i32, %c0_i32_0 : i32, i32
  }
  func.func @transform_3(%arg0: i32) -> (i32, i32) {
    %c0_i32 = arith.constant 0 : i32
    %c0_i32_0 = arith.constant 0 : i32
    %c0_i32_1 = arith.constant 0 : i32
    return %c0_i32, %c0_i32_0 : i32, i32
  }
  func.func @transform_4(%arg0: i32) -> (i32, i32) {
    %c0_i32 = arith.constant 0 : i32
    %c0_i32_0 = arith.constant 0 : i32
    %c0_i32_1 = arith.constant 0 : i32
    return %c0_i32, %c0_i32_0 : i32, i32
  }
  func.func @transform_5(%arg0: i32) -> (i32, i32) {
    %c0_i32 = arith.constant 0 : i32
    %c0_i32_0 = arith.constant 0 : i32
    %c0_i32_1 = arith.constant 0 : i32
    return %c0_i32, %c0_i32_0 : i32, i32
  }
  func.func @transform_6(%arg0: i32) -> (i32, i32) {
    %c0_i32 = arith.constant 0 : i32
    %c0_i32_0 = arith.constant 0 : i32
    %c0_i32_1 = arith.constant 0 : i32
    return %c0_i32, %c0_i32_0 : i32, i32
  }
  func.func @transform_7(%arg0: i32) -> (i32, i32) {
    %c0_i32 = arith.constant 0 : i32
    %c0_i32_0 = arith.constant 0 : i32
    return %arg0, %c0_i32 : i32, i32
  }
}

module attributes {stable_mosaic.version = 11 : i64} {
  func.func @emotion_head_kernel(%arg0: i32, %arg1: memref<8x1024xbf16, #tpu.memory_space<vmem>>, %arg2: memref<1024x1024xbf16, #tpu.memory_space<vmem>>, %arg3: memref<1x1024xf32, #tpu.memory_space<vmem>>, %arg4: memref<1024x768xbf16, #tpu.memory_space<vmem>>, %arg5: memref<1x768xf32, #tpu.memory_space<vmem>>, %arg6: memref<768x128xbf16, #tpu.memory_space<vmem>>, %arg7: memref<1x128xf32, #tpu.memory_space<vmem>>, %arg8: memref<8x128xf32, #tpu.memory_space<vmem>>) attributes {dimension_semantics = [#tpu.dimension_semantics<arbitrary>], iteration_bounds = array<i64: 1>, scalar_prefetch = 0 : i64, scratch_operands = 0 : i64, tpu.core_type = #tpu.core_type<tc>, window_params = [{transform_indices = @transform_0, window_bounds = array<i64: 8, 1024>}, {pipeline_mode = #tpu.pipeline_mode<synchronous>, transform_indices = @transform_1, window_bounds = array<i64: 1024, 1024>}, {pipeline_mode = #tpu.pipeline_mode<synchronous>, transform_indices = @transform_2, window_bounds = array<i64: 1, 1024>}, {pipeline_mode = #tpu.pipeline_mode<synchronous>, transform_indices = @transform_3, window_bounds = array<i64: 1024, 768>}, {pipeline_mode = #tpu.pipeline_mode<synchronous>, transform_indices = @transform_4, window_bounds = array<i64: 1, 768>}, {pipeline_mode = #tpu.pipeline_mode<synchronous>, transform_indices = @transform_5, window_bounds = array<i64: 768, 128>}, {pipeline_mode = #tpu.pipeline_mode<synchronous>, transform_indices = @transform_6, window_bounds = array<i64: 1, 128>}, {transform_indices = @transform_7, window_bounds = array<i64: 8, 128>}]} {
    %c0 = arith.constant 0 : index
    %c0_0 = arith.constant 0 : index
    %0 = vector.load %arg1[%c0, %c0_0] : memref<8x1024xbf16, #tpu.memory_space<vmem>>, vector<8x1024xbf16>
    %c0_1 = arith.constant 0 : index
    %c0_2 = arith.constant 0 : index
    %1 = vector.load %arg2[%c0_1, %c0_2] : memref<1024x1024xbf16, #tpu.memory_space<vmem>>, vector<1024x1024xbf16>
    %cst = arith.constant dense<0.000000e+00> : vector<8x1024xf32>
    %2 = tpu.matmul %0, %1, %cst {dimension_numbers = #tpu.dot_dimension_numbers<[1], [0], [0], [1], [0, 0, 1, 1], [], []>} : vector<8x1024xbf16>, vector<1024x1024xbf16>, vector<8x1024xf32> -> vector<8x1024xf32>
    %c0_3 = arith.constant 0 : index
    %c0_4 = arith.constant 0 : index
    %3 = vector.load %arg3[%c0_3, %c0_4] : memref<1x1024xf32, #tpu.memory_space<vmem>>, vector<1x1024xf32>
    %4 = vector.broadcast %3 : vector<1x1024xf32> to vector<8x1024xf32>
    %5 = arith.addf %2, %4 : vector<8x1024xf32>
    %6 = math.tanh %5 : vector<8x1024xf32>
    %7 = arith.truncf %6 : vector<8x1024xf32> to vector<8x1024xbf16>
    %c0_5 = arith.constant 0 : index
    %c0_6 = arith.constant 0 : index
    %8 = vector.load %arg4[%c0_5, %c0_6] : memref<1024x768xbf16, #tpu.memory_space<vmem>>, vector<1024x768xbf16>
    %cst_7 = arith.constant dense<0.000000e+00> : vector<8x768xf32>
    %9 = tpu.matmul %7, %8, %cst_7 {dimension_numbers = #tpu.dot_dimension_numbers<[1], [0], [0], [1], [0, 0, 1, 1], [], []>} : vector<8x1024xbf16>, vector<1024x768xbf16>, vector<8x768xf32> -> vector<8x768xf32>
    %c0_8 = arith.constant 0 : index
    %c0_9 = arith.constant 0 : index
    %10 = vector.load %arg5[%c0_8, %c0_9] : memref<1x768xf32, #tpu.memory_space<vmem>>, vector<1x768xf32>
    %11 = vector.broadcast %10 : vector<1x768xf32> to vector<8x768xf32>
    %12 = arith.addf %9, %11 : vector<8x768xf32>
    %cst_10 = arith.constant 0.000000e+00 : f32
    %13 = vector.broadcast %cst_10 : f32 to vector<8x768xf32>
    %14 = arith.maximumf %12, %13 : vector<8x768xf32>
    %15 = arith.truncf %14 : vector<8x768xf32> to vector<8x768xbf16>
    %c0_11 = arith.constant 0 : index
    %c0_12 = arith.constant 0 : index
    %16 = vector.load %arg6[%c0_11, %c0_12] : memref<768x128xbf16, #tpu.memory_space<vmem>>, vector<768x128xbf16>
    %cst_13 = arith.constant dense<0.000000e+00> : vector<8x128xf32>
    %17 = tpu.matmul %15, %16, %cst_13 {dimension_numbers = #tpu.dot_dimension_numbers<[1], [0], [0], [1], [0, 0, 1, 1], [], []>} : vector<8x768xbf16>, vector<768x128xbf16>, vector<8x128xf32> -> vector<8x128xf32>
    %c0_14 = arith.constant 0 : index
    %c0_15 = arith.constant 0 : index
    %18 = vector.load %arg7[%c0_14, %c0_15] : memref<1x128xf32, #tpu.memory_space<vmem>>, vector<1x128xf32>
    %19 = vector.broadcast %18 : vector<1x128xf32> to vector<8x128xf32>
    %20 = arith.addf %17, %19 : vector<8x128xf32>
    %cst_16 = arith.constant dense<0xFF800000> : vector<8xf32>
    %21 = vector.multi_reduction <maximumf>, %20, %cst_16 [1] : vector<8x128xf32> to vector<8xf32>
    %22 = vector.shape_cast %21 : vector<8xf32> to vector<8x1xf32>
    %23 = vector.broadcast %22 : vector<8x1xf32> to vector<8x128xf32>
    %24 = arith.subf %20, %23 : vector<8x128xf32>
    %25 = math.exp %24 : vector<8x128xf32>
    %cst_17 = arith.constant dense<0.000000e+00> : vector<8xf32>
    %26 = vector.multi_reduction <add>, %25, %cst_17 [1] : vector<8x128xf32> to vector<8xf32>
    %27 = vector.shape_cast %26 : vector<8xf32> to vector<8x1xf32>
    %28 = math.log %27 : vector<8x1xf32>
    %29 = vector.broadcast %28 : vector<8x1xf32> to vector<8x128xf32>
    %30 = arith.subf %24, %29 : vector<8x128xf32>
    %c0_18 = arith.constant 0 : index
    %c0_19 = arith.constant 0 : index
    %31 = vector.load %arg8[%c0_18, %c0_19] : memref<8x128xf32, #tpu.memory_space<vmem>>, vector<8x128xf32>
    tpu.vector_store %arg8[%c0_18, %c0_19], %30 {strides = array<i32>} : memref<8x128xf32, #tpu.memory_space<vmem>>, vector<8x128xf32>,
    return
  }
  func.func @transform_0(%arg0: i32) -> (i32, i32) {
    %c0_i32 = arith.constant 0 : i32
    %c0_i32_0 = arith.constant 0 : i32
    return %arg0, %c0_i32 : i32, i32
  }
  func.func @transform_1(%arg0: i32) -> (i32, i32) {
    %c0_i32 = arith.constant 0 : i32
    %c0_i32_0 = arith.constant 0 : i32
    %c0_i32_1 = arith.constant 0 : i32
    return %c0_i32, %c0_i32_0 : i32, i32
  }
  func.func @transform_2(%arg0: i32) -> (i32, i32) {
    %c0_i32 = arith.constant 0 : i32
    %c0_i32_0 = arith.constant 0 : i32
    %c0_i32_1 = arith.constant 0 : i32
    return %c0_i32, %c0_i32_0 : i32, i32
  }
  func.func @transform_3(%arg0: i32) -> (i32, i32) {
    %c0_i32 = arith.constant 0 : i32
    %c0_i32_0 = arith.constant 0 : i32
    %c0_i32_1 = arith.constant 0 : i32
    return %c0_i32, %c0_i32_0 : i32, i32
  }
  func.func @transform_4(%arg0: i32) -> (i32, i32) {
    %c0_i32 = arith.constant 0 : i32
    %c0_i32_0 = arith.constant 0 : i32
    %c0_i32_1 = arith.constant 0 : i32
    return %c0_i32, %c0_i32_0 : i32, i32
  }
  func.func @transform_5(%arg0: i32) -> (i32, i32) {
    %c0_i32 = arith.constant 0 : i32
    %c0_i32_0 = arith.constant 0 : i32
    %c0_i32_1 = arith.constant 0 : i32
    return %c0_i32, %c0_i32_0 : i32, i32
  }
  func.func @transform_6(%arg0: i32) -> (i32, i32) {
    %c0_i32 = arith.constant 0 : i32
    %c0_i32_0 = arith.constant 0 : i32
    %c0_i32_1 = arith.constant 0 : i32
    return %c0_i32, %c0_i32_0 : i32, i32
  }
  func.func @transform_7(%arg0: i32) -> (i32, i32) {
    %c0_i32 = arith.constant 0 : i32
    %c0_i32_0 = arith.constant 0 : i32
    return %arg0, %c0_i32 : i32, i32
  }
}

</mosaic_0001>

<llo_original>
// kernel: tpu_custom_call.1
$region0: #{tpu_custom_call.1}
  #allocation0 [shape = 'u32[]', space=smem, size = 0x4, offset = 0x4, fixed_abs, tag = 'smem constant byte address 0x4 - core index']
  #allocation1 [shape = 'u32[144,128]{1,0:T(1,128)}', space=vmem, size = 0x12000, scoped, tag = 'internal scratch']
  %s0 = inlined_call_operand.hbm [shape: bf16[8,1024], index: 0, kind: input, shape index: {}]
  %s1 = inlined_call_operand.hbm [shape: bf16[1024,1024], index: 1, kind: input, shape index: {}]
  %s2 = inlined_call_operand.hbm [shape: f32[1,1024], index: 2, kind: input, shape index: {}]
  %s3 = inlined_call_operand.hbm [shape: bf16[1024,768], index: 3, kind: input, shape index: {}]
  %s4 = inlined_call_operand.hbm [shape: f32[1,768], index: 4, kind: input, shape index: {}]
  %s5 = inlined_call_operand.hbm [shape: bf16[768,128], index: 5, kind: input, shape index: {}]
  %s6 = inlined_call_operand.hbm [shape: f32[1,128], index: 6, kind: input, shape index: {}]
  %s7 = inlined_call_operand.hbm [shape: f32[8,128], index: 7, kind: output, shape index: {}]
  %s8 = sld [smem:[#allocation0]]
  $region66: #{tpu_custom_call.1} parent=0
    _
  %s10 = ssub.s32 1, %s8
  %s11 = scalar_select 0, %s10, %s8
  $region1: #{tpu_custom_call.1} parent=0
    #allocation2 [shape = 'u8[16384]{0}', space=vmem, size = 0x4000, scoped, tag = 'input window, operand 0, single buffered']
    #allocation3 [shape = 's32[1]{0}', space=sflag, size = 0x4, scoped, tag = 'scoped memory for tpu_custom_call.1']
    #allocation4 [shape = 's32[1]{0}', space=sflag, size = 0x4, scoped, tag = 'scoped memory for tpu_custom_call.1']
    #allocation5 [shape = 'u8[2097152]{0}', space=vmem, size = 0x200000, scoped, tag = 'input window, operand 1, single buffered']
    #allocation6 [shape = 's32[1]{0}', space=sflag, size = 0x4, scoped, tag = 'scoped memory for tpu_custom_call.1']
    #allocation7 [shape = 'u8[4096]{0}', space=vmem, size = 0x1000, scoped, tag = 'input window, operand 2, single buffered']
    #allocation8 [shape = 'u8[1572864]{0}', space=vmem, size = 0x180000, scoped, tag = 'input window, operand 3, single buffered']
    #allocation9 [shape = 's32[1]{0}', space=sflag, size = 0x4, scoped, tag = 'scoped memory for tpu_custom_call.1']
    #allocation10 [shape = 'u8[3072]{0}', space=vmem, size = 0xc00, scoped, tag = 'input window, operand 4, single buffered']
    #allocation11 [shape = 'u8[196608]{0}', space=vmem, size = 0x30000, scoped, tag = 'input window, operand 5, single buffered']
    #allocation12 [shape = 's32[1]{0}', space=sflag, size = 0x4, scoped, tag = 'scoped memory for tpu_custom_call.1']
    #allocation13 [shape = 'u8[512]{0}', space=vmem, size = 0x400, scoped, tag = 'input window, operand 6, single buffered']
    #allocation14 [shape = 'u8[4096]{0}', space=vmem, size = 0x1000, scoped, tag = 'output window, operand 0, single buffered']
    %12 = vsyncpa [#allocation3], 0
    %13 = vsyncpa [#allocation6], 0
    %14 = vsyncpa [#allocation9], 0
    %15 = vsyncpa [#allocation12], 0
    %16 = vsyncpa [#allocation4], 0
    // Predicated region
    $region2: #{tpu_custom_call.1} parent=1 // pred_check
      _
    $region3: #{tpu_custom_call.1} parent=1 // pred_check_branch
      %18 = sbr.rel (0) target = $region5
    $region4: #{tpu_custom_call.1} parent=1 // pred_region
      %s20 = ssub.s32 512, 512
      %21 = vsyncadd [#allocation3], %s20
      %s23 = sshll.u32 [#allocation2], 4
      %s24 = int_to_ptr.vmem [resolvable:$true] %s23
      %26 = dma.hbm_to_vmem [thread:$0]  %s0, 512, %s24, [#allocation3]
    $region5: #{tpu_custom_call.1} parent=1 // pred_fallthru
      _
    // Predicated region
    $region6: #{tpu_custom_call.1} parent=1 // pred_check
      _
    $region7: #{tpu_custom_call.1} parent=1 // pred_check_branch
      %28 = sbr.rel (0) target = $region9
    $region8: #{tpu_custom_call.1} parent=1 // pred_region
      %s30 = ssub.s32 65536, 65536
      %31 = vsyncadd [#allocation6], %s30
      %s32 = sshll.u32 [#allocation5], 4
      %s33 = int_to_ptr.vmem [resolvable:$true] %s32
      %38 = dma.hbm_to_vmem [thread:$0]  %s1, 65536, %s33, [#allocation6], 512, 512, 32
    $region9: #{tpu_custom_call.1} parent=1 // pred_fallthru
      _
    // Predicated region
    $region10: #{tpu_custom_call.1} parent=1 // pred_check
      _
    $region11: #{tpu_custom_call.1} parent=1 // pred_check_branch
      %40 = sbr.rel (0) target = $region13
    $region12: #{tpu_custom_call.1} parent=1 // pred_region
      %s42 = ssub.s32 128, 128
      %43 = vsyncadd [#allocation6], %s42
      %s45 = sshll.u32 [#allocation7], 4
      %s46 = int_to_ptr.vmem [resolvable:$true] %s45
      %48 = dma.hbm_to_vmem [thread:$0]  %s2, 128, %s46, [#allocation6]
    $region13: #{tpu_custom_call.1} parent=1 // pred_fallthru
      _
    // Predicated region
    $region14: #{tpu_custom_call.1} parent=1 // pred_check
      _
    $region15: #{tpu_custom_call.1} parent=1 // pred_check_branch
      %50 = sbr.rel (0) target = $region17
    $region16: #{tpu_custom_call.1} parent=1 // pred_region
      %s52 = ssub.s32 49152, 49152
      %53 = vsyncadd [#allocation9], %s52
      %s54 = sshll.u32 [#allocation8], 4
      %s55 = int_to_ptr.vmem [resolvable:$true] %s54
      %60 = dma.hbm_to_vmem [thread:$0]  %s3, 49152, %s55, [#allocation9], 384, 384, 24
    $region17: #{tpu_custom_call.1} parent=1 // pred_fallthru
      _
    // Predicated region
    $region18: #{tpu_custom_call.1} parent=1 // pred_check
      _
    $region19: #{tpu_custom_call.1} parent=1 // pred_check_branch
      %62 = sbr.rel (0) target = $region21
    $region20: #{tpu_custom_call.1} parent=1 // pred_region
      %s64 = ssub.s32 96, 96
      %65 = vsyncadd [#allocation9], %s64
      %s67 = sshll.u32 [#allocation10], 4
      %s68 = int_to_ptr.vmem [resolvable:$true] %s67
      %70 = dma.hbm_to_vmem [thread:$0]  %s4, 96, %s68, [#allocation9]
    $region21: #{tpu_custom_call.1} parent=1 // pred_fallthru
      _
    // Predicated region
    $region22: #{tpu_custom_call.1} parent=1 // pred_check
      _
    $region23: #{tpu_custom_call.1} parent=1 // pred_check_branch
      %72 = sbr.rel (0) target = $region25
    $region24: #{tpu_custom_call.1} parent=1 // pred_region
      %s74 = ssub.s32 6144, 6144
      %75 = vsyncadd [#allocation12], %s74
      %s76 = sshll.u32 [#allocation11], 4
      %s77 = int_to_ptr.vmem [resolvable:$true] %s76
      %82 = dma.hbm_to_vmem [thread:$0]  %s5, 6144, %s77, [#allocation12], 64, 64, 4
    $region25: #{tpu_custom_call.1} parent=1 // pred_fallthru
      _
    // Predicated region
    $region26: #{tpu_custom_call.1} parent=1 // pred_check
      _
    $region27: #{tpu_custom_call.1} parent=1 // pred_check_branch
      %84 = sbr.rel (0) target = $region29
    $region28: #{tpu_custom_call.1} parent=1 // pred_region
      %s86 = ssub.s32 16, 16
      %87 = vsyncadd [#allocation12], %s86
      %s89 = sshll.u32 [#allocation13], 4
      %s90 = int_to_ptr.vmem [resolvable:$true] %s89
      %92 = dma.hbm_to_vmem [thread:$0]  %s6, 16, %s90, [#allocation12]
    $region29: #{tpu_custom_call.1} parent=1 // pred_fallthru
      _
    // Predicated region
    $region30: #{tpu_custom_call.1} parent=1 // pred_check
      _
    $region31: #{tpu_custom_call.1} parent=1 // pred_check_branch
      %94 = sbr.rel (0) target = $region33
    $region32: #{tpu_custom_call.1} parent=1 // pred_region
      %95 = dma.done [#allocation3], 512
    $region33: #{tpu_custom_call.1} parent=1 // pred_fallthru
      _
    // Predicated region
    $region34: #{tpu_custom_call.1} parent=1 // pred_check
      _
    $region35: #{tpu_custom_call.1} parent=1 // pred_check_branch
      %97 = sbr.rel (0) target = $region37
    $region36: #{tpu_custom_call.1} parent=1 // pred_region
      %98 = dma.done [#allocation6], 65536
    $region37: #{tpu_custom_call.1} parent=1 // pred_fallthru
      _
    // Predicated region
    $region38: #{tpu_custom_call.1} parent=1 // pred_check
      _
    $region39: #{tpu_custom_call.1} parent=1 // pred_check_branch
      %100 = sbr.rel (0) target = $region41
    $region40: #{tpu_custom_call.1} parent=1 // pred_region
      %101 = dma.done [#allocation6], 128
    $region41: #{tpu_custom_call.1} parent=1 // pred_fallthru
      _
    // Predicated region
    $region42: #{tpu_custom_call.1} parent=1 // pred_check
      _
    $region43: #{tpu_custom_call.1} parent=1 // pred_check_branch
      %103 = sbr.rel (0) target = $region45
    $region44: #{tpu_custom_call.1} parent=1 // pred_region
      %104 = dma.done [#allocation9], 49152
    $region45: #{tpu_custom_call.1} parent=1 // pred_fallthru
      _
    // Predicated region
    $region46: #{tpu_custom_call.1} parent=1 // pred_check
      _
    $region47: #{tpu_custom_call.1} parent=1 // pred_check_branch
      %106 = sbr.rel (0) target = $region49
    $region48: #{tpu_custom_call.1} parent=1 // pred_region
      %107 = dma.done [#allocation9], 96
    $region49: #{tpu_custom_call.1} parent=1 // pred_fallthru
      _
    // Predicated region
    $region50: #{tpu_custom_call.1} parent=1 // pred_check
      _
    $region51: #{tpu_custom_call.1} parent=1 // pred_check_branch
      %109 = sbr.rel (0) target = $region53
    $region52: #{tpu_custom_call.1} parent=1 // pred_region
      %110 = dma.done [#allocation12], 6144
    $region53: #{tpu_custom_call.1} parent=1 // pred_fallthru
      _
    // Predicated region
    $region54: #{tpu_custom_call.1} parent=1 // pred_check
      _
    $region55: #{tpu_custom_call.1} parent=1 // pred_check_branch
      %112 = sbr.rel (0) target = $region57
    $region56: #{tpu_custom_call.1} parent=1 // pred_region
      %113 = dma.done [#allocation12], 16
    $region57: #{tpu_custom_call.1} parent=1 // pred_fallthru
      _
    %v115 = vld [vmem:[#allocation2] sm:$0xff]
    %v116 = vld [vmem:[#allocation2 + $0x8] sm:$0xff]
    %v117 = vld [vmem:[#allocation2 + $0x10] sm:$0xff]
    %v118 = vld [vmem:[#allocation2 + $0x18] sm:$0xff]
    %v119 = vld [vmem:[#allocation5] sm:$0xff]
    %v120 = vld [vmem:[#allocation5 + $0x8] sm:$0xff]
    %v121 = vld [vmem:[#allocation5 + $0x10] sm:$0xff]
    %v122 = vld [vmem:[#allocation5 + $0x18] sm:$0xff]
    %v123 = vld [vmem:[#allocation5 + $0x20] sm:$0xff]
    %v124 = vld [vmem:[#allocation5 + $0x28] sm:$0xff]
    %v125 = vld [vmem:[#allocation5 + $0x30] sm:$0xff]
    %v126 = vld [vmem:[#allocation5 + $0x38] sm:$0xff]
    %v127 = vld [vmem:[#allocation5 + $0x40] sm:$0xff]
    %v128 = vld [vmem:[#allocation5 + $0x48] sm:$0xff]
    %v129 = vld [vmem:[#allocation5 + $0x50] sm:$0xff]
    %v130 = vld [vmem:[#allocation5 + $0x58] sm:$0xff]
    %v131 = vld [vmem:[#allocation5 + $0x60] sm:$0xff]
    %v132 = vld [vmem:[#allocation5 + $0x68] sm:$0xff]
    %v133 = vld [vmem:[#allocation5 + $0x70] sm:$0xff]
    %v134 = vld [vmem:[#allocation5 + $0x78] sm:$0xff]
    %v135 = vld [vmem:[#allocation5 + $0x80] sm:$0xff]
    %v136 = vld [vmem:[#allocation5 + $0x88] sm:$0xff]
    %v137 = vld [vmem:[#allocation5 + $0x90] sm:$0xff]
    %v138 = vld [vmem:[#allocation5 + $0x98] sm:$0xff]
    %v139 = vld [vmem:[#allocation5 + $0xa0] sm:$0xff]
    %v140 = vld [vmem:[#allocation5 + $0xa8] sm:$0xff]
    %v141 = vld [vmem:[#allocation5 + $0xb0] sm:$0xff]
    %v142 = vld [vmem:[#allocation5 + $0xb8] sm:$0xff]
    %v143 = vld [vmem:[#allocation5 + $0xc0] sm:$0xff]
    %v144 = vld [vmem:[#allocation5 + $0xc8] sm:$0xff]
    %v145 = vld [vmem:[#allocation5 + $0xd0] sm:$0xff]
    %v146 = vld [vmem:[#allocation5 + $0xd8] sm:$0xff]
    %v147 = vld [vmem:[#allocation5 + $0xe0] sm:$0xff]
    %v148 = vld [vmem:[#allocation5 + $0xe8] sm:$0xff]
    %v149 = vld [vmem:[#allocation5 + $0xf0] sm:$0xff]
    %v150 = vld [vmem:[#allocation5 + $0xf8] sm:$0xff]
    %v151 = vld [vmem:[#allocation5 + $0x100] sm:$0xff]
    %v152 = vld [vmem:[#allocation5 + $0x108] sm:$0xff]
    %v153 = vld [vmem:[#allocation5 + $0x110] sm:$0xff]
    %v154 = vld [vmem:[#allocation5 + $0x118] sm:$0xff]
    %v155 = vld [vmem:[#allocation5 + $0x120] sm:$0xff]
    %v156 = vld [vmem:[#allocation5 + $0x128] sm:$0xff]
    %v157 = vld [vmem:[#allocation5 + $0x130] sm:$0xff]
    %v158 = vld [vmem:[#allocation5 + $0x138] sm:$0xff]
    %v159 = vld [vmem:[#allocation5 + $0x140] sm:$0xff]
    %v160 = vld [vmem:[#allocation5 + $0x148] sm:$0xff]
    %v161 = vld [vmem:[#allocation5 + $0x150] sm:$0xff]
    %v162 = vld [vmem:[#allocation5 + $0x158] sm:$0xff]
    %v163 = vld [vmem:[#allocation5 + $0x160] sm:$0xff]
    %v164 = vld [vmem:[#allocation5 + $0x168] sm:$0xff]
    %v165 = vld [vmem:[#allocation5 + $0x170] sm:$0xff]
    %v166 = vld [vmem:[#allocation5 + $0x178] sm:$0xff]
    %v167 = vld [vmem:[#allocation5 + $0x180] sm:$0xff]
    %v168 = vld [vmem:[#allocation5 + $0x188] sm:$0xff]
    %v169 = vld [vmem:[#allocation5 + $0x190] sm:$0xff]
    %v170 = vld [vmem:[#allocation5 + $0x198] sm:$0xff]
    %v171 = vld [vmem:[#allocation5 + $0x1a0] sm:$0xff]
    %v172 = vld [vmem:[#allocation5 + $0x1a8] sm:$0xff]
    %v173 = vld [vmem:[#allocation5 + $0x1b0] sm:$0xff]
    %v174 = vld [vmem:[#allocation5 + $0x1b8] sm:$0xff]
    %v175 = vld [vmem:[#allocation5 + $0x1c0] sm:$0xff]
    %v176 = vld [vmem:[#allocation5 + $0x1c8] sm:$0xff]
    %v177 = vld [vmem:[#allocation5 + $0x1d0] sm:$0xff]
    %v178 = vld [vmem:[#allocation5 + $0x1d8] sm:$0xff]
    %v179 = vld [vmem:[#allocation5 + $0x1e0] sm:$0xff]
    %v180 = vld [vmem:[#allocation5 + $0x1e8] sm:$0xff]
    %v181 = vld [vmem:[#allocation5 + $0x1f0] sm:$0xff]
    %v182 = vld [vmem:[#allocation5 + $0x1f8] sm:$0xff]
    %v183 = vld [vmem:[#allocation5 + $0x200] sm:$0xff]
    %v184 = vld [vmem:[#allocation5 + $0x208] sm:$0xff]
    %v185 = vld [vmem:[#allocation5 + $0x210] sm:$0xff]
    %v186 = vld [vmem:[#allocation5 + $0x218] sm:$0xff]
    %v187 = vld [vmem:[#allocation5 + $0x220] sm:$0xff]
    %v188 = vld [vmem:[#allocation5 + $0x228] sm:$0xff]
    %v189 = vld [vmem:[#allocation5 + $0x230] sm:$0xff]
    %v190 = vld [vmem:[#allocation5 + $0x238] sm:$0xff]
    %v191 = vld [vmem:[#allocation5 + $0x240] sm:$0xff]
    %v192 = vld [vmem:[#allocation5 + $0x248] sm:$0xff]
    %v193 = vld [vmem:[#allocation5 + $0x250] sm:$0xff]
    %v194 = vld [vmem:[#allocation5 + $0x258] sm:$0xff]
    %v195 = vld [vmem:[#allocation5 + $0x260] sm:$0xff]
    %v196 = vld [vmem:[#allocation5 + $0x268] sm:$0xff]
    %v197 = vld [vmem:[#allocation5 + $0x270] sm:$0xff]
    %v198 = vld [vmem:[#allocation5 + $0x278] sm:$0xff]
    %v199 = vld [vmem:[#allocation5 + $0x280] sm:$0xff]
    %v200 = vld [vmem:[#allocation5 + $0x288] sm:$0xff]
    %v201 = vld [vmem:[#allocation5 + $0x290] sm:$0xff]
    %v202 = vld [vmem:[#allocation5 + $0x298] sm:$0xff]
    %v203 = vld [vmem:[#allocation5 + $0x2a0] sm:$0xff]
    %v204 = vld [vmem:[#allocation5 + $0x2a8] sm:$0xff]
    %v205 = vld [vmem:[#allocation5 + $0x2b0] sm:$0xff]
    %v206 = vld [vmem:[#allocation5 + $0x2b8] sm:$0xff]
    %v207 = vld [vmem:[#allocation5 + $0x2c0] sm:$0xff]
    %v208 = vld [vmem:[#allocation5 + $0x2c8] sm:$0xff]
    %v209 = vld [vmem:[#allocation5 + $0x2d0] sm:$0xff]
    %v210 = vld [vmem:[#allocation5 + $0x2d8] sm:$0xff]
    %v211 = vld [vmem:[#allocation5 + $0x2e0] sm:$0xff]
    %v212 = vld [vmem:[#allocation5 + $0x2e8] sm:$0xff]
    %v213 = vld [vmem:[#allocation5 + $0x2f0] sm:$0xff]
    %v214 = vld [vmem:[#allocation5 + $0x2f8] sm:$0xff]
    %v215 = vld [vmem:[#allocation5 + $0x300] sm:$0xff]
    %v216 = vld [vmem:[#allocation5 + $0x308] sm:$0xff]
    %v217 = vld [vmem:[#allocation5 + $0x310] sm:$0xff]
    %v218 = vld [vmem:[#allocation5 + $0x318] sm:$0xff]
    %v219 = vld [vmem:[#allocation5 + $0x320] sm:$0xff]
    %v220 = vld [vmem:[#allocation5 + $0x328] sm:$0xff]
    %v221 = vld [vmem:[#allocation5 + $0x330] sm:$0xff]
    %v222 = vld [vmem:[#allocation5 + $0x338] sm:$0xff]
    %v223 = vld [vmem:[#allocation5 + $0x340] sm:$0xff]
    %v224 = vld [vmem:[#allocation5 + $0x348] sm:$0xff]
    %v225 = vld [vmem:[#allocation5 + $0x350] sm:$0xff]
    %v226 = vld [vmem:[#allocation5 + $0x358] sm:$0xff]
    %v227 = vld [vmem:[#allocation5 + $0x360] sm:$0xff]
    %v228 = vld [vmem:[#allocation5 + $0x368] sm:$0xff]
    %v229 = vld [vmem:[#allocation5 + $0x370] sm:$0xff]
    %v230 = vld [vmem:[#allocation5 + $0x378] sm:$0xff]
    %v231 = vld [vmem:[#allocation5 + $0x380] sm:$0xff]
    %v232 = vld [vmem:[#allocation5 + $0x388] sm:$0xff]
    %v233 = vld [vmem:[#allocation5 + $0x390] sm:$0xff]
    %v234 = vld [vmem:[#allocation5 + $0x398] sm:$0xff]
    %v235 = vld [vmem:[#allocation5 + $0x3a0] sm:$0xff]
    %v236 = vld [vmem:[#allocation5 + $0x3a8] sm:$0xff]
    %v237 = vld [vmem:[#allocation5 + $0x3b0] sm:$0xff]
    %v238 = vld [vmem:[#allocation5 + $0x3b8] sm:$0xff]
    %v239 = vld [vmem:[#allocation5 + $0x3c0] sm:$0xff]
    %v240 = vld [vmem:[#allocation5 + $0x3c8] sm:$0xff]
    %v241 = vld [vmem:[#allocation5 + $0x3d0] sm:$0xff]
    %v242 = vld [vmem:[#allocation5 + $0x3d8] sm:$0xff]
    %v243 = vld [vmem:[#allocation5 + $0x3e0] sm:$0xff]
    %v244 = vld [vmem:[#allocation5 + $0x3e8] sm:$0xff]
    %v245 = vld [vmem:[#allocation5 + $0x3f0] sm:$0xff]
    %v246 = vld [vmem:[#allocation5 + $0x3f8] sm:$0xff]
    %v247 = vld [vmem:[#allocation5 + $0x400] sm:$0xff]
    %v248 = vld [vmem:[#allocation5 + $0x408] sm:$0xff]
    %v249 = vld [vmem:[#allocation5 + $0x410] sm:$0xff]
    %v250 = vld [vmem:[#allocation5 + $0x418] sm:$0xff]
    %v251 = vld [vmem:[#allocation5 + $0x420] sm:$0xff]
    %v252 = vld [vmem:[#allocation5 + $0x428] sm:$0xff]
    %v253 = vld [vmem:[#allocation5 + $0x430] sm:$0xff]
    %v254 = vld [vmem:[#allocation5 + $0x438] sm:$0xff]
    %v255 = vld [vmem:[#allocation5 + $0x440] sm:$0xff]
    %v256 = vld [vmem:[#allocation5 + $0x448] sm:$0xff]
    %v257 = vld [vmem:[#allocation5 + $0x450] sm:$0xff]
    %v258 = vld [vmem:[#allocation5 + $0x458] sm:$0xff]
    %v259 = vld [vmem:[#allocation5 + $0x460] sm:$0xff]
    %v260 = vld [vmem:[#allocation5 + $0x468] sm:$0xff]
    %v261 = vld [vmem:[#allocation5 + $0x470] sm:$0xff]
    %v262 = vld [vmem:[#allocation5 + $0x478] sm:$0xff]
    %v263 = vld [vmem:[#allocation5 + $0x480] sm:$0xff]
    %v264 = vld [vmem:[#allocation5 + $0x488] sm:$0xff]
    %v265 = vld [vmem:[#allocation5 + $0x490] sm:$0xff]
    %v266 = vld [vmem:[#allocation5 + $0x498] sm:$0xff]
    %v267 = vld [vmem:[#allocation5 + $0x4a0] sm:$0xff]
    %v268 = vld [vmem:[#allocation5 + $0x4a8] sm:$0xff]
    %v269 = vld [vmem:[#allocation5 + $0x4b0] sm:$0xff]
    %v270 = vld [vmem:[#allocation5 + $0x4b8] sm:$0xff]
    %v271 = vld [vmem:[#allocation5 + $0x4c0] sm:$0xff]
    %v272 = vld [vmem:[#allocation5 + $0x4c8] sm:$0xff]
    %v273 = vld [vmem:[#allocation5 + $0x4d0] sm:$0xff]
    %v274 = vld [vmem:[#allocation5 + $0x4d8] sm:$0xff]
    %v275 = vld [vmem:[#allocation5 + $0x4e0] sm:$0xff]
    %v276 = vld [vmem:[#allocation5 + $0x4e8] sm:$0xff]
    %v277 = vld [vmem:[#allocation5 + $0x4f0] sm:$0xff]
    %v278 = vld [vmem:[#allocation5 + $0x4f8] sm:$0xff]
    %v279 = vld [vmem:[#allocation5 + $0x500] sm:$0xff]
    %v280 = vld [vmem:[#allocation5 + $0x508] sm:$0xff]
    %v281 = vld [vmem:[#allocation5 + $0x510] sm:$0xff]
    %v282 = vld [vmem:[#allocation5 + $0x518] sm:$0xff]
    %v283 = vld [vmem:[#allocation5 + $0x520] sm:$0xff]
    %v284 = vld [vmem:[#allocation5 + $0x528] sm:$0xff]
    %v285 = vld [vmem:[#allocation5 + $0x530] sm:$0xff]
    %v286 = vld [vmem:[#allocation5 + $0x538] sm:$0xff]
    %v287 = vld [vmem:[#allocation5 + $0x540] sm:$0xff]
    %v288 = vld [vmem:[#allocation5 + $0x548] sm:$0xff]
    %v289 = vld [vmem:[#allocation5 + $0x550] sm:$0xff]
    %v290 = vld [vmem:[#allocation5 + $0x558] sm:$0xff]
    %v291 = vld [vmem:[#allocation5 + $0x560] sm:$0xff]
    %v292 = vld [vmem:[#allocation5 + $0x568] sm:$0xff]
    %v293 = vld [vmem:[#allocation5 + $0x570] sm:$0xff]
    %v294 = vld [vmem:[#allocation5 + $0x578] sm:$0xff]
    %v295 = vld [vmem:[#allocation5 + $0x580] sm:$0xff]
    %v296 = vld [vmem:[#allocation5 + $0x588] sm:$0xff]
    %v297 = vld [vmem:[#allocation5 + $0x590] sm:$0xff]
    %v298 = vld [vmem:[#allocation5 + $0x598] sm:$0xff]
    %v299 = vld [vmem:[#allocation5 + $0x5a0] sm:$0xff]
    %v300 = vld [vmem:[#allocation5 + $0x5a8] sm:$0xff]
    %v301 = vld [vmem:[#allocation5 + $0x5b0] sm:$0xff]
    %v302 = vld [vmem:[#allocation5 + $0x5b8] sm:$0xff]
    %v303 = vld [vmem:[#allocation5 + $0x5c0] sm:$0xff]
    %v304 = vld [vmem:[#allocation5 + $0x5c8] sm:$0xff]
    %v305 = vld [vmem:[#allocation5 + $0x5d0] sm:$0xff]
    %v306 = vld [vmem:[#allocation5 + $0x5d8] sm:$0xff]
    %v307 = vld [vmem:[#allocation5 + $0x5e0] sm:$0xff]
    %v308 = vld [vmem:[#allocation5 + $0x5e8] sm:$0xff]
    %v309 = vld [vmem:[#allocation5 + $0x5f0] sm:$0xff]
    %v310 = vld [vmem:[#allocation5 + $0x5f8] sm:$0xff]
    %v311 = vld [vmem:[#allocation5 + $0x600] sm:$0xff]
    %v312 = vld [vmem:[#allocation5 + $0x608] sm:$0xff]
    %v313 = vld [vmem:[#allocation5 + $0x610] sm:$0xff]
    %v314 = vld [vmem:[#allocation5 + $0x618] sm:$0xff]
    %v315 = vld [vmem:[#allocation5 + $0x620] sm:$0xff]
    %v316 = vld [vmem:[#allocation5 + $0x628] sm:$0xff]
    %v317 = vld [vmem:[#allocation5 + $0x630] sm:$0xff]
    %v318 = vld [vmem:[#allocation5 + $0x638] sm:$0xff]
    %v319 = vld [vmem:[#allocation5 + $0x640] sm:$0xff]
    %v320 = vld [vmem:[#allocation5 + $0x648] sm:$0xff]
    %v321 = vld [vmem:[#allocation5 + $0x650] sm:$0xff]
    %v322 = vld [vmem:[#allocation5 + $0x658] sm:$0xff]
    %v323 = vld [vmem:[#allocation5 + $0x660] sm:$0xff]
    %v324 = vld [vmem:[#allocation5 + $0x668] sm:$0xff]
    %v325 = vld [vmem:[#allocation5 + $0x670] sm:$0xff]
    %v326 = vld [vmem:[#allocation5 + $0x678] sm:$0xff]
    %v327 = vld [vmem:[#allocation5 + $0x680] sm:$0xff]
    %v328 = vld [vmem:[#allocation5 + $0x688] sm:$0xff]
    %v329 = vld [vmem:[#allocation5 + $0x690] sm:$0xff]
    %v330 = vld [vmem:[#allocation5 + $0x698] sm:$0xff]
    %v331 = vld [vmem:[#allocation5 + $0x6a0] sm:$0xff]
    %v332 = vld [vmem:[#allocation5 + $0x6a8] sm:$0xff]
    %v333 = vld [vmem:[#allocation5 + $0x6b0] sm:$0xff]
    %v334 = vld [vmem:[#allocation5 + $0x6b8] sm:$0xff]
    %v335 = vld [vmem:[#allocation5 + $0x6c0] sm:$0xff]
    %v336 = vld [vmem:[#allocation5 + $0x6c8] sm:$0xff]
    %v337 = vld [vmem:[#allocation5 + $0x6d0] sm:$0xff]
    %v338 = vld [vmem:[#allocation5 + $0x6d8] sm:$0xff]
    %v339 = vld [vmem:[#allocation5 + $0x6e0] sm:$0xff]
    %v340 = vld [vmem:[#allocation5 + $0x6e8] sm:$0xff]
    %v341 = vld [vmem:[#allocation5 + $0x6f0] sm:$0xff]
    %v342 = vld [vmem:[#allocation5 + $0x6f8] sm:$0xff]
    %v343 = vld [vmem:[#allocation5 + $0x700] sm:$0xff]
    %v344 = vld [vmem:[#allocation5 + $0x708] sm:$0xff]
    %v345 = vld [vmem:[#allocation5 + $0x710] sm:$0xff]
    %v346 = vld [vmem:[#allocation5 + $0x718] sm:$0xff]
    %v347 = vld [vmem:[#allocation5 + $0x720] sm:$0xff]
    %v348 = vld [vmem:[#allocation5 + $0x728] sm:$0xff]
    %v349 = vld [vmem:[#allocation5 + $0x730] sm:$0xff]
    %v350 = vld [vmem:[#allocation5 + $0x738] sm:$0xff]
    %v351 = vld [vmem:[#allocation5 + $0x740] sm:$0xff]
    %v352 = vld [vmem:[#allocation5 + $0x748] sm:$0xff]
    %v353 = vld [vmem:[#allocation5 + $0x750] sm:$0xff]
    %v354 = vld [vmem:[#allocation5 + $0x758] sm:$0xff]
    %v355 = vld [vmem:[#allocation5 + $0x760] sm:$0xff]
    %v356 = vld [vmem:[#allocation5 + $0x768] sm:$0xff]
    %v357 = vld [vmem:[#allocation5 + $0x770] sm:$0xff]
    %v358 = vld [vmem:[#allocation5 + $0x778] sm:$0xff]
    %v359 = vld [vmem:[#allocation5 + $0x780] sm:$0xff]
    %v360 = vld [vmem:[#allocation5 + $0x788] sm:$0xff]
    %v361 = vld [vmem:[#allocation5 + $0x790] sm:$0xff]
    %v362 = vld [vmem:[#allocation5 + $0x798] sm:$0xff]
    %v363 = vld [vmem:[#allocation5 + $0x7a0] sm:$0xff]
    %v364 = vld [vmem:[#allocation5 + $0x7a8] sm:$0xff]
    %v365 = vld [vmem:[#allocation5 + $0x7b0] sm:$0xff]
    %v366 = vld [vmem:[#allocation5 + $0x7b8] sm:$0xff]
    %v367 = vld [vmem:[#allocation5 + $0x7c0] sm:$0xff]
    %v368 = vld [vmem:[#allocation5 + $0x7c8] sm:$0xff]
    %v369 = vld [vmem:[#allocation5 + $0x7d0] sm:$0xff]
    %v370 = vld [vmem:[#allocation5 + $0x7d8] sm:$0xff]
    %v371 = vld [vmem:[#allocation5 + $0x7e0] sm:$0xff]
    %v372 = vld [vmem:[#allocation5 + $0x7e8] sm:$0xff]
    %v373 = vld [vmem:[#allocation5 + $0x7f0] sm:$0xff]
    %v374 = vld [vmem:[#allocation5 + $0x7f8] sm:$0xff]
    %v375 = vld [vmem:[#allocation5 + $0x800] sm:$0xff]
    %v376 = vld [vmem:[#allocation5 + $0x808] sm:$0xff]
    %v377 = vld [vmem:[#allocation5 + $0x810] sm:$0xff]
    %v378 = vld [vmem:[#allocation5 + $0x818] sm:$0xff]
    %v379 = vld [vmem:[#allocation5 + $0x820] sm:$0xff]
    %v380 = vld [vmem:[#allocation5 + $0x828] sm:$0xff]
    %v381 = vld [vmem:[#allocation5 + $0x830] sm:$0xff]
    %v382 = vld [vmem:[#allocation5 + $0x838] sm:$0xff]
    %v383 = vld [vmem:[#allocation5 + $0x840] sm:$0xff]
    %v384 = vld [vmem:[#allocation5 + $0x848] sm:$0xff]
    %v385 = vld [vmem:[#allocation5 + $0x850] sm:$0xff]
    %v386 = vld [vmem:[#allocation5 + $0x858] sm:$0xff]
    %v387 = vld [vmem:[#allocation5 + $0x860] sm:$0xff]
    %v388 = vld [vmem:[#allocation5 + $0x868] sm:$0xff]
    %v389 = vld [vmem:[#allocation5 + $0x870] sm:$0xff]
    %v390 = vld [vmem:[#allocation5 + $0x878] sm:$0xff]
    %v391 = vld [vmem:[#allocation5 + $0x880] sm:$0xff]
    %v392 = vld [vmem:[#allocation5 + $0x888] sm:$0xff]
    %v393 = vld [vmem:[#allocation5 + $0x890] sm:$0xff]
    %v394 = vld [vmem:[#allocation5 + $0x898] sm:$0xff]
    %v395 = vld [vmem:[#allocation5 + $0x8a0] sm:$0xff]
    %v396 = vld [vmem:[#allocation5 + $0x8a8] sm:$0xff]
    %v397 = vld [vmem:[#allocation5 + $0x8b0] sm:$0xff]
    %v398 = vld [vmem:[#allocation5 + $0x8b8] sm:$0xff]
    %v399 = vld [vmem:[#allocation5 + $0x8c0] sm:$0xff]
    %v400 = vld [vmem:[#allocation5 + $0x8c8] sm:$0xff]
    %v401 = vld [vmem:[#allocation5 + $0x8d0] sm:$0xff]
    %v402 = vld [vmem:[#allocation5 + $0x8d8] sm:$0xff]
    %v403 = vld [vmem:[#allocation5 + $0x8e0] sm:$0xff]
    %v404 = vld [vmem:[#allocation5 + $0x8e8] sm:$0xff]
    %v405 = vld [vmem:[#allocation5 + $0x8f0] sm:$0xff]
    %v406 = vld [vmem:[#allocation5 + $0x8f8] sm:$0xff]
    %v407 = vld [vmem:[#allocation5 + $0x900] sm:$0xff]
    %v408 = vld [vmem:[#allocation5 + $0x908] sm:$0xff]
    %v409 = vld [vmem:[#allocation5 + $0x910] sm:$0xff]
    %v410 = vld [vmem:[#allocation5 + $0x918] sm:$0xff]
    %v411 = vld [vmem:[#allocation5 + $0x920] sm:$0xff]
    %v412 = vld [vmem:[#allocation5 + $0x928] sm:$0xff]
    %v413 = vld [vmem:[#allocation5 + $0x930] sm:$0xff]
    %v414 = vld [vmem:[#allocation5 + $0x938] sm:$0xff]
    %v415 = vld [vmem:[#allocation5 + $0x940] sm:$0xff]
    %v416 = vld [vmem:[#allocation5 + $0x948] sm:$0xff]
    %v417 = vld [vmem:[#allocation5 + $0x950] sm:$0xff]
    %v418 = vld [vmem:[#allocation5 + $0x958] sm:$0xff]
    %v419 = vld [vmem:[#allocation5 + $0x960] sm:$0xff]
    %v420 = vld [vmem:[#allocation5 + $0x968] sm:$0xff]
    %v421 = vld [vmem:[#allocation5 + $0x970] sm:$0xff]
    %v422 = vld [vmem:[#allocation5 + $0x978] sm:$0xff]
    %v423 = vld [vmem:[#allocation5 + $0x980] sm:$0xff]
    %v424 = vld [vmem:[#allocation5 + $0x988] sm:$0xff]
    %v425 = vld [vmem:[#allocation5 + $0x990] sm:$0xff]
    %v426 = vld [vmem:[#allocation5 + $0x998] sm:$0xff]
    %v427 = vld [vmem:[#allocation5 + $0x9a0] sm:$0xff]
    %v428 = vld [vmem:[#allocation5 + $0x9a8] sm:$0xff]
    %v429 = vld [vmem:[#allocation5 + $0x9b0] sm:$0xff]
    %v430 = vld [vmem:[#allocation5 + $0x9b8] sm:$0xff]
    %v431 = vld [vmem:[#allocation5 + $0x9c0] sm:$0xff]
    %v432 = vld [vmem:[#allocation5 + $0x9c8] sm:$0xff]
    %v433 = vld [vmem:[#allocation5 + $0x9d0] sm:$0xff]
    %v434 = vld [vmem:[#allocation5 + $0x9d8] sm:$0xff]
    %v435 = vld [vmem:[#allocation5 + $0x9e0] sm:$0xff]
    %v436 = vld [vmem:[#allocation5 + $0x9e8] sm:$0xff]
    %v437 = vld [vmem:[#allocation5 + $0x9f0] sm:$0xff]
    %v438 = vld [vmem:[#allocation5 + $0x9f8] sm:$0xff]
    %v439 = vld [vmem:[#allocation5 + $0xa00] sm:$0xff]
    %v440 = vld [vmem:[#allocation5 + $0xa08] sm:$0xff]
    %v441 = vld [vmem:[#allocation5 + $0xa10] sm:$0xff]
    %v442 = vld [vmem:[#allocation5 + $0xa18] sm:$0xff]
    %v443 = vld [vmem:[#allocation5 + $0xa20] sm:$0xff]
    %v444 = vld [vmem:[#allocation5 + $0xa28] sm:$0xff]
    %v445 = vld [vmem:[#allocation5 + $0xa30] sm:$0xff]
    %v446 = vld [vmem:[#allocation5 + $0xa38] sm:$0xff]
    %v447 = vld [vmem:[#allocation5 + $0xa40] sm:$0xff]
    %v448 = vld [vmem:[#allocation5 + $0xa48] sm:$0xff]
    %v449 = vld [vmem:[#allocation5 + $0xa50] sm:$0xff]
    %v450 = vld [vmem:[#allocation5 + $0xa58] sm:$0xff]
    %v451 = vld [vmem:[#allocation5 + $0xa60] sm:$0xff]
    %v452 = vld [vmem:[#allocation5 + $0xa68] sm:$0xff]
    %v453 = vld [vmem:[#allocation5 + $0xa70] sm:$0xff]
    %v454 = vld [vmem:[#allocation5 + $0xa78] sm:$0xff]
    %v455 = vld [vmem:[#allocation5 + $0xa80] sm:$0xff]
    %v456 = vld [vmem:[#allocation5 + $0xa88] sm:$0xff]
    %v457 = vld [vmem:[#allocation5 + $0xa90] sm:$0xff]
    %v458 = vld [vmem:[#allocation5 + $0xa98] sm:$0xff]
    %v459 = vld [vmem:[#allocation5 + $0xaa0] sm:$0xff]
    %v460 = vld [vmem:[#allocation5 + $0xaa8] sm:$0xff]
    %v461 = vld [vmem:[#allocation5 + $0xab0] sm:$0xff]
    %v462 = vld [vmem:[#allocation5 + $0xab8] sm:$0xff]
    %v463 = vld [vmem:[#allocation5 + $0xac0] sm:$0xff]
    %v464 = vld [vmem:[#allocation5 + $0xac8] sm:$0xff]
    %v465 = vld [vmem:[#allocation5 + $0xad0] sm:$0xff]
    %v466 = vld [vmem:[#allocation5 + $0xad8] sm:$0xff]
    %v467 = vld [vmem:[#allocation5 + $0xae0] sm:$0xff]
    %v468 = vld [vmem:[#allocation5 + $0xae8] sm:$0xff]
    %v469 = vld [vmem:[#allocation5 + $0xaf0] sm:$0xff]
    %v470 = vld [vmem:[#allocation5 + $0xaf8] sm:$0xff]
    %v471 = vld [vmem:[#allocation5 + $0xb00] sm:$0xff]
    %v472 = vld [vmem:[#allocation5 + $0xb08] sm:$0xff]
    %v473 = vld [vmem:[#allocation5 + $0xb10] sm:$0xff]
    %v474 = vld [vmem:[#allocation5 + $0xb18] sm:$0xff]
    %v475 = vld [vmem:[#allocation5 + $0xb20] sm:$0xff]
    %v476 = vld [vmem:[#allocation5 + $0xb28] sm:$0xff]
    %v477 = vld [vmem:[#allocation5 + $0xb30] sm:$0xff]
    %v478 = vld [vmem:[#allocation5 + $0xb38] sm:$0xff]
    %v479 = vld [vmem:[#allocation5 + $0xb40] sm:$0xff]
    %v480 = vld [vmem:[#allocation5 + $0xb48] sm:$0xff]
    %v481 = vld [vmem:[#allocation5 + $0xb50] sm:$0xff]
    %v482 = vld [vmem:[#allocation5 + $0xb58] sm:$0xff]
    %v483 = vld [vmem:[#allocation5 + $0xb60] sm:$0xff]
    %v484 = vld [vmem:[#allocation5 + $0xb68] sm:$0xff]
    %v485 = vld [vmem:[#allocation5 + $0xb70] sm:$0xff]
    %v486 = vld [vmem:[#allocation5 + $0xb78] sm:$0xff]
    %v487 = vld [vmem:[#allocation5 + $0xb80] sm:$0xff]
    %v488 = vld [vmem:[#allocation5 + $0xb88] sm:$0xff]
    %v489 = vld [vmem:[#allocation5 + $0xb90] sm:$0xff]
    %v490 = vld [vmem:[#allocation5 + $0xb98] sm:$0xff]
    %v491 = vld [vmem:[#allocation5 + $0xba0] sm:$0xff]
    %v492 = vld [vmem:[#allocation5 + $0xba8] sm:$0xff]
    %v493 = vld [vmem:[#allocation5 + $0xbb0] sm:$0xff]
    %v494 = vld [vmem:[#allocation5 + $0xbb8] sm:$0xff]
    %v495 = vld [vmem:[#allocation5 + $0xbc0] sm:$0xff]
    %v496 = vld [vmem:[#allocation5 + $0xbc8] sm:$0xff]
    %v497 = vld [vmem:[#allocation5 + $0xbd0] sm:$0xff]
    %v498 = vld [vmem:[#allocation5 + $0xbd8] sm:$0xff]
    %v499 = vld [vmem:[#allocation5 + $0xbe0] sm:$0xff]
    %v500 = vld [vmem:[#allocation5 + $0xbe8] sm:$0xff]
    %v501 = vld [vmem:[#allocation5 + $0xbf0] sm:$0xff]
    %v502 = vld [vmem:[#allocation5 + $0xbf8] sm:$0xff]
    %v503 = vld [vmem:[#allocation5 + $0xc00] sm:$0xff]
    %v504 = vld [vmem:[#allocation5 + $0xc08] sm:$0xff]
    %v505 = vld [vmem:[#allocation5 + $0xc10] sm:$0xff]
    %v506 = vld [vmem:[#allocation5 + $0xc18] sm:$0xff]
    %v507 = vld [vmem:[#allocation5 + $0xc20] sm:$0xff]
    %v508 = vld [vmem:[#allocation5 + $0xc28] sm:$0xff]
    %v509 = vld [vmem:[#allocation5 + $0xc30] sm:$0xff]
    %v510 = vld [vmem:[#allocation5 + $0xc38] sm:$0xff]
    %v511 = vld [vmem:[#allocation5 + $0xc40] sm:$0xff]
    %v512 = vld [vmem:[#allocation5 + $0xc48] sm:$0xff]
    %v513 = vld [vmem:[#allocation5 + $0xc50] sm:$0xff]
    %v514 = vld [vmem:[#allocation5 + $0xc58] sm:$0xff]
    %v515 = vld [vmem:[#allocation5 + $0xc60] sm:$0xff]
    %v516 = vld [vmem:[#allocation5 + $0xc68] sm:$0xff]
    %v517 = vld [vmem:[#allocation5 + $0xc70] sm:$0xff]
    %v518 = vld [vmem:[#allocation5 + $0xc78] sm:$0xff]
    %v519 = vld [vmem:[#allocation5 + $0xc80] sm:$0xff]
    %v520 = vld [vmem:[#allocation5 + $0xc88] sm:$0xff]
    %v521 = vld [vmem:[#allocation5 + $0xc90] sm:$0xff]
    %v522 = vld [vmem:[#allocation5 + $0xc98] sm:$0xff]
    %v523 = vld [vmem:[#allocation5 + $0xca0] sm:$0xff]
    %v524 = vld [vmem:[#allocation5 + $0xca8] sm:$0xff]
    %v525 = vld [vmem:[#allocation5 + $0xcb0] sm:$0xff]
    %v526 = vld [vmem:[#allocation5 + $0xcb8] sm:$0xff]
    %v527 = vld [vmem:[#allocation5 + $0xcc0] sm:$0xff]
    %v528 = vld [vmem:[#allocation5 + $0xcc8] sm:$0xff]
    %v529 = vld [vmem:[#allocation5 + $0xcd0] sm:$0xff]
    %v530 = vld [vmem:[#allocation5 + $0xcd8] sm:$0xff]
    %v531 = vld [vmem:[#allocation5 + $0xce0] sm:$0xff]
    %v532 = vld [vmem:[#allocation5 + $0xce8] sm:$0xff]
    %v533 = vld [vmem:[#allocation5 + $0xcf0] sm:$0xff]
    %v534 = vld [vmem:[#allocation5 + $0xcf8] sm:$0xff]
    %v535 = vld [vmem:[#allocation5 + $0xd00] sm:$0xff]
    %v536 = vld [vmem:[#allocation5 + $0xd08] sm:$0xff]
    %v537 = vld [vmem:[#allocation5 + $0xd10] sm:$0xff]
    %v538 = vld [vmem:[#allocation5 + $0xd18] sm:$0xff]
    %v539 = vld [vmem:[#allocation5 + $0xd20] sm:$0xff]
    %v540 = vld [vmem:[#allocation5 + $0xd28] sm:$0xff]
    %v541 = vld [vmem:[#allocation5 + $0xd30] sm:$0xff]
    %v542 = vld [vmem:[#allocation5 + $0xd38] sm:$0xff]
    %v543 = vld [vmem:[#allocation5 + $0xd40] sm:$0xff]
    %v544 = vld [vmem:[#allocation5 + $0xd48] sm:$0xff]
    %v545 = vld [vmem:[#allocation5 + $0xd50] sm:$0xff]
    %v546 = vld [vmem:[#allocation5 + $0xd58] sm:$0xff]
    %v547 = vld [vmem:[#allocation5 + $0xd60] sm:$0xff]
    %v548 = vld [vmem:[#allocation5 + $0xd68] sm:$0xff]
    %v549 = vld [vmem:[#allocation5 + $0xd70] sm:$0xff]
    %v550 = vld [vmem:[#allocation5 + $0xd78] sm:$0xff]
    %v551 = vld [vmem:[#allocation5 + $0xd80] sm:$0xff]
    %v552 = vld [vmem:[#allocation5 + $0xd88] sm:$0xff]
    %v553 = vld [vmem:[#allocation5 + $0xd90] sm:$0xff]
    %v554 = vld [vmem:[#allocation5 + $0xd98] sm:$0xff]
    %v555 = vld [vmem:[#allocation5 + $0xda0] sm:$0xff]
    %v556 = vld [vmem:[#allocation5 + $0xda8] sm:$0xff]
    %v557 = vld [vmem:[#allocation5 + $0xdb0] sm:$0xff]
    %v558 = vld [vmem:[#allocation5 + $0xdb8] sm:$0xff]
    %v559 = vld [vmem:[#allocation5 + $0xdc0] sm:$0xff]
    %v560 = vld [vmem:[#allocation5 + $0xdc8] sm:$0xff]
    %v561 = vld [vmem:[#allocation5 + $0xdd0] sm:$0xff]
    %v562 = vld [vmem:[#allocation5 + $0xdd8] sm:$0xff]
    %v563 = vld [vmem:[#allocation5 + $0xde0] sm:$0xff]
    %v564 = vld [vmem:[#allocation5 + $0xde8] sm:$0xff]
    %v565 = vld [vmem:[#allocation5 + $0xdf0] sm:$0xff]
    %v566 = vld [vmem:[#allocation5 + $0xdf8] sm:$0xff]
    %v567 = vld [vmem:[#allocation5 + $0xe00] sm:$0xff]
    %v568 = vld [vmem:[#allocation5 + $0xe08] sm:$0xff]
    %v569 = vld [vmem:[#allocation5 + $0xe10] sm:$0xff]
    %v570 = vld [vmem:[#allocation5 + $0xe18] sm:$0xff]
    %v571 = vld [vmem:[#allocation5 + $0xe20] sm:$0xff]
    %v572 = vld [vmem:[#allocation5 + $0xe28] sm:$0xff]
    %v573 = vld [vmem:[#allocation5 + $0xe30] sm:$0xff]
    %v574 = vld [vmem:[#allocation5 + $0xe38] sm:$0xff]
    %v575 = vld [vmem:[#allocation5 + $0xe40] sm:$0xff]
    %v576 = vld [vmem:[#allocation5 + $0xe48] sm:$0xff]
    %v577 = vld [vmem:[#allocation5 + $0xe50] sm:$0xff]
    %v578 = vld [vmem:[#allocation5 + $0xe58] sm:$0xff]
    %v579 = vld [vmem:[#allocation5 + $0xe60] sm:$0xff]
    %v580 = vld [vmem:[#allocation5 + $0xe68] sm:$0xff]
    %v581 = vld [vmem:[#allocation5 + $0xe70] sm:$0xff]
    %v582 = vld [vmem:[#allocation5 + $0xe78] sm:$0xff]
    %v583 = vld [vmem:[#allocation5 + $0xe80] sm:$0xff]
    %v584 = vld [vmem:[#allocation5 + $0xe88] sm:$0xff]
    %v585 = vld [vmem:[#allocation5 + $0xe90] sm:$0xff]
    %v586 = vld [vmem:[#allocation5 + $0xe98] sm:$0xff]
    %v587 = vld [vmem:[#allocation5 + $0xea0] sm:$0xff]
    %v588 = vld [vmem:[#allocation5 + $0xea8] sm:$0xff]
    %v589 = vld [vmem:[#allocation5 + $0xeb0] sm:$0xff]
    %v590 = vld [vmem:[#allocation5 + $0xeb8] sm:$0xff]
    %v591 = vld [vmem:[#allocation5 + $0xec0] sm:$0xff]
    %v592 = vld [vmem:[#allocation5 + $0xec8] sm:$0xff]
    %v593 = vld [vmem:[#allocation5 + $0xed0] sm:$0xff]
    %v594 = vld [vmem:[#allocation5 + $0xed8] sm:$0xff]
    %v595 = vld [vmem:[#allocation5 + $0xee0] sm:$0xff]
    %v596 = vld [vmem:[#allocation5 + $0xee8] sm:$0xff]
    %v597 = vld [vmem:[#allocation5 + $0xef0] sm:$0xff]
    %v598 = vld [vmem:[#allocation5 + $0xef8] sm:$0xff]
    %v599 = vld [vmem:[#allocation5 + $0xf00] sm:$0xff]
    %v600 = vld [vmem:[#allocation5 + $0xf08] sm:$0xff]
    %v601 = vld [vmem:[#allocation5 + $0xf10] sm:$0xff]
    %v602 = vld [vmem:[#allocation5 + $0xf18] sm:$0xff]
    %v603 = vld [vmem:[#allocation5 + $0xf20] sm:$0xff]
    %v604 = vld [vmem:[#allocation5 + $0xf28] sm:$0xff]
    %v605 = vld [vmem:[#allocation5 + $0xf30] sm:$0xff]
    %v606 = vld [vmem:[#allocation5 + $0xf38] sm:$0xff]
    %v607 = vld [vmem:[#allocation5 + $0xf40] sm:$0xff]
    %v608 = vld [vmem:[#allocation5 + $0xf48] sm:$0xff]
    %v609 = vld [vmem:[#allocation5 + $0xf50] sm:$0xff]
    %v610 = vld [vmem:[#allocation5 + $0xf58] sm:$0xff]
    %v611 = vld [vmem:[#allocation5 + $0xf60] sm:$0xff]
    %v612 = vld [vmem:[#allocation5 + $0xf68] sm:$0xff]
    %v613 = vld [vmem:[#allocation5 + $0xf70] sm:$0xff]
    %v614 = vld [vmem:[#allocation5 + $0xf78] sm:$0xff]
    %v615 = vld [vmem:[#allocation5 + $0xf80] sm:$0xff]
    %v616 = vld [vmem:[#allocation5 + $0xf88] sm:$0xff]
    %v617 = vld [vmem:[#allocation5 + $0xf90] sm:$0xff]
    %v618 = vld [vmem:[#allocation5 + $0xf98] sm:$0xff]
    %v619 = vld [vmem:[#allocation5 + $0xfa0] sm:$0xff]
    %v620 = vld [vmem:[#allocation5 + $0xfa8] sm:$0xff]
    %v621 = vld [vmem:[#allocation5 + $0xfb0] sm:$0xff]
    %v622 = vld [vmem:[#allocation5 + $0xfb8] sm:$0xff]
    %v623 = vld [vmem:[#allocation5 + $0xfc0] sm:$0xff]
    %v624 = vld [vmem:[#allocation5 + $0xfc8] sm:$0xff]
    %v625 = vld [vmem:[#allocation5 + $0xfd0] sm:$0xff]
    %v626 = vld [vmem:[#allocation5 + $0xfd8] sm:$0xff]
    %v627 = vld [vmem:[#allocation5 + $0xfe0] sm:$0xff]
    %v628 = vld [vmem:[#allocation5 + $0xfe8] sm:$0xff]
    %v629 = vld [vmem:[#allocation5 + $0xff0] sm:$0xff]
    %v630 = vld [vmem:[#allocation5 + $0xff8] sm:$0xff]
    %v631 = vld [vmem:[#allocation7] sm:$0xff]
    %v633 = vlaneseq
    %v634 = vshrl.u32 %v633, 7
    %v635 = vsub.s32 0, %v634
    %v636 = vrot.slane %v631, %v635
    %v637 = vlaneseq
    %v638 = vshrl.u32 %v637, 7
    %v639 = vsub.s32 1, %v638
    %v640 = vrot.slane %v631, %v639
    %v641 = vlaneseq
    %v642 = vshrl.u32 %v641, 7
    %v643 = vsub.s32 2, %v642
    %v644 = vrot.slane %v631, %v643
    %v645 = vlaneseq
    %v646 = vshrl.u32 %v645, 7
    %v647 = vsub.s32 3, %v646
    %v648 = vrot.slane %v631, %v647
    %v649 = vlaneseq
    %v650 = vshrl.u32 %v649, 7
    %v651 = vsub.s32 4, %v650
    %v652 = vrot.slane %v631, %v651
    %v653 = vlaneseq
    %v654 = vshrl.u32 %v653, 7
    %v655 = vsub.s32 5, %v654
    %v656 = vrot.slane %v631, %v655
    %v657 = vlaneseq
    %v658 = vshrl.u32 %v657, 7
    %v659 = vsub.s32 6, %v658
    %v660 = vrot.slane %v631, %v659
    %v661 = vlaneseq
    %v662 = vshrl.u32 %v661, 7
    %v663 = vsub.s32 7, %v662
    %v664 = vrot.slane %v631, %v663
    %v677 = vunpack.c.l.b16 %v115
    %v678 = vunpack.c.h.b16 %v115
    %v679 = vunpack.c.l.b16 %v116
    %v680 = vunpack.c.h.b16 %v116
    %v681 = vunpack.c.l.b16 %v117
    %v682 = vunpack.c.h.b16 %v117
    %v683 = vunpack.c.l.b16 %v118
    %v684 = vunpack.c.h.b16 %v118
    %v685 = vpack.c.b16 %v677, %v677
    %v686 = vpack.c.b16 %v678, %v678
    %v687 = vpack.c.b16 %v679, %v679
    %v688 = vpack.c.b16 %v680, %v680
    %v689 = vpack.c.b16 %v681, %v681
    %v690 = vpack.c.b16 %v682, %v682
    %v691 = vpack.c.b16 %v683, %v683
    %v692 = vpack.c.b16 %v684, %v684
    %v1213 = vunpack.c.l.b16 %v119
    %v1214 = vunpack.c.h.b16 %v119
    %v1215 = vunpack.c.l.b16 %v120
    %v1216 = vunpack.c.h.b16 %v120
    %v1217 = vunpack.c.l.b16 %v121
    %v1218 = vunpack.c.h.b16 %v121
    %v1219 = vunpack.c.l.b16 %v122
    %v1220 = vunpack.c.h.b16 %v122
    %v1221 = vunpack.c.l.b16 %v123
    %v1222 = vunpack.c.h.b16 %v123
    %v1223 = vunpack.c.l.b16 %v124
    %v1224 = vunpack.c.h.b16 %v124
    %v1225 = vunpack.c.l.b16 %v125
    %v1226 = vunpack.c.h.b16 %v125
    %v1227 = vunpack.c.l.b16 %v126
    %v1228 = vunpack.c.h.b16 %v126
    %v1229 = vunpack.c.l.b16 %v127
    %v1230 = vunpack.c.h.b16 %v127
    %v1231 = vunpack.c.l.b16 %v128
    %v1232 = vunpack.c.h.b16 %v128
    %v1233 = vunpack.c.l.b16 %v129
    %v1234 = vunpack.c.h.b16 %v129
    %v1235 = vunpack.c.l.b16 %v130
    %v1236 = vunpack.c.h.b16 %v130
    %v1237 = vunpack.c.l.b16 %v131
    %v1238 = vunpack.c.h.b16 %v131
    %v1239 = vunpack.c.l.b16 %v132
    %v1240 = vunpack.c.h.b16 %v132
    %v1241 = vunpack.c.l.b16 %v133
    %v1242 = vunpack.c.h.b16 %v133
    %v1243 = vunpack.c.l.b16 %v134
    %v1244 = vunpack.c.h.b16 %v134
    %v1245 = vunpack.c.l.b16 %v135
    %v1246 = vunpack.c.h.b16 %v135
    %v1247 = vunpack.c.l.b16 %v136
    %v1248 = vunpack.c.h.b16 %v136
    %v1249 = vunpack.c.l.b16 %v137
    %v1250 = vunpack.c.h.b16 %v137
    %v1251 = vunpack.c.l.b16 %v138
    %v1252 = vunpack.c.h.b16 %v138
    %v1253 = vunpack.c.l.b16 %v139
    %v1254 = vunpack.c.h.b16 %v139
    %v1255 = vunpack.c.l.b16 %v140
    %v1256 = vunpack.c.h.b16 %v140
    %v1257 = vunpack.c.l.b16 %v141
    %v1258 = vunpack.c.h.b16 %v141
    %v1259 = vunpack.c.l.b16 %v142
    %v1260 = vunpack.c.h.b16 %v142
    %v1261 = vunpack.c.l.b16 %v143
    %v1262 = vunpack.c.h.b16 %v143
    %v1263 = vunpack.c.l.b16 %v144
    %v1264 = vunpack.c.h.b16 %v144
    %v1265 = vunpack.c.l.b16 %v145
    %v1266 = vunpack.c.h.b16 %v145
    %v1267 = vunpack.c.l.b16 %v146
    %v1268 = vunpack.c.h.b16 %v146
    %v1269 = vunpack.c.l.b16 %v147
    %v1270 = vunpack.c.h.b16 %v147
    %v1271 = vunpack.c.l.b16 %v148
    %v1272 = vunpack.c.h.b16 %v148
    %v1273 = vunpack.c.l.b16 %v149
    %v1274 = vunpack.c.h.b16 %v149
    %v1275 = vunpack.c.l.b16 %v150
    %v1276 = vunpack.c.h.b16 %v150
    %v1277 = vunpack.c.l.b16 %v151
    %v1278 = vunpack.c.h.b16 %v151
    %v1279 = vunpack.c.l.b16 %v152
    %v1280 = vunpack.c.h.b16 %v152
    %v1281 = vunpack.c.l.b16 %v153
    %v1282 = vunpack.c.h.b16 %v153
    %v1283 = vunpack.c.l.b16 %v154
    %v1284 = vunpack.c.h.b16 %v154
    %v1285 = vunpack.c.l.b16 %v155
    %v1286 = vunpack.c.h.b16 %v155
    %v1287 = vunpack.c.l.b16 %v156
    %v1288 = vunpack.c.h.b16 %v156
    %v1289 = vunpack.c.l.b16 %v157
    %v1290 = vunpack.c.h.b16 %v157
    %v1291 = vunpack.c.l.b16 %v158
    %v1292 = vunpack.c.h.b16 %v158
    %v1293 = vunpack.c.l.b16 %v159
    %v1294 = vunpack.c.h.b16 %v159
    %v1295 = vunpack.c.l.b16 %v160
    %v1296 = vunpack.c.h.b16 %v160
    %v1297 = vunpack.c.l.b16 %v161
    %v1298 = vunpack.c.h.b16 %v161
    %v1299 = vunpack.c.l.b16 %v162
    %v1300 = vunpack.c.h.b16 %v162
    %v1301 = vunpack.c.l.b16 %v163
    %v1302 = vunpack.c.h.b16 %v163
    %v1303 = vunpack.c.l.b16 %v164
    %v1304 = vunpack.c.h.b16 %v164
    %v1305 = vunpack.c.l.b16 %v165
    %v1306 = vunpack.c.h.b16 %v165
    %v1307 = vunpack.c.l.b16 %v166
    %v1308 = vunpack.c.h.b16 %v166
    %v1309 = vunpack.c.l.b16 %v167
    %v1310 = vunpack.c.h.b16 %v167
    %v1311 = vunpack.c.l.b16 %v168
    %v1312 = vunpack.c.h.b16 %v168
    %v1313 = vunpack.c.l.b16 %v169
    %v1314 = vunpack.c.h.b16 %v169
    %v1315 = vunpack.c.l.b16 %v170
    %v1316 = vunpack.c.h.b16 %v170
    %v1317 = vunpack.c.l.b16 %v171
    %v1318 = vunpack.c.h.b16 %v171
    %v1319 = vunpack.c.l.b16 %v172
    %v1320 = vunpack.c.h.b16 %v172
    %v1321 = vunpack.c.l.b16 %v173
    %v1322 = vunpack.c.h.b16 %v173
    %v1323 = vunpack.c.l.b16 %v174
    %v1324 = vunpack.c.h.b16 %v174
    %v1325 = vunpack.c.l.b16 %v175
    %v1326 = vunpack.c.h.b16 %v175
    %v1327 = vunpack.c.l.b16 %v176
    %v1328 = vunpack.c.h.b16 %v176
    %v1329 = vunpack.c.l.b16 %v177
    %v1330 = vunpack.c.h.b16 %v177
    %v1331 = vunpack.c.l.b16 %v178
    %v1332 = vunpack.c.h.b16 %v178
    %v1333 = vunpack.c.l.b16 %v179
    %v1334 = vunpack.c.h.b16 %v179
    %v1335 = vunpack.c.l.b16 %v180
    %v1336 = vunpack.c.h.b16 %v180
    %v1337 = vunpack.c.l.b16 %v181
    %v1338 = vunpack.c.h.b16 %v181
    %v1339 = vunpack.c.l.b16 %v182
    %v1340 = vunpack.c.h.b16 %v182
    %v1341 = vunpack.c.l.b16 %v183
    %v1342 = vunpack.c.h.b16 %v183
    %v1343 = vunpack.c.l.b16 %v184
    %v1344 = vunpack.c.h.b16 %v184
    %v1345 = vunpack.c.l.b16 %v185
    %v1346 = vunpack.c.h.b16 %v185
    %v1347 = vunpack.c.l.b16 %v186
    %v1348 = vunpack.c.h.b16 %v186
    %v1349 = vunpack.c.l.b16 %v187
    %v1350 = vunpack.c.h.b16 %v187
    %v1351 = vunpack.c.l.b16 %v188
    %v1352 = vunpack.c.h.b16 %v188
    %v1353 = vunpack.c.l.b16 %v189
    %v1354 = vunpack.c.h.b16 %v189
    %v1355 = vunpack.c.l.b16 %v190
    %v1356 = vunpack.c.h.b16 %v190
    %v1357 = vunpack.c.l.b16 %v191
    %v1358 = vunpack.c.h.b16 %v191
    %v1359 = vunpack.c.l.b16 %v192
    %v1360 = vunpack.c.h.b16 %v192
    %v1361 = vunpack.c.l.b16 %v193
    %v1362 = vunpack.c.h.b16 %v193
    %v1363 = vunpack.c.l.b16 %v194
    %v1364 = vunpack.c.h.b16 %v194
    %v1365 = vunpack.c.l.b16 %v195
    %v1366 = vunpack.c.h.b16 %v195
    %v1367 = vunpack.c.l.b16 %v196
    %v1368 = vunpack.c.h.b16 %v196
    %v1369 = vunpack.c.l.b16 %v197
    %v1370 = vunpack.c.h.b16 %v197
    %v1371 = vunpack.c.l.b16 %v198
    %v1372 = vunpack.c.h.b16 %v198
    %v1373 = vunpack.c.l.b16 %v199
    %v1374 = vunpack.c.h.b16 %v199
    %v1375 = vunpack.c.l.b16 %v200
    %v1376 = vunpack.c.h.b16 %v200
    %v1377 = vunpack.c.l.b16 %v201
    %v1378 = vunpack.c.h.b16 %v201
    %v1379 = vunpack.c.l.b16 %v202
    %v1380 = vunpack.c.h.b16 %v202
    %v1381 = vunpack.c.l.b16 %v203
    %v1382 = vunpack.c.h.b16 %v203
    %v1383 = vunpack.c.l.b16 %v204
    %v1384 = vunpack.c.h.b16 %v204
    %v1385 = vunpack.c.l.b16 %v205
    %v1386 = vunpack.c.h.b16 %v205
    %v1387 = vunpack.c.l.b16 %v206
    %v1388 = vunpack.c.h.b16 %v206
    %v1389 = vunpack.c.l.b16 %v207
    %v1390 = vunpack.c.h.b16 %v207
    %v1391 = vunpack.c.l.b16 %v208
    %v1392 = vunpack.c.h.b16 %v208
    %v1393 = vunpack.c.l.b16 %v209
    %v1394 = vunpack.c.h.b16 %v209
    %v1395 = vunpack.c.l.b16 %v210
    %v1396 = vunpack.c.h.b16 %v210
    %v1397 = vunpack.c.l.b16 %v211
    %v1398 = vunpack.c.h.b16 %v211
    %v1399 = vunpack.c.l.b16 %v212
    %v1400 = vunpack.c.h.b16 %v212
    %v1401 = vunpack.c.l.b16 %v213
    %v1402 = vunpack.c.h.b16 %v213
    %v1403 = vunpack.c.l.b16 %v214
    %v1404 = vunpack.c.h.b16 %v214
    %v1405 = vunpack.c.l.b16 %v215
    %v1406 = vunpack.c.h.b16 %v215
    %v1407 = vunpack.c.l.b16 %v216
    %v1408 = vunpack.c.h.b16 %v216
    %v1409 = vunpack.c.l.b16 %v217
    %v1410 = vunpack.c.h.b16 %v217
    %v1411 = vunpack.c.l.b16 %v218
    %v1412 = vunpack.c.h.b16 %v218
    %v1413 = vunpack.c.l.b16 %v219
    %v1414 = vunpack.c.h.b16 %v219
    %v1415 = vunpack.c.l.b16 %v220
    %v1416 = vunpack.c.h.b16 %v220
    %v1417 = vunpack.c.l.b16 %v221
    %v1418 = vunpack.c.h.b16 %v221
    %v1419 = vunpack.c.l.b16 %v222
    %v1420 = vunpack.c.h.b16 %v222
    %v1421 = vunpack.c.l.b16 %v223
    %v1422 = vunpack.c.h.b16 %v223
    %v1423 = vunpack.c.l.b16 %v224
    %v1424 = vunpack.c.h.b16 %v224
    %v1425 = vunpack.c.l.b16 %v225
    %v1426 = vunpack.c.h.b16 %v225
    %v1427 = vunpack.c.l.b16 %v226
    %v1428 = vunpack.c.h.b16 %v226
    %v1429 = vunpack.c.l.b16 %v227
    %v1430 = vunpack.c.h.b16 %v227
    %v1431 = vunpack.c.l.b16 %v228
    %v1432 = vunpack.c.h.b16 %v228
    %v1433 = vunpack.c.l.b16 %v229
    %v1434 = vunpack.c.h.b16 %v229
    %v1435 = vunpack.c.l.b16 %v230
    %v1436 = vunpack.c.h.b16 %v230
    %v1437 = vunpack.c.l.b16 %v231
    %v1438 = vunpack.c.h.b16 %v231
    %v1439 = vunpack.c.l.b16 %v232
    %v1440 = vunpack.c.h.b16 %v232
    %v1441 = vunpack.c.l.b16 %v233
    %v1442 = vunpack.c.h.b16 %v233
    %v1443 = vunpack.c.l.b16 %v234
    %v1444 = vunpack.c.h.b16 %v234
    %v1445 = vunpack.c.l.b16 %v235
    %v1446 = vunpack.c.h.b16 %v235
    %v1447 = vunpack.c.l.b16 %v236
    %v1448 = vunpack.c.h.b16 %v236
    %v1449 = vunpack.c.l.b16 %v237
    %v1450 = vunpack.c.h.b16 %v237
    %v1451 = vunpack.c.l.b16 %v238
    %v1452 = vunpack.c.h.b16 %v238
    %v1453 = vunpack.c.l.b16 %v239
    %v1454 = vunpack.c.h.b16 %v239
    %v1455 = vunpack.c.l.b16 %v240
    %v1456 = vunpack.c.h.b16 %v240
    %v1457 = vunpack.c.l.b16 %v241
    %v1458 = vunpack.c.h.b16 %v241
    %v1459 = vunpack.c.l.b16 %v242
    %v1460 = vunpack.c.h.b16 %v242
    %v1461 = vunpack.c.l.b16 %v243
    %v1462 = vunpack.c.h.b16 %v243
    %v1463 = vunpack.c.l.b16 %v244
    %v1464 = vunpack.c.h.b16 %v244
    %v1465 = vunpack.c.l.b16 %v245
    %v1466 = vunpack.c.h.b16 %v245
    %v1467 = vunpack.c.l.b16 %v246
    %v1468 = vunpack.c.h.b16 %v246
    %v1469 = vunpack.c.l.b16 %v247
    %v1470 = vunpack.c.h.b16 %v247
    %v1471 = vunpack.c.l.b16 %v248
    %v1472 = vunpack.c.h.b16 %v248
    %v1473 = vunpack.c.l.b16 %v249
    %v1474 = vunpack.c.h.b16 %v249
    %v1475 = vunpack.c.l.b16 %v250
    %v1476 = vunpack.c.h.b16 %v250
    %v1477 = vunpack.c.l.b16 %v251
    %v1478 = vunpack.c.h.b16 %v251
    %v1479 = vunpack.c.l.b16 %v252
    %v1480 = vunpack.c.h.b16 %v252
    %v1481 = vunpack.c.l.b16 %v253
    %v1482 = vunpack.c.h.b16 %v253
    %v1483 = vunpack.c.l.b16 %v254
    %v1484 = vunpack.c.h.b16 %v254
    %v1485 = vunpack.c.l.b16 %v255
    %v1486 = vunpack.c.h.b16 %v255
    %v1487 = vunpack.c.l.b16 %v256
    %v1488 = vunpack.c.h.b16 %v256
    %v1489 = vunpack.c.l.b16 %v257
    %v1490 = vunpack.c.h.b16 %v257
    %v1491 = vunpack.c.l.b16 %v258
    %v1492 = vunpack.c.h.b16 %v258
    %v1493 = vunpack.c.l.b16 %v259
    %v1494 = vunpack.c.h.b16 %v259
    %v1495 = vunpack.c.l.b16 %v260
    %v1496 = vunpack.c.h.b16 %v260
    %v1497 = vunpack.c.l.b16 %v261
    %v1498 = vunpack.c.h.b16 %v261
    %v1499 = vunpack.c.l.b16 %v262
    %v1500 = vunpack.c.h.b16 %v262
    %v1501 = vunpack.c.l.b16 %v263
    %v1502 = vunpack.c.h.b16 %v263
    %v1503 = vunpack.c.l.b16 %v264
    %v1504 = vunpack.c.h.b16 %v264
    %v1505 = vunpack.c.l.b16 %v265
    %v1506 = vunpack.c.h.b16 %v265
    %v1507 = vunpack.c.l.b16 %v266
    %v1508 = vunpack.c.h.b16 %v266
    %v1509 = vunpack.c.l.b16 %v267
    %v1510 = vunpack.c.h.b16 %v267
    %v1511 = vunpack.c.l.b16 %v268
    %v1512 = vunpack.c.h.b16 %v268
    %v1513 = vunpack.c.l.b16 %v269
    %v1514 = vunpack.c.h.b16 %v269
    %v1515 = vunpack.c.l.b16 %v270
    %v1516 = vunpack.c.h.b16 %v270
    %v1517 = vunpack.c.l.b16 %v271
    %v1518 = vunpack.c.h.b16 %v271
    %v1519 = vunpack.c.l.b16 %v272
    %v1520 = vunpack.c.h.b16 %v272
    %v1521 = vunpack.c.l.b16 %v273
    %v1522 = vunpack.c.h.b16 %v273
    %v1523 = vunpack.c.l.b16 %v274
    %v1524 = vunpack.c.h.b16 %v274
    %v1525 = vunpack.c.l.b16 %v275
    %v1526 = vunpack.c.h.b16 %v275
    %v1527 = vunpack.c.l.b16 %v276
    %v1528 = vunpack.c.h.b16 %v276
    %v1529 = vunpack.c.l.b16 %v277
    %v1530 = vunpack.c.h.b16 %v277
    %v1531 = vunpack.c.l.b16 %v278
    %v1532 = vunpack.c.h.b16 %v278
    %v1533 = vunpack.c.l.b16 %v279
    %v1534 = vunpack.c.h.b16 %v279
    %v1535 = vunpack.c.l.b16 %v280
    %v1536 = vunpack.c.h.b16 %v280
    %v1537 = vunpack.c.l.b16 %v281
    %v1538 = vunpack.c.h.b16 %v281
    %v1539 = vunpack.c.l.b16 %v282
    %v1540 = vunpack.c.h.b16 %v282
    %v1541 = vunpack.c.l.b16 %v283
    %v1542 = vunpack.c.h.b16 %v283
    %v1543 = vunpack.c.l.b16 %v284
    %v1544 = vunpack.c.h.b16 %v284
    %v1545 = vunpack.c.l.b16 %v285
    %v1546 = vunpack.c.h.b16 %v285
    %v1547 = vunpack.c.l.b16 %v286
    %v1548 = vunpack.c.h.b16 %v286
    %v1549 = vunpack.c.l.b16 %v287
    %v1550 = vunpack.c.h.b16 %v287
    %v1551 = vunpack.c.l.b16 %v288
    %v1552 = vunpack.c.h.b16 %v288
    %v1553 = vunpack.c.l.b16 %v289
    %v1554 = vunpack.c.h.b16 %v289
    %v1555 = vunpack.c.l.b16 %v290
    %v1556 = vunpack.c.h.b16 %v290
    %v1557 = vunpack.c.l.b16 %v291
    %v1558 = vunpack.c.h.b16 %v291
    %v1559 = vunpack.c.l.b16 %v292
    %v1560 = vunpack.c.h.b16 %v292
    %v1561 = vunpack.c.l.b16 %v293
    %v1562 = vunpack.c.h.b16 %v293
    %v1563 = vunpack.c.l.b16 %v294
    %v1564 = vunpack.c.h.b16 %v294
    %v1565 = vunpack.c.l.b16 %v295
    %v1566 = vunpack.c.h.b16 %v295
    %v1567 = vunpack.c.l.b16 %v296
    %v1568 = vunpack.c.h.b16 %v296
    %v1569 = vunpack.c.l.b16 %v297
    %v1570 = vunpack.c.h.b16 %v297
    %v1571 = vunpack.c.l.b16 %v298
    %v1572 = vunpack.c.h.b16 %v298
    %v1573 = vunpack.c.l.b16 %v299
    %v1574 = vunpack.c.h.b16 %v299
    %v1575 = vunpack.c.l.b16 %v300
    %v1576 = vunpack.c.h.b16 %v300
    %v1577 = vunpack.c.l.b16 %v301
    %v1578 = vunpack.c.h.b16 %v301
    %v1579 = vunpack.c.l.b16 %v302
    %v1580 = vunpack.c.h.b16 %v302
    %v1581 = vunpack.c.l.b16 %v303
    %v1582 = vunpack.c.h.b16 %v303
    %v1583 = vunpack.c.l.b16 %v304
    %v1584 = vunpack.c.h.b16 %v304
    %v1585 = vunpack.c.l.b16 %v305
    %v1586 = vunpack.c.h.b16 %v305
    %v1587 = vunpack.c.l.b16 %v306
    %v1588 = vunpack.c.h.b16 %v306
    %v1589 = vunpack.c.l.b16 %v307
    %v1590 = vunpack.c.h.b16 %v307
    %v1591 = vunpack.c.l.b16 %v308
    %v1592 = vunpack.c.h.b16 %v308
    %v1593 = vunpack.c.l.b16 %v309
    %v1594 = vunpack.c.h.b16 %v309
    %v1595 = vunpack.c.l.b16 %v310
    %v1596 = vunpack.c.h.b16 %v310
    %v1597 = vunpack.c.l.b16 %v311
    %v1598 = vunpack.c.h.b16 %v311
    %v1599 = vunpack.c.l.b16 %v312
    %v1600 = vunpack.c.h.b16 %v312
    %v1601 = vunpack.c.l.b16 %v313
    %v1602 = vunpack.c.h.b16 %v313
    %v1603 = vunpack.c.l.b16 %v314
    %v1604 = vunpack.c.h.b16 %v314
    %v1605 = vunpack.c.l.b16 %v315
    %v1606 = vunpack.c.h.b16 %v315
    %v1607 = vunpack.c.l.b16 %v316
    %v1608 = vunpack.c.h.b16 %v316
    %v1609 = vunpack.c.l.b16 %v317
    %v1610 = vunpack.c.h.b16 %v317
    %v1611 = vunpack.c.l.b16 %v318
    %v1612 = vunpack.c.h.b16 %v318
    %v1613 = vunpack.c.l.b16 %v319
    %v1614 = vunpack.c.h.b16 %v319
    %v1615 = vunpack.c.l.b16 %v320
    %v1616 = vunpack.c.h.b16 %v320
    %v1617 = vunpack.c.l.b16 %v321
    %v1618 = vunpack.c.h.b16 %v321
    %v1619 = vunpack.c.l.b16 %v322
    %v1620 = vunpack.c.h.b16 %v322
    %v1621 = vunpack.c.l.b16 %v323
    %v1622 = vunpack.c.h.b16 %v323
    %v1623 = vunpack.c.l.b16 %v324
    %v1624 = vunpack.c.h.b16 %v324
    %v1625 = vunpack.c.l.b16 %v325
    %v1626 = vunpack.c.h.b16 %v325
    %v1627 = vunpack.c.l.b16 %v326
    %v1628 = vunpack.c.h.b16 %v326
    %v1629 = vunpack.c.l.b16 %v327
    %v1630 = vunpack.c.h.b16 %v327
    %v1631 = vunpack.c.l.b16 %v328
    %v1632 = vunpack.c.h.b16 %v328
    %v1633 = vunpack.c.l.b16 %v329
    %v1634 = vunpack.c.h.b16 %v329
    %v1635 = vunpack.c.l.b16 %v330
    %v1636 = vunpack.c.h.b16 %v330
    %v1637 = vunpack.c.l.b16 %v331
    %v1638 = vunpack.c.h.b16 %v331
    %v1639 = vunpack.c.l.b16 %v332
    %v1640 = vunpack.c.h.b16 %v332
    %v1641 = vunpack.c.l.b16 %v333
    %v1642 = vunpack.c.h.b16 %v333
    %v1643 = vunpack.c.l.b16 %v334
    %v1644 = vunpack.c.h.b16 %v334
    %v1645 = vunpack.c.l.b16 %v335
    %v1646 = vunpack.c.h.b16 %v335
    %v1647 = vunpack.c.l.b16 %v336
    %v1648 = vunpack.c.h.b16 %v336
    %v1649 = vunpack.c.l.b16 %v337
    %v1650 = vunpack.c.h.b16 %v337
    %v1651 = vunpack.c.l.b16 %v338
    %v1652 = vunpack.c.h.b16 %v338
    %v1653 = vunpack.c.l.b16 %v339
    %v1654 = vunpack.c.h.b16 %v339
    %v1655 = vunpack.c.l.b16 %v340
    %v1656 = vunpack.c.h.b16 %v340
    %v1657 = vunpack.c.l.b16 %v341
    %v1658 = vunpack.c.h.b16 %v341
    %v1659 = vunpack.c.l.b16 %v342
    %v1660 = vunpack.c.h.b16 %v342
    %v1661 = vunpack.c.l.b16 %v343
    %v1662 = vunpack.c.h.b16 %v343
    %v1663 = vunpack.c.l.b16 %v344
    %v1664 = vunpack.c.h.b16 %v344
    %v1665 = vunpack.c.l.b16 %v345
    %v1666 = vunpack.c.h.b16 %v345
    %v1667 = vunpack.c.l.b16 %v346
    %v1668 = vunpack.c.h.b16 %v346
    %v1669 = vunpack.c.l.b16 %v347
    %v1670 = vunpack.c.h.b16 %v347
    %v1671 = vunpack.c.l.b16 %v348
    %v1672 = vunpack.c.h.b16 %v348
    %v1673 = vunpack.c.l.b16 %v349
    %v1674 = vunpack.c.h.b16 %v349
    %v1675 = vunpack.c.l.b16 %v350
    %v1676 = vunpack.c.h.b16 %v350
    %v1677 = vunpack.c.l.b16 %v351
    %v1678 = vunpack.c.h.b16 %v351
    %v1679 = vunpack.c.l.b16 %v352
    %v1680 = vunpack.c.h.b16 %v352
    %v1681 = vunpack.c.l.b16 %v353
    %v1682 = vunpack.c.h.b16 %v353
    %v1683 = vunpack.c.l.b16 %v354
    %v1684 = vunpack.c.h.b16 %v354
    %v1685 = vunpack.c.l.b16 %v355
    %v1686 = vunpack.c.h.b16 %v355
    %v1687 = vunpack.c.l.b16 %v356
    %v1688 = vunpack.c.h.b16 %v356
    %v1689 = vunpack.c.l.b16 %v357
    %v1690 = vunpack.c.h.b16 %v357
    %v1691 = vunpack.c.l.b16 %v358
    %v1692 = vunpack.c.h.b16 %v358
    %v1693 = vunpack.c.l.b16 %v359
    %v1694 = vunpack.c.h.b16 %v359
    %v1695 = vunpack.c.l.b16 %v360
    %v1696 = vunpack.c.h.b16 %v360
    %v1697 = vunpack.c.l.b16 %v361
    %v1698 = vunpack.c.h.b16 %v361
    %v1699 = vunpack.c.l.b16 %v362
    %v1700 = vunpack.c.h.b16 %v362
    %v1701 = vunpack.c.l.b16 %v363
    %v1702 = vunpack.c.h.b16 %v363
    %v1703 = vunpack.c.l.b16 %v364
    %v1704 = vunpack.c.h.b16 %v364
    %v1705 = vunpack.c.l.b16 %v365
    %v1706 = vunpack.c.h.b16 %v365
    %v1707 = vunpack.c.l.b16 %v366
    %v1708 = vunpack.c.h.b16 %v366
    %v1709 = vunpack.c.l.b16 %v367
    %v1710 = vunpack.c.h.b16 %v367
    %v1711 = vunpack.c.l.b16 %v368
    %v1712 = vunpack.c.h.b16 %v368
    %v1713 = vunpack.c.l.b16 %v369
    %v1714 = vunpack.c.h.b16 %v369
    %v1715 = vunpack.c.l.b16 %v370
    %v1716 = vunpack.c.h.b16 %v370
    %v1717 = vunpack.c.l.b16 %v371
    %v1718 = vunpack.c.h.b16 %v371
    %v1719 = vunpack.c.l.b16 %v372
    %v1720 = vunpack.c.h.b16 %v372
    %v1721 = vunpack.c.l.b16 %v373
    %v1722 = vunpack.c.h.b16 %v373
    %v1723 = vunpack.c.l.b16 %v374
    %v1724 = vunpack.c.h.b16 %v374
    %v1725 = vunpack.c.l.b16 %v375
    %v1726 = vunpack.c.h.b16 %v375
    %v1727 = vunpack.c.l.b16 %v376
    %v1728 = vunpack.c.h.b16 %v376
    %v1729 = vunpack.c.l.b16 %v377
    %v1730 = vunpack.c.h.b16 %v377
    %v1731 = vunpack.c.l.b16 %v378
    %v1732 = vunpack.c.h.b16 %v378
    %v1733 = vunpack.c.l.b16 %v379
    %v1734 = vunpack.c.h.b16 %v379
    %v1735 = vunpack.c.l.b16 %v380
    %v1736 = vunpack.c.h.b16 %v380
    %v1737 = vunpack.c.l.b16 %v381
    %v1738 = vunpack.c.h.b16 %v381
    %v1739 = vunpack.c.l.b16 %v382
    %v1740 = vunpack.c.h.b16 %v382
    %v1741 = vunpack.c.l.b16 %v383
    %v1742 = vunpack.c.h.b16 %v383
    %v1743 = vunpack.c.l.b16 %v384
    %v1744 = vunpack.c.h.b16 %v384
    %v1745 = vunpack.c.l.b16 %v385
    %v1746 = vunpack.c.h.b16 %v385
    %v1747 = vunpack.c.l.b16 %v386
    %v1748 = vunpack.c.h.b16 %v386
    %v1749 = vunpack.c.l.b16 %v387
    %v1750 = vunpack.c.h.b16 %v387
    %v1751 = vunpack.c.l.b16 %v388
    %v1752 = vunpack.c.h.b16 %v388
    %v1753 = vunpack.c.l.b16 %v389
    %v1754 = vunpack.c.h.b16 %v389
    %v1755 = vunpack.c.l.b16 %v390
    %v1756 = vunpack.c.h.b16 %v390
    %v1757 = vunpack.c.l.b16 %v391
    %v1758 = vunpack.c.h.b16 %v391
    %v1759 = vunpack.c.l.b16 %v392
    %v1760 = vunpack.c.h.b16 %v392
    %v1761 = vunpack.c.l.b16 %v393
    %v1762 = vunpack.c.h.b16 %v393
    %v1763 = vunpack.c.l.b16 %v394
    %v1764 = vunpack.c.h.b16 %v394
    %v1765 = vunpack.c.l.b16 %v395
    %v1766 = vunpack.c.h.b16 %v395
    %v1767 = vunpack.c.l.b16 %v396
    %v1768 = vunpack.c.h.b16 %v396
    %v1769 = vunpack.c.l.b16 %v397
    %v1770 = vunpack.c.h.b16 %v397
    %v1771 = vunpack.c.l.b16 %v398
    %v1772 = vunpack.c.h.b16 %v398
    %v1773 = vunpack.c.l.b16 %v399
    %v1774 = vunpack.c.h.b16 %v399
    %v1775 = vunpack.c.l.b16 %v400
    %v1776 = vunpack.c.h.b16 %v400
    %v1777 = vunpack.c.l.b16 %v401
    %v1778 = vunpack.c.h.b16 %v401
    %v1779 = vunpack.c.l.b16 %v402
    %v1780 = vunpack.c.h.b16 %v402
    %v1781 = vunpack.c.l.b16 %v403
    %v1782 = vunpack.c.h.b16 %v403
    %v1783 = vunpack.c.l.b16 %v404
    %v1784 = vunpack.c.h.b16 %v404
    %v1785 = vunpack.c.l.b16 %v405
    %v1786 = vunpack.c.h.b16 %v405
    %v1787 = vunpack.c.l.b16 %v406
    %v1788 = vunpack.c.h.b16 %v406
    %v1789 = vunpack.c.l.b16 %v407
    %v1790 = vunpack.c.h.b16 %v407
    %v1791 = vunpack.c.l.b16 %v408
    %v1792 = vunpack.c.h.b16 %v408
    %v1793 = vunpack.c.l.b16 %v409
    %v1794 = vunpack.c.h.b16 %v409
    %v1795 = vunpack.c.l.b16 %v410
    %v1796 = vunpack.c.h.b16 %v410
    %v1797 = vunpack.c.l.b16 %v411
    %v1798 = vunpack.c.h.b16 %v411
    %v1799 = vunpack.c.l.b16 %v412
    %v1800 = vunpack.c.h.b16 %v412
    %v1801 = vunpack.c.l.b16 %v413
    %v1802 = vunpack.c.h.b16 %v413
    %v1803 = vunpack.c.l.b16 %v414
    %v1804 = vunpack.c.h.b16 %v414
    %v1805 = vunpack.c.l.b16 %v415
    %v1806 = vunpack.c.h.b16 %v415
    %v1807 = vunpack.c.l.b16 %v416
    %v1808 = vunpack.c.h.b16 %v416
    %v1809 = vunpack.c.l.b16 %v417
    %v1810 = vunpack.c.h.b16 %v417
    %v1811 = vunpack.c.l.b16 %v418
    %v1812 = vunpack.c.h.b16 %v418
    %v1813 = vunpack.c.l.b16 %v419
    %v1814 = vunpack.c.h.b16 %v419
    %v1815 = vunpack.c.l.b16 %v420
    %v1816 = vunpack.c.h.b16 %v420
    %v1817 = vunpack.c.l.b16 %v421
    %v1818 = vunpack.c.h.b16 %v421
    %v1819 = vunpack.c.l.b16 %v422
    %v1820 = vunpack.c.h.b16 %v422
    %v1821 = vunpack.c.l.b16 %v423
    %v1822 = vunpack.c.h.b16 %v423
    %v1823 = vunpack.c.l.b16 %v424
    %v1824 = vunpack.c.h.b16 %v424
    %v1825 = vunpack.c.l.b16 %v425
    %v1826 = vunpack.c.h.b16 %v425
    %v1827 = vunpack.c.l.b16 %v426
    %v1828 = vunpack.c.h.b16 %v426
    %v1829 = vunpack.c.l.b16 %v427
    %v1830 = vunpack.c.h.b16 %v427
    %v1831 = vunpack.c.l.b16 %v428
    %v1832 = vunpack.c.h.b16 %v428
    %v1833 = vunpack.c.l.b16 %v429
    %v1834 = vunpack.c.h.b16 %v429
    %v1835 = vunpack.c.l.b16 %v430
    %v1836 = vunpack.c.h.b16 %v430
    %v1837 = vunpack.c.l.b16 %v431
    %v1838 = vunpack.c.h.b16 %v431
    %v1839 = vunpack.c.l.b16 %v432
    %v1840 = vunpack.c.h.b16 %v432
    %v1841 = vunpack.c.l.b16 %v433
    %v1842 = vunpack.c.h.b16 %v433
    %v1843 = vunpack.c.l.b16 %v434
    %v1844 = vunpack.c.h.b16 %v434
    %v1845 = vunpack.c.l.b16 %v435
    %v1846 = vunpack.c.h.b16 %v435
    %v1847 = vunpack.c.l.b16 %v436
    %v1848 = vunpack.c.h.b16 %v436
    %v1849 = vunpack.c.l.b16 %v437
    %v1850 = vunpack.c.h.b16 %v437
    %v1851 = vunpack.c.l.b16 %v438
    %v1852 = vunpack.c.h.b16 %v438
    %v1853 = vunpack.c.l.b16 %v439
    %v1854 = vunpack.c.h.b16 %v439
    %v1855 = vunpack.c.l.b16 %v440
    %v1856 = vunpack.c.h.b16 %v440
    %v1857 = vunpack.c.l.b16 %v441
    %v1858 = vunpack.c.h.b16 %v441
    %v1859 = vunpack.c.l.b16 %v442
    %v1860 = vunpack.c.h.b16 %v442
    %v1861 = vunpack.c.l.b16 %v443
    %v1862 = vunpack.c.h.b16 %v443
    %v1863 = vunpack.c.l.b16 %v444
    %v1864 = vunpack.c.h.b16 %v444
    %v1865 = vunpack.c.l.b16 %v445
    %v1866 = vunpack.c.h.b16 %v445
    %v1867 = vunpack.c.l.b16 %v446
    %v1868 = vunpack.c.h.b16 %v446
    %v1869 = vunpack.c.l.b16 %v447
    %v1870 = vunpack.c.h.b16 %v447
    %v1871 = vunpack.c.l.b16 %v448
    %v1872 = vunpack.c.h.b16 %v448
    %v1873 = vunpack.c.l.b16 %v449
    %v1874 = vunpack.c.h.b16 %v449
    %v1875 = vunpack.c.l.b16 %v450
    %v1876 = vunpack.c.h.b16 %v450
    %v1877 = vunpack.c.l.b16 %v451
    %v1878 = vunpack.c.h.b16 %v451
    %v1879 = vunpack.c.l.b16 %v452
    %v1880 = vunpack.c.h.b16 %v452
    %v1881 = vunpack.c.l.b16 %v453
    %v1882 = vunpack.c.h.b16 %v453
    %v1883 = vunpack.c.l.b16 %v454
    %v1884 = vunpack.c.h.b16 %v454
    %v1885 = vunpack.c.l.b16 %v455
    %v1886 = vunpack.c.h.b16 %v455
    %v1887 = vunpack.c.l.b16 %v456
    %v1888 = vunpack.c.h.b16 %v456
    %v1889 = vunpack.c.l.b16 %v457
    %v1890 = vunpack.c.h.b16 %v457
    %v1891 = vunpack.c.l.b16 %v458
    %v1892 = vunpack.c.h.b16 %v458
    %v1893 = vunpack.c.l.b16 %v459
    %v1894 = vunpack.c.h.b16 %v459
    %v1895 = vunpack.c.l.b16 %v460
    %v1896 = vunpack.c.h.b16 %v460
    %v1897 = vunpack.c.l.b16 %v461
    %v1898 = vunpack.c.h.b16 %v461
    %v1899 = vunpack.c.l.b16 %v462
    %v1900 = vunpack.c.h.b16 %v462
    %v1901 = vunpack.c.l.b16 %v463
    %v1902 = vunpack.c.h.b16 %v463
    %v1903 = vunpack.c.l.b16 %v464
    %v1904 = vunpack.c.h.b16 %v464
    %v1905 = vunpack.c.l.b16 %v465
    %v1906 = vunpack.c.h.b16 %v465
    %v1907 = vunpack.c.l.b16 %v466
    %v1908 = vunpack.c.h.b16 %v466
    %v1909 = vunpack.c.l.b16 %v467
    %v1910 = vunpack.c.h.b16 %v467
    %v1911 = vunpack.c.l.b16 %v468
    %v1912 = vunpack.c.h.b16 %v468
    %v1913 = vunpack.c.l.b16 %v469
    %v1914 = vunpack.c.h.b16 %v469
    %v1915 = vunpack.c.l.b16 %v470
    %v1916 = vunpack.c.h.b16 %v470
    %v1917 = vunpack.c.l.b16 %v471
    %v1918 = vunpack.c.h.b16 %v471
    %v1919 = vunpack.c.l.b16 %v472
    %v1920 = vunpack.c.h.b16 %v472
    %v1921 = vunpack.c.l.b16 %v473
    %v1922 = vunpack.c.h.b16 %v473
    %v1923 = vunpack.c.l.b16 %v474
    %v1924 = vunpack.c.h.b16 %v474
    %v1925 = vunpack.c.l.b16 %v475
    %v1926 = vunpack.c.h.b16 %v475
    %v1927 = vunpack.c.l.b16 %v476
    %v1928 = vunpack.c.h.b16 %v476
    %v1929 = vunpack.c.l.b16 %v477
    %v1930 = vunpack.c.h.b16 %v477
    %v1931 = vunpack.c.l.b16 %v478
    %v1932 = vunpack.c.h.b16 %v478
    %v1933 = vunpack.c.l.b16 %v479
    %v1934 = vunpack.c.h.b16 %v479
    %v1935 = vunpack.c.l.b16 %v480
    %v1936 = vunpack.c.h.b16 %v480
    %v1937 = vunpack.c.l.b16 %v481
    %v1938 = vunpack.c.h.b16 %v481
    %v1939 = vunpack.c.l.b16 %v482
    %v1940 = vunpack.c.h.b16 %v482
    %v1941 = vunpack.c.l.b16 %v483
    %v1942 = vunpack.c.h.b16 %v483
    %v1943 = vunpack.c.l.b16 %v484
    %v1944 = vunpack.c.h.b16 %v484
    %v1945 = vunpack.c.l.b16 %v485
    %v1946 = vunpack.c.h.b16 %v485
    %v1947 = vunpack.c.l.b16 %v486
    %v1948 = vunpack.c.h.b16 %v486
    %v1949 = vunpack.c.l.b16 %v487
    %v1950 = vunpack.c.h.b16 %v487
    %v1951 = vunpack.c.l.b16 %v488
    %v1952 = vunpack.c.h.b16 %v488
    %v1953 = vunpack.c.l.b16 %v489
    %v1954 = vunpack.c.h.b16 %v489
    %v1955 = vunpack.c.l.b16 %v490
    %v1956 = vunpack.c.h.b16 %v490
    %v1957 = vunpack.c.l.b16 %v491
    %v1958 = vunpack.c.h.b16 %v491
    %v1959 = vunpack.c.l.b16 %v492
    %v1960 = vunpack.c.h.b16 %v492
    %v1961 = vunpack.c.l.b16 %v493
    %v1962 = vunpack.c.h.b16 %v493
    %v1963 = vunpack.c.l.b16 %v494
    %v1964 = vunpack.c.h.b16 %v494
    %v1965 = vunpack.c.l.b16 %v495
    %v1966 = vunpack.c.h.b16 %v495
    %v1967 = vunpack.c.l.b16 %v496
    %v1968 = vunpack.c.h.b16 %v496
    %v1969 = vunpack.c.l.b16 %v497
    %v1970 = vunpack.c.h.b16 %v497
    %v1971 = vunpack.c.l.b16 %v498
    %v1972 = vunpack.c.h.b16 %v498
    %v1973 = vunpack.c.l.b16 %v499
    %v1974 = vunpack.c.h.b16 %v499
    %v1975 = vunpack.c.l.b16 %v500
    %v1976 = vunpack.c.h.b16 %v500
    %v1977 = vunpack.c.l.b16 %v501
    %v1978 = vunpack.c.h.b16 %v501
    %v1979 = vunpack.c.l.b16 %v502
    %v1980 = vunpack.c.h.b16 %v502
    %v1981 = vunpack.c.l.b16 %v503
    %v1982 = vunpack.c.h.b16 %v503
    %v1983 = vunpack.c.l.b16 %v504
    %v1984 = vunpack.c.h.b16 %v504
    %v1985 = vunpack.c.l.b16 %v505
    %v1986 = vunpack.c.h.b16 %v505
    %v1987 = vunpack.c.l.b16 %v506
    %v1988 = vunpack.c.h.b16 %v506
    %v1989 = vunpack.c.l.b16 %v507
    %v1990 = vunpack.c.h.b16 %v507
    %v1991 = vunpack.c.l.b16 %v508
    %v1992 = vunpack.c.h.b16 %v508
    %v1993 = vunpack.c.l.b16 %v509
    %v1994 = vunpack.c.h.b16 %v509
    %v1995 = vunpack.c.l.b16 %v510
    %v1996 = vunpack.c.h.b16 %v510
    %v1997 = vunpack.c.l.b16 %v511
    %v1998 = vunpack.c.h.b16 %v511
    %v1999 = vunpack.c.l.b16 %v512
    %v2000 = vunpack.c.h.b16 %v512
    %v2001 = vunpack.c.l.b16 %v513
    %v2002 = vunpack.c.h.b16 %v513
    %v2003 = vunpack.c.l.b16 %v514
    %v2004 = vunpack.c.h.b16 %v514
    %v2005 = vunpack.c.l.b16 %v515
    %v2006 = vunpack.c.h.b16 %v515
    %v2007 = vunpack.c.l.b16 %v516
    %v2008 = vunpack.c.h.b16 %v516
    %v2009 = vunpack.c.l.b16 %v517
    %v2010 = vunpack.c.h.b16 %v517
    %v2011 = vunpack.c.l.b16 %v518
    %v2012 = vunpack.c.h.b16 %v518
    %v2013 = vunpack.c.l.b16 %v519
    %v2014 = vunpack.c.h.b16 %v519
    %v2015 = vunpack.c.l.b16 %v520
    %v2016 = vunpack.c.h.b16 %v520
    %v2017 = vunpack.c.l.b16 %v521
    %v2018 = vunpack.c.h.b16 %v521
    %v2019 = vunpack.c.l.b16 %v522
    %v2020 = vunpack.c.h.b16 %v522
    %v2021 = vunpack.c.l.b16 %v523
    %v2022 = vunpack.c.h.b16 %v523
    %v2023 = vunpack.c.l.b16 %v524
    %v2024 = vunpack.c.h.b16 %v524
    %v2025 = vunpack.c.l.b16 %v525
    %v2026 = vunpack.c.h.b16 %v525
    %v2027 = vunpack.c.l.b16 %v526
    %v2028 = vunpack.c.h.b16 %v526
    %v2029 = vunpack.c.l.b16 %v527
    %v2030 = vunpack.c.h.b16 %v527
    %v2031 = vunpack.c.l.b16 %v528
    %v2032 = vunpack.c.h.b16 %v528
    %v2033 = vunpack.c.l.b16 %v529
    %v2034 = vunpack.c.h.b16 %v529
    %v2035 = vunpack.c.l.b16 %v530
    %v2036 = vunpack.c.h.b16 %v530
    %v2037 = vunpack.c.l.b16 %v531
    %v2038 = vunpack.c.h.b16 %v531
    %v2039 = vunpack.c.l.b16 %v532
    %v2040 = vunpack.c.h.b16 %v532
    %v2041 = vunpack.c.l.b16 %v533
    %v2042 = vunpack.c.h.b16 %v533
    %v2043 = vunpack.c.l.b16 %v534
    %v2044 = vunpack.c.h.b16 %v534
    %v2045 = vunpack.c.l.b16 %v535
    %v2046 = vunpack.c.h.b16 %v535
    %v2047 = vunpack.c.l.b16 %v536
    %v2048 = vunpack.c.h.b16 %v536
    %v2049 = vunpack.c.l.b16 %v537
    %v2050 = vunpack.c.h.b16 %v537
    %v2051 = vunpack.c.l.b16 %v538
    %v2052 = vunpack.c.h.b16 %v538
    %v2053 = vunpack.c.l.b16 %v539
    %v2054 = vunpack.c.h.b16 %v539
    %v2055 = vunpack.c.l.b16 %v540
    %v2056 = vunpack.c.h.b16 %v540
    %v2057 = vunpack.c.l.b16 %v541
    %v2058 = vunpack.c.h.b16 %v541
    %v2059 = vunpack.c.l.b16 %v542
    %v2060 = vunpack.c.h.b16 %v542
    %v2061 = vunpack.c.l.b16 %v543
    %v2062 = vunpack.c.h.b16 %v543
    %v2063 = vunpack.c.l.b16 %v544
    %v2064 = vunpack.c.h.b16 %v544
    %v2065 = vunpack.c.l.b16 %v545
    %v2066 = vunpack.c.h.b16 %v545
    %v2067 = vunpack.c.l.b16 %v546
    %v2068 = vunpack.c.h.b16 %v546
    %v2069 = vunpack.c.l.b16 %v547
    %v2070 = vunpack.c.h.b16 %v547
    %v2071 = vunpack.c.l.b16 %v548
    %v2072 = vunpack.c.h.b16 %v548
    %v2073 = vunpack.c.l.b16 %v549
    %v2074 = vunpack.c.h.b16 %v549
    %v2075 = vunpack.c.l.b16 %v550
    %v2076 = vunpack.c.h.b16 %v550
    %v2077 = vunpack.c.l.b16 %v551
    %v2078 = vunpack.c.h.b16 %v551
    %v2079 = vunpack.c.l.b16 %v552
    %v2080 = vunpack.c.h.b16 %v552
    %v2081 = vunpack.c.l.b16 %v553
    %v2082 = vunpack.c.h.b16 %v553
    %v2083 = vunpack.c.l.b16 %v554
    %v2084 = vunpack.c.h.b16 %v554
    %v2085 = vunpack.c.l.b16 %v555
    %v2086 = vunpack.c.h.b16 %v555
    %v2087 = vunpack.c.l.b16 %v556
    %v2088 = vunpack.c.h.b16 %v556
    %v2089 = vunpack.c.l.b16 %v557
    %v2090 = vunpack.c.h.b16 %v557
    %v2091 = vunpack.c.l.b16 %v558
    %v2092 = vunpack.c.h.b16 %v558
    %v2093 = vunpack.c.l.b16 %v559
    %v2094 = vunpack.c.h.b16 %v559
    %v2095 = vunpack.c.l.b16 %v560
    %v2096 = vunpack.c.h.b16 %v560
    %v2097 = vunpack.c.l.b16 %v561
    %v2098 = vunpack.c.h.b16 %v561
    %v2099 = vunpack.c.l.b16 %v562
    %v2100 = vunpack.c.h.b16 %v562
    %v2101 = vunpack.c.l.b16 %v563
    %v2102 = vunpack.c.h.b16 %v563
    %v2103 = vunpack.c.l.b16 %v564
    %v2104 = vunpack.c.h.b16 %v564
    %v2105 = vunpack.c.l.b16 %v565
    %v2106 = vunpack.c.h.b16 %v565
    %v2107 = vunpack.c.l.b16 %v566
    %v2108 = vunpack.c.h.b16 %v566
    %v2109 = vunpack.c.l.b16 %v567
    %v2110 = vunpack.c.h.b16 %v567
    %v2111 = vunpack.c.l.b16 %v568
    %v2112 = vunpack.c.h.b16 %v568
    %v2113 = vunpack.c.l.b16 %v569
    %v2114 = vunpack.c.h.b16 %v569
    %v2115 = vunpack.c.l.b16 %v570
    %v2116 = vunpack.c.h.b16 %v570
    %v2117 = vunpack.c.l.b16 %v571
    %v2118 = vunpack.c.h.b16 %v571
    %v2119 = vunpack.c.l.b16 %v572
    %v2120 = vunpack.c.h.b16 %v572
    %v2121 = vunpack.c.l.b16 %v573
    %v2122 = vunpack.c.h.b16 %v573
    %v2123 = vunpack.c.l.b16 %v574
    %v2124 = vunpack.c.h.b16 %v574
    %v2125 = vunpack.c.l.b16 %v575
    %v2126 = vunpack.c.h.b16 %v575
    %v2127 = vunpack.c.l.b16 %v576
    %v2128 = vunpack.c.h.b16 %v576
    %v2129 = vunpack.c.l.b16 %v577
    %v2130 = vunpack.c.h.b16 %v577
    %v2131 = vunpack.c.l.b16 %v578
    %v2132 = vunpack.c.h.b16 %v578
    %v2133 = vunpack.c.l.b16 %v579
    %v2134 = vunpack.c.h.b16 %v579
    %v2135 = vunpack.c.l.b16 %v580
    %v2136 = vunpack.c.h.b16 %v580
    %v2137 = vunpack.c.l.b16 %v581
    %v2138 = vunpack.c.h.b16 %v581
    %v2139 = vunpack.c.l.b16 %v582
    %v2140 = vunpack.c.h.b16 %v582
    %v2141 = vunpack.c.l.b16 %v583
    %v2142 = vunpack.c.h.b16 %v583
    %v2143 = vunpack.c.l.b16 %v584
    %v2144 = vunpack.c.h.b16 %v584
    %v2145 = vunpack.c.l.b16 %v585
    %v2146 = vunpack.c.h.b16 %v585
    %v2147 = vunpack.c.l.b16 %v586
    %v2148 = vunpack.c.h.b16 %v586
    %v2149 = vunpack.c.l.b16 %v587
    %v2150 = vunpack.c.h.b16 %v587
    %v2151 = vunpack.c.l.b16 %v588
    %v2152 = vunpack.c.h.b16 %v588
    %v2153 = vunpack.c.l.b16 %v589
    %v2154 = vunpack.c.h.b16 %v589
    %v2155 = vunpack.c.l.b16 %v590
    %v2156 = vunpack.c.h.b16 %v590
    %v2157 = vunpack.c.l.b16 %v591
    %v2158 = vunpack.c.h.b16 %v591
    %v2159 = vunpack.c.l.b16 %v592
    %v2160 = vunpack.c.h.b16 %v592
    %v2161 = vunpack.c.l.b16 %v593
    %v2162 = vunpack.c.h.b16 %v593
    %v2163 = vunpack.c.l.b16 %v594
    %v2164 = vunpack.c.h.b16 %v594
    %v2165 = vunpack.c.l.b16 %v595
    %v2166 = vunpack.c.h.b16 %v595
    %v2167 = vunpack.c.l.b16 %v596
    %v2168 = vunpack.c.h.b16 %v596
    %v2169 = vunpack.c.l.b16 %v597
    %v2170 = vunpack.c.h.b16 %v597
    %v2171 = vunpack.c.l.b16 %v598
    %v2172 = vunpack.c.h.b16 %v598
    %v2173 = vunpack.c.l.b16 %v599
    %v2174 = vunpack.c.h.b16 %v599
    %v2175 = vunpack.c.l.b16 %v600
    %v2176 = vunpack.c.h.b16 %v600
    %v2177 = vunpack.c.l.b16 %v601
    %v2178 = vunpack.c.h.b16 %v601
    %v2179 = vunpack.c.l.b16 %v602
    %v2180 = vunpack.c.h.b16 %v602
    %v2181 = vunpack.c.l.b16 %v603
    %v2182 = vunpack.c.h.b16 %v603
    %v2183 = vunpack.c.l.b16 %v604
    %v2184 = vunpack.c.h.b16 %v604
    %v2185 = vunpack.c.l.b16 %v605
    %v2186 = vunpack.c.h.b16 %v605
    %v2187 = vunpack.c.l.b16 %v606
    %v2188 = vunpack.c.h.b16 %v606
    %v2189 = vunpack.c.l.b16 %v607
    %v2190 = vunpack.c.h.b16 %v607
    %v2191 = vunpack.c.l.b16 %v608
    %v2192 = vunpack.c.h.b16 %v608
    %v2193 = vunpack.c.l.b16 %v609
    %v2194 = vunpack.c.h.b16 %v609
    %v2195 = vunpack.c.l.b16 %v610
    %v2196 = vunpack.c.h.b16 %v610
    %v2197 = vunpack.c.l.b16 %v611
    %v2198 = vunpack.c.h.b16 %v611
    %v2199 = vunpack.c.l.b16 %v612
    %v2200 = vunpack.c.h.b16 %v612
    %v2201 = vunpack.c.l.b16 %v613
    %v2202 = vunpack.c.h.b16 %v613
    %v2203 = vunpack.c.l.b16 %v614
    %v2204 = vunpack.c.h.b16 %v614
    %v2205 = vunpack.c.l.b16 %v615
    %v2206 = vunpack.c.h.b16 %v615
    %v2207 = vunpack.c.l.b16 %v616
    %v2208 = vunpack.c.h.b16 %v616
    %v2209 = vunpack.c.l.b16 %v617
    %v2210 = vunpack.c.h.b16 %v617
    %v2211 = vunpack.c.l.b16 %v618
    %v2212 = vunpack.c.h.b16 %v618
    %v2213 = vunpack.c.l.b16 %v619
    %v2214 = vunpack.c.h.b16 %v619
    %v2215 = vunpack.c.l.b16 %v620
    %v2216 = vunpack.c.h.b16 %v620
    %v2217 = vunpack.c.l.b16 %v621
    %v2218 = vunpack.c.h.b16 %v621
    %v2219 = vunpack.c.l.b16 %v622
    %v2220 = vunpack.c.h.b16 %v622
    %v2221 = vunpack.c.l.b16 %v623
    %v2222 = vunpack.c.h.b16 %v623
    %v2223 = vunpack.c.l.b16 %v624
    %v2224 = vunpack.c.h.b16 %v624
    %v2225 = vunpack.c.l.b16 %v625
    %v2226 = vunpack.c.h.b16 %v625
    %v2227 = vunpack.c.l.b16 %v626
    %v2228 = vunpack.c.h.b16 %v626
    %v2229 = vunpack.c.l.b16 %v627
    %v2230 = vunpack.c.h.b16 %v627
    %v2231 = vunpack.c.l.b16 %v628
    %v2232 = vunpack.c.h.b16 %v628
    %v2233 = vunpack.c.l.b16 %v629
    %v2234 = vunpack.c.h.b16 %v629
    %v2235 = vunpack.c.l.b16 %v630
    %v2236 = vunpack.c.h.b16 %v630
    %v2237 = vpack.c.b16 %v1221, %v1213
    %v2238 = vpack.c.b16 %v1222, %v1214
    %v2239 = vpack.c.b16 %v1223, %v1215
    %v2240 = vpack.c.b16 %v1224, %v1216
    %v2241 = vpack.c.b16 %v1225, %v1217
    %v2242 = vpack.c.b16 %v1226, %v1218
    %v2243 = vpack.c.b16 %v1227, %v1219
    %v2244 = vpack.c.b16 %v1228, %v1220
    %v2245 = vpack.c.b16 %v1237, %v1229
    %v2246 = vpack.c.b16 %v1238, %v1230
    %v2247 = vpack.c.b16 %v1239, %v1231
    %v2248 = vpack.c.b16 %v1240, %v1232
    %v2249 = vpack.c.b16 %v1241, %v1233
    %v2250 = vpack.c.b16 %v1242, %v1234
    %v2251 = vpack.c.b16 %v1243, %v1235
    %v2252 = vpack.c.b16 %v1244, %v1236
    %v2253 = vpack.c.b16 %v1253, %v1245
    %v2254 = vpack.c.b16 %v1254, %v1246
    %v2255 = vpack.c.b16 %v1255, %v1247
    %v2256 = vpack.c.b16 %v1256, %v1248
    %v2257 = vpack.c.b16 %v1257, %v1249
    %v2258 = vpack.c.b16 %v1258, %v1250
    %v2259 = vpack.c.b16 %v1259, %v1251
    %v2260 = vpack.c.b16 %v1260, %v1252
    %v2261 = vpack.c.b16 %v1269, %v1261
    %v2262 = vpack.c.b16 %v1270, %v1262
    %v2263 = vpack.c.b16 %v1271, %v1263
    %v2264 = vpack.c.b16 %v1272, %v1264
    %v2265 = vpack.c.b16 %v1273, %v1265
    %v2266 = vpack.c.b16 %v1274, %v1266
    %v2267 = vpack.c.b16 %v1275, %v1267
    %v2268 = vpack.c.b16 %v1276, %v1268
    %v2269 = vpack.c.b16 %v1285, %v1277
    %v2270 = vpack.c.b16 %v1286, %v1278
    %v2271 = vpack.c.b16 %v1287, %v1279
    %v2272 = vpack.c.b16 %v1288, %v1280
    %v2273 = vpack.c.b16 %v1289, %v1281
    %v2274 = vpack.c.b16 %v1290, %v1282
    %v2275 = vpack.c.b16 %v1291, %v1283
    %v2276 = vpack.c.b16 %v1292, %v1284
    %v2277 = vpack.c.b16 %v1301, %v1293
    %v2278 = vpack.c.b16 %v1302, %v1294
    %v2279 = vpack.c.b16 %v1303, %v1295
    %v2280 = vpack.c.b16 %v1304, %v1296
    %v2281 = vpack.c.b16 %v1305, %v1297
    %v2282 = vpack.c.b16 %v1306, %v1298
    %v2283 = vpack.c.b16 %v1307, %v1299
    %v2284 = vpack.c.b16 %v1308, %v1300
    %v2285 = vpack.c.b16 %v1317, %v1309
    %v2286 = vpack.c.b16 %v1318, %v1310
    %v2287 = vpack.c.b16 %v1319, %v1311
    %v2288 = vpack.c.b16 %v1320, %v1312
    %v2289 = vpack.c.b16 %v1321, %v1313
    %v2290 = vpack.c.b16 %v1322, %v1314
    %v2291 = vpack.c.b16 %v1323, %v1315
    %v2292 = vpack.c.b16 %v1324, %v1316
    %v2293 = vpack.c.b16 %v1333, %v1325
    %v2294 = vpack.c.b16 %v1334, %v1326
    %v2295 = vpack.c.b16 %v1335, %v1327
    %v2296 = vpack.c.b16 %v1336, %v1328
    %v2297 = vpack.c.b16 %v1337, %v1329
    %v2298 = vpack.c.b16 %v1338, %v1330
    %v2299 = vpack.c.b16 %v1339, %v1331
    %v2300 = vpack.c.b16 %v1340, %v1332
    %v2301 = vpack.c.b16 %v1349, %v1341
    %v2302 = vpack.c.b16 %v1350, %v1342
    %v2303 = vpack.c.b16 %v1351, %v1343
    %v2304 = vpack.c.b16 %v1352, %v1344
    %v2305 = vpack.c.b16 %v1353, %v1345
    %v2306 = vpack.c.b16 %v1354, %v1346
    %v2307 = vpack.c.b16 %v1355, %v1347
    %v2308 = vpack.c.b16 %v1356, %v1348
    %v2309 = vpack.c.b16 %v1365, %v1357
    %v2310 = vpack.c.b16 %v1366, %v1358
    %v2311 = vpack.c.b16 %v1367, %v1359
    %v2312 = vpack.c.b16 %v1368, %v1360
    %v2313 = vpack.c.b16 %v1369, %v1361
    %v2314 = vpack.c.b16 %v1370, %v1362
    %v2315 = vpack.c.b16 %v1371, %v1363
    %v2316 = vpack.c.b16 %v1372, %v1364
    %v2317 = vpack.c.b16 %v1381, %v1373
    %v2318 = vpack.c.b16 %v1382, %v1374
    %v2319 = vpack.c.b16 %v1383, %v1375
    %v2320 = vpack.c.b16 %v1384, %v1376
    %v2321 = vpack.c.b16 %v1385, %v1377
    %v2322 = vpack.c.b16 %v1386, %v1378
    %v2323 = vpack.c.b16 %v1387, %v1379
    %v2324 = vpack.c.b16 %v1388, %v1380
    %v2325 = vpack.c.b16 %v1397, %v1389
    %v2326 = vpack.c.b16 %v1398, %v1390
    %v2327 = vpack.c.b16 %v1399, %v1391
    %v2328 = vpack.c.b16 %v1400, %v1392
    %v2329 = vpack.c.b16 %v1401, %v1393
    %v2330 = vpack.c.b16 %v1402, %v1394
    %v2331 = vpack.c.b16 %v1403, %v1395
    %v2332 = vpack.c.b16 %v1404, %v1396
    %v2333 = vpack.c.b16 %v1413, %v1405
    %v2334 = vpack.c.b16 %v1414, %v1406
    %v2335 = vpack.c.b16 %v1415, %v1407
    %v2336 = vpack.c.b16 %v1416, %v1408
    %v2337 = vpack.c.b16 %v1417, %v1409
    %v2338 = vpack.c.b16 %v1418, %v1410
    %v2339 = vpack.c.b16 %v1419, %v1411
    %v2340 = vpack.c.b16 %v1420, %v1412
    %v2341 = vpack.c.b16 %v1429, %v1421
    %v2342 = vpack.c.b16 %v1430, %v1422
    %v2343 = vpack.c.b16 %v1431, %v1423
    %v2344 = vpack.c.b16 %v1432, %v1424
    %v2345 = vpack.c.b16 %v1433, %v1425
    %v2346 = vpack.c.b16 %v1434, %v1426
    %v2347 = vpack.c.b16 %v1435, %v1427
    %v2348 = vpack.c.b16 %v1436, %v1428
    %v2349 = vpack.c.b16 %v1445, %v1437
    %v2350 = vpack.c.b16 %v1446, %v1438
    %v2351 = vpack.c.b16 %v1447, %v1439
    %v2352 = vpack.c.b16 %v1448, %v1440
    %v2353 = vpack.c.b16 %v1449, %v1441
    %v2354 = vpack.c.b16 %v1450, %v1442
    %v2355 = vpack.c.b16 %v1451, %v1443
    %v2356 = vpack.c.b16 %v1452, %v1444
    %v2357 = vpack.c.b16 %v1461, %v1453
    %v2358 = vpack.c.b16 %v1462, %v1454
    %v2359 = vpack.c.b16 %v1463, %v1455
    %v2360 = vpack.c.b16 %v1464, %v1456
    %v2361 = vpack.c.b16 %v1465, %v1457
    %v2362 = vpack.c.b16 %v1466, %v1458
    %v2363 = vpack.c.b16 %v1467, %v1459
    %v2364 = vpack.c.b16 %v1468, %v1460
    %v2365 = vpack.c.b16 %v1477, %v1469
    %v2366 = vpack.c.b16 %v1478, %v1470
    %v2367 = vpack.c.b16 %v1479, %v1471
    %v2368 = vpack.c.b16 %v1480, %v1472
    %v2369 = vpack.c.b16 %v1481, %v1473
    %v2370 = vpack.c.b16 %v1482, %v1474
    %v2371 = vpack.c.b16 %v1483, %v1475
    %v2372 = vpack.c.b16 %v1484, %v1476
    %v2373 = vpack.c.b16 %v1493, %v1485
    %v2374 = vpack.c.b16 %v1494, %v1486
    %v2375 = vpack.c.b16 %v1495, %v1487
    %v2376 = vpack.c.b16 %v1496, %v1488
    %v2377 = vpack.c.b16 %v1497, %v1489
    %v2378 = vpack.c.b16 %v1498, %v1490
    %v2379 = vpack.c.b16 %v1499, %v1491
    %v2380 = vpack.c.b16 %v1500, %v1492
    %v2381 = vpack.c.b16 %v1509, %v1501
    %v2382 = vpack.c.b16 %v1510, %v1502
    %v2383 = vpack.c.b16 %v1511, %v1503
    %v2384 = vpack.c.b16 %v1512, %v1504
    %v2385 = vpack.c.b16 %v1513, %v1505
    %v2386 = vpack.c.b16 %v1514, %v1506
    %v2387 = vpack.c.b16 %v1515, %v1507
    %v2388 = vpack.c.b16 %v1516, %v1508
    %v2389 = vpack.c.b16 %v1525, %v1517
    %v2390 = vpack.c.b16 %v1526, %v1518
    %v2391 = vpack.c.b16 %v1527, %v1519
    %v2392 = vpack.c.b16 %v1528, %v1520
    %v2393 = vpack.c.b16 %v1529, %v1521
    %v2394 = vpack.c.b16 %v1530, %v1522
    %v2395 = vpack.c.b16 %v1531, %v1523
    %v2396 = vpack.c.b16 %v1532, %v1524
    %v2397 = vpack.c.b16 %v1541, %v1533
    %v2398 = vpack.c.b16 %v1542, %v1534
    %v2399 = vpack.c.b16 %v1543, %v1535
    %v2400 = vpack.c.b16 %v1544, %v1536
    %v2401 = vpack.c.b16 %v1545, %v1537
    %v2402 = vpack.c.b16 %v1546, %v1538
    %v2403 = vpack.c.b16 %v1547, %v1539
    %v2404 = vpack.c.b16 %v1548, %v1540
    %v2405 = vpack.c.b16 %v1557, %v1549
    %v2406 = vpack.c.b16 %v1558, %v1550
    %v2407 = vpack.c.b16 %v1559, %v1551
    %v2408 = vpack.c.b16 %v1560, %v1552
    %v2409 = vpack.c.b16 %v1561, %v1553
    %v2410 = vpack.c.b16 %v1562, %v1554
    %v2411 = vpack.c.b16 %v1563, %v1555
    %v2412 = vpack.c.b16 %v1564, %v1556
    %v2413 = vpack.c.b16 %v1573, %v1565
    %v2414 = vpack.c.b16 %v1574, %v1566
    %v2415 = vpack.c.b16 %v1575, %v1567
    %v2416 = vpack.c.b16 %v1576, %v1568
    %v2417 = vpack.c.b16 %v1577, %v1569
    %v2418 = vpack.c.b16 %v1578, %v1570
    %v2419 = vpack.c.b16 %v1579, %v1571
    %v2420 = vpack.c.b16 %v1580, %v1572
    %v2421 = vpack.c.b16 %v1589, %v1581
    %v2422 = vpack.c.b16 %v1590, %v1582
    %v2423 = vpack.c.b16 %v1591, %v1583
    %v2424 = vpack.c.b16 %v1592, %v1584
    %v2425 = vpack.c.b16 %v1593, %v1585
    %v2426 = vpack.c.b16 %v1594, %v1586
    %v2427 = vpack.c.b16 %v1595, %v1587
    %v2428 = vpack.c.b16 %v1596, %v1588
    %v2429 = vpack.c.b16 %v1605, %v1597
    %v2430 = vpack.c.b16 %v1606, %v1598
    %v2431 = vpack.c.b16 %v1607, %v1599
    %v2432 = vpack.c.b16 %v1608, %v1600
    %v2433 = vpack.c.b16 %v1609, %v1601
    %v2434 = vpack.c.b16 %v1610, %v1602
    %v2435 = vpack.c.b16 %v1611, %v1603
    %v2436 = vpack.c.b16 %v1612, %v1604
    %v2437 = vpack.c.b16 %v1621, %v1613
    %v2438 = vpack.c.b16 %v1622, %v1614
    %v2439 = vpack.c.b16 %v1623, %v1615
    %v2440 = vpack.c.b16 %v1624, %v1616
    %v2441 = vpack.c.b16 %v1625, %v1617
    %v2442 = vpack.c.b16 %v1626, %v1618
    %v2443 = vpack.c.b16 %v1627, %v1619
    %v2444 = vpack.c.b16 %v1628, %v1620
    %v2445 = vpack.c.b16 %v1637, %v1629
    %v2446 = vpack.c.b16 %v1638, %v1630
    %v2447 = vpack.c.b16 %v1639, %v1631
    %v2448 = vpack.c.b16 %v1640, %v1632
    %v2449 = vpack.c.b16 %v1641, %v1633
    %v2450 = vpack.c.b16 %v1642, %v1634
    %v2451 = vpack.c.b16 %v1643, %v1635
    %v2452 = vpack.c.b16 %v1644, %v1636
    %v2453 = vpack.c.b16 %v1653, %v1645
    %v2454 = vpack.c.b16 %v1654, %v1646
    %v2455 = vpack.c.b16 %v1655, %v1647
    %v2456 = vpack.c.b16 %v1656, %v1648
    %v2457 = vpack.c.b16 %v1657, %v1649
    %v2458 = vpack.c.b16 %v1658, %v1650
    %v2459 = vpack.c.b16 %v1659, %v1651
    %v2460 = vpack.c.b16 %v1660, %v1652
    %v2461 = vpack.c.b16 %v1669, %v1661
    %v2462 = vpack.c.b16 %v1670, %v1662
    %v2463 = vpack.c.b16 %v1671, %v1663
    %v2464 = vpack.c.b16 %v1672, %v1664
    %v2465 = vpack.c.b16 %v1673, %v1665
    %v2466 = vpack.c.b16 %v1674, %v1666
    %v2467 = vpack.c.b16 %v1675, %v1667
    %v2468 = vpack.c.b16 %v1676, %v1668
    %v2469 = vpack.c.b16 %v1685, %v1677
    %v2470 = vpack.c.b16 %v1686, %v1678
    %v2471 = vpack.c.b16 %v1687, %v1679
    %v2472 = vpack.c.b16 %v1688, %v1680
    %v2473 = vpack.c.b16 %v1689, %v1681
    %v2474 = vpack.c.b16 %v1690, %v1682
    %v2475 = vpack.c.b16 %v1691, %v1683
    %v2476 = vpack.c.b16 %v1692, %v1684
    %v2477 = vpack.c.b16 %v1701, %v1693
    %v2478 = vpack.c.b16 %v1702, %v1694
    %v2479 = vpack.c.b16 %v1703, %v1695
    %v2480 = vpack.c.b16 %v1704, %v1696
    %v2481 = vpack.c.b16 %v1705, %v1697
    %v2482 = vpack.c.b16 %v1706, %v1698
    %v2483 = vpack.c.b16 %v1707, %v1699
    %v2484 = vpack.c.b16 %v1708, %v1700
    %v2485 = vpack.c.b16 %v1717, %v1709
    %v2486 = vpack.c.b16 %v1718, %v1710
    %v2487 = vpack.c.b16 %v1719, %v1711
    %v2488 = vpack.c.b16 %v1720, %v1712
    %v2489 = vpack.c.b16 %v1721, %v1713
    %v2490 = vpack.c.b16 %v1722, %v1714
    %v2491 = vpack.c.b16 %v1723, %v1715
    %v2492 = vpack.c.b16 %v1724, %v1716
    %v2493 = vpack.c.b16 %v1733, %v1725
    %v2494 = vpack.c.b16 %v1734, %v1726
    %v2495 = vpack.c.b16 %v1735, %v1727
    %v2496 = vpack.c.b16 %v1736, %v1728
    %v2497 = vpack.c.b16 %v1737, %v1729
    %v2498 = vpack.c.b16 %v1738, %v1730
    %v2499 = vpack.c.b16 %v1739, %v1731
    %v2500 = vpack.c.b16 %v1740, %v1732
    %v2501 = vpack.c.b16 %v1749, %v1741
    %v2502 = vpack.c.b16 %v1750, %v1742
    %v2503 = vpack.c.b16 %v1751, %v1743
    %v2504 = vpack.c.b16 %v1752, %v1744
    %v2505 = vpack.c.b16 %v1753, %v1745
    %v2506 = vpack.c.b16 %v1754, %v1746
    %v2507 = vpack.c.b16 %v1755, %v1747
    %v2508 = vpack.c.b16 %v1756, %v1748
    %v2509 = vpack.c.b16 %v1765, %v1757
    %v2510 = vpack.c.b16 %v1766, %v1758
    %v2511 = vpack.c.b16 %v1767, %v1759
    %v2512 = vpack.c.b16 %v1768, %v1760
    %v2513 = vpack.c.b16 %v1769, %v1761
    %v2514 = vpack.c.b16 %v1770, %v1762
    %v2515 = vpack.c.b16 %v1771, %v1763
    %v2516 = vpack.c.b16 %v1772, %v1764
    %v2517 = vpack.c.b16 %v1781, %v1773
    %v2518 = vpack.c.b16 %v1782, %v1774
    %v2519 = vpack.c.b16 %v1783, %v1775
    %v2520 = vpack.c.b16 %v1784, %v1776
    %v2521 = vpack.c.b16 %v1785, %v1777
    %v2522 = vpack.c.b16 %v1786, %v1778
    %v2523 = vpack.c.b16 %v1787, %v1779
    %v2524 = vpack.c.b16 %v1788, %v1780
    %v2525 = vpack.c.b16 %v1797, %v1789
    %v2526 = vpack.c.b16 %v1798, %v1790
    %v2527 = vpack.c.b16 %v1799, %v1791
    %v2528 = vpack.c.b16 %v1800, %v1792
    %v2529 = vpack.c.b16 %v1801, %v1793
    %v2530 = vpack.c.b16 %v1802, %v1794
    %v2531 = vpack.c.b16 %v1803, %v1795
    %v2532 = vpack.c.b16 %v1804, %v1796
    %v2533 = vpack.c.b16 %v1813, %v1805
    %v2534 = vpack.c.b16 %v1814, %v1806
    %v2535 = vpack.c.b16 %v1815, %v1807
    %v2536 = vpack.c.b16 %v1816, %v1808
    %v2537 = vpack.c.b16 %v1817, %v1809
    %v2538 = vpack.c.b16 %v1818, %v1810
    %v2539 = vpack.c.b16 %v1819, %v1811
    %v2540 = vpack.c.b16 %v1820, %v1812
    %v2541 = vpack.c.b16 %v1829, %v1821
    %v2542 = vpack.c.b16 %v1830, %v1822
    %v2543 = vpack.c.b16 %v1831, %v1823
    %v2544 = vpack.c.b16 %v1832, %v1824
    %v2545 = vpack.c.b16 %v1833, %v1825
    %v2546 = vpack.c.b16 %v1834, %v1826
    %v2547 = vpack.c.b16 %v1835, %v1827
    %v2548 = vpack.c.b16 %v1836, %v1828
    %v2549 = vpack.c.b16 %v1845, %v1837
    %v2550 = vpack.c.b16 %v1846, %v1838
    %v2551 = vpack.c.b16 %v1847, %v1839
    %v2552 = vpack.c.b16 %v1848, %v1840
    %v2553 = vpack.c.b16 %v1849, %v1841
    %v2554 = vpack.c.b16 %v1850, %v1842
    %v2555 = vpack.c.b16 %v1851, %v1843
    %v2556 = vpack.c.b16 %v1852, %v1844
    %v2557 = vpack.c.b16 %v1861, %v1853
    %v2558 = vpack.c.b16 %v1862, %v1854
    %v2559 = vpack.c.b16 %v1863, %v1855
    %v2560 = vpack.c.b16 %v1864, %v1856
    %v2561 = vpack.c.b16 %v1865, %v1857
    %v2562 = vpack.c.b16 %v1866, %v1858
    %v2563 = vpack.c.b16 %v1867, %v1859
    %v2564 = vpack.c.b16 %v1868, %v1860
    %v2565 = vpack.c.b16 %v1877, %v1869
    %v2566 = vpack.c.b16 %v1878, %v1870
    %v2567 = vpack.c.b16 %v1879, %v1871
    %v2568 = vpack.c.b16 %v1880, %v1872
    %v2569 = vpack.c.b16 %v1881, %v1873
    %v2570 = vpack.c.b16 %v1882, %v1874
    %v2571 = vpack.c.b16 %v1883, %v1875
    %v2572 = vpack.c.b16 %v1884, %v1876
    %v2573 = vpack.c.b16 %v1893, %v1885
    %v2574 = vpack.c.b16 %v1894, %v1886
    %v2575 = vpack.c.b16 %v1895, %v1887
    %v2576 = vpack.c.b16 %v1896, %v1888
    %v2577 = vpack.c.b16 %v1897, %v1889
    %v2578 = vpack.c.b16 %v1898, %v1890
    %v2579 = vpack.c.b16 %v1899, %v1891
    %v2580 = vpack.c.b16 %v1900, %v1892
    %v2581 = vpack.c.b16 %v1909, %v1901
    %v2582 = vpack.c.b16 %v1910, %v1902
    %v2583 = vpack.c.b16 %v1911, %v1903
    %v2584 = vpack.c.b16 %v1912, %v1904
    %v2585 = vpack.c.b16 %v1913, %v1905
    %v2586 = vpack.c.b16 %v1914, %v1906
    %v2587 = vpack.c.b16 %v1915, %v1907
    %v2588 = vpack.c.b16 %v1916, %v1908
    %v2589 = vpack.c.b16 %v1925, %v1917
    %v2590 = vpack.c.b16 %v1926, %v1918
    %v2591 = vpack.c.b16 %v1927, %v1919
    %v2592 = vpack.c.b16 %v1928, %v1920
    %v2593 = vpack.c.b16 %v1929, %v1921
    %v2594 = vpack.c.b16 %v1930, %v1922
    %v2595 = vpack.c.b16 %v1931, %v1923
    %v2596 = vpack.c.b16 %v1932, %v1924
    %v2597 = vpack.c.b16 %v1941, %v1933
    %v2598 = vpack.c.b16 %v1942, %v1934
    %v2599 = vpack.c.b16 %v1943, %v1935
    %v2600 = vpack.c.b16 %v1944, %v1936
    %v2601 = vpack.c.b16 %v1945, %v1937
    %v2602 = vpack.c.b16 %v1946, %v1938
    %v2603 = vpack.c.b16 %v1947, %v1939
    %v2604 = vpack.c.b16 %v1948, %v1940
    %v2605 = vpack.c.b16 %v1957, %v1949
    %v2606 = vpack.c.b16 %v1958, %v1950
    %v2607 = vpack.c.b16 %v1959, %v1951
    %v2608 = vpack.c.b16 %v1960, %v1952
    %v2609 = vpack.c.b16 %v1961, %v1953
    %v2610 = vpack.c.b16 %v1962, %v1954
    %v2611 = vpack.c.b16 %v1963, %v1955
    %v2612 = vpack.c.b16 %v1964, %v1956
    %v2613 = vpack.c.b16 %v1973, %v1965
    %v2614 = vpack.c.b16 %v1974, %v1966
    %v2615 = vpack.c.b16 %v1975, %v1967
    %v2616 = vpack.c.b16 %v1976, %v1968
    %v2617 = vpack.c.b16 %v1977, %v1969
    %v2618 = vpack.c.b16 %v1978, %v1970
    %v2619 = vpack.c.b16 %v1979, %v1971
    %v2620 = vpack.c.b16 %v1980, %v1972
    %v2621 = vpack.c.b16 %v1989, %v1981
    %v2622 = vpack.c.b16 %v1990, %v1982
    %v2623 = vpack.c.b16 %v1991, %v1983
    %v2624 = vpack.c.b16 %v1992, %v1984
    %v2625 = vpack.c.b16 %v1993, %v1985
    %v2626 = vpack.c.b16 %v1994, %v1986
    %v2627 = vpack.c.b16 %v1995, %v1987
    %v2628 = vpack.c.b16 %v1996, %v1988
    %v2629 = vpack.c.b16 %v2005, %v1997
    %v2630 = vpack.c.b16 %v2006, %v1998
    %v2631 = vpack.c.b16 %v2007, %v1999
    %v2632 = vpack.c.b16 %v2008, %v2000
    %v2633 = vpack.c.b16 %v2009, %v2001
    %v2634 = vpack.c.b16 %v2010, %v2002
    %v2635 = vpack.c.b16 %v2011, %v2003
    %v2636 = vpack.c.b16 %v2012, %v2004
    %v2637 = vpack.c.b16 %v2021, %v2013
    %v2638 = vpack.c.b16 %v2022, %v2014
    %v2639 = vpack.c.b16 %v2023, %v2015
    %v2640 = vpack.c.b16 %v2024, %v2016
    %v2641 = vpack.c.b16 %v2025, %v2017
    %v2642 = vpack.c.b16 %v2026, %v2018
    %v2643 = vpack.c.b16 %v2027, %v2019
    %v2644 = vpack.c.b16 %v2028, %v2020
    %v2645 = vpack.c.b16 %v2037, %v2029
    %v2646 = vpack.c.b16 %v2038, %v2030
    %v2647 = vpack.c.b16 %v2039, %v2031
    %v2648 = vpack.c.b16 %v2040, %v2032
    %v2649 = vpack.c.b16 %v2041, %v2033
    %v2650 = vpack.c.b16 %v2042, %v2034
    %v2651 = vpack.c.b16 %v2043, %v2035
    %v2652 = vpack.c.b16 %v2044, %v2036
    %v2653 = vpack.c.b16 %v2053, %v2045
    %v2654 = vpack.c.b16 %v2054, %v2046
    %v2655 = vpack.c.b16 %v2055, %v2047
    %v2656 = vpack.c.b16 %v2056, %v2048
    %v2657 = vpack.c.b16 %v2057, %v2049
    %v2658 = vpack.c.b16 %v2058, %v2050
    %v2659 = vpack.c.b16 %v2059, %v2051
    %v2660 = vpack.c.b16 %v2060, %v2052
    %v2661 = vpack.c.b16 %v2069, %v2061
    %v2662 = vpack.c.b16 %v2070, %v2062
    %v2663 = vpack.c.b16 %v2071, %v2063
    %v2664 = vpack.c.b16 %v2072, %v2064
    %v2665 = vpack.c.b16 %v2073, %v2065
    %v2666 = vpack.c.b16 %v2074, %v2066
    %v2667 = vpack.c.b16 %v2075, %v2067
    %v2668 = vpack.c.b16 %v2076, %v2068
    %v2669 = vpack.c.b16 %v2085, %v2077
    %v2670 = vpack.c.b16 %v2086, %v2078
    %v2671 = vpack.c.b16 %v2087, %v2079
    %v2672 = vpack.c.b16 %v2088, %v2080
    %v2673 = vpack.c.b16 %v2089, %v2081
    %v2674 = vpack.c.b16 %v2090, %v2082
    %v2675 = vpack.c.b16 %v2091, %v2083
    %v2676 = vpack.c.b16 %v2092, %v2084
    %v2677 = vpack.c.b16 %v2101, %v2093
    %v2678 = vpack.c.b16 %v2102, %v2094
    %v2679 = vpack.c.b16 %v2103, %v2095
    %v2680 = vpack.c.b16 %v2104, %v2096
    %v2681 = vpack.c.b16 %v2105, %v2097
    %v2682 = vpack.c.b16 %v2106, %v2098
    %v2683 = vpack.c.b16 %v2107, %v2099
    %v2684 = vpack.c.b16 %v2108, %v2100
    %v2685 = vpack.c.b16 %v2117, %v2109
    %v2686 = vpack.c.b16 %v2118, %v2110
    %v2687 = vpack.c.b16 %v2119, %v2111
    %v2688 = vpack.c.b16 %v2120, %v2112
    %v2689 = vpack.c.b16 %v2121, %v2113
    %v2690 = vpack.c.b16 %v2122, %v2114
    %v2691 = vpack.c.b16 %v2123, %v2115
    %v2692 = vpack.c.b16 %v2124, %v2116
    %v2693 = vpack.c.b16 %v2133, %v2125
    %v2694 = vpack.c.b16 %v2134, %v2126
    %v2695 = vpack.c.b16 %v2135, %v2127
    %v2696 = vpack.c.b16 %v2136, %v2128
    %v2697 = vpack.c.b16 %v2137, %v2129
    %v2698 = vpack.c.b16 %v2138, %v2130
    %v2699 = vpack.c.b16 %v2139, %v2131
    %v2700 = vpack.c.b16 %v2140, %v2132
    %v2701 = vpack.c.b16 %v2149, %v2141
    %v2702 = vpack.c.b16 %v2150, %v2142
    %v2703 = vpack.c.b16 %v2151, %v2143
    %v2704 = vpack.c.b16 %v2152, %v2144
    %v2705 = vpack.c.b16 %v2153, %v2145
    %v2706 = vpack.c.b16 %v2154, %v2146
    %v2707 = vpack.c.b16 %v2155, %v2147
    %v2708 = vpack.c.b16 %v2156, %v2148
    %v2709 = vpack.c.b16 %v2165, %v2157
    %v2710 = vpack.c.b16 %v2166, %v2158
    %v2711 = vpack.c.b16 %v2167, %v2159
    %v2712 = vpack.c.b16 %v2168, %v2160
    %v2713 = vpack.c.b16 %v2169, %v2161
    %v2714 = vpack.c.b16 %v2170, %v2162
    %v2715 = vpack.c.b16 %v2171, %v2163
    %v2716 = vpack.c.b16 %v2172, %v2164
    %v2717 = vpack.c.b16 %v2181, %v2173
    %v2718 = vpack.c.b16 %v2182, %v2174
    %v2719 = vpack.c.b16 %v2183, %v2175
    %v2720 = vpack.c.b16 %v2184, %v2176
    %v2721 = vpack.c.b16 %v2185, %v2177
    %v2722 = vpack.c.b16 %v2186, %v2178
    %v2723 = vpack.c.b16 %v2187, %v2179
    %v2724 = vpack.c.b16 %v2188, %v2180
    %v2725 = vpack.c.b16 %v2197, %v2189
    %v2726 = vpack.c.b16 %v2198, %v2190
    %v2727 = vpack.c.b16 %v2199, %v2191
    %v2728 = vpack.c.b16 %v2200, %v2192
    %v2729 = vpack.c.b16 %v2201, %v2193
    %v2730 = vpack.c.b16 %v2202, %v2194
    %v2731 = vpack.c.b16 %v2203, %v2195
    %v2732 = vpack.c.b16 %v2204, %v2196
    %v2733 = vpack.c.b16 %v2213, %v2205
    %v2734 = vpack.c.b16 %v2214, %v2206
    %v2735 = vpack.c.b16 %v2215, %v2207
    %v2736 = vpack.c.b16 %v2216, %v2208
    %v2737 = vpack.c.b16 %v2217, %v2209
    %v2738 = vpack.c.b16 %v2218, %v2210
    %v2739 = vpack.c.b16 %v2219, %v2211
    %v2740 = vpack.c.b16 %v2220, %v2212
    %v2741 = vpack.c.b16 %v2229, %v2221
    %v2742 = vpack.c.b16 %v2230, %v2222
    %v2743 = vpack.c.b16 %v2231, %v2223
    %v2744 = vpack.c.b16 %v2232, %v2224
    %v2745 = vpack.c.b16 %v2233, %v2225
    %v2746 = vpack.c.b16 %v2234, %v2226
    %v2747 = vpack.c.b16 %v2235, %v2227
    %v2748 = vpack.c.b16 %v2236, %v2228
    %3261 = vmatprep.subr.bf16.mxu0 %v2238
    %3262 = vmatpush1.bf16.msra.mxu0 %v2237
    %3263 = vmatprep.subr.bf16.mxu0 %v2246
    %3264 = vmatpush1.bf16.msra.mxu0 %v2245
    %3265 = vmatprep.subr.bf16.mxu0 %v2254
    %3266 = vmatpush1.bf16.msra.mxu0 %v2253
    %3267 = vmatprep.subr.bf16.mxu0 %v2262
    %3268 = vmatpush1.bf16.msra.mxu0 %v2261
    %3269 = vmatprep.subr.bf16.mxu0 %v2270
    %3270 = vmatpush1.bf16.msra.mxu0 %v2269
    %3271 = vmatprep.subr.bf16.mxu0 %v2278
    %3272 = vmatpush1.bf16.msra.mxu0 %v2277
    %3273 = vmatprep.subr.bf16.mxu0 %v2286
    %3274 = vmatpush1.bf16.msra.mxu0 %v2285
    %3275 = vmatprep.subr.bf16.mxu0 %v2294
    %3276 = vmatpush1.bf16.msra.mxu0 %v2293
    %3277 = vmatprep.subr.bf16.mxu0 %v2302
    %3278 = vmatpush1.bf16.msra.mxu0 %v2301
    %3279 = vmatprep.subr.bf16.mxu0 %v2310
    %3280 = vmatpush1.bf16.msra.mxu0 %v2309
    %3281 = vmatprep.subr.bf16.mxu0 %v2318
    %3282 = vmatpush1.bf16.msra.mxu0 %v2317
    %3283 = vmatprep.subr.bf16.mxu0 %v2326
    %3284 = vmatpush1.bf16.msra.mxu0 %v2325
    %3285 = vmatprep.subr.bf16.mxu0 %v2334
    %3286 = vmatpush1.bf16.msra.mxu0 %v2333
    %3287 = vmatprep.subr.bf16.mxu0 %v2342
    %3288 = vmatpush1.bf16.msra.mxu0 %v2341
    %3289 = vmatprep.subr.bf16.mxu0 %v2350
    %3290 = vmatpush1.bf16.msra.mxu0 %v2349
    %3291 = vmatprep.subr.bf16.mxu0 %v2358
    %3292 = vmatpush1.bf16.msra.mxu0 %v2357
    %3293 = vmatprep.mubr.bf16.mxu0 %v686
    %3294 = vmatmul.mubr.bf16.gmra.mrb[0].mxu0 %v685
    %v3295 = vpop.f32.mrb[0].mxu0
    %v3296 = vadd.f32 %v636, %v3295
    %v3297 = vpop.f32.mrb[0].mxu0
    %v3298 = vadd.f32 %v640, %v3297
    %v3299 = vpop.f32.mrb[0].mxu0
    %v3300 = vpop.f32.mrb[0].mxu0
    %3301 = vdwg.mxu0
    %3302 = vmatprep.subr.bf16.mxu0 %v2366
    %3303 = vmatpush1.bf16.msra.mxu0 %v2365
    %3304 = vmatprep.subr.bf16.mxu0 %v2374
    %3305 = vmatpush1.bf16.msra.mxu0 %v2373
    %3306 = vmatprep.subr.bf16.mxu0 %v2382
    %3307 = vmatpush1.bf16.msra.mxu0 %v2381
    %3308 = vmatprep.subr.bf16.mxu0 %v2390
    %3309 = vmatpush1.bf16.msra.mxu0 %v2389
    %3310 = vmatprep.subr.bf16.mxu0 %v2398
    %3311 = vmatpush1.bf16.msra.mxu0 %v2397
    %3312 = vmatprep.subr.bf16.mxu0 %v2406
    %3313 = vmatpush1.bf16.msra.mxu0 %v2405
    %3314 = vmatprep.subr.bf16.mxu0 %v2414
    %3315 = vmatpush1.bf16.msra.mxu0 %v2413
    %3316 = vmatprep.subr.bf16.mxu0 %v2422
    %3317 = vmatpush1.bf16.msra.mxu0 %v2421
    %3318 = vmatprep.subr.bf16.mxu0 %v2430
    %3319 = vmatpush1.bf16.msra.mxu0 %v2429
    %3320 = vmatprep.subr.bf16.mxu0 %v2438
    %3321 = vmatpush1.bf16.msra.mxu0 %v2437
    %3322 = vmatprep.subr.bf16.mxu0 %v2446
    %3323 = vmatpush1.bf16.msra.mxu0 %v2445
    %3324 = vmatprep.subr.bf16.mxu0 %v2454
    %3325 = vmatpush1.bf16.msra.mxu0 %v2453
    %3326 = vmatprep.subr.bf16.mxu0 %v2462
    %3327 = vmatpush1.bf16.msra.mxu0 %v2461
    %3328 = vmatprep.subr.bf16.mxu0 %v2470
    %3329 = vmatpush1.bf16.msra.mxu0 %v2469
    %3330 = vmatprep.subr.bf16.mxu0 %v2478
    %3331 = vmatpush1.bf16.msra.mxu0 %v2477
    %3332 = vmatprep.subr.bf16.mxu0 %v2486
    %3333 = vmatpush1.bf16.msra.mxu0 %v2485
    %3334 = vmatprep.mubr.bf16.mxu0 %v688
    %3335 = vmatmul.mubr.bf16.gmra.mrb[0].mxu0 %v687
    %v3336 = vpop.f32.mrb[0].mxu0
    %v3337 = vadd.f32 %v3296, %v3336
    %v3338 = vpop.f32.mrb[0].mxu0
    %v3339 = vadd.f32 %v3298, %v3338
    %v3340 = vpop.f32.mrb[0].mxu0
    %v3341 = vpop.f32.mrb[0].mxu0
    %3342 = vdwg.mxu0
    %3343 = vmatprep.subr.bf16.mxu0 %v2494
    %3344 = vmatpush1.bf16.msra.mxu0 %v2493
    %3345 = vmatprep.subr.bf16.mxu0 %v2502
    %3346 = vmatpush1.bf16.msra.mxu0 %v2501
    %3347 = vmatprep.subr.bf16.mxu0 %v2510
    %3348 = vmatpush1.bf16.msra.mxu0 %v2509
    %3349 = vmatprep.subr.bf16.mxu0 %v2518
    %3350 = vmatpush1.bf16.msra.mxu0 %v2517
    %3351 = vmatprep.subr.bf16.mxu0 %v2526
    %3352 = vmatpush1.bf16.msra.mxu0 %v2525
    %3353 = vmatprep.subr.bf16.mxu0 %v2534
    %3354 = vmatpush1.bf16.msra.mxu0 %v2533
    %3355 = vmatprep.subr.bf16.mxu0 %v2542
    %3356 = vmatpush1.bf16.msra.mxu0 %v2541
    %3357 = vmatprep.subr.bf16.mxu0 %v2550
    %3358 = vmatpush1.bf16.msra.mxu0 %v2549
    %3359 = vmatprep.subr.bf16.mxu0 %v2558
    %3360 = vmatpush1.bf16.msra.mxu0 %v2557
    %3361 = vmatprep.subr.bf16.mxu0 %v2566
    %3362 = vmatpush1.bf16.msra.mxu0 %v2565
    %3363 = vmatprep.subr.bf16.mxu0 %v2574
    %3364 = vmatpush1.bf16.msra.mxu0 %v2573
    %3365 = vmatprep.subr.bf16.mxu0 %v2582
    %3366 = vmatpush1.bf16.msra.mxu0 %v2581
    %3367 = vmatprep.subr.bf16.mxu0 %v2590
    %3368 = vmatpush1.bf16.msra.mxu0 %v2589
    %3369 = vmatprep.subr.bf16.mxu0 %v2598
    %3370 = vmatpush1.bf16.msra.mxu0 %v2597
    %3371 = vmatprep.subr.bf16.mxu0 %v2606
    %3372 = vmatpush1.bf16.msra.mxu0 %v2605
    %3373 = vmatprep.subr.bf16.mxu0 %v2614
    %3374 = vmatpush1.bf16.msra.mxu0 %v2613
    %3375 = vmatprep.mubr.bf16.mxu0 %v690
    %3376 = vmatmul.mubr.bf16.gmra.mrb[0].mxu0 %v689
    %v3377 = vpop.f32.mrb[0].mxu0
    %v3378 = vadd.f32 %v3337, %v3377
    %v3379 = vpop.f32.mrb[0].mxu0
    %v3380 = vadd.f32 %v3339, %v3379
    %v3381 = vpop.f32.mrb[0].mxu0
    %v3382 = vpop.f32.mrb[0].mxu0
    %3383 = vdwg.mxu0
    %3384 = vmatprep.subr.bf16.mxu0 %v2622
    %3385 = vmatpush1.bf16.msra.mxu0 %v2621
    %3386 = vmatprep.subr.bf16.mxu0 %v2630
    %3387 = vmatpush1.bf16.msra.mxu0 %v2629
    %3388 = vmatprep.subr.bf16.mxu0 %v2638
    %3389 = vmatpush1.bf16.msra.mxu0 %v2637
    %3390 = vmatprep.subr.bf16.mxu0 %v2646
    %3391 = vmatpush1.bf16.msra.mxu0 %v2645
    %3392 = vmatprep.subr.bf16.mxu0 %v2654
    %3393 = vmatpush1.bf16.msra.mxu0 %v2653
    %3394 = vmatprep.subr.bf16.mxu0 %v2662
    %3395 = vmatpush1.bf16.msra.mxu0 %v2661
    %3396 = vmatprep.subr.bf16.mxu0 %v2670
    %3397 = vmatpush1.bf16.msra.mxu0 %v2669
    %3398 = vmatprep.subr.bf16.mxu0 %v2678
    %3399 = vmatpush1.bf16.msra.mxu0 %v2677
    %3400 = vmatprep.subr.bf16.mxu0 %v2686
    %3401 = vmatpush1.bf16.msra.mxu0 %v2685
    %3402 = vmatprep.subr.bf16.mxu0 %v2694
    %3403 = vmatpush1.bf16.msra.mxu0 %v2693
    %3404 = vmatprep.subr.bf16.mxu0 %v2702
    %3405 = vmatpush1.bf16.msra.mxu0 %v2701
    %3406 = vmatprep.subr.bf16.mxu0 %v2710
    %3407 = vmatpush1.bf16.msra.mxu0 %v2709
    %3408 = vmatprep.subr.bf16.mxu0 %v2718
    %3409 = vmatpush1.bf16.msra.mxu0 %v2717
    %3410 = vmatprep.subr.bf16.mxu0 %v2726
    %3411 = vmatpush1.bf16.msra.mxu0 %v2725
    %3412 = vmatprep.subr.bf16.mxu0 %v2734
    %3413 = vmatpush1.bf16.msra.mxu0 %v2733
    %3414 = vmatprep.subr.bf16.mxu0 %v2742
    %3415 = vmatpush1.bf16.msra.mxu0 %v2741
    %3416 = vmatprep.mubr.bf16.mxu0 %v692
    %3417 = vmatmul.mubr.bf16.gmra.mrb[0].mxu0 %v691
    %v3418 = vpop.f32.mrb[0].mxu0
    %v3419 = vadd.f32 %v3378, %v3418
    %v3420 = vpop.f32.mrb[0].mxu0
    %v3421 = vadd.f32 %v3380, %v3420
    %v3422 = vpop.f32.mrb[0].mxu0
    %v3423 = vpop.f32.mrb[0].mxu0
    %3424 = vdwg.mxu0
    %3425 = vmatprep.subr.bf16.mxu0 %v2240
    %3426 = vmatpush1.bf16.msra.mxu0 %v2239
    %3427 = vmatprep.subr.bf16.mxu0 %v2248
    %3428 = vmatpush1.bf16.msra.mxu0 %v2247
    %3429 = vmatprep.subr.bf16.mxu0 %v2256
    %3430 = vmatpush1.bf16.msra.mxu0 %v2255
    %3431 = vmatprep.subr.bf16.mxu0 %v2264
    %3432 = vmatpush1.bf16.msra.mxu0 %v2263
    %3433 = vmatprep.subr.bf16.mxu0 %v2272
    %3434 = vmatpush1.bf16.msra.mxu0 %v2271
    %3435 = vmatprep.subr.bf16.mxu0 %v2280
    %3436 = vmatpush1.bf16.msra.mxu0 %v2279
    %3437 = vmatprep.subr.bf16.mxu0 %v2288
    %3438 = vmatpush1.bf16.msra.mxu0 %v2287
    %3439 = vmatprep.subr.bf16.mxu0 %v2296
    %3440 = vmatpush1.bf16.msra.mxu0 %v2295
    %3441 = vmatprep.subr.bf16.mxu0 %v2304
    %3442 = vmatpush1.bf16.msra.mxu0 %v2303
    %3443 = vmatprep.subr.bf16.mxu0 %v2312
    %3444 = vmatpush1.bf16.msra.mxu0 %v2311
    %3445 = vmatprep.subr.bf16.mxu0 %v2320
    %3446 = vmatpush1.bf16.msra.mxu0 %v2319
    %3447 = vmatprep.subr.bf16.mxu0 %v2328
    %3448 = vmatpush1.bf16.msra.mxu0 %v2327
    %3449 = vmatprep.subr.bf16.mxu0 %v2336
    %3450 = vmatpush1.bf16.msra.mxu0 %v2335
    %3451 = vmatprep.subr.bf16.mxu0 %v2344
    %3452 = vmatpush1.bf16.msra.mxu0 %v2343
    %3453 = vmatprep.subr.bf16.mxu0 %v2352
    %3454 = vmatpush1.bf16.msra.mxu0 %v2351
    %3455 = vmatprep.subr.bf16.mxu0 %v2360
    %3456 = vmatpush1.bf16.msra.mxu0 %v2359
    %3457 = vmatprep.mubr.bf16.mxu0 %v686
    %3458 = vmatmul.mubr.bf16.gmra.mrb[0].mxu0 %v685
    %v3459 = vpop.f32.mrb[0].mxu0
    %v3460 = vadd.f32 %v644, %v3459
    %v3461 = vpop.f32.mrb[0].mxu0
    %v3462 = vadd.f32 %v648, %v3461
    %v3463 = vpop.f32.mrb[0].mxu0
    %v3464 = vpop.f32.mrb[0].mxu0
    %3465 = vdwg.mxu0
    %3466 = vmatprep.subr.bf16.mxu0 %v2368
    %3467 = vmatpush1.bf16.msra.mxu0 %v2367
    %3468 = vmatprep.subr.bf16.mxu0 %v2376
    %3469 = vmatpush1.bf16.msra.mxu0 %v2375
    %3470 = vmatprep.subr.bf16.mxu0 %v2384
    %3471 = vmatpush1.bf16.msra.mxu0 %v2383
    %3472 = vmatprep.subr.bf16.mxu0 %v2392
    %3473 = vmatpush1.bf16.msra.mxu0 %v2391
    %3474 = vmatprep.subr.bf16.mxu0 %v2400
    %3475 = vmatpush1.bf16.msra.mxu0 %v2399
    %3476 = vmatprep.subr.bf16.mxu0 %v2408
    %3477 = vmatpush1.bf16.msra.mxu0 %v2407
    %3478 = vmatprep.subr.bf16.mxu0 %v2416
    %3479 = vmatpush1.bf16.msra.mxu0 %v2415
    %3480 = vmatprep.subr.bf16.mxu0 %v2424
    %3481 = vmatpush1.bf16.msra.mxu0 %v2423
    %3482 = vmatprep.subr.bf16.mxu0 %v2432
    %3483 = vmatpush1.bf16.msra.mxu0 %v2431
    %3484 = vmatprep.subr.bf16.mxu0 %v2440
    %3485 = vmatpush1.bf16.msra.mxu0 %v2439
    %3486 = vmatprep.subr.bf16.mxu0 %v2448
    %3487 = vmatpush1.bf16.msra.mxu0 %v2447
    %3488 = vmatprep.subr.bf16.mxu0 %v2456
    %3489 = vmatpush1.bf16.msra.mxu0 %v2455
    %3490 = vmatprep.subr.bf16.mxu0 %v2464
    %3491 = vmatpush1.bf16.msra.mxu0 %v2463
    %3492 = vmatprep.subr.bf16.mxu0 %v2472
    %3493 = vmatpush1.bf16.msra.mxu0 %v2471
    %3494 = vmatprep.subr.bf16.mxu0 %v2480
    %3495 = vmatpush1.bf16.msra.mxu0 %v2479
    %3496 = vmatprep.subr.bf16.mxu0 %v2488
    %3497 = vmatpush1.bf16.msra.mxu0 %v2487
    %3498 = vmatprep.mubr.bf16.mxu0 %v688
    %3499 = vmatmul.mubr.bf16.gmra.mrb[0].mxu0 %v687
    %v3500 = vpop.f32.mrb[0].mxu0
    %v3501 = vadd.f32 %v3460, %v3500
    %v3502 = vpop.f32.mrb[0].mxu0
    %v3503 = vadd.f32 %v3462, %v3502
    %v3504 = vpop.f32.mrb[0].mxu0
    %v3505 = vpop.f32.mrb[0].mxu0
    %3506 = vdwg.mxu0
    %3507 = vmatprep.subr.bf16.mxu0 %v2496
    %3508 = vmatpush1.bf16.msra.mxu0 %v2495
    %3509 = vmatprep.subr.bf16.mxu0 %v2504
    %3510 = vmatpush1.bf16.msra.mxu0 %v2503
    %3511 = vmatprep.subr.bf16.mxu0 %v2512
    %3512 = vmatpush1.bf16.msra.mxu0 %v2511
    %3513 = vmatprep.subr.bf16.mxu0 %v2520
    %3514 = vmatpush1.bf16.msra.mxu0 %v2519
    %3515 = vmatprep.subr.bf16.mxu0 %v2528
    %3516 = vmatpush1.bf16.msra.mxu0 %v2527
    %3517 = vmatprep.subr.bf16.mxu0 %v2536
    %3518 = vmatpush1.bf16.msra.mxu0 %v2535
    %3519 = vmatprep.subr.bf16.mxu0 %v2544
    %3520 = vmatpush1.bf16.msra.mxu0 %v2543
    %3521 = vmatprep.subr.bf16.mxu0 %v2552
    %3522 = vmatpush1.bf16.msra.mxu0 %v2551
    %3523 = vmatprep.subr.bf16.mxu0 %v2560
    %3524 = vmatpush1.bf16.msra.mxu0 %v2559
    %3525 = vmatprep.subr.bf16.mxu0 %v2568
    %3526 = vmatpush1.bf16.msra.mxu0 %v2567
    %3527 = vmatprep.subr.bf16.mxu0 %v2576
    %3528 = vmatpush1.bf16.msra.mxu0 %v2575
    %3529 = vmatprep.subr.bf16.mxu0 %v2584
    %3530 = vmatpush1.bf16.msra.mxu0 %v2583
    %3531 = vmatprep.subr.bf16.mxu0 %v2592
    %3532 = vmatpush1.bf16.msra.mxu0 %v2591
    %3533 = vmatprep.subr.bf16.mxu0 %v2600
    %3534 = vmatpush1.bf16.msra.mxu0 %v2599
    %3535 = vmatprep.subr.bf16.mxu0 %v2608
    %3536 = vmatpush1.bf16.msra.mxu0 %v2607
    %3537 = vmatprep.subr.bf16.mxu0 %v2616
    %3538 = vmatpush1.bf16.msra.mxu0 %v2615
    %3539 = vmatprep.mubr.bf16.mxu0 %v690
    %3540 = vmatmul.mubr.bf16.gmra.mrb[0].mxu0 %v689
    %v3541 = vpop.f32.mrb[0].mxu0
    %v3542 = vadd.f32 %v3501, %v3541
    %v3543 = vpop.f32.mrb[0].mxu0
    %v3544 = vadd.f32 %v3503, %v3543
    %v3545 = vpop.f32.mrb[0].mxu0
    %v3546 = vpop.f32.mrb[0].mxu0
    %3547 = vdwg.mxu0
    %3548 = vmatprep.subr.bf16.mxu0 %v2624
    %3549 = vmatpush1.bf16.msra.mxu0 %v2623
    %3550 = vmatprep.subr.bf16.mxu0 %v2632
    %3551 = vmatpush1.bf16.msra.mxu0 %v2631
    %3552 = vmatprep.subr.bf16.mxu0 %v2640
    %3553 = vmatpush1.bf16.msra.mxu0 %v2639
    %3554 = vmatprep.subr.bf16.mxu0 %v2648
    %3555 = vmatpush1.bf16.msra.mxu0 %v2647
    %3556 = vmatprep.subr.bf16.mxu0 %v2656
    %3557 = vmatpush1.bf16.msra.mxu0 %v2655
    %3558 = vmatprep.subr.bf16.mxu0 %v2664
    %3559 = vmatpush1.bf16.msra.mxu0 %v2663
    %3560 = vmatprep.subr.bf16.mxu0 %v2672
    %3561 = vmatpush1.bf16.msra.mxu0 %v2671
    %3562 = vmatprep.subr.bf16.mxu0 %v2680
    %3563 = vmatpush1.bf16.msra.mxu0 %v2679
    %3564 = vmatprep.subr.bf16.mxu0 %v2688
    %3565 = vmatpush1.bf16.msra.mxu0 %v2687
    %3566 = vmatprep.subr.bf16.mxu0 %v2696
    %3567 = vmatpush1.bf16.msra.mxu0 %v2695
    %3568 = vmatprep.subr.bf16.mxu0 %v2704
    %3569 = vmatpush1.bf16.msra.mxu0 %v2703
    %3570 = vmatprep.subr.bf16.mxu0 %v2712
    %3571 = vmatpush1.bf16.msra.mxu0 %v2711
    %3572 = vmatprep.subr.bf16.mxu0 %v2720
    %3573 = vmatpush1.bf16.msra.mxu0 %v2719
    %3574 = vmatprep.subr.bf16.mxu0 %v2728
    %3575 = vmatpush1.bf16.msra.mxu0 %v2727
    %3576 = vmatprep.subr.bf16.mxu0 %v2736
    %3577 = vmatpush1.bf16.msra.mxu0 %v2735
    %3578 = vmatprep.subr.bf16.mxu0 %v2744
    %3579 = vmatpush1.bf16.msra.mxu0 %v2743
    %3580 = vmatprep.mubr.bf16.mxu0 %v692
    %3581 = vmatmul.mubr.bf16.gmra.mrb[0].mxu0 %v691
    %v3582 = vpop.f32.mrb[0].mxu0
    %v3583 = vadd.f32 %v3542, %v3582
    %v3584 = vpop.f32.mrb[0].mxu0
    %v3585 = vadd.f32 %v3544, %v3584
    %v3586 = vpop.f32.mrb[0].mxu0
    %v3587 = vpop.f32.mrb[0].mxu0
    %3588 = vdwg.mxu0
    %3589 = vmatprep.subr.bf16.mxu0 %v2242
    %3590 = vmatpush1.bf16.msra.mxu0 %v2241
    %3591 = vmatprep.subr.bf16.mxu0 %v2250
    %3592 = vmatpush1.bf16.msra.mxu0 %v2249
    %3593 = vmatprep.subr.bf16.mxu0 %v2258
    %3594 = vmatpush1.bf16.msra.mxu0 %v2257
    %3595 = vmatprep.subr.bf16.mxu0 %v2266
    %3596 = vmatpush1.bf16.msra.mxu0 %v2265
    %3597 = vmatprep.subr.bf16.mxu0 %v2274
    %3598 = vmatpush1.bf16.msra.mxu0 %v2273
    %3599 = vmatprep.subr.bf16.mxu0 %v2282
    %3600 = vmatpush1.bf16.msra.mxu0 %v2281
    %3601 = vmatprep.subr.bf16.mxu0 %v2290
    %3602 = vmatpush1.bf16.msra.mxu0 %v2289
    %3603 = vmatprep.subr.bf16.mxu0 %v2298
    %3604 = vmatpush1.bf16.msra.mxu0 %v2297
    %3605 = vmatprep.subr.bf16.mxu0 %v2306
    %3606 = vmatpush1.bf16.msra.mxu0 %v2305
    %3607 = vmatprep.subr.bf16.mxu0 %v2314
    %3608 = vmatpush1.bf16.msra.mxu0 %v2313
    %3609 = vmatprep.subr.bf16.mxu0 %v2322
    %3610 = vmatpush1.bf16.msra.mxu0 %v2321
    %3611 = vmatprep.subr.bf16.mxu0 %v2330
    %3612 = vmatpush1.bf16.msra.mxu0 %v2329
    %3613 = vmatprep.subr.bf16.mxu0 %v2338
    %3614 = vmatpush1.bf16.msra.mxu0 %v2337
    %3615 = vmatprep.subr.bf16.mxu0 %v2346
    %3616 = vmatpush1.bf16.msra.mxu0 %v2345
    %3617 = vmatprep.subr.bf16.mxu0 %v2354
    %3618 = vmatpush1.bf16.msra.mxu0 %v2353
    %3619 = vmatprep.subr.bf16.mxu0 %v2362
    %3620 = vmatpush1.bf16.msra.mxu0 %v2361
    %3621 = vmatprep.mubr.bf16.mxu0 %v686
    %3622 = vmatmul.mubr.bf16.gmra.mrb[0].mxu0 %v685
    %v3623 = vpop.f32.mrb[0].mxu0
    %v3624 = vadd.f32 %v652, %v3623
    %v3625 = vpop.f32.mrb[0].mxu0
    %v3626 = vadd.f32 %v656, %v3625
    %v3627 = vpop.f32.mrb[0].mxu0
    %v3628 = vpop.f32.mrb[0].mxu0
    %3629 = vdwg.mxu0
    %3630 = vmatprep.subr.bf16.mxu0 %v2370
    %3631 = vmatpush1.bf16.msra.mxu0 %v2369
    %3632 = vmatprep.subr.bf16.mxu0 %v2378
    %3633 = vmatpush1.bf16.msra.mxu0 %v2377
    %3634 = vmatprep.subr.bf16.mxu0 %v2386
    %3635 = vmatpush1.bf16.msra.mxu0 %v2385
    %3636 = vmatprep.subr.bf16.mxu0 %v2394
    %3637 = vmatpush1.bf16.msra.mxu0 %v2393
    %3638 = vmatprep.subr.bf16.mxu0 %v2402
    %3639 = vmatpush1.bf16.msra.mxu0 %v2401
    %3640 = vmatprep.subr.bf16.mxu0 %v2410
    %3641 = vmatpush1.bf16.msra.mxu0 %v2409
    %3642 = vmatprep.subr.bf16.mxu0 %v2418
    %3643 = vmatpush1.bf16.msra.mxu0 %v2417
    %3644 = vmatprep.subr.bf16.mxu0 %v2426
    %3645 = vmatpush1.bf16.msra.mxu0 %v2425
    %3646 = vmatprep.subr.bf16.mxu0 %v2434
    %3647 = vmatpush1.bf16.msra.mxu0 %v2433
    %3648 = vmatprep.subr.bf16.mxu0 %v2442
    %3649 = vmatpush1.bf16.msra.mxu0 %v2441
    %3650 = vmatprep.subr.bf16.mxu0 %v2450
    %3651 = vmatpush1.bf16.msra.mxu0 %v2449
    %3652 = vmatprep.subr.bf16.mxu0 %v2458
    %3653 = vmatpush1.bf16.msra.mxu0 %v2457
    %3654 = vmatprep.subr.bf16.mxu0 %v2466
    %3655 = vmatpush1.bf16.msra.mxu0 %v2465
    %3656 = vmatprep.subr.bf16.mxu0 %v2474
    %3657 = vmatpush1.bf16.msra.mxu0 %v2473
    %3658 = vmatprep.subr.bf16.mxu0 %v2482
    %3659 = vmatpush1.bf16.msra.mxu0 %v2481
    %3660 = vmatprep.subr.bf16.mxu0 %v2490
    %3661 = vmatpush1.bf16.msra.mxu0 %v2489
    %3662 = vmatprep.mubr.bf16.mxu0 %v688
    %3663 = vmatmul.mubr.bf16.gmra.mrb[0].mxu0 %v687
    %v3664 = vpop.f32.mrb[0].mxu0
    %v3665 = vadd.f32 %v3624, %v3664
    %v3666 = vpop.f32.mrb[0].mxu0
    %v3667 = vadd.f32 %v3626, %v3666
    %v3668 = vpop.f32.mrb[0].mxu0
    %v3669 = vpop.f32.mrb[0].mxu0
    %3670 = vdwg.mxu0
    %3671 = vmatprep.subr.bf16.mxu0 %v2498
    %3672 = vmatpush1.bf16.msra.mxu0 %v2497
    %3673 = vmatprep.subr.bf16.mxu0 %v2506
    %3674 = vmatpush1.bf16.msra.mxu0 %v2505
    %3675 = vmatprep.subr.bf16.mxu0 %v2514
    %3676 = vmatpush1.bf16.msra.mxu0 %v2513
    %3677 = vmatprep.subr.bf16.mxu0 %v2522
    %3678 = vmatpush1.bf16.msra.mxu0 %v2521
    %3679 = vmatprep.subr.bf16.mxu0 %v2530
    %3680 = vmatpush1.bf16.msra.mxu0 %v2529
    %3681 = vmatprep.subr.bf16.mxu0 %v2538
    %3682 = vmatpush1.bf16.msra.mxu0 %v2537
    %3683 = vmatprep.subr.bf16.mxu0 %v2546
    %3684 = vmatpush1.bf16.msra.mxu0 %v2545
    %3685 = vmatprep.subr.bf16.mxu0 %v2554
    %3686 = vmatpush1.bf16.msra.mxu0 %v2553
    %3687 = vmatprep.subr.bf16.mxu0 %v2562
    %3688 = vmatpush1.bf16.msra.mxu0 %v2561
    %3689 = vmatprep.subr.bf16.mxu0 %v2570
    %3690 = vmatpush1.bf16.msra.mxu0 %v2569
    %3691 = vmatprep.subr.bf16.mxu0 %v2578
    %3692 = vmatpush1.bf16.msra.mxu0 %v2577
    %3693 = vmatprep.subr.bf16.mxu0 %v2586
    %3694 = vmatpush1.bf16.msra.mxu0 %v2585
    %3695 = vmatprep.subr.bf16.mxu0 %v2594
    %3696 = vmatpush1.bf16.msra.mxu0 %v2593
    %3697 = vmatprep.subr.bf16.mxu0 %v2602
    %3698 = vmatpush1.bf16.msra.mxu0 %v2601
    %3699 = vmatprep.subr.bf16.mxu0 %v2610
    %3700 = vmatpush1.bf16.msra.mxu0 %v2609
    %3701 = vmatprep.subr.bf16.mxu0 %v2618
    %3702 = vmatpush1.bf16.msra.mxu0 %v2617
    %3703 = vmatprep.mubr.bf16.mxu0 %v690
    %3704 = vmatmul.mubr.bf16.gmra.mrb[0].mxu0 %v689
    %v3705 = vpop.f32.mrb[0].mxu0
    %v3706 = vadd.f32 %v3665, %v3705
    %v3707 = vpop.f32.mrb[0].mxu0
    %v3708 = vadd.f32 %v3667, %v3707
    %v3709 = vpop.f32.mrb[0].mxu0
    %v3710 = vpop.f32.mrb[0].mxu0
    %3711 = vdwg.mxu0
    %3712 = vmatprep.subr.bf16.mxu0 %v2626
    %3713 = vmatpush1.bf16.msra.mxu0 %v2625
    %3714 = vmatprep.subr.bf16.mxu0 %v2634
    %3715 = vmatpush1.bf16.msra.mxu0 %v2633
    %3716 = vmatprep.subr.bf16.mxu0 %v2642
    %3717 = vmatpush1.bf16.msra.mxu0 %v2641
    %3718 = vmatprep.subr.bf16.mxu0 %v2650
    %3719 = vmatpush1.bf16.msra.mxu0 %v2649
    %3720 = vmatprep.subr.bf16.mxu0 %v2658
    %3721 = vmatpush1.bf16.msra.mxu0 %v2657
    %3722 = vmatprep.subr.bf16.mxu0 %v2666
    %3723 = vmatpush1.bf16.msra.mxu0 %v2665
    %3724 = vmatprep.subr.bf16.mxu0 %v2674
    %3725 = vmatpush1.bf16.msra.mxu0 %v2673
    %3726 = vmatprep.subr.bf16.mxu0 %v2682
    %3727 = vmatpush1.bf16.msra.mxu0 %v2681
    %3728 = vmatprep.subr.bf16.mxu0 %v2690
    %3729 = vmatpush1.bf16.msra.mxu0 %v2689
    %3730 = vmatprep.subr.bf16.mxu0 %v2698
    %3731 = vmatpush1.bf16.msra.mxu0 %v2697
    %3732 = vmatprep.subr.bf16.mxu0 %v2706
    %3733 = vmatpush1.bf16.msra.mxu0 %v2705
    %3734 = vmatprep.subr.bf16.mxu0 %v2714
    %3735 = vmatpush1.bf16.msra.mxu0 %v2713
    %3736 = vmatprep.subr.bf16.mxu0 %v2722
    %3737 = vmatpush1.bf16.msra.mxu0 %v2721
    %3738 = vmatprep.subr.bf16.mxu0 %v2730
    %3739 = vmatpush1.bf16.msra.mxu0 %v2729
    %3740 = vmatprep.subr.bf16.mxu0 %v2738
    %3741 = vmatpush1.bf16.msra.mxu0 %v2737
    %3742 = vmatprep.subr.bf16.mxu0 %v2746
    %3743 = vmatpush1.bf16.msra.mxu0 %v2745
    %3744 = vmatprep.mubr.bf16.mxu0 %v692
    %3745 = vmatmul.mubr.bf16.gmra.mrb[0].mxu0 %v691
    %v3746 = vpop.f32.mrb[0].mxu0
    %v3747 = vadd.f32 %v3706, %v3746
    %v3748 = vpop.f32.mrb[0].mxu0
    %v3749 = vadd.f32 %v3708, %v3748
    %v3750 = vpop.f32.mrb[0].mxu0
    %v3751 = vpop.f32.mrb[0].mxu0
    %3752 = vdwg.mxu0
    %3753 = vmatprep.subr.bf16.mxu0 %v2244
    %3754 = vmatpush1.bf16.msra.mxu0 %v2243
    %3755 = vmatprep.subr.bf16.mxu0 %v2252
    %3756 = vmatpush1.bf16.msra.mxu0 %v2251
    %3757 = vmatprep.subr.bf16.mxu0 %v2260
    %3758 = vmatpush1.bf16.msra.mxu0 %v2259
    %3759 = vmatprep.subr.bf16.mxu0 %v2268
    %3760 = vmatpush1.bf16.msra.mxu0 %v2267
    %3761 = vmatprep.subr.bf16.mxu0 %v2276
    %3762 = vmatpush1.bf16.msra.mxu0 %v2275
    %3763 = vmatprep.subr.bf16.mxu0 %v2284
    %3764 = vmatpush1.bf16.msra.mxu0 %v2283
    %3765 = vmatprep.subr.bf16.mxu0 %v2292
    %3766 = vmatpush1.bf16.msra.mxu0 %v2291
    %3767 = vmatprep.subr.bf16.mxu0 %v2300
    %3768 = vmatpush1.bf16.msra.mxu0 %v2299
    %3769 = vmatprep.subr.bf16.mxu0 %v2308
    %3770 = vmatpush1.bf16.msra.mxu0 %v2307
    %3771 = vmatprep.subr.bf16.mxu0 %v2316
    %3772 = vmatpush1.bf16.msra.mxu0 %v2315
    %3773 = vmatprep.subr.bf16.mxu0 %v2324
    %3774 = vmatpush1.bf16.msra.mxu0 %v2323
    %3775 = vmatprep.subr.bf16.mxu0 %v2332
    %3776 = vmatpush1.bf16.msra.mxu0 %v2331
    %3777 = vmatprep.subr.bf16.mxu0 %v2340
    %3778 = vmatpush1.bf16.msra.mxu0 %v2339
    %3779 = vmatprep.subr.bf16.mxu0 %v2348
    %3780 = vmatpush1.bf16.msra.mxu0 %v2347
    %3781 = vmatprep.subr.bf16.mxu0 %v2356
    %3782 = vmatpush1.bf16.msra.mxu0 %v2355
    %3783 = vmatprep.subr.bf16.mxu0 %v2364
    %3784 = vmatpush1.bf16.msra.mxu0 %v2363
    %3785 = vmatprep.mubr.bf16.mxu0 %v686
    %3786 = vmatmul.mubr.bf16.gmra.mrb[0].mxu0 %v685
    %v3787 = vpop.f32.mrb[0].mxu0
    %v3788 = vadd.f32 %v660, %v3787
    %v3789 = vpop.f32.mrb[0].mxu0
    %v3790 = vadd.f32 %v664, %v3789
    %v3791 = vpop.f32.mrb[0].mxu0
    %v3792 = vpop.f32.mrb[0].mxu0
    %3793 = vdwg.mxu0
    %3794 = vmatprep.subr.bf16.mxu0 %v2372
    %3795 = vmatpush1.bf16.msra.mxu0 %v2371
    %3796 = vmatprep.subr.bf16.mxu0 %v2380
    %3797 = vmatpush1.bf16.msra.mxu0 %v2379
    %3798 = vmatprep.subr.bf16.mxu0 %v2388
    %3799 = vmatpush1.bf16.msra.mxu0 %v2387
    %3800 = vmatprep.subr.bf16.mxu0 %v2396
    %3801 = vmatpush1.bf16.msra.mxu0 %v2395
    %3802 = vmatprep.subr.bf16.mxu0 %v2404
    %3803 = vmatpush1.bf16.msra.mxu0 %v2403
    %3804 = vmatprep.subr.bf16.mxu0 %v2412
    %3805 = vmatpush1.bf16.msra.mxu0 %v2411
    %3806 = vmatprep.subr.bf16.mxu0 %v2420
    %3807 = vmatpush1.bf16.msra.mxu0 %v2419
    %3808 = vmatprep.subr.bf16.mxu0 %v2428
    %3809 = vmatpush1.bf16.msra.mxu0 %v2427
    %3810 = vmatprep.subr.bf16.mxu0 %v2436
    %3811 = vmatpush1.bf16.msra.mxu0 %v2435
    %3812 = vmatprep.subr.bf16.mxu0 %v2444
    %3813 = vmatpush1.bf16.msra.mxu0 %v2443
    %3814 = vmatprep.subr.bf16.mxu0 %v2452
    %3815 = vmatpush1.bf16.msra.mxu0 %v2451
    %3816 = vmatprep.subr.bf16.mxu0 %v2460
    %3817 = vmatpush1.bf16.msra.mxu0 %v2459
    %3818 = vmatprep.subr.bf16.mxu0 %v2468
    %3819 = vmatpush1.bf16.msra.mxu0 %v2467
    %3820 = vmatprep.subr.bf16.mxu0 %v2476
    %3821 = vmatpush1.bf16.msra.mxu0 %v2475
    %3822 = vmatprep.subr.bf16.mxu0 %v2484
    %3823 = vmatpush1.bf16.msra.mxu0 %v2483
    %3824 = vmatprep.subr.bf16.mxu0 %v2492
    %3825 = vmatpush1.bf16.msra.mxu0 %v2491
    %3826 = vmatprep.mubr.bf16.mxu0 %v688
    %3827 = vmatmul.mubr.bf16.gmra.mrb[0].mxu0 %v687
    %v3828 = vpop.f32.mrb[0].mxu0
    %v3829 = vadd.f32 %v3788, %v3828
    %v3830 = vpop.f32.mrb[0].mxu0
    %v3831 = vadd.f32 %v3790, %v3830
    %v3832 = vpop.f32.mrb[0].mxu0
    %v3833 = vpop.f32.mrb[0].mxu0
    %3834 = vdwg.mxu0
    %3835 = vmatprep.subr.bf16.mxu0 %v2500
    %3836 = vmatpush1.bf16.msra.mxu0 %v2499
    %3837 = vmatprep.subr.bf16.mxu0 %v2508
    %3838 = vmatpush1.bf16.msra.mxu0 %v2507
    %3839 = vmatprep.subr.bf16.mxu0 %v2516
    %3840 = vmatpush1.bf16.msra.mxu0 %v2515
    %3841 = vmatprep.subr.bf16.mxu0 %v2524
    %3842 = vmatpush1.bf16.msra.mxu0 %v2523
    %3843 = vmatprep.subr.bf16.mxu0 %v2532
    %3844 = vmatpush1.bf16.msra.mxu0 %v2531
    %3845 = vmatprep.subr.bf16.mxu0 %v2540
    %3846 = vmatpush1.bf16.msra.mxu0 %v2539
    %3847 = vmatprep.subr.bf16.mxu0 %v2548
    %3848 = vmatpush1.bf16.msra.mxu0 %v2547
    %3849 = vmatprep.subr.bf16.mxu0 %v2556
    %3850 = vmatpush1.bf16.msra.mxu0 %v2555
    %3851 = vmatprep.subr.bf16.mxu0 %v2564
    %3852 = vmatpush1.bf16.msra.mxu0 %v2563
    %3853 = vmatprep.subr.bf16.mxu0 %v2572
    %3854 = vmatpush1.bf16.msra.mxu0 %v2571
    %3855 = vmatprep.subr.bf16.mxu0 %v2580
    %3856 = vmatpush1.bf16.msra.mxu0 %v2579
    %3857 = vmatprep.subr.bf16.mxu0 %v2588
    %3858 = vmatpush1.bf16.msra.mxu0 %v2587
    %3859 = vmatprep.subr.bf16.mxu0 %v2596
    %3860 = vmatpush1.bf16.msra.mxu0 %v2595
    %3861 = vmatprep.subr.bf16.mxu0 %v2604
    %3862 = vmatpush1.bf16.msra.mxu0 %v2603
    %3863 = vmatprep.subr.bf16.mxu0 %v2612
    %3864 = vmatpush1.bf16.msra.mxu0 %v2611
    %3865 = vmatprep.subr.bf16.mxu0 %v2620
    %3866 = vmatpush1.bf16.msra.mxu0 %v2619
    %3867 = vmatprep.mubr.bf16.mxu0 %v690
    %3868 = vmatmul.mubr.bf16.gmra.mrb[0].mxu0 %v689
    %v3869 = vpop.f32.mrb[0].mxu0
    %v3870 = vadd.f32 %v3829, %v3869
    %v3871 = vpop.f32.mrb[0].mxu0
    %v3872 = vadd.f32 %v3831, %v3871
    %v3873 = vpop.f32.mrb[0].mxu0
    %v3874 = vpop.f32.mrb[0].mxu0
    %3875 = vdwg.mxu0
    %3876 = vmatprep.subr.bf16.mxu0 %v2628
    %3877 = vmatpush1.bf16.msra.mxu0 %v2627
    %3878 = vmatprep.subr.bf16.mxu0 %v2636
    %3879 = vmatpush1.bf16.msra.mxu0 %v2635
    %3880 = vmatprep.subr.bf16.mxu0 %v2644
    %3881 = vmatpush1.bf16.msra.mxu0 %v2643
    %3882 = vmatprep.subr.bf16.mxu0 %v2652
    %3883 = vmatpush1.bf16.msra.mxu0 %v2651
    %3884 = vmatprep.subr.bf16.mxu0 %v2660
    %3885 = vmatpush1.bf16.msra.mxu0 %v2659
    %3886 = vmatprep.subr.bf16.mxu0 %v2668
    %3887 = vmatpush1.bf16.msra.mxu0 %v2667
    %3888 = vmatprep.subr.bf16.mxu0 %v2676
    %3889 = vmatpush1.bf16.msra.mxu0 %v2675
    %3890 = vmatprep.subr.bf16.mxu0 %v2684
    %3891 = vmatpush1.bf16.msra.mxu0 %v2683
    %3892 = vmatprep.subr.bf16.mxu0 %v2692
    %3893 = vmatpush1.bf16.msra.mxu0 %v2691
    %3894 = vmatprep.subr.bf16.mxu0 %v2700
    %3895 = vmatpush1.bf16.msra.mxu0 %v2699
    %3896 = vmatprep.subr.bf16.mxu0 %v2708
    %3897 = vmatpush1.bf16.msra.mxu0 %v2707
    %3898 = vmatprep.subr.bf16.mxu0 %v2716
    %3899 = vmatpush1.bf16.msra.mxu0 %v2715
    %3900 = vmatprep.subr.bf16.mxu0 %v2724
    %3901 = vmatpush1.bf16.msra.mxu0 %v2723
    %3902 = vmatprep.subr.bf16.mxu0 %v2732
    %3903 = vmatpush1.bf16.msra.mxu0 %v2731
    %3904 = vmatprep.subr.bf16.mxu0 %v2740
    %3905 = vmatpush1.bf16.msra.mxu0 %v2739
    %3906 = vmatprep.subr.bf16.mxu0 %v2748
    %3907 = vmatpush1.bf16.msra.mxu0 %v2747
    %3908 = vmatprep.mubr.bf16.mxu0 %v692
    %3909 = vmatmul.mubr.bf16.gmra.mrb[0].mxu0 %v691
    %v3910 = vpop.f32.mrb[0].mxu0
    %v3911 = vadd.f32 %v3870, %v3910
    %v3912 = vpop.f32.mrb[0].mxu0
    %v3913 = vadd.f32 %v3872, %v3912
    %v3914 = vpop.f32.mrb[0].mxu0
    %v3915 = vpop.f32.mrb[0].mxu0
    %3916 = vdwg.mxu0
    %v3917 = vtanh.pop %v3419
    %v3918 = vtanh.pop %v3421
    %v3919 = vtanh.pop %v3583
    %v3920 = vtanh.pop %v3585
    %v3921 = vtanh.pop %v3747
    %v3922 = vtanh.pop %v3749
    %v3923 = vtanh.pop %v3911
    %v3924 = vtanh.pop %v3913
    %v3925 = vpack.c.bf16 %v3917, %v3917
    %v3926 = vpack.c.bf16 %v3918, %v3918
    %v3927 = vpack.c.bf16 %v3919, %v3919
    %v3928 = vpack.c.bf16 %v3920, %v3920
    %v3929 = vpack.c.bf16 %v3921, %v3921
    %v3930 = vpack.c.bf16 %v3922, %v3922
    %v3931 = vpack.c.bf16 %v3923, %v3923
    %v3932 = vpack.c.bf16 %v3924, %v3924
    %v3933 = vld [vmem:[#allocation8] sm:$0xff]
    %v3934 = vld [vmem:[#allocation8 + $0x8] sm:$0xff]
    %v3935 = vld [vmem:[#allocation8 + $0x10] sm:$0xff]
    %v3936 = vld [vmem:[#allocation8 + $0x18] sm:$0xff]
    %v3937 = vld [vmem:[#allocation8 + $0x20] sm:$0xff]
    %v3938 = vld [vmem:[#allocation8 + $0x28] sm:$0xff]
    %v3939 = vld [vmem:[#allocation8 + $0x30] sm:$0xff]
    %v3940 = vld [vmem:[#allocation8 + $0x38] sm:$0xff]
    %v3941 = vld [vmem:[#allocation8 + $0x40] sm:$0xff]
    %v3942 = vld [vmem:[#allocation8 + $0x48] sm:$0xff]
    %v3943 = vld [vmem:[#allocation8 + $0x50] sm:$0xff]
    %v3944 = vld [vmem:[#allocation8 + $0x58] sm:$0xff]
    %v3945 = vld [vmem:[#allocation8 + $0x60] sm:$0xff]
    %v3946 = vld [vmem:[#allocation8 + $0x68] sm:$0xff]
    %v3947 = vld [vmem:[#allocation8 + $0x70] sm:$0xff]
    %v3948 = vld [vmem:[#allocation8 + $0x78] sm:$0xff]
    %v3949 = vld [vmem:[#allocation8 + $0x80] sm:$0xff]
    %v3950 = vld [vmem:[#allocation8 + $0x88] sm:$0xff]
    %v3951 = vld [vmem:[#allocation8 + $0x90] sm:$0xff]
    %v3952 = vld [vmem:[#allocation8 + $0x98] sm:$0xff]
    %v3953 = vld [vmem:[#allocation8 + $0xa0] sm:$0xff]
    %v3954 = vld [vmem:[#allocation8 + $0xa8] sm:$0xff]
    %v3955 = vld [vmem:[#allocation8 + $0xb0] sm:$0xff]
    %v3956 = vld [vmem:[#allocation8 + $0xb8] sm:$0xff]
    %v3957 = vld [vmem:[#allocation8 + $0xc0] sm:$0xff]
    %v3958 = vld [vmem:[#allocation8 + $0xc8] sm:$0xff]
    %v3959 = vld [vmem:[#allocation8 + $0xd0] sm:$0xff]
    %v3960 = vld [vmem:[#allocation8 + $0xd8] sm:$0xff]
    %v3961 = vld [vmem:[#allocation8 + $0xe0] sm:$0xff]
    %v3962 = vld [vmem:[#allocation8 + $0xe8] sm:$0xff]
    %v3963 = vld [vmem:[#allocation8 + $0xf0] sm:$0xff]
    %v3964 = vld [vmem:[#allocation8 + $0xf8] sm:$0xff]
    %v3965 = vld [vmem:[#allocation8 + $0x100] sm:$0xff]
    %v3966 = vld [vmem:[#allocation8 + $0x108] sm:$0xff]
    %v3967 = vld [vmem:[#allocation8 + $0x110] sm:$0xff]
    %v3968 = vld [vmem:[#allocation8 + $0x118] sm:$0xff]
    %v3969 = vld [vmem:[#allocation8 + $0x120] sm:$0xff]
    %v3970 = vld [vmem:[#allocation8 + $0x128] sm:$0xff]
    %v3971 = vld [vmem:[#allocation8 + $0x130] sm:$0xff]
    %v3972 = vld [vmem:[#allocation8 + $0x138] sm:$0xff]
    %v3973 = vld [vmem:[#allocation8 + $0x140] sm:$0xff]
    %v3974 = vld [vmem:[#allocation8 + $0x148] sm:$0xff]
    %v3975 = vld [vmem:[#allocation8 + $0x150] sm:$0xff]
    %v3976 = vld [vmem:[#allocation8 + $0x158] sm:$0xff]
    %v3977 = vld [vmem:[#allocation8 + $0x160] sm:$0xff]
    %v3978 = vld [vmem:[#allocation8 + $0x168] sm:$0xff]
    %v3979 = vld [vmem:[#allocation8 + $0x170] sm:$0xff]
    %v3980 = vld [vmem:[#allocation8 + $0x178] sm:$0xff]
    %v3981 = vld [vmem:[#allocation8 + $0x180] sm:$0xff]
    %v3982 = vld [vmem:[#allocation8 + $0x188] sm:$0xff]
    %v3983 = vld [vmem:[#allocation8 + $0x190] sm:$0xff]
    %v3984 = vld [vmem:[#allocation8 + $0x198] sm:$0xff]
    %v3985 = vld [vmem:[#allocation8 + $0x1a0] sm:$0xff]
    %v3986 = vld [vmem:[#allocation8 + $0x1a8] sm:$0xff]
    %v3987 = vld [vmem:[#allocation8 + $0x1b0] sm:$0xff]
    %v3988 = vld [vmem:[#allocation8 + $0x1b8] sm:$0xff]
    %v3989 = vld [vmem:[#allocation8 + $0x1c0] sm:$0xff]
    %v3990 = vld [vmem:[#allocation8 + $0x1c8] sm:$0xff]
    %v3991 = vld [vmem:[#allocation8 + $0x1d0] sm:$0xff]
    %v3992 = vld [vmem:[#allocation8 + $0x1d8] sm:$0xff]
    %v3993 = vld [vmem:[#allocation8 + $0x1e0] sm:$0xff]
    %v3994 = vld [vmem:[#allocation8 + $0x1e8] sm:$0xff]
    %v3995 = vld [vmem:[#allocation8 + $0x1f0] sm:$0xff]
    %v3996 = vld [vmem:[#allocation8 + $0x1f8] sm:$0xff]
    %v3997 = vld [vmem:[#allocation8 + $0x200] sm:$0xff]
    %v3998 = vld [vmem:[#allocation8 + $0x208] sm:$0xff]
    %v3999 = vld [vmem:[#allocation8 + $0x210] sm:$0xff]
    %v4000 = vld [vmem:[#allocation8 + $0x218] sm:$0xff]
    %v4001 = vld [vmem:[#allocation8 + $0x220] sm:$0xff]
    %v4002 = vld [vmem:[#allocation8 + $0x228] sm:$0xff]
    %v4003 = vld [vmem:[#allocation8 + $0x230] sm:$0xff]
    %v4004 = vld [vmem:[#allocation8 + $0x238] sm:$0xff]
    %v4005 = vld [vmem:[#allocation8 + $0x240] sm:$0xff]
    %v4006 = vld [vmem:[#allocation8 + $0x248] sm:$0xff]
    %v4007 = vld [vmem:[#allocation8 + $0x250] sm:$0xff]
    %v4008 = vld [vmem:[#allocation8 + $0x258] sm:$0xff]
    %v4009 = vld [vmem:[#allocation8 + $0x260] sm:$0xff]
    %v4010 = vld [vmem:[#allocation8 + $0x268] sm:$0xff]
    %v4011 = vld [vmem:[#allocation8 + $0x270] sm:$0xff]
    %v4012 = vld [vmem:[#allocation8 + $0x278] sm:$0xff]
    %v4013 = vld [vmem:[#allocation8 + $0x280] sm:$0xff]
    %v4014 = vld [vmem:[#allocation8 + $0x288] sm:$0xff]
    %v4015 = vld [vmem:[#allocation8 + $0x290] sm:$0xff]
    %v4016 = vld [vmem:[#allocation8 + $0x298] sm:$0xff]
    %v4017 = vld [vmem:[#allocation8 + $0x2a0] sm:$0xff]
    %v4018 = vld [vmem:[#allocation8 + $0x2a8] sm:$0xff]
    %v4019 = vld [vmem:[#allocation8 + $0x2b0] sm:$0xff]
    %v4020 = vld [vmem:[#allocation8 + $0x2b8] sm:$0xff]
    %v4021 = vld [vmem:[#allocation8 + $0x2c0] sm:$0xff]
    %v4022 = vld [vmem:[#allocation8 + $0x2c8] sm:$0xff]
    %v4023 = vld [vmem:[#allocation8 + $0x2d0] sm:$0xff]
    %v4024 = vld [vmem:[#allocation8 + $0x2d8] sm:$0xff]
    %v4025 = vld [vmem:[#allocation8 + $0x2e0] sm:$0xff]
    %v4026 = vld [vmem:[#allocation8 + $0x2e8] sm:$0xff]
    %v4027 = vld [vmem:[#allocation8 + $0x2f0] sm:$0xff]
    %v4028 = vld [vmem:[#allocation8 + $0x2f8] sm:$0xff]
    %v4029 = vld [vmem:[#allocation8 + $0x300] sm:$0xff]
    %v4030 = vld [vmem:[#allocation8 + $0x308] sm:$0xff]
    %v4031 = vld [vmem:[#allocation8 + $0x310] sm:$0xff]
    %v4032 = vld [vmem:[#allocation8 + $0x318] sm:$0xff]
    %v4033 = vld [vmem:[#allocation8 + $0x320] sm:$0xff]
    %v4034 = vld [vmem:[#allocation8 + $0x328] sm:$0xff]
    %v4035 = vld [vmem:[#allocation8 + $0x330] sm:$0xff]
    %v4036 = vld [vmem:[#allocation8 + $0x338] sm:$0xff]
    %v4037 = vld [vmem:[#allocation8 + $0x340] sm:$0xff]
    %v4038 = vld [vmem:[#allocation8 + $0x348] sm:$0xff]
    %v4039 = vld [vmem:[#allocation8 + $0x350] sm:$0xff]
    %v4040 = vld [vmem:[#allocation8 + $0x358] sm:$0xff]
    %v4041 = vld [vmem:[#allocation8 + $0x360] sm:$0xff]
    %v4042 = vld [vmem:[#allocation8 + $0x368] sm:$0xff]
    %v4043 = vld [vmem:[#allocation8 + $0x370] sm:$0xff]
    %v4044 = vld [vmem:[#allocation8 + $0x378] sm:$0xff]
    %v4045 = vld [vmem:[#allocation8 + $0x380] sm:$0xff]
    %v4046 = vld [vmem:[#allocation8 + $0x388] sm:$0xff]
    %v4047 = vld [vmem:[#allocation8 + $0x390] sm:$0xff]
    %v4048 = vld [vmem:[#allocation8 + $0x398] sm:$0xff]
    %v4049 = vld [vmem:[#allocation8 + $0x3a0] sm:$0xff]
    %v4050 = vld [vmem:[#allocation8 + $0x3a8] sm:$0xff]
    %v4051 = vld [vmem:[#allocation8 + $0x3b0] sm:$0xff]
    %v4052 = vld [vmem:[#allocation8 + $0x3b8] sm:$0xff]
    %v4053 = vld [vmem:[#allocation8 + $0x3c0] sm:$0xff]
    %v4054 = vld [vmem:[#allocation8 + $0x3c8] sm:$0xff]
    %v4055 = vld [vmem:[#allocation8 + $0x3d0] sm:$0xff]
    %v4056 = vld [vmem:[#allocation8 + $0x3d8] sm:$0xff]
    %v4057 = vld [vmem:[#allocation8 + $0x3e0] sm:$0xff]
    %v4058 = vld [vmem:[#allocation8 + $0x3e8] sm:$0xff]
    %v4059 = vld [vmem:[#allocation8 + $0x3f0] sm:$0xff]
    %v4060 = vld [vmem:[#allocation8 + $0x3f8] sm:$0xff]
    %v4061 = vld [vmem:[#allocation8 + $0x400] sm:$0xff]
    %v4062 = vld [vmem:[#allocation8 + $0x408] sm:$0xff]
    %v4063 = vld [vmem:[#allocation8 + $0x410] sm:$0xff]
    %v4064 = vld [vmem:[#allocation8 + $0x418] sm:$0xff]
    %v4065 = vld [vmem:[#allocation8 + $0x420] sm:$0xff]
    %v4066 = vld [vmem:[#allocation8 + $0x428] sm:$0xff]
    %v4067 = vld [vmem:[#allocation8 + $0x430] sm:$0xff]
    %v4068 = vld [vmem:[#allocation8 + $0x438] sm:$0xff]
    %v4069 = vld [vmem:[#allocation8 + $0x440] sm:$0xff]
    %v4070 = vld [vmem:[#allocation8 + $0x448] sm:$0xff]
    %v4071 = vld [vmem:[#allocation8 + $0x450] sm:$0xff]
    %v4072 = vld [vmem:[#allocation8 + $0x458] sm:$0xff]
    %v4073 = vld [vmem:[#allocation8 + $0x460] sm:$0xff]
    %v4074 = vld [vmem:[#allocation8 + $0x468] sm:$0xff]
    %v4075 = vld [vmem:[#allocation8 + $0x470] sm:$0xff]
    %v4076 = vld [vmem:[#allocation8 + $0x478] sm:$0xff]
    %v4077 = vld [vmem:[#allocation8 + $0x480] sm:$0xff]
    %v4078 = vld [vmem:[#allocation8 + $0x488] sm:$0xff]
    %v4079 = vld [vmem:[#allocation8 + $0x490] sm:$0xff]
    %v4080 = vld [vmem:[#allocation8 + $0x498] sm:$0xff]
    %v4081 = vld [vmem:[#allocation8 + $0x4a0] sm:$0xff]
    %v4082 = vld [vmem:[#allocation8 + $0x4a8] sm:$0xff]
    %v4083 = vld [vmem:[#allocation8 + $0x4b0] sm:$0xff]
    %v4084 = vld [vmem:[#allocation8 + $0x4b8] sm:$0xff]
    %v4085 = vld [vmem:[#allocation8 + $0x4c0] sm:$0xff]
    %v4086 = vld [vmem:[#allocation8 + $0x4c8] sm:$0xff]
    %v4087 = vld [vmem:[#allocation8 + $0x4d0] sm:$0xff]
    %v4088 = vld [vmem:[#allocation8 + $0x4d8] sm:$0xff]
    %v4089 = vld [vmem:[#allocation8 + $0x4e0] sm:$0xff]
    %v4090 = vld [vmem:[#allocation8 + $0x4e8] sm:$0xff]
    %v4091 = vld [vmem:[#allocation8 + $0x4f0] sm:$0xff]
    %v4092 = vld [vmem:[#allocation8 + $0x4f8] sm:$0xff]
    %v4093 = vld [vmem:[#allocation8 + $0x500] sm:$0xff]
    %v4094 = vld [vmem:[#allocation8 + $0x508] sm:$0xff]
    %v4095 = vld [vmem:[#allocation8 + $0x510] sm:$0xff]
    %v4096 = vld [vmem:[#allocation8 + $0x518] sm:$0xff]
    %v4097 = vld [vmem:[#allocation8 + $0x520] sm:$0xff]
    %v4098 = vld [vmem:[#allocation8 + $0x528] sm:$0xff]
    %v4099 = vld [vmem:[#allocation8 + $0x530] sm:$0xff]
    %v4100 = vld [vmem:[#allocation8 + $0x538] sm:$0xff]
    %v4101 = vld [vmem:[#allocation8 + $0x540] sm:$0xff]
    %v4102 = vld [vmem:[#allocation8 + $0x548] sm:$0xff]
    %v4103 = vld [vmem:[#allocation8 + $0x550] sm:$0xff]
    %v4104 = vld [vmem:[#allocation8 + $0x558] sm:$0xff]
    %v4105 = vld [vmem:[#allocation8 + $0x560] sm:$0xff]
    %v4106 = vld [vmem:[#allocation8 + $0x568] sm:$0xff]
    %v4107 = vld [vmem:[#allocation8 + $0x570] sm:$0xff]
    %v4108 = vld [vmem:[#allocation8 + $0x578] sm:$0xff]
    %v4109 = vld [vmem:[#allocation8 + $0x580] sm:$0xff]
    %v4110 = vld [vmem:[#allocation8 + $0x588] sm:$0xff]
    %v4111 = vld [vmem:[#allocation8 + $0x590] sm:$0xff]
    %v4112 = vld [vmem:[#allocation8 + $0x598] sm:$0xff]
    %v4113 = vld [vmem:[#allocation8 + $0x5a0] sm:$0xff]
    %v4114 = vld [vmem:[#allocation8 + $0x5a8] sm:$0xff]
    %v4115 = vld [vmem:[#allocation8 + $0x5b0] sm:$0xff]
    %v4116 = vld [vmem:[#allocation8 + $0x5b8] sm:$0xff]
    %v4117 = vld [vmem:[#allocation8 + $0x5c0] sm:$0xff]
    %v4118 = vld [vmem:[#allocation8 + $0x5c8] sm:$0xff]
    %v4119 = vld [vmem:[#allocation8 + $0x5d0] sm:$0xff]
    %v4120 = vld [vmem:[#allocation8 + $0x5d8] sm:$0xff]
    %v4121 = vld [vmem:[#allocation8 + $0x5e0] sm:$0xff]
    %v4122 = vld [vmem:[#allocation8 + $0x5e8] sm:$0xff]
    %v4123 = vld [vmem:[#allocation8 + $0x5f0] sm:$0xff]
    %v4124 = vld [vmem:[#allocation8 + $0x5f8] sm:$0xff]
    %v4125 = vld [vmem:[#allocation8 + $0x600] sm:$0xff]
    %v4126 = vld [vmem:[#allocation8 + $0x608] sm:$0xff]
    %v4127 = vld [vmem:[#allocation8 + $0x610] sm:$0xff]
    %v4128 = vld [vmem:[#allocation8 + $0x618] sm:$0xff]
    %v4129 = vld [vmem:[#allocation8 + $0x620] sm:$0xff]
    %v4130 = vld [vmem:[#allocation8 + $0x628] sm:$0xff]
    %v4131 = vld [vmem:[#allocation8 + $0x630] sm:$0xff]
    %v4132 = vld [vmem:[#allocation8 + $0x638] sm:$0xff]
    %v4133 = vld [vmem:[#allocation8 + $0x640] sm:$0xff]
    %v4134 = vld [vmem:[#allocation8 + $0x648] sm:$0xff]
    %v4135 = vld [vmem:[#allocation8 + $0x650] sm:$0xff]
    %v4136 = vld [vmem:[#allocation8 + $0x658] sm:$0xff]
    %v4137 = vld [vmem:[#allocation8 + $0x660] sm:$0xff]
    %v4138 = vld [vmem:[#allocation8 + $0x668] sm:$0xff]
    %v4139 = vld [vmem:[#allocation8 + $0x670] sm:$0xff]
    %v4140 = vld [vmem:[#allocation8 + $0x678] sm:$0xff]
    %v4141 = vld [vmem:[#allocation8 + $0x680] sm:$0xff]
    %v4142 = vld [vmem:[#allocation8 + $0x688] sm:$0xff]
    %v4143 = vld [vmem:[#allocation8 + $0x690] sm:$0xff]
    %v4144 = vld [vmem:[#allocation8 + $0x698] sm:$0xff]
    %v4145 = vld [vmem:[#allocation8 + $0x6a0] sm:$0xff]
    %v4146 = vld [vmem:[#allocation8 + $0x6a8] sm:$0xff]
    %v4147 = vld [vmem:[#allocation8 + $0x6b0] sm:$0xff]
    %v4148 = vld [vmem:[#allocation8 + $0x6b8] sm:$0xff]
    %v4149 = vld [vmem:[#allocation8 + $0x6c0] sm:$0xff]
    %v4150 = vld [vmem:[#allocation8 + $0x6c8] sm:$0xff]
    %v4151 = vld [vmem:[#allocation8 + $0x6d0] sm:$0xff]
    %v4152 = vld [vmem:[#allocation8 + $0x6d8] sm:$0xff]
    %v4153 = vld [vmem:[#allocation8 + $0x6e0] sm:$0xff]
    %v4154 = vld [vmem:[#allocation8 + $0x6e8] sm:$0xff]
    %v4155 = vld [vmem:[#allocation8 + $0x6f0] sm:$0xff]
    %v4156 = vld [vmem:[#allocation8 + $0x6f8] sm:$0xff]
    %v4157 = vld [vmem:[#allocation8 + $0x700] sm:$0xff]
    %v4158 = vld [vmem:[#allocation8 + $0x708] sm:$0xff]
    %v4159 = vld [vmem:[#allocation8 + $0x710] sm:$0xff]
    %v4160 = vld [vmem:[#allocation8 + $0x718] sm:$0xff]
    %v4161 = vld [vmem:[#allocation8 + $0x720] sm:$0xff]
    %v4162 = vld [vmem:[#allocation8 + $0x728] sm:$0xff]
    %v4163 = vld [vmem:[#allocation8 + $0x730] sm:$0xff]
    %v4164 = vld [vmem:[#allocation8 + $0x738] sm:$0xff]
    %v4165 = vld [vmem:[#allocation8 + $0x740] sm:$0xff]
    %v4166 = vld [vmem:[#allocation8 + $0x748] sm:$0xff]
    %v4167 = vld [vmem:[#allocation8 + $0x750] sm:$0xff]
    %v4168 = vld [vmem:[#allocation8 + $0x758] sm:$0xff]
    %v4169 = vld [vmem:[#allocation8 + $0x760] sm:$0xff]
    %v4170 = vld [vmem:[#allocation8 + $0x768] sm:$0xff]
    %v4171 = vld [vmem:[#allocation8 + $0x770] sm:$0xff]
    %v4172 = vld [vmem:[#allocation8 + $0x778] sm:$0xff]
    %v4173 = vld [vmem:[#allocation8 + $0x780] sm:$0xff]
    %v4174 = vld [vmem:[#allocation8 + $0x788] sm:$0xff]
    %v4175 = vld [vmem:[#allocation8 + $0x790] sm:$0xff]
    %v4176 = vld [vmem:[#allocation8 + $0x798] sm:$0xff]
    %v4177 = vld [vmem:[#allocation8 + $0x7a0] sm:$0xff]
    %v4178 = vld [vmem:[#allocation8 + $0x7a8] sm:$0xff]
    %v4179 = vld [vmem:[#allocation8 + $0x7b0] sm:$0xff]
    %v4180 = vld [vmem:[#allocation8 + $0x7b8] sm:$0xff]
    %v4181 = vld [vmem:[#allocation8 + $0x7c0] sm:$0xff]
    %v4182 = vld [vmem:[#allocation8 + $0x7c8] sm:$0xff]
    %v4183 = vld [vmem:[#allocation8 + $0x7d0] sm:$0xff]
    %v4184 = vld [vmem:[#allocation8 + $0x7d8] sm:$0xff]
    %v4185 = vld [vmem:[#allocation8 + $0x7e0] sm:$0xff]
    %v4186 = vld [vmem:[#allocation8 + $0x7e8] sm:$0xff]
    %v4187 = vld [vmem:[#allocation8 + $0x7f0] sm:$0xff]
    %v4188 = vld [vmem:[#allocation8 + $0x7f8] sm:$0xff]
    %v4189 = vld [vmem:[#allocation8 + $0x800] sm:$0xff]
    %v4190 = vld [vmem:[#allocation8 + $0x808] sm:$0xff]
    %v4191 = vld [vmem:[#allocation8 + $0x810] sm:$0xff]
    %v4192 = vld [vmem:[#allocation8 + $0x818] sm:$0xff]
    %v4193 = vld [vmem:[#allocation8 + $0x820] sm:$0xff]
    %v4194 = vld [vmem:[#allocation8 + $0x828] sm:$0xff]
    %v4195 = vld [vmem:[#allocation8 + $0x830] sm:$0xff]
    %v4196 = vld [vmem:[#allocation8 + $0x838] sm:$0xff]
    %v4197 = vld [vmem:[#allocation8 + $0x840] sm:$0xff]
    %v4198 = vld [vmem:[#allocation8 + $0x848] sm:$0xff]
    %v4199 = vld [vmem:[#allocation8 + $0x850] sm:$0xff]
    %v4200 = vld [vmem:[#allocation8 + $0x858] sm:$0xff]
    %v4201 = vld [vmem:[#allocation8 + $0x860] sm:$0xff]
    %v4202 = vld [vmem:[#allocation8 + $0x868] sm:$0xff]
    %v4203 = vld [vmem:[#allocation8 + $0x870] sm:$0xff]
    %v4204 = vld [vmem:[#allocation8 + $0x878] sm:$0xff]
    %v4205 = vld [vmem:[#allocation8 + $0x880] sm:$0xff]
    %v4206 = vld [vmem:[#allocation8 + $0x888] sm:$0xff]
    %v4207 = vld [vmem:[#allocation8 + $0x890] sm:$0xff]
    %v4208 = vld [vmem:[#allocation8 + $0x898] sm:$0xff]
    %v4209 = vld [vmem:[#allocation8 + $0x8a0] sm:$0xff]
    %v4210 = vld [vmem:[#allocation8 + $0x8a8] sm:$0xff]
    %v4211 = vld [vmem:[#allocation8 + $0x8b0] sm:$0xff]
    %v4212 = vld [vmem:[#allocation8 + $0x8b8] sm:$0xff]
    %v4213 = vld [vmem:[#allocation8 + $0x8c0] sm:$0xff]
    %v4214 = vld [vmem:[#allocation8 + $0x8c8] sm:$0xff]
    %v4215 = vld [vmem:[#allocation8 + $0x8d0] sm:$0xff]
    %v4216 = vld [vmem:[#allocation8 + $0x8d8] sm:$0xff]
    %v4217 = vld [vmem:[#allocation8 + $0x8e0] sm:$0xff]
    %v4218 = vld [vmem:[#allocation8 + $0x8e8] sm:$0xff]
    %v4219 = vld [vmem:[#allocation8 + $0x8f0] sm:$0xff]
    %v4220 = vld [vmem:[#allocation8 + $0x8f8] sm:$0xff]
    %v4221 = vld [vmem:[#allocation8 + $0x900] sm:$0xff]
    %v4222 = vld [vmem:[#allocation8 + $0x908] sm:$0xff]
    %v4223 = vld [vmem:[#allocation8 + $0x910] sm:$0xff]
    %v4224 = vld [vmem:[#allocation8 + $0x918] sm:$0xff]
    %v4225 = vld [vmem:[#allocation8 + $0x920] sm:$0xff]
    %v4226 = vld [vmem:[#allocation8 + $0x928] sm:$0xff]
    %v4227 = vld [vmem:[#allocation8 + $0x930] sm:$0xff]
    %v4228 = vld [vmem:[#allocation8 + $0x938] sm:$0xff]
    %v4229 = vld [vmem:[#allocation8 + $0x940] sm:$0xff]
    %v4230 = vld [vmem:[#allocation8 + $0x948] sm:$0xff]
    %v4231 = vld [vmem:[#allocation8 + $0x950] sm:$0xff]
    %v4232 = vld [vmem:[#allocation8 + $0x958] sm:$0xff]
    %v4233 = vld [vmem:[#allocation8 + $0x960] sm:$0xff]
    %v4234 = vld [vmem:[#allocation8 + $0x968] sm:$0xff]
    %v4235 = vld [vmem:[#allocation8 + $0x970] sm:$0xff]
    %v4236 = vld [vmem:[#allocation8 + $0x978] sm:$0xff]
    %v4237 = vld [vmem:[#allocation8 + $0x980] sm:$0xff]
    %v4238 = vld [vmem:[#allocation8 + $0x988] sm:$0xff]
    %v4239 = vld [vmem:[#allocation8 + $0x990] sm:$0xff]
    %v4240 = vld [vmem:[#allocation8 + $0x998] sm:$0xff]
    %v4241 = vld [vmem:[#allocation8 + $0x9a0] sm:$0xff]
    %v4242 = vld [vmem:[#allocation8 + $0x9a8] sm:$0xff]
    %v4243 = vld [vmem:[#allocation8 + $0x9b0] sm:$0xff]
    %v4244 = vld [vmem:[#allocation8 + $0x9b8] sm:$0xff]
    %v4245 = vld [vmem:[#allocation8 + $0x9c0] sm:$0xff]
    %v4246 = vld [vmem:[#allocation8 + $0x9c8] sm:$0xff]
    %v4247 = vld [vmem:[#allocation8 + $0x9d0] sm:$0xff]
    %v4248 = vld [vmem:[#allocation8 + $0x9d8] sm:$0xff]
    %v4249 = vld [vmem:[#allocation8 + $0x9e0] sm:$0xff]
    %v4250 = vld [vmem:[#allocation8 + $0x9e8] sm:$0xff]
    %v4251 = vld [vmem:[#allocation8 + $0x9f0] sm:$0xff]
    %v4252 = vld [vmem:[#allocation8 + $0x9f8] sm:$0xff]
    %v4253 = vld [vmem:[#allocation8 + $0xa00] sm:$0xff]
    %v4254 = vld [vmem:[#allocation8 + $0xa08] sm:$0xff]
    %v4255 = vld [vmem:[#allocation8 + $0xa10] sm:$0xff]
    %v4256 = vld [vmem:[#allocation8 + $0xa18] sm:$0xff]
    %v4257 = vld [vmem:[#allocation8 + $0xa20] sm:$0xff]
    %v4258 = vld [vmem:[#allocation8 + $0xa28] sm:$0xff]
    %v4259 = vld [vmem:[#allocation8 + $0xa30] sm:$0xff]
    %v4260 = vld [vmem:[#allocation8 + $0xa38] sm:$0xff]
    %v4261 = vld [vmem:[#allocation8 + $0xa40] sm:$0xff]
    %v4262 = vld [vmem:[#allocation8 + $0xa48] sm:$0xff]
    %v4263 = vld [vmem:[#allocation8 + $0xa50] sm:$0xff]
    %v4264 = vld [vmem:[#allocation8 + $0xa58] sm:$0xff]
    %v4265 = vld [vmem:[#allocation8 + $0xa60] sm:$0xff]
    %v4266 = vld [vmem:[#allocation8 + $0xa68] sm:$0xff]
    %v4267 = vld [vmem:[#allocation8 + $0xa70] sm:$0xff]
    %v4268 = vld [vmem:[#allocation8 + $0xa78] sm:$0xff]
    %v4269 = vld [vmem:[#allocation8 + $0xa80] sm:$0xff]
    %v4270 = vld [vmem:[#allocation8 + $0xa88] sm:$0xff]
    %v4271 = vld [vmem:[#allocation8 + $0xa90] sm:$0xff]
    %v4272 = vld [vmem:[#allocation8 + $0xa98] sm:$0xff]
    %v4273 = vld [vmem:[#allocation8 + $0xaa0] sm:$0xff]
    %v4274 = vld [vmem:[#allocation8 + $0xaa8] sm:$0xff]
    %v4275 = vld [vmem:[#allocation8 + $0xab0] sm:$0xff]
    %v4276 = vld [vmem:[#allocation8 + $0xab8] sm:$0xff]
    %v4277 = vld [vmem:[#allocation8 + $0xac0] sm:$0xff]
    %v4278 = vld [vmem:[#allocation8 + $0xac8] sm:$0xff]
    %v4279 = vld [vmem:[#allocation8 + $0xad0] sm:$0xff]
    %v4280 = vld [vmem:[#allocation8 + $0xad8] sm:$0xff]
    %v4281 = vld [vmem:[#allocation8 + $0xae0] sm:$0xff]
    %v4282 = vld [vmem:[#allocation8 + $0xae8] sm:$0xff]
    %v4283 = vld [vmem:[#allocation8 + $0xaf0] sm:$0xff]
    %v4284 = vld [vmem:[#allocation8 + $0xaf8] sm:$0xff]
    %v4285 = vld [vmem:[#allocation8 + $0xb00] sm:$0xff]
    %v4286 = vld [vmem:[#allocation8 + $0xb08] sm:$0xff]
    %v4287 = vld [vmem:[#allocation8 + $0xb10] sm:$0xff]
    %v4288 = vld [vmem:[#allocation8 + $0xb18] sm:$0xff]
    %v4289 = vld [vmem:[#allocation8 + $0xb20] sm:$0xff]
    %v4290 = vld [vmem:[#allocation8 + $0xb28] sm:$0xff]
    %v4291 = vld [vmem:[#allocation8 + $0xb30] sm:$0xff]
    %v4292 = vld [vmem:[#allocation8 + $0xb38] sm:$0xff]
    %v4293 = vld [vmem:[#allocation8 + $0xb40] sm:$0xff]
    %v4294 = vld [vmem:[#allocation8 + $0xb48] sm:$0xff]
    %v4295 = vld [vmem:[#allocation8 + $0xb50] sm:$0xff]
    %v4296 = vld [vmem:[#allocation8 + $0xb58] sm:$0xff]
    %v4297 = vld [vmem:[#allocation8 + $0xb60] sm:$0xff]
    %v4298 = vld [vmem:[#allocation8 + $0xb68] sm:$0xff]
    %v4299 = vld [vmem:[#allocation8 + $0xb70] sm:$0xff]
    %v4300 = vld [vmem:[#allocation8 + $0xb78] sm:$0xff]
    %v4301 = vld [vmem:[#allocation8 + $0xb80] sm:$0xff]
    %v4302 = vld [vmem:[#allocation8 + $0xb88] sm:$0xff]
    %v4303 = vld [vmem:[#allocation8 + $0xb90] sm:$0xff]
    %v4304 = vld [vmem:[#allocation8 + $0xb98] sm:$0xff]
    %v4305 = vld [vmem:[#allocation8 + $0xba0] sm:$0xff]
    %v4306 = vld [vmem:[#allocation8 + $0xba8] sm:$0xff]
    %v4307 = vld [vmem:[#allocation8 + $0xbb0] sm:$0xff]
    %v4308 = vld [vmem:[#allocation8 + $0xbb8] sm:$0xff]
    %v4309 = vld [vmem:[#allocation8 + $0xbc0] sm:$0xff]
    %v4310 = vld [vmem:[#allocation8 + $0xbc8] sm:$0xff]
    %v4311 = vld [vmem:[#allocation8 + $0xbd0] sm:$0xff]
    %v4312 = vld [vmem:[#allocation8 + $0xbd8] sm:$0xff]
    %v4313 = vld [vmem:[#allocation8 + $0xbe0] sm:$0xff]
    %v4314 = vld [vmem:[#allocation8 + $0xbe8] sm:$0xff]
    %v4315 = vld [vmem:[#allocation8 + $0xbf0] sm:$0xff]
    %v4316 = vld [vmem:[#allocation8 + $0xbf8] sm:$0xff]
    %v4317 = vld [vmem:[#allocation10] sm:$0x3f]
    %v4319 = vlaneseq
    %v4320 = vshrl.u32 %v4319, 7
    %v4321 = vsub.s32 0, %v4320
    %v4322 = vrot.slane %v4317, %v4321
    %v4323 = vlaneseq
    %v4324 = vshrl.u32 %v4323, 7
    %v4325 = vsub.s32 1, %v4324
    %v4326 = vrot.slane %v4317, %v4325
    %v4327 = vlaneseq
    %v4328 = vshrl.u32 %v4327, 7
    %v4329 = vsub.s32 2, %v4328
    %v4330 = vrot.slane %v4317, %v4329
    %v4331 = vlaneseq
    %v4332 = vshrl.u32 %v4331, 7
    %v4333 = vsub.s32 3, %v4332
    %v4334 = vrot.slane %v4317, %v4333
    %v4335 = vlaneseq
    %v4336 = vshrl.u32 %v4335, 7
    %v4337 = vsub.s32 4, %v4336
    %v4338 = vrot.slane %v4317, %v4337
    %v4339 = vlaneseq
    %v4340 = vshrl.u32 %v4339, 7
    %v4341 = vsub.s32 5, %v4340
    %v4342 = vrot.slane %v4317, %v4341
    %v4733 = vunpack.c.l.b16 %v3933
    %v4734 = vunpack.c.h.b16 %v3933
    %v4735 = vunpack.c.l.b16 %v3934
    %v4736 = vunpack.c.h.b16 %v3934
    %v4737 = vunpack.c.l.b16 %v3935
    %v4738 = vunpack.c.h.b16 %v3935
    %v4739 = vunpack.c.l.b16 %v3936
    %v4740 = vunpack.c.h.b16 %v3936
    %v4741 = vunpack.c.l.b16 %v3937
    %v4742 = vunpack.c.h.b16 %v3937
    %v4743 = vunpack.c.l.b16 %v3938
    %v4744 = vunpack.c.h.b16 %v3938
    %v4745 = vunpack.c.l.b16 %v3939
    %v4746 = vunpack.c.h.b16 %v3939
    %v4747 = vunpack.c.l.b16 %v3940
    %v4748 = vunpack.c.h.b16 %v3940
    %v4749 = vunpack.c.l.b16 %v3941
    %v4750 = vunpack.c.h.b16 %v3941
    %v4751 = vunpack.c.l.b16 %v3942
    %v4752 = vunpack.c.h.b16 %v3942
    %v4753 = vunpack.c.l.b16 %v3943
    %v4754 = vunpack.c.h.b16 %v3943
    %v4755 = vunpack.c.l.b16 %v3944
    %v4756 = vunpack.c.h.b16 %v3944
    %v4757 = vunpack.c.l.b16 %v3945
    %v4758 = vunpack.c.h.b16 %v3945
    %v4759 = vunpack.c.l.b16 %v3946
    %v4760 = vunpack.c.h.b16 %v3946
    %v4761 = vunpack.c.l.b16 %v3947
    %v4762 = vunpack.c.h.b16 %v3947
    %v4763 = vunpack.c.l.b16 %v3948
    %v4764 = vunpack.c.h.b16 %v3948
    %v4765 = vunpack.c.l.b16 %v3949
    %v4766 = vunpack.c.h.b16 %v3949
    %v4767 = vunpack.c.l.b16 %v3950
    %v4768 = vunpack.c.h.b16 %v3950
    %v4769 = vunpack.c.l.b16 %v3951
    %v4770 = vunpack.c.h.b16 %v3951
    %v4771 = vunpack.c.l.b16 %v3952
    %v4772 = vunpack.c.h.b16 %v3952
    %v4773 = vunpack.c.l.b16 %v3953
    %v4774 = vunpack.c.h.b16 %v3953
    %v4775 = vunpack.c.l.b16 %v3954
    %v4776 = vunpack.c.h.b16 %v3954
    %v4777 = vunpack.c.l.b16 %v3955
    %v4778 = vunpack.c.h.b16 %v3955
    %v4779 = vunpack.c.l.b16 %v3956
    %v4780 = vunpack.c.h.b16 %v3956
    %v4781 = vunpack.c.l.b16 %v3957
    %v4782 = vunpack.c.h.b16 %v3957
    %v4783 = vunpack.c.l.b16 %v3958
    %v4784 = vunpack.c.h.b16 %v3958
    %v4785 = vunpack.c.l.b16 %v3959
    %v4786 = vunpack.c.h.b16 %v3959
    %v4787 = vunpack.c.l.b16 %v3960
    %v4788 = vunpack.c.h.b16 %v3960
    %v4789 = vunpack.c.l.b16 %v3961
    %v4790 = vunpack.c.h.b16 %v3961
    %v4791 = vunpack.c.l.b16 %v3962
    %v4792 = vunpack.c.h.b16 %v3962
    %v4793 = vunpack.c.l.b16 %v3963
    %v4794 = vunpack.c.h.b16 %v3963
    %v4795 = vunpack.c.l.b16 %v3964
    %v4796 = vunpack.c.h.b16 %v3964
    %v4797 = vunpack.c.l.b16 %v3965
    %v4798 = vunpack.c.h.b16 %v3965
    %v4799 = vunpack.c.l.b16 %v3966
    %v4800 = vunpack.c.h.b16 %v3966
    %v4801 = vunpack.c.l.b16 %v3967
    %v4802 = vunpack.c.h.b16 %v3967
    %v4803 = vunpack.c.l.b16 %v3968
    %v4804 = vunpack.c.h.b16 %v3968
    %v4805 = vunpack.c.l.b16 %v3969
    %v4806 = vunpack.c.h.b16 %v3969
    %v4807 = vunpack.c.l.b16 %v3970
    %v4808 = vunpack.c.h.b16 %v3970
    %v4809 = vunpack.c.l.b16 %v3971
    %v4810 = vunpack.c.h.b16 %v3971
    %v4811 = vunpack.c.l.b16 %v3972
    %v4812 = vunpack.c.h.b16 %v3972
    %v4813 = vunpack.c.l.b16 %v3973
    %v4814 = vunpack.c.h.b16 %v3973
    %v4815 = vunpack.c.l.b16 %v3974
    %v4816 = vunpack.c.h.b16 %v3974
    %v4817 = vunpack.c.l.b16 %v3975
    %v4818 = vunpack.c.h.b16 %v3975
    %v4819 = vunpack.c.l.b16 %v3976
    %v4820 = vunpack.c.h.b16 %v3976
    %v4821 = vunpack.c.l.b16 %v3977
    %v4822 = vunpack.c.h.b16 %v3977
    %v4823 = vunpack.c.l.b16 %v3978
    %v4824 = vunpack.c.h.b16 %v3978
    %v4825 = vunpack.c.l.b16 %v3979
    %v4826 = vunpack.c.h.b16 %v3979
    %v4827 = vunpack.c.l.b16 %v3980
    %v4828 = vunpack.c.h.b16 %v3980
    %v4829 = vunpack.c.l.b16 %v3981
    %v4830 = vunpack.c.h.b16 %v3981
    %v4831 = vunpack.c.l.b16 %v3982
    %v4832 = vunpack.c.h.b16 %v3982
    %v4833 = vunpack.c.l.b16 %v3983
    %v4834 = vunpack.c.h.b16 %v3983
    %v4835 = vunpack.c.l.b16 %v3984
    %v4836 = vunpack.c.h.b16 %v3984
    %v4837 = vunpack.c.l.b16 %v3985
    %v4838 = vunpack.c.h.b16 %v3985
    %v4839 = vunpack.c.l.b16 %v3986
    %v4840 = vunpack.c.h.b16 %v3986
    %v4841 = vunpack.c.l.b16 %v3987
    %v4842 = vunpack.c.h.b16 %v3987
    %v4843 = vunpack.c.l.b16 %v3988
    %v4844 = vunpack.c.h.b16 %v3988
    %v4845 = vunpack.c.l.b16 %v3989
    %v4846 = vunpack.c.h.b16 %v3989
    %v4847 = vunpack.c.l.b16 %v3990
    %v4848 = vunpack.c.h.b16 %v3990
    %v4849 = vunpack.c.l.b16 %v3991
    %v4850 = vunpack.c.h.b16 %v3991
    %v4851 = vunpack.c.l.b16 %v3992
    %v4852 = vunpack.c.h.b16 %v3992
    %v4853 = vunpack.c.l.b16 %v3993
    %v4854 = vunpack.c.h.b16 %v3993
    %v4855 = vunpack.c.l.b16 %v3994
    %v4856 = vunpack.c.h.b16 %v3994
    %v4857 = vunpack.c.l.b16 %v3995
    %v4858 = vunpack.c.h.b16 %v3995
    %v4859 = vunpack.c.l.b16 %v3996
    %v4860 = vunpack.c.h.b16 %v3996
    %v4861 = vunpack.c.l.b16 %v3997
    %v4862 = vunpack.c.h.b16 %v3997
    %v4863 = vunpack.c.l.b16 %v3998
    %v4864 = vunpack.c.h.b16 %v3998
    %v4865 = vunpack.c.l.b16 %v3999
    %v4866 = vunpack.c.h.b16 %v3999
    %v4867 = vunpack.c.l.b16 %v4000
    %v4868 = vunpack.c.h.b16 %v4000
    %v4869 = vunpack.c.l.b16 %v4001
    %v4870 = vunpack.c.h.b16 %v4001
    %v4871 = vunpack.c.l.b16 %v4002
    %v4872 = vunpack.c.h.b16 %v4002
    %v4873 = vunpack.c.l.b16 %v4003
    %v4874 = vunpack.c.h.b16 %v4003
    %v4875 = vunpack.c.l.b16 %v4004
    %v4876 = vunpack.c.h.b16 %v4004
    %v4877 = vunpack.c.l.b16 %v4005
    %v4878 = vunpack.c.h.b16 %v4005
    %v4879 = vunpack.c.l.b16 %v4006
    %v4880 = vunpack.c.h.b16 %v4006
    %v4881 = vunpack.c.l.b16 %v4007
    %v4882 = vunpack.c.h.b16 %v4007
    %v4883 = vunpack.c.l.b16 %v4008
    %v4884 = vunpack.c.h.b16 %v4008
    %v4885 = vunpack.c.l.b16 %v4009
    %v4886 = vunpack.c.h.b16 %v4009
    %v4887 = vunpack.c.l.b16 %v4010
    %v4888 = vunpack.c.h.b16 %v4010
    %v4889 = vunpack.c.l.b16 %v4011
    %v4890 = vunpack.c.h.b16 %v4011
    %v4891 = vunpack.c.l.b16 %v4012
    %v4892 = vunpack.c.h.b16 %v4012
    %v4893 = vunpack.c.l.b16 %v4013
    %v4894 = vunpack.c.h.b16 %v4013
    %v4895 = vunpack.c.l.b16 %v4014
    %v4896 = vunpack.c.h.b16 %v4014
    %v4897 = vunpack.c.l.b16 %v4015
    %v4898 = vunpack.c.h.b16 %v4015
    %v4899 = vunpack.c.l.b16 %v4016
    %v4900 = vunpack.c.h.b16 %v4016
    %v4901 = vunpack.c.l.b16 %v4017
    %v4902 = vunpack.c.h.b16 %v4017
    %v4903 = vunpack.c.l.b16 %v4018
    %v4904 = vunpack.c.h.b16 %v4018
    %v4905 = vunpack.c.l.b16 %v4019
    %v4906 = vunpack.c.h.b16 %v4019
    %v4907 = vunpack.c.l.b16 %v4020
    %v4908 = vunpack.c.h.b16 %v4020
    %v4909 = vunpack.c.l.b16 %v4021
    %v4910 = vunpack.c.h.b16 %v4021
    %v4911 = vunpack.c.l.b16 %v4022
    %v4912 = vunpack.c.h.b16 %v4022
    %v4913 = vunpack.c.l.b16 %v4023
    %v4914 = vunpack.c.h.b16 %v4023
    %v4915 = vunpack.c.l.b16 %v4024
    %v4916 = vunpack.c.h.b16 %v4024
    %v4917 = vunpack.c.l.b16 %v4025
    %v4918 = vunpack.c.h.b16 %v4025
    %v4919 = vunpack.c.l.b16 %v4026
    %v4920 = vunpack.c.h.b16 %v4026
    %v4921 = vunpack.c.l.b16 %v4027
    %v4922 = vunpack.c.h.b16 %v4027
    %v4923 = vunpack.c.l.b16 %v4028
    %v4924 = vunpack.c.h.b16 %v4028
    %v4925 = vunpack.c.l.b16 %v4029
    %v4926 = vunpack.c.h.b16 %v4029
    %v4927 = vunpack.c.l.b16 %v4030
    %v4928 = vunpack.c.h.b16 %v4030
    %v4929 = vunpack.c.l.b16 %v4031
    %v4930 = vunpack.c.h.b16 %v4031
    %v4931 = vunpack.c.l.b16 %v4032
    %v4932 = vunpack.c.h.b16 %v4032
    %v4933 = vunpack.c.l.b16 %v4033
    %v4934 = vunpack.c.h.b16 %v4033
    %v4935 = vunpack.c.l.b16 %v4034
    %v4936 = vunpack.c.h.b16 %v4034
    %v4937 = vunpack.c.l.b16 %v4035
    %v4938 = vunpack.c.h.b16 %v4035
    %v4939 = vunpack.c.l.b16 %v4036
    %v4940 = vunpack.c.h.b16 %v4036
    %v4941 = vunpack.c.l.b16 %v4037
    %v4942 = vunpack.c.h.b16 %v4037
    %v4943 = vunpack.c.l.b16 %v4038
    %v4944 = vunpack.c.h.b16 %v4038
    %v4945 = vunpack.c.l.b16 %v4039
    %v4946 = vunpack.c.h.b16 %v4039
    %v4947 = vunpack.c.l.b16 %v4040
    %v4948 = vunpack.c.h.b16 %v4040
    %v4949 = vunpack.c.l.b16 %v4041
    %v4950 = vunpack.c.h.b16 %v4041
    %v4951 = vunpack.c.l.b16 %v4042
    %v4952 = vunpack.c.h.b16 %v4042
    %v4953 = vunpack.c.l.b16 %v4043
    %v4954 = vunpack.c.h.b16 %v4043
    %v4955 = vunpack.c.l.b16 %v4044
    %v4956 = vunpack.c.h.b16 %v4044
    %v4957 = vunpack.c.l.b16 %v4045
    %v4958 = vunpack.c.h.b16 %v4045
    %v4959 = vunpack.c.l.b16 %v4046
    %v4960 = vunpack.c.h.b16 %v4046
    %v4961 = vunpack.c.l.b16 %v4047
    %v4962 = vunpack.c.h.b16 %v4047
    %v4963 = vunpack.c.l.b16 %v4048
    %v4964 = vunpack.c.h.b16 %v4048
    %v4965 = vunpack.c.l.b16 %v4049
    %v4966 = vunpack.c.h.b16 %v4049
    %v4967 = vunpack.c.l.b16 %v4050
    %v4968 = vunpack.c.h.b16 %v4050
    %v4969 = vunpack.c.l.b16 %v4051
    %v4970 = vunpack.c.h.b16 %v4051
    %v4971 = vunpack.c.l.b16 %v4052
    %v4972 = vunpack.c.h.b16 %v4052
    %v4973 = vunpack.c.l.b16 %v4053
    %v4974 = vunpack.c.h.b16 %v4053
    %v4975 = vunpack.c.l.b16 %v4054
    %v4976 = vunpack.c.h.b16 %v4054
    %v4977 = vunpack.c.l.b16 %v4055
    %v4978 = vunpack.c.h.b16 %v4055
    %v4979 = vunpack.c.l.b16 %v4056
    %v4980 = vunpack.c.h.b16 %v4056
    %v4981 = vunpack.c.l.b16 %v4057
    %v4982 = vunpack.c.h.b16 %v4057
    %v4983 = vunpack.c.l.b16 %v4058
    %v4984 = vunpack.c.h.b16 %v4058
    %v4985 = vunpack.c.l.b16 %v4059
    %v4986 = vunpack.c.h.b16 %v4059
    %v4987 = vunpack.c.l.b16 %v4060
    %v4988 = vunpack.c.h.b16 %v4060
    %v4989 = vunpack.c.l.b16 %v4061
    %v4990 = vunpack.c.h.b16 %v4061
    %v4991 = vunpack.c.l.b16 %v4062
    %v4992 = vunpack.c.h.b16 %v4062
    %v4993 = vunpack.c.l.b16 %v4063
    %v4994 = vunpack.c.h.b16 %v4063
    %v4995 = vunpack.c.l.b16 %v4064
    %v4996 = vunpack.c.h.b16 %v4064
    %v4997 = vunpack.c.l.b16 %v4065
    %v4998 = vunpack.c.h.b16 %v4065
    %v4999 = vunpack.c.l.b16 %v4066
    %v5000 = vunpack.c.h.b16 %v4066
    %v5001 = vunpack.c.l.b16 %v4067
    %v5002 = vunpack.c.h.b16 %v4067
    %v5003 = vunpack.c.l.b16 %v4068
    %v5004 = vunpack.c.h.b16 %v4068
    %v5005 = vunpack.c.l.b16 %v4069
    %v5006 = vunpack.c.h.b16 %v4069
    %v5007 = vunpack.c.l.b16 %v4070
    %v5008 = vunpack.c.h.b16 %v4070
    %v5009 = vunpack.c.l.b16 %v4071
    %v5010 = vunpack.c.h.b16 %v4071
    %v5011 = vunpack.c.l.b16 %v4072
    %v5012 = vunpack.c.h.b16 %v4072
    %v5013 = vunpack.c.l.b16 %v4073
    %v5014 = vunpack.c.h.b16 %v4073
    %v5015 = vunpack.c.l.b16 %v4074
    %v5016 = vunpack.c.h.b16 %v4074
    %v5017 = vunpack.c.l.b16 %v4075
    %v5018 = vunpack.c.h.b16 %v4075
    %v5019 = vunpack.c.l.b16 %v4076
    %v5020 = vunpack.c.h.b16 %v4076
    %v5021 = vunpack.c.l.b16 %v4077
    %v5022 = vunpack.c.h.b16 %v4077
    %v5023 = vunpack.c.l.b16 %v4078
    %v5024 = vunpack.c.h.b16 %v4078
    %v5025 = vunpack.c.l.b16 %v4079
    %v5026 = vunpack.c.h.b16 %v4079
    %v5027 = vunpack.c.l.b16 %v4080
    %v5028 = vunpack.c.h.b16 %v4080
    %v5029 = vunpack.c.l.b16 %v4081
    %v5030 = vunpack.c.h.b16 %v4081
    %v5031 = vunpack.c.l.b16 %v4082
    %v5032 = vunpack.c.h.b16 %v4082
    %v5033 = vunpack.c.l.b16 %v4083
    %v5034 = vunpack.c.h.b16 %v4083
    %v5035 = vunpack.c.l.b16 %v4084
    %v5036 = vunpack.c.h.b16 %v4084
    %v5037 = vunpack.c.l.b16 %v4085
    %v5038 = vunpack.c.h.b16 %v4085
    %v5039 = vunpack.c.l.b16 %v4086
    %v5040 = vunpack.c.h.b16 %v4086
    %v5041 = vunpack.c.l.b16 %v4087
    %v5042 = vunpack.c.h.b16 %v4087
    %v5043 = vunpack.c.l.b16 %v4088
    %v5044 = vunpack.c.h.b16 %v4088
    %v5045 = vunpack.c.l.b16 %v4089
    %v5046 = vunpack.c.h.b16 %v4089
    %v5047 = vunpack.c.l.b16 %v4090
    %v5048 = vunpack.c.h.b16 %v4090
    %v5049 = vunpack.c.l.b16 %v4091
    %v5050 = vunpack.c.h.b16 %v4091
    %v5051 = vunpack.c.l.b16 %v4092
    %v5052 = vunpack.c.h.b16 %v4092
    %v5053 = vunpack.c.l.b16 %v4093
    %v5054 = vunpack.c.h.b16 %v4093
    %v5055 = vunpack.c.l.b16 %v4094
    %v5056 = vunpack.c.h.b16 %v4094
    %v5057 = vunpack.c.l.b16 %v4095
    %v5058 = vunpack.c.h.b16 %v4095
    %v5059 = vunpack.c.l.b16 %v4096
    %v5060 = vunpack.c.h.b16 %v4096
    %v5061 = vunpack.c.l.b16 %v4097
    %v5062 = vunpack.c.h.b16 %v4097
    %v5063 = vunpack.c.l.b16 %v4098
    %v5064 = vunpack.c.h.b16 %v4098
    %v5065 = vunpack.c.l.b16 %v4099
    %v5066 = vunpack.c.h.b16 %v4099
    %v5067 = vunpack.c.l.b16 %v4100
    %v5068 = vunpack.c.h.b16 %v4100
    %v5069 = vunpack.c.l.b16 %v4101
    %v5070 = vunpack.c.h.b16 %v4101
    %v5071 = vunpack.c.l.b16 %v4102
    %v5072 = vunpack.c.h.b16 %v4102
    %v5073 = vunpack.c.l.b16 %v4103
    %v5074 = vunpack.c.h.b16 %v4103
    %v5075 = vunpack.c.l.b16 %v4104
    %v5076 = vunpack.c.h.b16 %v4104
    %v5077 = vunpack.c.l.b16 %v4105
    %v5078 = vunpack.c.h.b16 %v4105
    %v5079 = vunpack.c.l.b16 %v4106
    %v5080 = vunpack.c.h.b16 %v4106
    %v5081 = vunpack.c.l.b16 %v4107
    %v5082 = vunpack.c.h.b16 %v4107
    %v5083 = vunpack.c.l.b16 %v4108
    %v5084 = vunpack.c.h.b16 %v4108
    %v5085 = vunpack.c.l.b16 %v4109
    %v5086 = vunpack.c.h.b16 %v4109
    %v5087 = vunpack.c.l.b16 %v4110
    %v5088 = vunpack.c.h.b16 %v4110
    %v5089 = vunpack.c.l.b16 %v4111
    %v5090 = vunpack.c.h.b16 %v4111
    %v5091 = vunpack.c.l.b16 %v4112
    %v5092 = vunpack.c.h.b16 %v4112
    %v5093 = vunpack.c.l.b16 %v4113
    %v5094 = vunpack.c.h.b16 %v4113
    %v5095 = vunpack.c.l.b16 %v4114
    %v5096 = vunpack.c.h.b16 %v4114
    %v5097 = vunpack.c.l.b16 %v4115
    %v5098 = vunpack.c.h.b16 %v4115
    %v5099 = vunpack.c.l.b16 %v4116
    %v5100 = vunpack.c.h.b16 %v4116
    %v5101 = vunpack.c.l.b16 %v4117
    %v5102 = vunpack.c.h.b16 %v4117
    %v5103 = vunpack.c.l.b16 %v4118
    %v5104 = vunpack.c.h.b16 %v4118
    %v5105 = vunpack.c.l.b16 %v4119
    %v5106 = vunpack.c.h.b16 %v4119
    %v5107 = vunpack.c.l.b16 %v4120
    %v5108 = vunpack.c.h.b16 %v4120
    %v5109 = vunpack.c.l.b16 %v4121
    %v5110 = vunpack.c.h.b16 %v4121
    %v5111 = vunpack.c.l.b16 %v4122
    %v5112 = vunpack.c.h.b16 %v4122
    %v5113 = vunpack.c.l.b16 %v4123
    %v5114 = vunpack.c.h.b16 %v4123
    %v5115 = vunpack.c.l.b16 %v4124
    %v5116 = vunpack.c.h.b16 %v4124
    %v5117 = vunpack.c.l.b16 %v4125
    %v5118 = vunpack.c.h.b16 %v4125
    %v5119 = vunpack.c.l.b16 %v4126
    %v5120 = vunpack.c.h.b16 %v4126
    %v5121 = vunpack.c.l.b16 %v4127
    %v5122 = vunpack.c.h.b16 %v4127
    %v5123 = vunpack.c.l.b16 %v4128
    %v5124 = vunpack.c.h.b16 %v4128
    %v5125 = vunpack.c.l.b16 %v4129
    %v5126 = vunpack.c.h.b16 %v4129
    %v5127 = vunpack.c.l.b16 %v4130
    %v5128 = vunpack.c.h.b16 %v4130
    %v5129 = vunpack.c.l.b16 %v4131
    %v5130 = vunpack.c.h.b16 %v4131
    %v5131 = vunpack.c.l.b16 %v4132
    %v5132 = vunpack.c.h.b16 %v4132
    %v5133 = vunpack.c.l.b16 %v4133
    %v5134 = vunpack.c.h.b16 %v4133
    %v5135 = vunpack.c.l.b16 %v4134
    %v5136 = vunpack.c.h.b16 %v4134
    %v5137 = vunpack.c.l.b16 %v4135
    %v5138 = vunpack.c.h.b16 %v4135
    %v5139 = vunpack.c.l.b16 %v4136
    %v5140 = vunpack.c.h.b16 %v4136
    %v5141 = vunpack.c.l.b16 %v4137
    %v5142 = vunpack.c.h.b16 %v4137
    %v5143 = vunpack.c.l.b16 %v4138
    %v5144 = vunpack.c.h.b16 %v4138
    %v5145 = vunpack.c.l.b16 %v4139
    %v5146 = vunpack.c.h.b16 %v4139
    %v5147 = vunpack.c.l.b16 %v4140
    %v5148 = vunpack.c.h.b16 %v4140
    %v5149 = vunpack.c.l.b16 %v4141
    %v5150 = vunpack.c.h.b16 %v4141
    %v5151 = vunpack.c.l.b16 %v4142
    %v5152 = vunpack.c.h.b16 %v4142
    %v5153 = vunpack.c.l.b16 %v4143
    %v5154 = vunpack.c.h.b16 %v4143
    %v5155 = vunpack.c.l.b16 %v4144
    %v5156 = vunpack.c.h.b16 %v4144
    %v5157 = vunpack.c.l.b16 %v4145
    %v5158 = vunpack.c.h.b16 %v4145
    %v5159 = vunpack.c.l.b16 %v4146
    %v5160 = vunpack.c.h.b16 %v4146
    %v5161 = vunpack.c.l.b16 %v4147
    %v5162 = vunpack.c.h.b16 %v4147
    %v5163 = vunpack.c.l.b16 %v4148
    %v5164 = vunpack.c.h.b16 %v4148
    %v5165 = vunpack.c.l.b16 %v4149
    %v5166 = vunpack.c.h.b16 %v4149
    %v5167 = vunpack.c.l.b16 %v4150
    %v5168 = vunpack.c.h.b16 %v4150
    %v5169 = vunpack.c.l.b16 %v4151
    %v5170 = vunpack.c.h.b16 %v4151
    %v5171 = vunpack.c.l.b16 %v4152
    %v5172 = vunpack.c.h.b16 %v4152
    %v5173 = vunpack.c.l.b16 %v4153
    %v5174 = vunpack.c.h.b16 %v4153
    %v5175 = vunpack.c.l.b16 %v4154
    %v5176 = vunpack.c.h.b16 %v4154
    %v5177 = vunpack.c.l.b16 %v4155
    %v5178 = vunpack.c.h.b16 %v4155
    %v5179 = vunpack.c.l.b16 %v4156
    %v5180 = vunpack.c.h.b16 %v4156
    %v5181 = vunpack.c.l.b16 %v4157
    %v5182 = vunpack.c.h.b16 %v4157
    %v5183 = vunpack.c.l.b16 %v4158
    %v5184 = vunpack.c.h.b16 %v4158
    %v5185 = vunpack.c.l.b16 %v4159
    %v5186 = vunpack.c.h.b16 %v4159
    %v5187 = vunpack.c.l.b16 %v4160
    %v5188 = vunpack.c.h.b16 %v4160
    %v5189 = vunpack.c.l.b16 %v4161
    %v5190 = vunpack.c.h.b16 %v4161
    %v5191 = vunpack.c.l.b16 %v4162
    %v5192 = vunpack.c.h.b16 %v4162
    %v5193 = vunpack.c.l.b16 %v4163
    %v5194 = vunpack.c.h.b16 %v4163
    %v5195 = vunpack.c.l.b16 %v4164
    %v5196 = vunpack.c.h.b16 %v4164
    %v5197 = vunpack.c.l.b16 %v4165
    %v5198 = vunpack.c.h.b16 %v4165
    %v5199 = vunpack.c.l.b16 %v4166
    %v5200 = vunpack.c.h.b16 %v4166
    %v5201 = vunpack.c.l.b16 %v4167
    %v5202 = vunpack.c.h.b16 %v4167
    %v5203 = vunpack.c.l.b16 %v4168
    %v5204 = vunpack.c.h.b16 %v4168
    %v5205 = vunpack.c.l.b16 %v4169
    %v5206 = vunpack.c.h.b16 %v4169
    %v5207 = vunpack.c.l.b16 %v4170
    %v5208 = vunpack.c.h.b16 %v4170
    %v5209 = vunpack.c.l.b16 %v4171
    %v5210 = vunpack.c.h.b16 %v4171
    %v5211 = vunpack.c.l.b16 %v4172
    %v5212 = vunpack.c.h.b16 %v4172
    %v5213 = vunpack.c.l.b16 %v4173
    %v5214 = vunpack.c.h.b16 %v4173
    %v5215 = vunpack.c.l.b16 %v4174
    %v5216 = vunpack.c.h.b16 %v4174
    %v5217 = vunpack.c.l.b16 %v4175
    %v5218 = vunpack.c.h.b16 %v4175
    %v5219 = vunpack.c.l.b16 %v4176
    %v5220 = vunpack.c.h.b16 %v4176
    %v5221 = vunpack.c.l.b16 %v4177
    %v5222 = vunpack.c.h.b16 %v4177
    %v5223 = vunpack.c.l.b16 %v4178
    %v5224 = vunpack.c.h.b16 %v4178
    %v5225 = vunpack.c.l.b16 %v4179
    %v5226 = vunpack.c.h.b16 %v4179
    %v5227 = vunpack.c.l.b16 %v4180
    %v5228 = vunpack.c.h.b16 %v4180
    %v5229 = vunpack.c.l.b16 %v4181
    %v5230 = vunpack.c.h.b16 %v4181
    %v5231 = vunpack.c.l.b16 %v4182
    %v5232 = vunpack.c.h.b16 %v4182
    %v5233 = vunpack.c.l.b16 %v4183
    %v5234 = vunpack.c.h.b16 %v4183
    %v5235 = vunpack.c.l.b16 %v4184
    %v5236 = vunpack.c.h.b16 %v4184
    %v5237 = vunpack.c.l.b16 %v4185
    %v5238 = vunpack.c.h.b16 %v4185
    %v5239 = vunpack.c.l.b16 %v4186
    %v5240 = vunpack.c.h.b16 %v4186
    %v5241 = vunpack.c.l.b16 %v4187
    %v5242 = vunpack.c.h.b16 %v4187
    %v5243 = vunpack.c.l.b16 %v4188
    %v5244 = vunpack.c.h.b16 %v4188
    %v5245 = vunpack.c.l.b16 %v4189
    %v5246 = vunpack.c.h.b16 %v4189
    %v5247 = vunpack.c.l.b16 %v4190
    %v5248 = vunpack.c.h.b16 %v4190
    %v5249 = vunpack.c.l.b16 %v4191
    %v5250 = vunpack.c.h.b16 %v4191
    %v5251 = vunpack.c.l.b16 %v4192
    %v5252 = vunpack.c.h.b16 %v4192
    %v5253 = vunpack.c.l.b16 %v4193
    %v5254 = vunpack.c.h.b16 %v4193
    %v5255 = vunpack.c.l.b16 %v4194
    %v5256 = vunpack.c.h.b16 %v4194
    %v5257 = vunpack.c.l.b16 %v4195
    %v5258 = vunpack.c.h.b16 %v4195
    %v5259 = vunpack.c.l.b16 %v4196
    %v5260 = vunpack.c.h.b16 %v4196
    %v5261 = vunpack.c.l.b16 %v4197
    %v5262 = vunpack.c.h.b16 %v4197
    %v5263 = vunpack.c.l.b16 %v4198
    %v5264 = vunpack.c.h.b16 %v4198
    %v5265 = vunpack.c.l.b16 %v4199
    %v5266 = vunpack.c.h.b16 %v4199
    %v5267 = vunpack.c.l.b16 %v4200
    %v5268 = vunpack.c.h.b16 %v4200
    %v5269 = vunpack.c.l.b16 %v4201
    %v5270 = vunpack.c.h.b16 %v4201
    %v5271 = vunpack.c.l.b16 %v4202
    %v5272 = vunpack.c.h.b16 %v4202
    %v5273 = vunpack.c.l.b16 %v4203
    %v5274 = vunpack.c.h.b16 %v4203
    %v5275 = vunpack.c.l.b16 %v4204
    %v5276 = vunpack.c.h.b16 %v4204
    %v5277 = vunpack.c.l.b16 %v4205
    %v5278 = vunpack.c.h.b16 %v4205
    %v5279 = vunpack.c.l.b16 %v4206
    %v5280 = vunpack.c.h.b16 %v4206
    %v5281 = vunpack.c.l.b16 %v4207
    %v5282 = vunpack.c.h.b16 %v4207
    %v5283 = vunpack.c.l.b16 %v4208
    %v5284 = vunpack.c.h.b16 %v4208
    %v5285 = vunpack.c.l.b16 %v4209
    %v5286 = vunpack.c.h.b16 %v4209
    %v5287 = vunpack.c.l.b16 %v4210
    %v5288 = vunpack.c.h.b16 %v4210
    %v5289 = vunpack.c.l.b16 %v4211
    %v5290 = vunpack.c.h.b16 %v4211
    %v5291 = vunpack.c.l.b16 %v4212
    %v5292 = vunpack.c.h.b16 %v4212
    %v5293 = vunpack.c.l.b16 %v4213
    %v5294 = vunpack.c.h.b16 %v4213
    %v5295 = vunpack.c.l.b16 %v4214
    %v5296 = vunpack.c.h.b16 %v4214
    %v5297 = vunpack.c.l.b16 %v4215
    %v5298 = vunpack.c.h.b16 %v4215
    %v5299 = vunpack.c.l.b16 %v4216
    %v5300 = vunpack.c.h.b16 %v4216
    %v5301 = vunpack.c.l.b16 %v4217
    %v5302 = vunpack.c.h.b16 %v4217
    %v5303 = vunpack.c.l.b16 %v4218
    %v5304 = vunpack.c.h.b16 %v4218
    %v5305 = vunpack.c.l.b16 %v4219
    %v5306 = vunpack.c.h.b16 %v4219
    %v5307 = vunpack.c.l.b16 %v4220
    %v5308 = vunpack.c.h.b16 %v4220
    %v5309 = vunpack.c.l.b16 %v4221
    %v5310 = vunpack.c.h.b16 %v4221
    %v5311 = vunpack.c.l.b16 %v4222
    %v5312 = vunpack.c.h.b16 %v4222
    %v5313 = vunpack.c.l.b16 %v4223
    %v5314 = vunpack.c.h.b16 %v4223
    %v5315 = vunpack.c.l.b16 %v4224
    %v5316 = vunpack.c.h.b16 %v4224
    %v5317 = vunpack.c.l.b16 %v4225
    %v5318 = vunpack.c.h.b16 %v4225
    %v5319 = vunpack.c.l.b16 %v4226
    %v5320 = vunpack.c.h.b16 %v4226
    %v5321 = vunpack.c.l.b16 %v4227
    %v5322 = vunpack.c.h.b16 %v4227
    %v5323 = vunpack.c.l.b16 %v4228
    %v5324 = vunpack.c.h.b16 %v4228
    %v5325 = vunpack.c.l.b16 %v4229
    %v5326 = vunpack.c.h.b16 %v4229
    %v5327 = vunpack.c.l.b16 %v4230
    %v5328 = vunpack.c.h.b16 %v4230
    %v5329 = vunpack.c.l.b16 %v4231
    %v5330 = vunpack.c.h.b16 %v4231
    %v5331 = vunpack.c.l.b16 %v4232
    %v5332 = vunpack.c.h.b16 %v4232
    %v5333 = vunpack.c.l.b16 %v4233
    %v5334 = vunpack.c.h.b16 %v4233
    %v5335 = vunpack.c.l.b16 %v4234
    %v5336 = vunpack.c.h.b16 %v4234
    %v5337 = vunpack.c.l.b16 %v4235
    %v5338 = vunpack.c.h.b16 %v4235
    %v5339 = vunpack.c.l.b16 %v4236
    %v5340 = vunpack.c.h.b16 %v4236
    %v5341 = vunpack.c.l.b16 %v4237
    %v5342 = vunpack.c.h.b16 %v4237
    %v5343 = vunpack.c.l.b16 %v4238
    %v5344 = vunpack.c.h.b16 %v4238
    %v5345 = vunpack.c.l.b16 %v4239
    %v5346 = vunpack.c.h.b16 %v4239
    %v5347 = vunpack.c.l.b16 %v4240
    %v5348 = vunpack.c.h.b16 %v4240
    %v5349 = vunpack.c.l.b16 %v4241
    %v5350 = vunpack.c.h.b16 %v4241
    %v5351 = vunpack.c.l.b16 %v4242
    %v5352 = vunpack.c.h.b16 %v4242
    %v5353 = vunpack.c.l.b16 %v4243
    %v5354 = vunpack.c.h.b16 %v4243
    %v5355 = vunpack.c.l.b16 %v4244
    %v5356 = vunpack.c.h.b16 %v4244
    %v5357 = vunpack.c.l.b16 %v4245
    %v5358 = vunpack.c.h.b16 %v4245
    %v5359 = vunpack.c.l.b16 %v4246
    %v5360 = vunpack.c.h.b16 %v4246
    %v5361 = vunpack.c.l.b16 %v4247
    %v5362 = vunpack.c.h.b16 %v4247
    %v5363 = vunpack.c.l.b16 %v4248
    %v5364 = vunpack.c.h.b16 %v4248
    %v5365 = vunpack.c.l.b16 %v4249
    %v5366 = vunpack.c.h.b16 %v4249
    %v5367 = vunpack.c.l.b16 %v4250
    %v5368 = vunpack.c.h.b16 %v4250
    %v5369 = vunpack.c.l.b16 %v4251
    %v5370 = vunpack.c.h.b16 %v4251
    %v5371 = vunpack.c.l.b16 %v4252
    %v5372 = vunpack.c.h.b16 %v4252
    %v5373 = vunpack.c.l.b16 %v4253
    %v5374 = vunpack.c.h.b16 %v4253
    %v5375 = vunpack.c.l.b16 %v4254
    %v5376 = vunpack.c.h.b16 %v4254
    %v5377 = vunpack.c.l.b16 %v4255
    %v5378 = vunpack.c.h.b16 %v4255
    %v5379 = vunpack.c.l.b16 %v4256
    %v5380 = vunpack.c.h.b16 %v4256
    %v5381 = vunpack.c.l.b16 %v4257
    %v5382 = vunpack.c.h.b16 %v4257
    %v5383 = vunpack.c.l.b16 %v4258
    %v5384 = vunpack.c.h.b16 %v4258
    %v5385 = vunpack.c.l.b16 %v4259
    %v5386 = vunpack.c.h.b16 %v4259
    %v5387 = vunpack.c.l.b16 %v4260
    %v5388 = vunpack.c.h.b16 %v4260
    %v5389 = vunpack.c.l.b16 %v4261
    %v5390 = vunpack.c.h.b16 %v4261
    %v5391 = vunpack.c.l.b16 %v4262
    %v5392 = vunpack.c.h.b16 %v4262
    %v5393 = vunpack.c.l.b16 %v4263
    %v5394 = vunpack.c.h.b16 %v4263
    %v5395 = vunpack.c.l.b16 %v4264
    %v5396 = vunpack.c.h.b16 %v4264
    %v5397 = vunpack.c.l.b16 %v4265
    %v5398 = vunpack.c.h.b16 %v4265
    %v5399 = vunpack.c.l.b16 %v4266
    %v5400 = vunpack.c.h.b16 %v4266
    %v5401 = vunpack.c.l.b16 %v4267
    %v5402 = vunpack.c.h.b16 %v4267
    %v5403 = vunpack.c.l.b16 %v4268
    %v5404 = vunpack.c.h.b16 %v4268
    %v5405 = vunpack.c.l.b16 %v4269
    %v5406 = vunpack.c.h.b16 %v4269
    %v5407 = vunpack.c.l.b16 %v4270
    %v5408 = vunpack.c.h.b16 %v4270
    %v5409 = vunpack.c.l.b16 %v4271
    %v5410 = vunpack.c.h.b16 %v4271
    %v5411 = vunpack.c.l.b16 %v4272
    %v5412 = vunpack.c.h.b16 %v4272
    %v5413 = vunpack.c.l.b16 %v4273
    %v5414 = vunpack.c.h.b16 %v4273
    %v5415 = vunpack.c.l.b16 %v4274
    %v5416 = vunpack.c.h.b16 %v4274
    %v5417 = vunpack.c.l.b16 %v4275
    %v5418 = vunpack.c.h.b16 %v4275
    %v5419 = vunpack.c.l.b16 %v4276
    %v5420 = vunpack.c.h.b16 %v4276
    %v5421 = vunpack.c.l.b16 %v4277
    %v5422 = vunpack.c.h.b16 %v4277
    %v5423 = vunpack.c.l.b16 %v4278
    %v5424 = vunpack.c.h.b16 %v4278
    %v5425 = vunpack.c.l.b16 %v4279
    %v5426 = vunpack.c.h.b16 %v4279
    %v5427 = vunpack.c.l.b16 %v4280
    %v5428 = vunpack.c.h.b16 %v4280
    %v5429 = vunpack.c.l.b16 %v4281
    %v5430 = vunpack.c.h.b16 %v4281
    %v5431 = vunpack.c.l.b16 %v4282
    %v5432 = vunpack.c.h.b16 %v4282
    %v5433 = vunpack.c.l.b16 %v4283
    %v5434 = vunpack.c.h.b16 %v4283
    %v5435 = vunpack.c.l.b16 %v4284
    %v5436 = vunpack.c.h.b16 %v4284
    %v5437 = vunpack.c.l.b16 %v4285
    %v5438 = vunpack.c.h.b16 %v4285
    %v5439 = vunpack.c.l.b16 %v4286
    %v5440 = vunpack.c.h.b16 %v4286
    %v5441 = vunpack.c.l.b16 %v4287
    %v5442 = vunpack.c.h.b16 %v4287
    %v5443 = vunpack.c.l.b16 %v4288
    %v5444 = vunpack.c.h.b16 %v4288
    %v5445 = vunpack.c.l.b16 %v4289
    %v5446 = vunpack.c.h.b16 %v4289
    %v5447 = vunpack.c.l.b16 %v4290
    %v5448 = vunpack.c.h.b16 %v4290
    %v5449 = vunpack.c.l.b16 %v4291
    %v5450 = vunpack.c.h.b16 %v4291
    %v5451 = vunpack.c.l.b16 %v4292
    %v5452 = vunpack.c.h.b16 %v4292
    %v5453 = vunpack.c.l.b16 %v4293
    %v5454 = vunpack.c.h.b16 %v4293
    %v5455 = vunpack.c.l.b16 %v4294
    %v5456 = vunpack.c.h.b16 %v4294
    %v5457 = vunpack.c.l.b16 %v4295
    %v5458 = vunpack.c.h.b16 %v4295
    %v5459 = vunpack.c.l.b16 %v4296
    %v5460 = vunpack.c.h.b16 %v4296
    %v5461 = vunpack.c.l.b16 %v4297
    %v5462 = vunpack.c.h.b16 %v4297
    %v5463 = vunpack.c.l.b16 %v4298
    %v5464 = vunpack.c.h.b16 %v4298
    %v5465 = vunpack.c.l.b16 %v4299
    %v5466 = vunpack.c.h.b16 %v4299
    %v5467 = vunpack.c.l.b16 %v4300
    %v5468 = vunpack.c.h.b16 %v4300
    %v5469 = vunpack.c.l.b16 %v4301
    %v5470 = vunpack.c.h.b16 %v4301
    %v5471 = vunpack.c.l.b16 %v4302
    %v5472 = vunpack.c.h.b16 %v4302
    %v5473 = vunpack.c.l.b16 %v4303
    %v5474 = vunpack.c.h.b16 %v4303
    %v5475 = vunpack.c.l.b16 %v4304
    %v5476 = vunpack.c.h.b16 %v4304
    %v5477 = vunpack.c.l.b16 %v4305
    %v5478 = vunpack.c.h.b16 %v4305
    %v5479 = vunpack.c.l.b16 %v4306
    %v5480 = vunpack.c.h.b16 %v4306
    %v5481 = vunpack.c.l.b16 %v4307
    %v5482 = vunpack.c.h.b16 %v4307
    %v5483 = vunpack.c.l.b16 %v4308
    %v5484 = vunpack.c.h.b16 %v4308
    %v5485 = vunpack.c.l.b16 %v4309
    %v5486 = vunpack.c.h.b16 %v4309
    %v5487 = vunpack.c.l.b16 %v4310
    %v5488 = vunpack.c.h.b16 %v4310
    %v5489 = vunpack.c.l.b16 %v4311
    %v5490 = vunpack.c.h.b16 %v4311
    %v5491 = vunpack.c.l.b16 %v4312
    %v5492 = vunpack.c.h.b16 %v4312
    %v5493 = vunpack.c.l.b16 %v4313
    %v5494 = vunpack.c.h.b16 %v4313
    %v5495 = vunpack.c.l.b16 %v4314
    %v5496 = vunpack.c.h.b16 %v4314
    %v5497 = vunpack.c.l.b16 %v4315
    %v5498 = vunpack.c.h.b16 %v4315
    %v5499 = vunpack.c.l.b16 %v4316
    %v5500 = vunpack.c.h.b16 %v4316
    %v5501 = vpack.c.b16 %v4739, %v4733
    %v5502 = vpack.c.b16 %v4740, %v4734
    %v5503 = vpack.c.b16 %v4741, %v4735
    %v5504 = vpack.c.b16 %v4742, %v4736
    %v5505 = vpack.c.b16 %v4743, %v4737
    %v5506 = vpack.c.b16 %v4744, %v4738
    %v5507 = vpack.c.b16 %v4751, %v4745
    %v5508 = vpack.c.b16 %v4752, %v4746
    %v5509 = vpack.c.b16 %v4753, %v4747
    %v5510 = vpack.c.b16 %v4754, %v4748
    %v5511 = vpack.c.b16 %v4755, %v4749
    %v5512 = vpack.c.b16 %v4756, %v4750
    %v5513 = vpack.c.b16 %v4763, %v4757
    %v5514 = vpack.c.b16 %v4764, %v4758
    %v5515 = vpack.c.b16 %v4765, %v4759
    %v5516 = vpack.c.b16 %v4766, %v4760
    %v5517 = vpack.c.b16 %v4767, %v4761
    %v5518 = vpack.c.b16 %v4768, %v4762
    %v5519 = vpack.c.b16 %v4775, %v4769
    %v5520 = vpack.c.b16 %v4776, %v4770
    %v5521 = vpack.c.b16 %v4777, %v4771
    %v5522 = vpack.c.b16 %v4778, %v4772
    %v5523 = vpack.c.b16 %v4779, %v4773
    %v5524 = vpack.c.b16 %v4780, %v4774
    %v5525 = vpack.c.b16 %v4787, %v4781
    %v5526 = vpack.c.b16 %v4788, %v4782
    %v5527 = vpack.c.b16 %v4789, %v4783
    %v5528 = vpack.c.b16 %v4790, %v4784
    %v5529 = vpack.c.b16 %v4791, %v4785
    %v5530 = vpack.c.b16 %v4792, %v4786
    %v5531 = vpack.c.b16 %v4799, %v4793
    %v5532 = vpack.c.b16 %v4800, %v4794
    %v5533 = vpack.c.b16 %v4801, %v4795
    %v5534 = vpack.c.b16 %v4802, %v4796
    %v5535 = vpack.c.b16 %v4803, %v4797
    %v5536 = vpack.c.b16 %v4804, %v4798
    %v5537 = vpack.c.b16 %v4811, %v4805
    %v5538 = vpack.c.b16 %v4812, %v4806
    %v5539 = vpack.c.b16 %v4813, %v4807
    %v5540 = vpack.c.b16 %v4814, %v4808
    %v5541 = vpack.c.b16 %v4815, %v4809
    %v5542 = vpack.c.b16 %v4816, %v4810
    %v5543 = vpack.c.b16 %v4823, %v4817
    %v5544 = vpack.c.b16 %v4824, %v4818
    %v5545 = vpack.c.b16 %v4825, %v4819
    %v5546 = vpack.c.b16 %v4826, %v4820
    %v5547 = vpack.c.b16 %v4827, %v4821
    %v5548 = vpack.c.b16 %v4828, %v4822
    %v5549 = vpack.c.b16 %v4835, %v4829
    %v5550 = vpack.c.b16 %v4836, %v4830
    %v5551 = vpack.c.b16 %v4837, %v4831
    %v5552 = vpack.c.b16 %v4838, %v4832
    %v5553 = vpack.c.b16 %v4839, %v4833
    %v5554 = vpack.c.b16 %v4840, %v4834
    %v5555 = vpack.c.b16 %v4847, %v4841
    %v5556 = vpack.c.b16 %v4848, %v4842
    %v5557 = vpack.c.b16 %v4849, %v4843
    %v5558 = vpack.c.b16 %v4850, %v4844
    %v5559 = vpack.c.b16 %v4851, %v4845
    %v5560 = vpack.c.b16 %v4852, %v4846
    %v5561 = vpack.c.b16 %v4859, %v4853
    %v5562 = vpack.c.b16 %v4860, %v4854
    %v5563 = vpack.c.b16 %v4861, %v4855
    %v5564 = vpack.c.b16 %v4862, %v4856
    %v5565 = vpack.c.b16 %v4863, %v4857
    %v5566 = vpack.c.b16 %v4864, %v4858
    %v5567 = vpack.c.b16 %v4871, %v4865
    %v5568 = vpack.c.b16 %v4872, %v4866
    %v5569 = vpack.c.b16 %v4873, %v4867
    %v5570 = vpack.c.b16 %v4874, %v4868
    %v5571 = vpack.c.b16 %v4875, %v4869
    %v5572 = vpack.c.b16 %v4876, %v4870
    %v5573 = vpack.c.b16 %v4883, %v4877
    %v5574 = vpack.c.b16 %v4884, %v4878
    %v5575 = vpack.c.b16 %v4885, %v4879
    %v5576 = vpack.c.b16 %v4886, %v4880
    %v5577 = vpack.c.b16 %v4887, %v4881
    %v5578 = vpack.c.b16 %v4888, %v4882
    %v5579 = vpack.c.b16 %v4895, %v4889
    %v5580 = vpack.c.b16 %v4896, %v4890
    %v5581 = vpack.c.b16 %v4897, %v4891
    %v5582 = vpack.c.b16 %v4898, %v4892
    %v5583 = vpack.c.b16 %v4899, %v4893
    %v5584 = vpack.c.b16 %v4900, %v4894
    %v5585 = vpack.c.b16 %v4907, %v4901
    %v5586 = vpack.c.b16 %v4908, %v4902
    %v5587 = vpack.c.b16 %v4909, %v4903
    %v5588 = vpack.c.b16 %v4910, %v4904
    %v5589 = vpack.c.b16 %v4911, %v4905
    %v5590 = vpack.c.b16 %v4912, %v4906
    %v5591 = vpack.c.b16 %v4919, %v4913
    %v5592 = vpack.c.b16 %v4920, %v4914
    %v5593 = vpack.c.b16 %v4921, %v4915
    %v5594 = vpack.c.b16 %v4922, %v4916
    %v5595 = vpack.c.b16 %v4923, %v4917
    %v5596 = vpack.c.b16 %v4924, %v4918
    %v5597 = vpack.c.b16 %v4931, %v4925
    %v5598 = vpack.c.b16 %v4932, %v4926
    %v5599 = vpack.c.b16 %v4933, %v4927
    %v5600 = vpack.c.b16 %v4934, %v4928
    %v5601 = vpack.c.b16 %v4935, %v4929
    %v5602 = vpack.c.b16 %v4936, %v4930
    %v5603 = vpack.c.b16 %v4943, %v4937
    %v5604 = vpack.c.b16 %v4944, %v4938
    %v5605 = vpack.c.b16 %v4945, %v4939
    %v5606 = vpack.c.b16 %v4946, %v4940
    %v5607 = vpack.c.b16 %v4947, %v4941
    %v5608 = vpack.c.b16 %v4948, %v4942
    %v5609 = vpack.c.b16 %v4955, %v4949
    %v5610 = vpack.c.b16 %v4956, %v4950
    %v5611 = vpack.c.b16 %v4957, %v4951
    %v5612 = vpack.c.b16 %v4958, %v4952
    %v5613 = vpack.c.b16 %v4959, %v4953
    %v5614 = vpack.c.b16 %v4960, %v4954
    %v5615 = vpack.c.b16 %v4967, %v4961
    %v5616 = vpack.c.b16 %v4968, %v4962
    %v5617 = vpack.c.b16 %v4969, %v4963
    %v5618 = vpack.c.b16 %v4970, %v4964
    %v5619 = vpack.c.b16 %v4971, %v4965
    %v5620 = vpack.c.b16 %v4972, %v4966
    %v5621 = vpack.c.b16 %v4979, %v4973
    %v5622 = vpack.c.b16 %v4980, %v4974
    %v5623 = vpack.c.b16 %v4981, %v4975
    %v5624 = vpack.c.b16 %v4982, %v4976
    %v5625 = vpack.c.b16 %v4983, %v4977
    %v5626 = vpack.c.b16 %v4984, %v4978
    %v5627 = vpack.c.b16 %v4991, %v4985
    %v5628 = vpack.c.b16 %v4992, %v4986
    %v5629 = vpack.c.b16 %v4993, %v4987
    %v5630 = vpack.c.b16 %v4994, %v4988
    %v5631 = vpack.c.b16 %v4995, %v4989
    %v5632 = vpack.c.b16 %v4996, %v4990
    %v5633 = vpack.c.b16 %v5003, %v4997
    %v5634 = vpack.c.b16 %v5004, %v4998
    %v5635 = vpack.c.b16 %v5005, %v4999
    %v5636 = vpack.c.b16 %v5006, %v5000
    %v5637 = vpack.c.b16 %v5007, %v5001
    %v5638 = vpack.c.b16 %v5008, %v5002
    %v5639 = vpack.c.b16 %v5015, %v5009
    %v5640 = vpack.c.b16 %v5016, %v5010
    %v5641 = vpack.c.b16 %v5017, %v5011
    %v5642 = vpack.c.b16 %v5018, %v5012
    %v5643 = vpack.c.b16 %v5019, %v5013
    %v5644 = vpack.c.b16 %v5020, %v5014
    %v5645 = vpack.c.b16 %v5027, %v5021
    %v5646 = vpack.c.b16 %v5028, %v5022
    %v5647 = vpack.c.b16 %v5029, %v5023
    %v5648 = vpack.c.b16 %v5030, %v5024
    %v5649 = vpack.c.b16 %v5031, %v5025
    %v5650 = vpack.c.b16 %v5032, %v5026
    %v5651 = vpack.c.b16 %v5039, %v5033
    %v5652 = vpack.c.b16 %v5040, %v5034
    %v5653 = vpack.c.b16 %v5041, %v5035
    %v5654 = vpack.c.b16 %v5042, %v5036
    %v5655 = vpack.c.b16 %v5043, %v5037
    %v5656 = vpack.c.b16 %v5044, %v5038
    %v5657 = vpack.c.b16 %v5051, %v5045
    %v5658 = vpack.c.b16 %v5052, %v5046
    %v5659 = vpack.c.b16 %v5053, %v5047
    %v5660 = vpack.c.b16 %v5054, %v5048
    %v5661 = vpack.c.b16 %v5055, %v5049
    %v5662 = vpack.c.b16 %v5056, %v5050
    %v5663 = vpack.c.b16 %v5063, %v5057
    %v5664 = vpack.c.b16 %v5064, %v5058
    %v5665 = vpack.c.b16 %v5065, %v5059
    %v5666 = vpack.c.b16 %v5066, %v5060
    %v5667 = vpack.c.b16 %v5067, %v5061
    %v5668 = vpack.c.b16 %v5068, %v5062
    %v5669 = vpack.c.b16 %v5075, %v5069
    %v5670 = vpack.c.b16 %v5076, %v5070
    %v5671 = vpack.c.b16 %v5077, %v5071
    %v5672 = vpack.c.b16 %v5078, %v5072
    %v5673 = vpack.c.b16 %v5079, %v5073
    %v5674 = vpack.c.b16 %v5080, %v5074
    %v5675 = vpack.c.b16 %v5087, %v5081
    %v5676 = vpack.c.b16 %v5088, %v5082
    %v5677 = vpack.c.b16 %v5089, %v5083
    %v5678 = vpack.c.b16 %v5090, %v5084
    %v5679 = vpack.c.b16 %v5091, %v5085
    %v5680 = vpack.c.b16 %v5092, %v5086
    %v5681 = vpack.c.b16 %v5099, %v5093
    %v5682 = vpack.c.b16 %v5100, %v5094
    %v5683 = vpack.c.b16 %v5101, %v5095
    %v5684 = vpack.c.b16 %v5102, %v5096
    %v5685 = vpack.c.b16 %v5103, %v5097
    %v5686 = vpack.c.b16 %v5104, %v5098
    %v5687 = vpack.c.b16 %v5111, %v5105
    %v5688 = vpack.c.b16 %v5112, %v5106
    %v5689 = vpack.c.b16 %v5113, %v5107
    %v5690 = vpack.c.b16 %v5114, %v5108
    %v5691 = vpack.c.b16 %v5115, %v5109
    %v5692 = vpack.c.b16 %v5116, %v5110
    %v5693 = vpack.c.b16 %v5123, %v5117
    %v5694 = vpack.c.b16 %v5124, %v5118
    %v5695 = vpack.c.b16 %v5125, %v5119
    %v5696 = vpack.c.b16 %v5126, %v5120
    %v5697 = vpack.c.b16 %v5127, %v5121
    %v5698 = vpack.c.b16 %v5128, %v5122
    %v5699 = vpack.c.b16 %v5135, %v5129
    %v5700 = vpack.c.b16 %v5136, %v5130
    %v5701 = vpack.c.b16 %v5137, %v5131
    %v5702 = vpack.c.b16 %v5138, %v5132
    %v5703 = vpack.c.b16 %v5139, %v5133
    %v5704 = vpack.c.b16 %v5140, %v5134
    %v5705 = vpack.c.b16 %v5147, %v5141
    %v5706 = vpack.c.b16 %v5148, %v5142
    %v5707 = vpack.c.b16 %v5149, %v5143
    %v5708 = vpack.c.b16 %v5150, %v5144
    %v5709 = vpack.c.b16 %v5151, %v5145
    %v5710 = vpack.c.b16 %v5152, %v5146
    %v5711 = vpack.c.b16 %v5159, %v5153
    %v5712 = vpack.c.b16 %v5160, %v5154
    %v5713 = vpack.c.b16 %v5161, %v5155
    %v5714 = vpack.c.b16 %v5162, %v5156
    %v5715 = vpack.c.b16 %v5163, %v5157
    %v5716 = vpack.c.b16 %v5164, %v5158
    %v5717 = vpack.c.b16 %v5171, %v5165
    %v5718 = vpack.c.b16 %v5172, %v5166
    %v5719 = vpack.c.b16 %v5173, %v5167
    %v5720 = vpack.c.b16 %v5174, %v5168
    %v5721 = vpack.c.b16 %v5175, %v5169
    %v5722 = vpack.c.b16 %v5176, %v5170
    %v5723 = vpack.c.b16 %v5183, %v5177
    %v5724 = vpack.c.b16 %v5184, %v5178
    %v5725 = vpack.c.b16 %v5185, %v5179
    %v5726 = vpack.c.b16 %v5186, %v5180
    %v5727 = vpack.c.b16 %v5187, %v5181
    %v5728 = vpack.c.b16 %v5188, %v5182
    %v5729 = vpack.c.b16 %v5195, %v5189
    %v5730 = vpack.c.b16 %v5196, %v5190
    %v5731 = vpack.c.b16 %v5197, %v5191
    %v5732 = vpack.c.b16 %v5198, %v5192
    %v5733 = vpack.c.b16 %v5199, %v5193
    %v5734 = vpack.c.b16 %v5200, %v5194
    %v5735 = vpack.c.b16 %v5207, %v5201
    %v5736 = vpack.c.b16 %v5208, %v5202
    %v5737 = vpack.c.b16 %v5209, %v5203
    %v5738 = vpack.c.b16 %v5210, %v5204
    %v5739 = vpack.c.b16 %v5211, %v5205
    %v5740 = vpack.c.b16 %v5212, %v5206
    %v5741 = vpack.c.b16 %v5219, %v5213
    %v5742 = vpack.c.b16 %v5220, %v5214
    %v5743 = vpack.c.b16 %v5221, %v5215
    %v5744 = vpack.c.b16 %v5222, %v5216
    %v5745 = vpack.c.b16 %v5223, %v5217
    %v5746 = vpack.c.b16 %v5224, %v5218
    %v5747 = vpack.c.b16 %v5231, %v5225
    %v5748 = vpack.c.b16 %v5232, %v5226
    %v5749 = vpack.c.b16 %v5233, %v5227
    %v5750 = vpack.c.b16 %v5234, %v5228
    %v5751 = vpack.c.b16 %v5235, %v5229
    %v5752 = vpack.c.b16 %v5236, %v5230
    %v5753 = vpack.c.b16 %v5243, %v5237
    %v5754 = vpack.c.b16 %v5244, %v5238
    %v5755 = vpack.c.b16 %v5245, %v5239
    %v5756 = vpack.c.b16 %v5246, %v5240
    %v5757 = vpack.c.b16 %v5247, %v5241
    %v5758 = vpack.c.b16 %v5248, %v5242
    %v5759 = vpack.c.b16 %v5255, %v5249
    %v5760 = vpack.c.b16 %v5256, %v5250
    %v5761 = vpack.c.b16 %v5257, %v5251
    %v5762 = vpack.c.b16 %v5258, %v5252
    %v5763 = vpack.c.b16 %v5259, %v5253
    %v5764 = vpack.c.b16 %v5260, %v5254
    %v5765 = vpack.c.b16 %v5267, %v5261
    %v5766 = vpack.c.b16 %v5268, %v5262
    %v5767 = vpack.c.b16 %v5269, %v5263
    %v5768 = vpack.c.b16 %v5270, %v5264
    %v5769 = vpack.c.b16 %v5271, %v5265
    %v5770 = vpack.c.b16 %v5272, %v5266
    %v5771 = vpack.c.b16 %v5279, %v5273
    %v5772 = vpack.c.b16 %v5280, %v5274
    %v5773 = vpack.c.b16 %v5281, %v5275
    %v5774 = vpack.c.b16 %v5282, %v5276
    %v5775 = vpack.c.b16 %v5283, %v5277
    %v5776 = vpack.c.b16 %v5284, %v5278
    %v5777 = vpack.c.b16 %v5291, %v5285
    %v5778 = vpack.c.b16 %v5292, %v5286
    %v5779 = vpack.c.b16 %v5293, %v5287
    %v5780 = vpack.c.b16 %v5294, %v5288
    %v5781 = vpack.c.b16 %v5295, %v5289
    %v5782 = vpack.c.b16 %v5296, %v5290
    %v5783 = vpack.c.b16 %v5303, %v5297
    %v5784 = vpack.c.b16 %v5304, %v5298
    %v5785 = vpack.c.b16 %v5305, %v5299
    %v5786 = vpack.c.b16 %v5306, %v5300
    %v5787 = vpack.c.b16 %v5307, %v5301
    %v5788 = vpack.c.b16 %v5308, %v5302
    %v5789 = vpack.c.b16 %v5315, %v5309
    %v5790 = vpack.c.b16 %v5316, %v5310
    %v5791 = vpack.c.b16 %v5317, %v5311
    %v5792 = vpack.c.b16 %v5318, %v5312
    %v5793 = vpack.c.b16 %v5319, %v5313
    %v5794 = vpack.c.b16 %v5320, %v5314
    %v5795 = vpack.c.b16 %v5327, %v5321
    %v5796 = vpack.c.b16 %v5328, %v5322
    %v5797 = vpack.c.b16 %v5329, %v5323
    %v5798 = vpack.c.b16 %v5330, %v5324
    %v5799 = vpack.c.b16 %v5331, %v5325
    %v5800 = vpack.c.b16 %v5332, %v5326
    %v5801 = vpack.c.b16 %v5339, %v5333
    %v5802 = vpack.c.b16 %v5340, %v5334
    %v5803 = vpack.c.b16 %v5341, %v5335
    %v5804 = vpack.c.b16 %v5342, %v5336
    %v5805 = vpack.c.b16 %v5343, %v5337
    %v5806 = vpack.c.b16 %v5344, %v5338
    %v5807 = vpack.c.b16 %v5351, %v5345
    %v5808 = vpack.c.b16 %v5352, %v5346
    %v5809 = vpack.c.b16 %v5353, %v5347
    %v5810 = vpack.c.b16 %v5354, %v5348
    %v5811 = vpack.c.b16 %v5355, %v5349
    %v5812 = vpack.c.b16 %v5356, %v5350
    %v5813 = vpack.c.b16 %v5363, %v5357
    %v5814 = vpack.c.b16 %v5364, %v5358
    %v5815 = vpack.c.b16 %v5365, %v5359
    %v5816 = vpack.c.b16 %v5366, %v5360
    %v5817 = vpack.c.b16 %v5367, %v5361
    %v5818 = vpack.c.b16 %v5368, %v5362
    %v5819 = vpack.c.b16 %v5375, %v5369
    %v5820 = vpack.c.b16 %v5376, %v5370
    %v5821 = vpack.c.b16 %v5377, %v5371
    %v5822 = vpack.c.b16 %v5378, %v5372
    %v5823 = vpack.c.b16 %v5379, %v5373
    %v5824 = vpack.c.b16 %v5380, %v5374
    %v5825 = vpack.c.b16 %v5387, %v5381
    %v5826 = vpack.c.b16 %v5388, %v5382
    %v5827 = vpack.c.b16 %v5389, %v5383
    %v5828 = vpack.c.b16 %v5390, %v5384
    %v5829 = vpack.c.b16 %v5391, %v5385
    %v5830 = vpack.c.b16 %v5392, %v5386
    %v5831 = vpack.c.b16 %v5399, %v5393
    %v5832 = vpack.c.b16 %v5400, %v5394
    %v5833 = vpack.c.b16 %v5401, %v5395
    %v5834 = vpack.c.b16 %v5402, %v5396
    %v5835 = vpack.c.b16 %v5403, %v5397
    %v5836 = vpack.c.b16 %v5404, %v5398
    %v5837 = vpack.c.b16 %v5411, %v5405
    %v5838 = vpack.c.b16 %v5412, %v5406
    %v5839 = vpack.c.b16 %v5413, %v5407
    %v5840 = vpack.c.b16 %v5414, %v5408
    %v5841 = vpack.c.b16 %v5415, %v5409
    %v5842 = vpack.c.b16 %v5416, %v5410
    %v5843 = vpack.c.b16 %v5423, %v5417
    %v5844 = vpack.c.b16 %v5424, %v5418
    %v5845 = vpack.c.b16 %v5425, %v5419
    %v5846 = vpack.c.b16 %v5426, %v5420
    %v5847 = vpack.c.b16 %v5427, %v5421
    %v5848 = vpack.c.b16 %v5428, %v5422
    %v5849 = vpack.c.b16 %v5435, %v5429
    %v5850 = vpack.c.b16 %v5436, %v5430
    %v5851 = vpack.c.b16 %v5437, %v5431
    %v5852 = vpack.c.b16 %v5438, %v5432
    %v5853 = vpack.c.b16 %v5439, %v5433
    %v5854 = vpack.c.b16 %v5440, %v5434
    %v5855 = vpack.c.b16 %v5447, %v5441
    %v5856 = vpack.c.b16 %v5448, %v5442
    %v5857 = vpack.c.b16 %v5449, %v5443
    %v5858 = vpack.c.b16 %v5450, %v5444
    %v5859 = vpack.c.b16 %v5451, %v5445
    %v5860 = vpack.c.b16 %v5452, %v5446
    %v5861 = vpack.c.b16 %v5459, %v5453
    %v5862 = vpack.c.b16 %v5460, %v5454
    %v5863 = vpack.c.b16 %v5461, %v5455
    %v5864 = vpack.c.b16 %v5462, %v5456
    %v5865 = vpack.c.b16 %v5463, %v5457
    %v5866 = vpack.c.b16 %v5464, %v5458
    %v5867 = vpack.c.b16 %v5471, %v5465
    %v5868 = vpack.c.b16 %v5472, %v5466
    %v5869 = vpack.c.b16 %v5473, %v5467
    %v5870 = vpack.c.b16 %v5474, %v5468
    %v5871 = vpack.c.b16 %v5475, %v5469
    %v5872 = vpack.c.b16 %v5476, %v5470
    %v5873 = vpack.c.b16 %v5483, %v5477
    %v5874 = vpack.c.b16 %v5484, %v5478
    %v5875 = vpack.c.b16 %v5485, %v5479
    %v5876 = vpack.c.b16 %v5486, %v5480
    %v5877 = vpack.c.b16 %v5487, %v5481
    %v5878 = vpack.c.b16 %v5488, %v5482
    %v5879 = vpack.c.b16 %v5495, %v5489
    %v5880 = vpack.c.b16 %v5496, %v5490
    %v5881 = vpack.c.b16 %v5497, %v5491
    %v5882 = vpack.c.b16 %v5498, %v5492
    %v5883 = vpack.c.b16 %v5499, %v5493
    %v5884 = vpack.c.b16 %v5500, %v5494
    %6269 = vmatprep.subr.bf16.mxu0 %v5502
    %6270 = vmatpush1.bf16.msra.mxu0 %v5501
    %6271 = vmatprep.subr.bf16.mxu0 %v5508
    %6272 = vmatpush1.bf16.msra.mxu0 %v5507
    %6273 = vmatprep.subr.bf16.mxu0 %v5514
    %6274 = vmatpush1.bf16.msra.mxu0 %v5513
    %6275 = vmatprep.subr.bf16.mxu0 %v5520
    %6276 = vmatpush1.bf16.msra.mxu0 %v5519
    %6277 = vmatprep.subr.bf16.mxu0 %v5526
    %6278 = vmatpush1.bf16.msra.mxu0 %v5525
    %6279 = vmatprep.subr.bf16.mxu0 %v5532
    %6280 = vmatpush1.bf16.msra.mxu0 %v5531
    %6281 = vmatprep.subr.bf16.mxu0 %v5538
    %6282 = vmatpush1.bf16.msra.mxu0 %v5537
    %6283 = vmatprep.subr.bf16.mxu0 %v5544
    %6284 = vmatpush1.bf16.msra.mxu0 %v5543
    %6285 = vmatprep.subr.bf16.mxu0 %v5550
    %6286 = vmatpush1.bf16.msra.mxu0 %v5549
    %6287 = vmatprep.subr.bf16.mxu0 %v5556
    %6288 = vmatpush1.bf16.msra.mxu0 %v5555
    %6289 = vmatprep.subr.bf16.mxu0 %v5562
    %6290 = vmatpush1.bf16.msra.mxu0 %v5561
    %6291 = vmatprep.subr.bf16.mxu0 %v5568
    %6292 = vmatpush1.bf16.msra.mxu0 %v5567
    %6293 = vmatprep.subr.bf16.mxu0 %v5574
    %6294 = vmatpush1.bf16.msra.mxu0 %v5573
    %6295 = vmatprep.subr.bf16.mxu0 %v5580
    %6296 = vmatpush1.bf16.msra.mxu0 %v5579
    %6297 = vmatprep.subr.bf16.mxu0 %v5586
    %6298 = vmatpush1.bf16.msra.mxu0 %v5585
    %6299 = vmatprep.subr.bf16.mxu0 %v5592
    %6300 = vmatpush1.bf16.msra.mxu0 %v5591
    %6301 = vmatprep.mubr.bf16.mxu0 %v3926
    %6302 = vmatmul.mubr.bf16.gmra.mrb[0].mxu0 %v3925
    %v6303 = vpop.f32.mrb[0].mxu0
    %v6304 = vadd.f32 %v4322, %v6303
    %v6305 = vpop.f32.mrb[0].mxu0
    %v6306 = vadd.f32 %v4326, %v6305
    %v6307 = vpop.f32.mrb[0].mxu0
    %v6308 = vpop.f32.mrb[0].mxu0
    %6309 = vdwg.mxu0
    %6310 = vmatprep.subr.bf16.mxu0 %v5598
    %6311 = vmatpush1.bf16.msra.mxu0 %v5597
    %6312 = vmatprep.subr.bf16.mxu0 %v5604
    %6313 = vmatpush1.bf16.msra.mxu0 %v5603
    %6314 = vmatprep.subr.bf16.mxu0 %v5610
    %6315 = vmatpush1.bf16.msra.mxu0 %v5609
    %6316 = vmatprep.subr.bf16.mxu0 %v5616
    %6317 = vmatpush1.bf16.msra.mxu0 %v5615
    %6318 = vmatprep.subr.bf16.mxu0 %v5622
    %6319 = vmatpush1.bf16.msra.mxu0 %v5621
    %6320 = vmatprep.subr.bf16.mxu0 %v5628
    %6321 = vmatpush1.bf16.msra.mxu0 %v5627
    %6322 = vmatprep.subr.bf16.mxu0 %v5634
    %6323 = vmatpush1.bf16.msra.mxu0 %v5633
    %6324 = vmatprep.subr.bf16.mxu0 %v5640
    %6325 = vmatpush1.bf16.msra.mxu0 %v5639
    %6326 = vmatprep.subr.bf16.mxu0 %v5646
    %6327 = vmatpush1.bf16.msra.mxu0 %v5645
    %6328 = vmatprep.subr.bf16.mxu0 %v5652
    %6329 = vmatpush1.bf16.msra.mxu0 %v5651
    %6330 = vmatprep.subr.bf16.mxu0 %v5658
    %6331 = vmatpush1.bf16.msra.mxu0 %v5657
    %6332 = vmatprep.subr.bf16.mxu0 %v5664
    %6333 = vmatpush1.bf16.msra.mxu0 %v5663
    %6334 = vmatprep.subr.bf16.mxu0 %v5670
    %6335 = vmatpush1.bf16.msra.mxu0 %v5669
    %6336 = vmatprep.subr.bf16.mxu0 %v5676
    %6337 = vmatpush1.bf16.msra.mxu0 %v5675
    %6338 = vmatprep.subr.bf16.mxu0 %v5682
    %6339 = vmatpush1.bf16.msra.mxu0 %v5681
    %6340 = vmatprep.subr.bf16.mxu0 %v5688
    %6341 = vmatpush1.bf16.msra.mxu0 %v5687
    %6342 = vmatprep.mubr.bf16.mxu0 %v3928
    %6343 = vmatmul.mubr.bf16.gmra.mrb[0].mxu0 %v3927
    %v6344 = vpop.f32.mrb[0].mxu0
    %v6345 = vadd.f32 %v6304, %v6344
    %v6346 = vpop.f32.mrb[0].mxu0
    %v6347 = vadd.f32 %v6306, %v6346
    %v6348 = vpop.f32.mrb[0].mxu0
    %v6349 = vpop.f32.mrb[0].mxu0
    %6350 = vdwg.mxu0
    %6351 = vmatprep.subr.bf16.mxu0 %v5694
    %6352 = vmatpush1.bf16.msra.mxu0 %v5693
    %6353 = vmatprep.subr.bf16.mxu0 %v5700
    %6354 = vmatpush1.bf16.msra.mxu0 %v5699
    %6355 = vmatprep.subr.bf16.mxu0 %v5706
    %6356 = vmatpush1.bf16.msra.mxu0 %v5705
    %6357 = vmatprep.subr.bf16.mxu0 %v5712
    %6358 = vmatpush1.bf16.msra.mxu0 %v5711
    %6359 = vmatprep.subr.bf16.mxu0 %v5718
    %6360 = vmatpush1.bf16.msra.mxu0 %v5717
    %6361 = vmatprep.subr.bf16.mxu0 %v5724
    %6362 = vmatpush1.bf16.msra.mxu0 %v5723
    %6363 = vmatprep.subr.bf16.mxu0 %v5730
    %6364 = vmatpush1.bf16.msra.mxu0 %v5729
    %6365 = vmatprep.subr.bf16.mxu0 %v5736
    %6366 = vmatpush1.bf16.msra.mxu0 %v5735
    %6367 = vmatprep.subr.bf16.mxu0 %v5742
    %6368 = vmatpush1.bf16.msra.mxu0 %v5741
    %6369 = vmatprep.subr.bf16.mxu0 %v5748
    %6370 = vmatpush1.bf16.msra.mxu0 %v5747
    %6371 = vmatprep.subr.bf16.mxu0 %v5754
    %6372 = vmatpush1.bf16.msra.mxu0 %v5753
    %6373 = vmatprep.subr.bf16.mxu0 %v5760
    %6374 = vmatpush1.bf16.msra.mxu0 %v5759
    %6375 = vmatprep.subr.bf16.mxu0 %v5766
    %6376 = vmatpush1.bf16.msra.mxu0 %v5765
    %6377 = vmatprep.subr.bf16.mxu0 %v5772
    %6378 = vmatpush1.bf16.msra.mxu0 %v5771
    %6379 = vmatprep.subr.bf16.mxu0 %v5778
    %6380 = vmatpush1.bf16.msra.mxu0 %v5777
    %6381 = vmatprep.subr.bf16.mxu0 %v5784
    %6382 = vmatpush1.bf16.msra.mxu0 %v5783
    %6383 = vmatprep.mubr.bf16.mxu0 %v3930
    %6384 = vmatmul.mubr.bf16.gmra.mrb[0].mxu0 %v3929
    %v6385 = vpop.f32.mrb[0].mxu0
    %v6386 = vadd.f32 %v6345, %v6385
    %v6387 = vpop.f32.mrb[0].mxu0
    %v6388 = vadd.f32 %v6347, %v6387
    %v6389 = vpop.f32.mrb[0].mxu0
    %v6390 = vpop.f32.mrb[0].mxu0
    %6391 = vdwg.mxu0
    %6392 = vmatprep.subr.bf16.mxu0 %v5790
    %6393 = vmatpush1.bf16.msra.mxu0 %v5789
    %6394 = vmatprep.subr.bf16.mxu0 %v5796
    %6395 = vmatpush1.bf16.msra.mxu0 %v5795
    %6396 = vmatprep.subr.bf16.mxu0 %v5802
    %6397 = vmatpush1.bf16.msra.mxu0 %v5801
    %6398 = vmatprep.subr.bf16.mxu0 %v5808
    %6399 = vmatpush1.bf16.msra.mxu0 %v5807
    %6400 = vmatprep.subr.bf16.mxu0 %v5814
    %6401 = vmatpush1.bf16.msra.mxu0 %v5813
    %6402 = vmatprep.subr.bf16.mxu0 %v5820
    %6403 = vmatpush1.bf16.msra.mxu0 %v5819
    %6404 = vmatprep.subr.bf16.mxu0 %v5826
    %6405 = vmatpush1.bf16.msra.mxu0 %v5825
    %6406 = vmatprep.subr.bf16.mxu0 %v5832
    %6407 = vmatpush1.bf16.msra.mxu0 %v5831
    %6408 = vmatprep.subr.bf16.mxu0 %v5838
    %6409 = vmatpush1.bf16.msra.mxu0 %v5837
    %6410 = vmatprep.subr.bf16.mxu0 %v5844
    %6411 = vmatpush1.bf16.msra.mxu0 %v5843
    %6412 = vmatprep.subr.bf16.mxu0 %v5850
    %6413 = vmatpush1.bf16.msra.mxu0 %v5849
    %6414 = vmatprep.subr.bf16.mxu0 %v5856
    %6415 = vmatpush1.bf16.msra.mxu0 %v5855
    %6416 = vmatprep.subr.bf16.mxu0 %v5862
    %6417 = vmatpush1.bf16.msra.mxu0 %v5861
    %6418 = vmatprep.subr.bf16.mxu0 %v5868
    %6419 = vmatpush1.bf16.msra.mxu0 %v5867
    %6420 = vmatprep.subr.bf16.mxu0 %v5874
    %6421 = vmatpush1.bf16.msra.mxu0 %v5873
    %6422 = vmatprep.subr.bf16.mxu0 %v5880
    %6423 = vmatpush1.bf16.msra.mxu0 %v5879
    %6424 = vmatprep.mubr.bf16.mxu0 %v3932
    %6425 = vmatmul.mubr.bf16.gmra.mrb[0].mxu0 %v3931
    %v6426 = vpop.f32.mrb[0].mxu0
    %v6427 = vadd.f32 %v6386, %v6426
    %v6428 = vpop.f32.mrb[0].mxu0
    %v6429 = vadd.f32 %v6388, %v6428
    %v6430 = vpop.f32.mrb[0].mxu0
    %v6431 = vpop.f32.mrb[0].mxu0
    %6432 = vdwg.mxu0
    %6433 = vmatprep.subr.bf16.mxu0 %v5504
    %6434 = vmatpush1.bf16.msra.mxu0 %v5503
    %6435 = vmatprep.subr.bf16.mxu0 %v5510
    %6436 = vmatpush1.bf16.msra.mxu0 %v5509
    %6437 = vmatprep.subr.bf16.mxu0 %v5516
    %6438 = vmatpush1.bf16.msra.mxu0 %v5515
    %6439 = vmatprep.subr.bf16.mxu0 %v5522
    %6440 = vmatpush1.bf16.msra.mxu0 %v5521
    %6441 = vmatprep.subr.bf16.mxu0 %v5528
    %6442 = vmatpush1.bf16.msra.mxu0 %v5527
    %6443 = vmatprep.subr.bf16.mxu0 %v5534
    %6444 = vmatpush1.bf16.msra.mxu0 %v5533
    %6445 = vmatprep.subr.bf16.mxu0 %v5540
    %6446 = vmatpush1.bf16.msra.mxu0 %v5539
    %6447 = vmatprep.subr.bf16.mxu0 %v5546
    %6448 = vmatpush1.bf16.msra.mxu0 %v5545
    %6449 = vmatprep.subr.bf16.mxu0 %v5552
    %6450 = vmatpush1.bf16.msra.mxu0 %v5551
    %6451 = vmatprep.subr.bf16.mxu0 %v5558
    %6452 = vmatpush1.bf16.msra.mxu0 %v5557
    %6453 = vmatprep.subr.bf16.mxu0 %v5564
    %6454 = vmatpush1.bf16.msra.mxu0 %v5563
    %6455 = vmatprep.subr.bf16.mxu0 %v5570
    %6456 = vmatpush1.bf16.msra.mxu0 %v5569
    %6457 = vmatprep.subr.bf16.mxu0 %v5576
    %6458 = vmatpush1.bf16.msra.mxu0 %v5575
    %6459 = vmatprep.subr.bf16.mxu0 %v5582
    %6460 = vmatpush1.bf16.msra.mxu0 %v5581
    %6461 = vmatprep.subr.bf16.mxu0 %v5588
    %6462 = vmatpush1.bf16.msra.mxu0 %v5587
    %6463 = vmatprep.subr.bf16.mxu0 %v5594
    %6464 = vmatpush1.bf16.msra.mxu0 %v5593
    %6465 = vmatprep.mubr.bf16.mxu0 %v3926
    %6466 = vmatmul.mubr.bf16.gmra.mrb[0].mxu0 %v3925
    %v6467 = vpop.f32.mrb[0].mxu0
    %v6468 = vadd.f32 %v4330, %v6467
    %v6469 = vpop.f32.mrb[0].mxu0
    %v6470 = vadd.f32 %v4334, %v6469
    %v6471 = vpop.f32.mrb[0].mxu0
    %v6472 = vpop.f32.mrb[0].mxu0
    %6473 = vdwg.mxu0
    %6474 = vmatprep.subr.bf16.mxu0 %v5600
    %6475 = vmatpush1.bf16.msra.mxu0 %v5599
    %6476 = vmatprep.subr.bf16.mxu0 %v5606
    %6477 = vmatpush1.bf16.msra.mxu0 %v5605
    %6478 = vmatprep.subr.bf16.mxu0 %v5612
    %6479 = vmatpush1.bf16.msra.mxu0 %v5611
    %6480 = vmatprep.subr.bf16.mxu0 %v5618
    %6481 = vmatpush1.bf16.msra.mxu0 %v5617
    %6482 = vmatprep.subr.bf16.mxu0 %v5624
    %6483 = vmatpush1.bf16.msra.mxu0 %v5623
    %6484 = vmatprep.subr.bf16.mxu0 %v5630
    %6485 = vmatpush1.bf16.msra.mxu0 %v5629
    %6486 = vmatprep.subr.bf16.mxu0 %v5636
    %6487 = vmatpush1.bf16.msra.mxu0 %v5635
    %6488 = vmatprep.subr.bf16.mxu0 %v5642
    %6489 = vmatpush1.bf16.msra.mxu0 %v5641
    %6490 = vmatprep.subr.bf16.mxu0 %v5648
    %6491 = vmatpush1.bf16.msra.mxu0 %v5647
    %6492 = vmatprep.subr.bf16.mxu0 %v5654
    %6493 = vmatpush1.bf16.msra.mxu0 %v5653
    %6494 = vmatprep.subr.bf16.mxu0 %v5660
    %6495 = vmatpush1.bf16.msra.mxu0 %v5659
    %6496 = vmatprep.subr.bf16.mxu0 %v5666
    %6497 = vmatpush1.bf16.msra.mxu0 %v5665
    %6498 = vmatprep.subr.bf16.mxu0 %v5672
    %6499 = vmatpush1.bf16.msra.mxu0 %v5671
    %6500 = vmatprep.subr.bf16.mxu0 %v5678
    %6501 = vmatpush1.bf16.msra.mxu0 %v5677
    %6502 = vmatprep.subr.bf16.mxu0 %v5684
    %6503 = vmatpush1.bf16.msra.mxu0 %v5683
    %6504 = vmatprep.subr.bf16.mxu0 %v5690
    %6505 = vmatpush1.bf16.msra.mxu0 %v5689
    %6506 = vmatprep.mubr.bf16.mxu0 %v3928
    %6507 = vmatmul.mubr.bf16.gmra.mrb[0].mxu0 %v3927
    %v6508 = vpop.f32.mrb[0].mxu0
    %v6509 = vadd.f32 %v6468, %v6508
    %v6510 = vpop.f32.mrb[0].mxu0
    %v6511 = vadd.f32 %v6470, %v6510
    %v6512 = vpop.f32.mrb[0].mxu0
    %v6513 = vpop.f32.mrb[0].mxu0
    %6514 = vdwg.mxu0
    %6515 = vmatprep.subr.bf16.mxu0 %v5696
    %6516 = vmatpush1.bf16.msra.mxu0 %v5695
    %6517 = vmatprep.subr.bf16.mxu0 %v5702
    %6518 = vmatpush1.bf16.msra.mxu0 %v5701
    %6519 = vmatprep.subr.bf16.mxu0 %v5708
    %6520 = vmatpush1.bf16.msra.mxu0 %v5707
    %6521 = vmatprep.subr.bf16.mxu0 %v5714
    %6522 = vmatpush1.bf16.msra.mxu0 %v5713
    %6523 = vmatprep.subr.bf16.mxu0 %v5720
    %6524 = vmatpush1.bf16.msra.mxu0 %v5719
    %6525 = vmatprep.subr.bf16.mxu0 %v5726
    %6526 = vmatpush1.bf16.msra.mxu0 %v5725
    %6527 = vmatprep.subr.bf16.mxu0 %v5732
    %6528 = vmatpush1.bf16.msra.mxu0 %v5731
    %6529 = vmatprep.subr.bf16.mxu0 %v5738
    %6530 = vmatpush1.bf16.msra.mxu0 %v5737
    %6531 = vmatprep.subr.bf16.mxu0 %v5744
    %6532 = vmatpush1.bf16.msra.mxu0 %v5743
    %6533 = vmatprep.subr.bf16.mxu0 %v5750
    %6534 = vmatpush1.bf16.msra.mxu0 %v5749
    %6535 = vmatprep.subr.bf16.mxu0 %v5756
    %6536 = vmatpush1.bf16.msra.mxu0 %v5755
    %6537 = vmatprep.subr.bf16.mxu0 %v5762
    %6538 = vmatpush1.bf16.msra.mxu0 %v5761
    %6539 = vmatprep.subr.bf16.mxu0 %v5768
    %6540 = vmatpush1.bf16.msra.mxu0 %v5767
    %6541 = vmatprep.subr.bf16.mxu0 %v5774
    %6542 = vmatpush1.bf16.msra.mxu0 %v5773
    %6543 = vmatprep.subr.bf16.mxu0 %v5780
    %6544 = vmatpush1.bf16.msra.mxu0 %v5779
    %6545 = vmatprep.subr.bf16.mxu0 %v5786
    %6546 = vmatpush1.bf16.msra.mxu0 %v5785
    %6547 = vmatprep.mubr.bf16.mxu0 %v3930
    %6548 = vmatmul.mubr.bf16.gmra.mrb[0].mxu0 %v3929
    %v6549 = vpop.f32.mrb[0].mxu0
    %v6550 = vadd.f32 %v6509, %v6549
    %v6551 = vpop.f32.mrb[0].mxu0
    %v6552 = vadd.f32 %v6511, %v6551
    %v6553 = vpop.f32.mrb[0].mxu0
    %v6554 = vpop.f32.mrb[0].mxu0
    %6555 = vdwg.mxu0
    %6556 = vmatprep.subr.bf16.mxu0 %v5792
    %6557 = vmatpush1.bf16.msra.mxu0 %v5791
    %6558 = vmatprep.subr.bf16.mxu0 %v5798
    %6559 = vmatpush1.bf16.msra.mxu0 %v5797
    %6560 = vmatprep.subr.bf16.mxu0 %v5804
    %6561 = vmatpush1.bf16.msra.mxu0 %v5803
    %6562 = vmatprep.subr.bf16.mxu0 %v5810
    %6563 = vmatpush1.bf16.msra.mxu0 %v5809
    %6564 = vmatprep.subr.bf16.mxu0 %v5816
    %6565 = vmatpush1.bf16.msra.mxu0 %v5815
    %6566 = vmatprep.subr.bf16.mxu0 %v5822
    %6567 = vmatpush1.bf16.msra.mxu0 %v5821
    %6568 = vmatprep.subr.bf16.mxu0 %v5828
    %6569 = vmatpush1.bf16.msra.mxu0 %v5827
    %6570 = vmatprep.subr.bf16.mxu0 %v5834
    %6571 = vmatpush1.bf16.msra.mxu0 %v5833
    %6572 = vmatprep.subr.bf16.mxu0 %v5840
    %6573 = vmatpush1.bf16.msra.mxu0 %v5839
    %6574 = vmatprep.subr.bf16.mxu0 %v5846
    %6575 = vmatpush1.bf16.msra.mxu0 %v5845
    %6576 = vmatprep.subr.bf16.mxu0 %v5852
    %6577 = vmatpush1.bf16.msra.mxu0 %v5851
    %6578 = vmatprep.subr.bf16.mxu0 %v5858
    %6579 = vmatpush1.bf16.msra.mxu0 %v5857
    %6580 = vmatprep.subr.bf16.mxu0 %v5864
    %6581 = vmatpush1.bf16.msra.mxu0 %v5863
    %6582 = vmatprep.subr.bf16.mxu0 %v5870
    %6583 = vmatpush1.bf16.msra.mxu0 %v5869
    %6584 = vmatprep.subr.bf16.mxu0 %v5876
    %6585 = vmatpush1.bf16.msra.mxu0 %v5875
    %6586 = vmatprep.subr.bf16.mxu0 %v5882
    %6587 = vmatpush1.bf16.msra.mxu0 %v5881
    %6588 = vmatprep.mubr.bf16.mxu0 %v3932
    %6589 = vmatmul.mubr.bf16.gmra.mrb[0].mxu0 %v3931
    %v6590 = vpop.f32.mrb[0].mxu0
    %v6591 = vadd.f32 %v6550, %v6590
    %v6592 = vpop.f32.mrb[0].mxu0
    %v6593 = vadd.f32 %v6552, %v6592
    %v6594 = vpop.f32.mrb[0].mxu0
    %v6595 = vpop.f32.mrb[0].mxu0
    %6596 = vdwg.mxu0
    %6597 = vmatprep.subr.bf16.mxu0 %v5506
    %6598 = vmatpush1.bf16.msra.mxu0 %v5505
    %6599 = vmatprep.subr.bf16.mxu0 %v5512
    %6600 = vmatpush1.bf16.msra.mxu0 %v5511
    %6601 = vmatprep.subr.bf16.mxu0 %v5518
    %6602 = vmatpush1.bf16.msra.mxu0 %v5517
    %6603 = vmatprep.subr.bf16.mxu0 %v5524
    %6604 = vmatpush1.bf16.msra.mxu0 %v5523
    %6605 = vmatprep.subr.bf16.mxu0 %v5530
    %6606 = vmatpush1.bf16.msra.mxu0 %v5529
    %6607 = vmatprep.subr.bf16.mxu0 %v5536
    %6608 = vmatpush1.bf16.msra.mxu0 %v5535
    %6609 = vmatprep.subr.bf16.mxu0 %v5542
    %6610 = vmatpush1.bf16.msra.mxu0 %v5541
    %6611 = vmatprep.subr.bf16.mxu0 %v5548
    %6612 = vmatpush1.bf16.msra.mxu0 %v5547
    %6613 = vmatprep.subr.bf16.mxu0 %v5554
    %6614 = vmatpush1.bf16.msra.mxu0 %v5553
    %6615 = vmatprep.subr.bf16.mxu0 %v5560
    %6616 = vmatpush1.bf16.msra.mxu0 %v5559
    %6617 = vmatprep.subr.bf16.mxu0 %v5566
    %6618 = vmatpush1.bf16.msra.mxu0 %v5565
    %6619 = vmatprep.subr.bf16.mxu0 %v5572
    %6620 = vmatpush1.bf16.msra.mxu0 %v5571
    %6621 = vmatprep.subr.bf16.mxu0 %v5578
    %6622 = vmatpush1.bf16.msra.mxu0 %v5577
    %6623 = vmatprep.subr.bf16.mxu0 %v5584
    %6624 = vmatpush1.bf16.msra.mxu0 %v5583
    %6625 = vmatprep.subr.bf16.mxu0 %v5590
    %6626 = vmatpush1.bf16.msra.mxu0 %v5589
    %6627 = vmatprep.subr.bf16.mxu0 %v5596
    %6628 = vmatpush1.bf16.msra.mxu0 %v5595
    %6629 = vmatprep.mubr.bf16.mxu0 %v3926
    %6630 = vmatmul.mubr.bf16.gmra.mrb[0].mxu0 %v3925
    %v6631 = vpop.f32.mrb[0].mxu0
    %v6632 = vadd.f32 %v4338, %v6631
    %v6633 = vpop.f32.mrb[0].mxu0
    %v6634 = vadd.f32 %v4342, %v6633
    %v6635 = vpop.f32.mrb[0].mxu0
    %v6636 = vpop.f32.mrb[0].mxu0
    %6637 = vdwg.mxu0
    %6638 = vmatprep.subr.bf16.mxu0 %v5602
    %6639 = vmatpush1.bf16.msra.mxu0 %v5601
    %6640 = vmatprep.subr.bf16.mxu0 %v5608
    %6641 = vmatpush1.bf16.msra.mxu0 %v5607
    %6642 = vmatprep.subr.bf16.mxu0 %v5614
    %6643 = vmatpush1.bf16.msra.mxu0 %v5613
    %6644 = vmatprep.subr.bf16.mxu0 %v5620
    %6645 = vmatpush1.bf16.msra.mxu0 %v5619
    %6646 = vmatprep.subr.bf16.mxu0 %v5626
    %6647 = vmatpush1.bf16.msra.mxu0 %v5625
    %6648 = vmatprep.subr.bf16.mxu0 %v5632
    %6649 = vmatpush1.bf16.msra.mxu0 %v5631
    %6650 = vmatprep.subr.bf16.mxu0 %v5638
    %6651 = vmatpush1.bf16.msra.mxu0 %v5637
    %6652 = vmatprep.subr.bf16.mxu0 %v5644
    %6653 = vmatpush1.bf16.msra.mxu0 %v5643
    %6654 = vmatprep.subr.bf16.mxu0 %v5650
    %6655 = vmatpush1.bf16.msra.mxu0 %v5649
    %6656 = vmatprep.subr.bf16.mxu0 %v5656
    %6657 = vmatpush1.bf16.msra.mxu0 %v5655
    %6658 = vmatprep.subr.bf16.mxu0 %v5662
    %6659 = vmatpush1.bf16.msra.mxu0 %v5661
    %6660 = vmatprep.subr.bf16.mxu0 %v5668
    %6661 = vmatpush1.bf16.msra.mxu0 %v5667
    %6662 = vmatprep.subr.bf16.mxu0 %v5674
    %6663 = vmatpush1.bf16.msra.mxu0 %v5673
    %6664 = vmatprep.subr.bf16.mxu0 %v5680
    %6665 = vmatpush1.bf16.msra.mxu0 %v5679
    %6666 = vmatprep.subr.bf16.mxu0 %v5686
    %6667 = vmatpush1.bf16.msra.mxu0 %v5685
    %6668 = vmatprep.subr.bf16.mxu0 %v5692
    %6669 = vmatpush1.bf16.msra.mxu0 %v5691
    %6670 = vmatprep.mubr.bf16.mxu0 %v3928
    %6671 = vmatmul.mubr.bf16.gmra.mrb[0].mxu0 %v3927
    %v6672 = vpop.f32.mrb[0].mxu0
    %v6673 = vadd.f32 %v6632, %v6672
    %v6674 = vpop.f32.mrb[0].mxu0
    %v6675 = vadd.f32 %v6634, %v6674
    %v6676 = vpop.f32.mrb[0].mxu0
    %v6677 = vpop.f32.mrb[0].mxu0
    %6678 = vdwg.mxu0
    %6679 = vmatprep.subr.bf16.mxu0 %v5698
    %6680 = vmatpush1.bf16.msra.mxu0 %v5697
    %6681 = vmatprep.subr.bf16.mxu0 %v5704
    %6682 = vmatpush1.bf16.msra.mxu0 %v5703
    %6683 = vmatprep.subr.bf16.mxu0 %v5710
    %6684 = vmatpush1.bf16.msra.mxu0 %v5709
    %6685 = vmatprep.subr.bf16.mxu0 %v5716
    %6686 = vmatpush1.bf16.msra.mxu0 %v5715
    %6687 = vmatprep.subr.bf16.mxu0 %v5722
    %6688 = vmatpush1.bf16.msra.mxu0 %v5721
    %6689 = vmatprep.subr.bf16.mxu0 %v5728
    %6690 = vmatpush1.bf16.msra.mxu0 %v5727
    %6691 = vmatprep.subr.bf16.mxu0 %v5734
    %6692 = vmatpush1.bf16.msra.mxu0 %v5733
    %6693 = vmatprep.subr.bf16.mxu0 %v5740
    %6694 = vmatpush1.bf16.msra.mxu0 %v5739
    %6695 = vmatprep.subr.bf16.mxu0 %v5746
    %6696 = vmatpush1.bf16.msra.mxu0 %v5745
    %6697 = vmatprep.subr.bf16.mxu0 %v5752
    %6698 = vmatpush1.bf16.msra.mxu0 %v5751
    %6699 = vmatprep.subr.bf16.mxu0 %v5758
    %6700 = vmatpush1.bf16.msra.mxu0 %v5757
    %6701 = vmatprep.subr.bf16.mxu0 %v5764
    %6702 = vmatpush1.bf16.msra.mxu0 %v5763
    %6703 = vmatprep.subr.bf16.mxu0 %v5770
    %6704 = vmatpush1.bf16.msra.mxu0 %v5769
    %6705 = vmatprep.subr.bf16.mxu0 %v5776
    %6706 = vmatpush1.bf16.msra.mxu0 %v5775
    %6707 = vmatprep.subr.bf16.mxu0 %v5782
    %6708 = vmatpush1.bf16.msra.mxu0 %v5781
    %6709 = vmatprep.subr.bf16.mxu0 %v5788
    %6710 = vmatpush1.bf16.msra.mxu0 %v5787
    %6711 = vmatprep.mubr.bf16.mxu0 %v3930
    %6712 = vmatmul.mubr.bf16.gmra.mrb[0].mxu0 %v3929
    %v6713 = vpop.f32.mrb[0].mxu0
    %v6714 = vadd.f32 %v6673, %v6713
    %v6715 = vpop.f32.mrb[0].mxu0
    %v6716 = vadd.f32 %v6675, %v6715
    %v6717 = vpop.f32.mrb[0].mxu0
    %v6718 = vpop.f32.mrb[0].mxu0
    %6719 = vdwg.mxu0
    %6720 = vmatprep.subr.bf16.mxu0 %v5794
    %6721 = vmatpush1.bf16.msra.mxu0 %v5793
    %6722 = vmatprep.subr.bf16.mxu0 %v5800
    %6723 = vmatpush1.bf16.msra.mxu0 %v5799
    %6724 = vmatprep.subr.bf16.mxu0 %v5806
    %6725 = vmatpush1.bf16.msra.mxu0 %v5805
    %6726 = vmatprep.subr.bf16.mxu0 %v5812
    %6727 = vmatpush1.bf16.msra.mxu0 %v5811
    %6728 = vmatprep.subr.bf16.mxu0 %v5818
    %6729 = vmatpush1.bf16.msra.mxu0 %v5817
    %6730 = vmatprep.subr.bf16.mxu0 %v5824
    %6731 = vmatpush1.bf16.msra.mxu0 %v5823
    %6732 = vmatprep.subr.bf16.mxu0 %v5830
    %6733 = vmatpush1.bf16.msra.mxu0 %v5829
    %6734 = vmatprep.subr.bf16.mxu0 %v5836
    %6735 = vmatpush1.bf16.msra.mxu0 %v5835
    %6736 = vmatprep.subr.bf16.mxu0 %v5842
    %6737 = vmatpush1.bf16.msra.mxu0 %v5841
    %6738 = vmatprep.subr.bf16.mxu0 %v5848
    %6739 = vmatpush1.bf16.msra.mxu0 %v5847
    %6740 = vmatprep.subr.bf16.mxu0 %v5854
    %6741 = vmatpush1.bf16.msra.mxu0 %v5853
    %6742 = vmatprep.subr.bf16.mxu0 %v5860
    %6743 = vmatpush1.bf16.msra.mxu0 %v5859
    %6744 = vmatprep.subr.bf16.mxu0 %v5866
    %6745 = vmatpush1.bf16.msra.mxu0 %v5865
    %6746 = vmatprep.subr.bf16.mxu0 %v5872
    %6747 = vmatpush1.bf16.msra.mxu0 %v5871
    %6748 = vmatprep.subr.bf16.mxu0 %v5878
    %6749 = vmatpush1.bf16.msra.mxu0 %v5877
    %6750 = vmatprep.subr.bf16.mxu0 %v5884
    %6751 = vmatpush1.bf16.msra.mxu0 %v5883
    %6752 = vmatprep.mubr.bf16.mxu0 %v3932
    %6753 = vmatmul.mubr.bf16.gmra.mrb[0].mxu0 %v3931
    %v6754 = vpop.f32.mrb[0].mxu0
    %v6755 = vadd.f32 %v6714, %v6754
    %v6756 = vpop.f32.mrb[0].mxu0
    %v6757 = vadd.f32 %v6716, %v6756
    %v6758 = vpop.f32.mrb[0].mxu0
    %v6759 = vpop.f32.mrb[0].mxu0
    %6760 = vdwg.mxu0
    %v6761 = vmax.f32 %v6427, 0.0
    %v6762 = vmax.f32 %v6429, 0.0
    %v6763 = vmax.f32 %v6591, 0.0
    %v6764 = vmax.f32 %v6593, 0.0
    %v6765 = vmax.f32 %v6755, 0.0
    %v6766 = vmax.f32 %v6757, 0.0
    %v6767 = vpack.c.bf16 %v6761, %v6761
    %v6768 = vpack.c.bf16 %v6762, %v6762
    %v6769 = vpack.c.bf16 %v6763, %v6763
    %v6770 = vpack.c.bf16 %v6764, %v6764
    %v6771 = vpack.c.bf16 %v6765, %v6765
    %v6772 = vpack.c.bf16 %v6766, %v6766
    %v6773 = vld [vmem:[#allocation11] sm:$0xf]
    %v6774 = vld [vmem:[#allocation11 + $0x4] sm:$0xf]
    %v6775 = vld [vmem:[#allocation11 + $0x8] sm:$0xf]
    %v6776 = vld [vmem:[#allocation11 + $0xc] sm:$0xf]
    %v6777 = vld [vmem:[#allocation11 + $0x10] sm:$0xf]
    %v6778 = vld [vmem:[#allocation11 + $0x14] sm:$0xf]
    %v6779 = vld [vmem:[#allocation11 + $0x18] sm:$0xf]
    %v6780 = vld [vmem:[#allocation11 + $0x1c] sm:$0xf]
    %v6781 = vld [vmem:[#allocation11 + $0x20] sm:$0xf]
    %v6782 = vld [vmem:[#allocation11 + $0x24] sm:$0xf]
    %v6783 = vld [vmem:[#allocation11 + $0x28] sm:$0xf]
    %v6784 = vld [vmem:[#allocation11 + $0x2c] sm:$0xf]
    %v6785 = vld [vmem:[#allocation11 + $0x30] sm:$0xf]
    %v6786 = vld [vmem:[#allocation11 + $0x34] sm:$0xf]
    %v6787 = vld [vmem:[#allocation11 + $0x38] sm:$0xf]
    %v6788 = vld [vmem:[#allocation11 + $0x3c] sm:$0xf]
    %v6789 = vld [vmem:[#allocation11 + $0x40] sm:$0xf]
    %v6790 = vld [vmem:[#allocation11 + $0x44] sm:$0xf]
    %v6791 = vld [vmem:[#allocation11 + $0x48] sm:$0xf]
    %v6792 = vld [vmem:[#allocation11 + $0x4c] sm:$0xf]
    %v6793 = vld [vmem:[#allocation11 + $0x50] sm:$0xf]
    %v6794 = vld [vmem:[#allocation11 + $0x54] sm:$0xf]
    %v6795 = vld [vmem:[#allocation11 + $0x58] sm:$0xf]
    %v6796 = vld [vmem:[#allocation11 + $0x5c] sm:$0xf]
    %v6797 = vld [vmem:[#allocation11 + $0x60] sm:$0xf]
    %v6798 = vld [vmem:[#allocation11 + $0x64] sm:$0xf]
    %v6799 = vld [vmem:[#allocation11 + $0x68] sm:$0xf]
    %v6800 = vld [vmem:[#allocation11 + $0x6c] sm:$0xf]
    %v6801 = vld [vmem:[#allocation11 + $0x70] sm:$0xf]
    %v6802 = vld [vmem:[#allocation11 + $0x74] sm:$0xf]
    %v6803 = vld [vmem:[#allocation11 + $0x78] sm:$0xf]
    %v6804 = vld [vmem:[#allocation11 + $0x7c] sm:$0xf]
    %v6805 = vld [vmem:[#allocation11 + $0x80] sm:$0xf]
    %v6806 = vld [vmem:[#allocation11 + $0x84] sm:$0xf]
    %v6807 = vld [vmem:[#allocation11 + $0x88] sm:$0xf]
    %v6808 = vld [vmem:[#allocation11 + $0x8c] sm:$0xf]
    %v6809 = vld [vmem:[#allocation11 + $0x90] sm:$0xf]
    %v6810 = vld [vmem:[#allocation11 + $0x94] sm:$0xf]
    %v6811 = vld [vmem:[#allocation11 + $0x98] sm:$0xf]
    %v6812 = vld [vmem:[#allocation11 + $0x9c] sm:$0xf]
    %v6813 = vld [vmem:[#allocation11 + $0xa0] sm:$0xf]
    %v6814 = vld [vmem:[#allocation11 + $0xa4] sm:$0xf]
    %v6815 = vld [vmem:[#allocation11 + $0xa8] sm:$0xf]
    %v6816 = vld [vmem:[#allocation11 + $0xac] sm:$0xf]
    %v6817 = vld [vmem:[#allocation11 + $0xb0] sm:$0xf]
    %v6818 = vld [vmem:[#allocation11 + $0xb4] sm:$0xf]
    %v6819 = vld [vmem:[#allocation11 + $0xb8] sm:$0xf]
    %v6820 = vld [vmem:[#allocation11 + $0xbc] sm:$0xf]
    %v6821 = vld [vmem:[#allocation11 + $0xc0] sm:$0xf]
    %v6822 = vld [vmem:[#allocation11 + $0xc4] sm:$0xf]
    %v6823 = vld [vmem:[#allocation11 + $0xc8] sm:$0xf]
    %v6824 = vld [vmem:[#allocation11 + $0xcc] sm:$0xf]
    %v6825 = vld [vmem:[#allocation11 + $0xd0] sm:$0xf]
    %v6826 = vld [vmem:[#allocation11 + $0xd4] sm:$0xf]
    %v6827 = vld [vmem:[#allocation11 + $0xd8] sm:$0xf]
    %v6828 = vld [vmem:[#allocation11 + $0xdc] sm:$0xf]
    %v6829 = vld [vmem:[#allocation11 + $0xe0] sm:$0xf]
    %v6830 = vld [vmem:[#allocation11 + $0xe4] sm:$0xf]
    %v6831 = vld [vmem:[#allocation11 + $0xe8] sm:$0xf]
    %v6832 = vld [vmem:[#allocation11 + $0xec] sm:$0xf]
    %v6833 = vld [vmem:[#allocation11 + $0xf0] sm:$0xf]
    %v6834 = vld [vmem:[#allocation11 + $0xf4] sm:$0xf]
    %v6835 = vld [vmem:[#allocation11 + $0xf8] sm:$0xf]
    %v6836 = vld [vmem:[#allocation11 + $0xfc] sm:$0xf]
    %v6837 = vld [vmem:[#allocation11 + $0x100] sm:$0xf]
    %v6838 = vld [vmem:[#allocation11 + $0x104] sm:$0xf]
    %v6839 = vld [vmem:[#allocation11 + $0x108] sm:$0xf]
    %v6840 = vld [vmem:[#allocation11 + $0x10c] sm:$0xf]
    %v6841 = vld [vmem:[#allocation11 + $0x110] sm:$0xf]
    %v6842 = vld [vmem:[#allocation11 + $0x114] sm:$0xf]
    %v6843 = vld [vmem:[#allocation11 + $0x118] sm:$0xf]
    %v6844 = vld [vmem:[#allocation11 + $0x11c] sm:$0xf]
    %v6845 = vld [vmem:[#allocation11 + $0x120] sm:$0xf]
    %v6846 = vld [vmem:[#allocation11 + $0x124] sm:$0xf]
    %v6847 = vld [vmem:[#allocation11 + $0x128] sm:$0xf]
    %v6848 = vld [vmem:[#allocation11 + $0x12c] sm:$0xf]
    %v6849 = vld [vmem:[#allocation11 + $0x130] sm:$0xf]
    %v6850 = vld [vmem:[#allocation11 + $0x134] sm:$0xf]
    %v6851 = vld [vmem:[#allocation11 + $0x138] sm:$0xf]
    %v6852 = vld [vmem:[#allocation11 + $0x13c] sm:$0xf]
    %v6853 = vld [vmem:[#allocation11 + $0x140] sm:$0xf]
    %v6854 = vld [vmem:[#allocation11 + $0x144] sm:$0xf]
    %v6855 = vld [vmem:[#allocation11 + $0x148] sm:$0xf]
    %v6856 = vld [vmem:[#allocation11 + $0x14c] sm:$0xf]
    %v6857 = vld [vmem:[#allocation11 + $0x150] sm:$0xf]
    %v6858 = vld [vmem:[#allocation11 + $0x154] sm:$0xf]
    %v6859 = vld [vmem:[#allocation11 + $0x158] sm:$0xf]
    %v6860 = vld [vmem:[#allocation11 + $0x15c] sm:$0xf]
    %v6861 = vld [vmem:[#allocation11 + $0x160] sm:$0xf]
    %v6862 = vld [vmem:[#allocation11 + $0x164] sm:$0xf]
    %v6863 = vld [vmem:[#allocation11 + $0x168] sm:$0xf]
    %v6864 = vld [vmem:[#allocation11 + $0x16c] sm:$0xf]
    %v6865 = vld [vmem:[#allocation11 + $0x170] sm:$0xf]
    %v6866 = vld [vmem:[#allocation11 + $0x174] sm:$0xf]
    %v6867 = vld [vmem:[#allocation11 + $0x178] sm:$0xf]
    %v6868 = vld [vmem:[#allocation11 + $0x17c] sm:$0xf]
    %v6869 = vld [vmem:[#allocation13] sm:$0x1]
    %v6871 = vlaneseq
    %v6872 = vshrl.u32 %v6871, 7
    %v6873 = vsub.s32 0, %v6872
    %v6874 = vrot.slane %v6869, %v6873
    %v6972 = vunpack.c.l.b16 %v6773
    %v6973 = vunpack.c.l.b16 %v6774
    %v6974 = vunpack.c.l.b16 %v6775
    %v6975 = vunpack.c.l.b16 %v6776
    %v6976 = vunpack.c.l.b16 %v6777
    %v6977 = vunpack.c.l.b16 %v6778
    %v6978 = vunpack.c.l.b16 %v6779
    %v6979 = vunpack.c.l.b16 %v6780
    %v6980 = vunpack.c.l.b16 %v6781
    %v6981 = vunpack.c.l.b16 %v6782
    %v6982 = vunpack.c.l.b16 %v6783
    %v6983 = vunpack.c.l.b16 %v6784
    %v6984 = vunpack.c.l.b16 %v6785
    %v6985 = vunpack.c.l.b16 %v6786
    %v6986 = vunpack.c.l.b16 %v6787
    %v6987 = vunpack.c.l.b16 %v6788
    %v6988 = vunpack.c.l.b16 %v6789
    %v6989 = vunpack.c.l.b16 %v6790
    %v6990 = vunpack.c.l.b16 %v6791
    %v6991 = vunpack.c.l.b16 %v6792
    %v6992 = vunpack.c.l.b16 %v6793
    %v6993 = vunpack.c.l.b16 %v6794
    %v6994 = vunpack.c.l.b16 %v6795
    %v6995 = vunpack.c.l.b16 %v6796
    %v6996 = vunpack.c.l.b16 %v6797
    %v6997 = vunpack.c.l.b16 %v6798
    %v6998 = vunpack.c.l.b16 %v6799
    %v6999 = vunpack.c.l.b16 %v6800
    %v7000 = vunpack.c.l.b16 %v6801
    %v7001 = vunpack.c.l.b16 %v6802
    %v7002 = vunpack.c.l.b16 %v6803
    %v7003 = vunpack.c.l.b16 %v6804
    %v7004 = vunpack.c.l.b16 %v6805
    %v7005 = vunpack.c.l.b16 %v6806
    %v7006 = vunpack.c.l.b16 %v6807
    %v7007 = vunpack.c.l.b16 %v6808
    %v7008 = vunpack.c.l.b16 %v6809
    %v7009 = vunpack.c.l.b16 %v6810
    %v7010 = vunpack.c.l.b16 %v6811
    %v7011 = vunpack.c.l.b16 %v6812
    %v7012 = vunpack.c.l.b16 %v6813
    %v7013 = vunpack.c.l.b16 %v6814
    %v7014 = vunpack.c.l.b16 %v6815
    %v7015 = vunpack.c.l.b16 %v6816
    %v7016 = vunpack.c.l.b16 %v6817
    %v7017 = vunpack.c.l.b16 %v6818
    %v7018 = vunpack.c.l.b16 %v6819
    %v7019 = vunpack.c.l.b16 %v6820
    %v7020 = vunpack.c.l.b16 %v6821
    %v7021 = vunpack.c.l.b16 %v6822
    %v7022 = vunpack.c.l.b16 %v6823
    %v7023 = vunpack.c.l.b16 %v6824
    %v7024 = vunpack.c.l.b16 %v6825
    %v7025 = vunpack.c.l.b16 %v6826
    %v7026 = vunpack.c.l.b16 %v6827
    %v7027 = vunpack.c.l.b16 %v6828
    %v7028 = vunpack.c.l.b16 %v6829
    %v7029 = vunpack.c.l.b16 %v6830
    %v7030 = vunpack.c.l.b16 %v6831
    %v7031 = vunpack.c.l.b16 %v6832
    %v7032 = vunpack.c.l.b16 %v6833
    %v7033 = vunpack.c.l.b16 %v6834
    %v7034 = vunpack.c.l.b16 %v6835
    %v7035 = vunpack.c.l.b16 %v6836
    %v7036 = vunpack.c.l.b16 %v6837
    %v7037 = vunpack.c.l.b16 %v6838
    %v7038 = vunpack.c.l.b16 %v6839
    %v7039 = vunpack.c.l.b16 %v6840
    %v7040 = vunpack.c.l.b16 %v6841
    %v7041 = vunpack.c.l.b16 %v6842
    %v7042 = vunpack.c.l.b16 %v6843
    %v7043 = vunpack.c.l.b16 %v6844
    %v7044 = vunpack.c.l.b16 %v6845
    %v7045 = vunpack.c.l.b16 %v6846
    %v7046 = vunpack.c.l.b16 %v6847
    %v7047 = vunpack.c.l.b16 %v6848
    %v7048 = vunpack.c.l.b16 %v6849
    %v7049 = vunpack.c.l.b16 %v6850
    %v7050 = vunpack.c.l.b16 %v6851
    %v7051 = vunpack.c.l.b16 %v6852
    %v7052 = vunpack.c.l.b16 %v6853
    %v7053 = vunpack.c.l.b16 %v6854
    %v7054 = vunpack.c.l.b16 %v6855
    %v7055 = vunpack.c.l.b16 %v6856
    %v7056 = vunpack.c.l.b16 %v6857
    %v7057 = vunpack.c.l.b16 %v6858
    %v7058 = vunpack.c.l.b16 %v6859
    %v7059 = vunpack.c.l.b16 %v6860
    %v7060 = vunpack.c.l.b16 %v6861
    %v7061 = vunpack.c.l.b16 %v6862
    %v7062 = vunpack.c.l.b16 %v6863
    %v7063 = vunpack.c.l.b16 %v6864
    %v7064 = vunpack.c.l.b16 %v6865
    %v7065 = vunpack.c.l.b16 %v6866
    %v7066 = vunpack.c.l.b16 %v6867
    %v7067 = vunpack.c.l.b16 %v6868
    %v7068 = vpack.c.b16 %v6973, %v6972
    %v7069 = vpack.c.b16 %v6975, %v6974
    %v7070 = vpack.c.b16 %v6977, %v6976
    %v7071 = vpack.c.b16 %v6979, %v6978
    %v7072 = vpack.c.b16 %v6981, %v6980
    %v7073 = vpack.c.b16 %v6983, %v6982
    %v7074 = vpack.c.b16 %v6985, %v6984
    %v7075 = vpack.c.b16 %v6987, %v6986
    %v7076 = vpack.c.b16 %v6989, %v6988
    %v7077 = vpack.c.b16 %v6991, %v6990
    %v7078 = vpack.c.b16 %v6993, %v6992
    %v7079 = vpack.c.b16 %v6995, %v6994
    %v7080 = vpack.c.b16 %v6997, %v6996
    %v7081 = vpack.c.b16 %v6999, %v6998
    %v7082 = vpack.c.b16 %v7001, %v7000
    %v7083 = vpack.c.b16 %v7003, %v7002
    %v7084 = vpack.c.b16 %v7005, %v7004
    %v7085 = vpack.c.b16 %v7007, %v7006
    %v7086 = vpack.c.b16 %v7009, %v7008
    %v7087 = vpack.c.b16 %v7011, %v7010
    %v7088 = vpack.c.b16 %v7013, %v7012
    %v7089 = vpack.c.b16 %v7015, %v7014
    %v7090 = vpack.c.b16 %v7017, %v7016
    %v7091 = vpack.c.b16 %v7019, %v7018
    %v7092 = vpack.c.b16 %v7021, %v7020
    %v7093 = vpack.c.b16 %v7023, %v7022
    %v7094 = vpack.c.b16 %v7025, %v7024
    %v7095 = vpack.c.b16 %v7027, %v7026
    %v7096 = vpack.c.b16 %v7029, %v7028
    %v7097 = vpack.c.b16 %v7031, %v7030
    %v7098 = vpack.c.b16 %v7033, %v7032
    %v7099 = vpack.c.b16 %v7035, %v7034
    %v7100 = vpack.c.b16 %v7037, %v7036
    %v7101 = vpack.c.b16 %v7039, %v7038
    %v7102 = vpack.c.b16 %v7041, %v7040
    %v7103 = vpack.c.b16 %v7043, %v7042
    %v7104 = vpack.c.b16 %v7045, %v7044
    %v7105 = vpack.c.b16 %v7047, %v7046
    %v7106 = vpack.c.b16 %v7049, %v7048
    %v7107 = vpack.c.b16 %v7051, %v7050
    %v7108 = vpack.c.b16 %v7053, %v7052
    %v7109 = vpack.c.b16 %v7055, %v7054
    %v7110 = vpack.c.b16 %v7057, %v7056
    %v7111 = vpack.c.b16 %v7059, %v7058
    %v7112 = vpack.c.b16 %v7061, %v7060
    %v7113 = vpack.c.b16 %v7063, %v7062
    %v7114 = vpack.c.b16 %v7065, %v7064
    %v7115 = vpack.c.b16 %v7067, %v7066
    %7164 = vmatprep.subr.bf16.mxu0 0
    %7165 = vmatpush1.bf16.msra.mxu0 %v7068
    %7166 = vmatprep.subr.bf16.mxu0 0
    %7167 = vmatpush1.bf16.msra.mxu0 %v7069
    %7168 = vmatprep.subr.bf16.mxu0 0
    %7169 = vmatpush1.bf16.msra.mxu0 %v7070
    %7170 = vmatprep.subr.bf16.mxu0 0
    %7171 = vmatpush1.bf16.msra.mxu0 %v7071
    %7172 = vmatprep.subr.bf16.mxu0 0
    %7173 = vmatpush1.bf16.msra.mxu0 %v7072
    %7174 = vmatprep.subr.bf16.mxu0 0
    %7175 = vmatpush1.bf16.msra.mxu0 %v7073
    %7176 = vmatprep.subr.bf16.mxu0 0
    %7177 = vmatpush1.bf16.msra.mxu0 %v7074
    %7178 = vmatprep.subr.bf16.mxu0 0
    %7179 = vmatpush1.bf16.msra.mxu0 %v7075
    %7180 = vmatprep.subr.bf16.mxu0 0
    %7181 = vmatpush1.bf16.msra.mxu0 %v7076
    %7182 = vmatprep.subr.bf16.mxu0 0
    %7183 = vmatpush1.bf16.msra.mxu0 %v7077
    %7184 = vmatprep.subr.bf16.mxu0 0
    %7185 = vmatpush1.bf16.msra.mxu0 %v7078
    %7186 = vmatprep.subr.bf16.mxu0 0
    %7187 = vmatpush1.bf16.msra.mxu0 %v7079
    %7188 = vmatprep.subr.bf16.mxu0 0
    %7189 = vmatpush1.bf16.msra.mxu0 %v7080
    %7190 = vmatprep.subr.bf16.mxu0 0
    %7191 = vmatpush1.bf16.msra.mxu0 %v7081
    %7192 = vmatprep.subr.bf16.mxu0 0
    %7193 = vmatpush1.bf16.msra.mxu0 %v7082
    %7194 = vmatprep.subr.bf16.mxu0 0
    %7195 = vmatpush1.bf16.msra.mxu0 %v7083
    %7196 = vmatprep.mubr.bf16.mxu0 %v6768
    %7197 = vmatmul.mubr.bf16.gmra.mrb[0].mxu0 %v6767
    %v7198 = vpop.f32.mrb[0].mxu0
    %v7199 = vadd.f32 %v6874, %v7198
    %v7200 = vpop.f32.mrb[0].mxu0
    %v7201 = vpop.f32.mrb[0].mxu0
    %v7202 = vpop.f32.mrb[0].mxu0
    %7203 = vdwg.mxu0
    %7204 = vmatprep.subr.bf16.mxu0 0
    %7205 = vmatpush1.bf16.msra.mxu0 %v7084
    %7206 = vmatprep.subr.bf16.mxu0 0
    %7207 = vmatpush1.bf16.msra.mxu0 %v7085
    %7208 = vmatprep.subr.bf16.mxu0 0
    %7209 = vmatpush1.bf16.msra.mxu0 %v7086
    %7210 = vmatprep.subr.bf16.mxu0 0
    %7211 = vmatpush1.bf16.msra.mxu0 %v7087
    %7212 = vmatprep.subr.bf16.mxu0 0
    %7213 = vmatpush1.bf16.msra.mxu0 %v7088
    %7214 = vmatprep.subr.bf16.mxu0 0
    %7215 = vmatpush1.bf16.msra.mxu0 %v7089
    %7216 = vmatprep.subr.bf16.mxu0 0
    %7217 = vmatpush1.bf16.msra.mxu0 %v7090
    %7218 = vmatprep.subr.bf16.mxu0 0
    %7219 = vmatpush1.bf16.msra.mxu0 %v7091
    %7220 = vmatprep.subr.bf16.mxu0 0
    %7221 = vmatpush1.bf16.msra.mxu0 %v7092
    %7222 = vmatprep.subr.bf16.mxu0 0
    %7223 = vmatpush1.bf16.msra.mxu0 %v7093
    %7224 = vmatprep.subr.bf16.mxu0 0
    %7225 = vmatpush1.bf16.msra.mxu0 %v7094
    %7226 = vmatprep.subr.bf16.mxu0 0
    %7227 = vmatpush1.bf16.msra.mxu0 %v7095
    %7228 = vmatprep.subr.bf16.mxu0 0
    %7229 = vmatpush1.bf16.msra.mxu0 %v7096
    %7230 = vmatprep.subr.bf16.mxu0 0
    %7231 = vmatpush1.bf16.msra.mxu0 %v7097
    %7232 = vmatprep.subr.bf16.mxu0 0
    %7233 = vmatpush1.bf16.msra.mxu0 %v7098
    %7234 = vmatprep.subr.bf16.mxu0 0
    %7235 = vmatpush1.bf16.msra.mxu0 %v7099
    %7236 = vmatprep.mubr.bf16.mxu0 %v6770
    %7237 = vmatmul.mubr.bf16.gmra.mrb[0].mxu0 %v6769
    %v7238 = vpop.f32.mrb[0].mxu0
    %v7239 = vadd.f32 %v7199, %v7238
    %v7240 = vpop.f32.mrb[0].mxu0
    %v7241 = vpop.f32.mrb[0].mxu0
    %v7242 = vpop.f32.mrb[0].mxu0
    %7243 = vdwg.mxu0
    %7244 = vmatprep.subr.bf16.mxu0 0
    %7245 = vmatpush1.bf16.msra.mxu0 %v7100
    %7246 = vmatprep.subr.bf16.mxu0 0
    %7247 = vmatpush1.bf16.msra.mxu0 %v7101
    %7248 = vmatprep.subr.bf16.mxu0 0
    %7249 = vmatpush1.bf16.msra.mxu0 %v7102
    %7250 = vmatprep.subr.bf16.mxu0 0
    %7251 = vmatpush1.bf16.msra.mxu0 %v7103
    %7252 = vmatprep.subr.bf16.mxu0 0
    %7253 = vmatpush1.bf16.msra.mxu0 %v7104
    %7254 = vmatprep.subr.bf16.mxu0 0
    %7255 = vmatpush1.bf16.msra.mxu0 %v7105
    %7256 = vmatprep.subr.bf16.mxu0 0
    %7257 = vmatpush1.bf16.msra.mxu0 %v7106
    %7258 = vmatprep.subr.bf16.mxu0 0
    %7259 = vmatpush1.bf16.msra.mxu0 %v7107
    %7260 = vmatprep.subr.bf16.mxu0 0
    %7261 = vmatpush1.bf16.msra.mxu0 %v7108
    %7262 = vmatprep.subr.bf16.mxu0 0
    %7263 = vmatpush1.bf16.msra.mxu0 %v7109
    %7264 = vmatprep.subr.bf16.mxu0 0
    %7265 = vmatpush1.bf16.msra.mxu0 %v7110
    %7266 = vmatprep.subr.bf16.mxu0 0
    %7267 = vmatpush1.bf16.msra.mxu0 %v7111
    %7268 = vmatprep.subr.bf16.mxu0 0
    %7269 = vmatpush1.bf16.msra.mxu0 %v7112
    %7270 = vmatprep.subr.bf16.mxu0 0
    %7271 = vmatpush1.bf16.msra.mxu0 %v7113
    %7272 = vmatprep.subr.bf16.mxu0 0
    %7273 = vmatpush1.bf16.msra.mxu0 %v7114
    %7274 = vmatprep.subr.bf16.mxu0 0
    %7275 = vmatpush1.bf16.msra.mxu0 %v7115
    %7276 = vmatprep.mubr.bf16.mxu0 %v6772
    %7277 = vmatmul.mubr.bf16.gmra.mrb[0].mxu0 %v6771
    %v7278 = vpop.f32.mrb[0].mxu0
    %v7279 = vadd.f32 %v7239, %v7278
    %v7280 = vpop.f32.mrb[0].mxu0
    %v7281 = vpop.f32.mrb[0].mxu0
    %v7282 = vpop.f32.mrb[0].mxu0
    %7283 = vdwg.mxu0
    %7284 = vmax.xlane.f32.xlu0 %v7279
    %v7285 = vpop.xlane.xlu0 %7284
    %v7286 = vsub.f32 %v7279, %v7285
    %v7287 = vmul.f32 %v7286, 1.442695
    %v7288 = vpow.pop %v7287
    %7289 = vadd.xlane.f32.xlu0 %v7288
    %v7290 = vpop.xlane.xlu0 %7289
    %v7291 = vlog2.pop %v7290
    %v7292 = vmul.f32 %v7291, 0.6931472
    %v7293 = vsub.f32 %v7286, %v7292
    %7294 = vst [vmem:[#allocation14] sm:$0xff] %v7293
    // Predicated region
    $region58: #{tpu_custom_call.1} parent=1 // pred_check
      _
    $region59: #{tpu_custom_call.1} parent=1 // pred_check_branch
      %7296 = sbr.rel (0) target = $region61
    $region60: #{tpu_custom_call.1} parent=1 // pred_region
      %s7298 = ssub.s32 128, 128
      %7299 = vsyncadd [#allocation4], %s7298
      %s7301 = sshll.u32 [#allocation14], 4
      %s7302 = int_to_ptr.vmem [resolvable:$true] %s7301
      %7304 = dma.vmem_to_hbm [thread:$0]  %s7302, 128, %s7, [#allocation4]
    $region61: #{tpu_custom_call.1} parent=1 // pred_fallthru
      _
    // Predicated region
    $region62: #{tpu_custom_call.1} parent=1 // pred_check
      _
    $region63: #{tpu_custom_call.1} parent=1 // pred_check_branch
      %7306 = sbr.rel (0) target = $region65
    $region64: #{tpu_custom_call.1} parent=1 // pred_region
      %7307 = dma.done [#allocation4], 128
    $region65: #{tpu_custom_call.1} parent=1 // pred_fallthru
      _
    %7308 = vsyncpa [#allocation3], 1
    %7309 = vsyncpa [#allocation6], 1
    %7310 = vsyncpa [#allocation9], 1
    %7311 = vsyncpa [#allocation12], 1
    %7312 = vsyncpa [#allocation4], 1

// kernel: tpu_custom_call.1
$region0: #{tpu_custom_call.1}
  #allocation0 [shape = 'u32[]', space=smem, size = 0x4, offset = 0x4, fixed_abs, tag = 'smem constant byte address 0x4 - core index']
  #allocation1 [shape = 'u32[144,128]{1,0:T(1,128)}', space=vmem, size = 0x12000, scoped, tag = 'internal scratch']
  %s0 = inlined_call_operand.hbm [shape: bf16[8,1024], index: 0, kind: input, shape index: {}]
  %s1 = inlined_call_operand.hbm [shape: bf16[1024,1024], index: 1, kind: input, shape index: {}]
  %s2 = inlined_call_operand.hbm [shape: f32[1,1024], index: 2, kind: input, shape index: {}]
  %s3 = inlined_call_operand.hbm [shape: bf16[1024,768], index: 3, kind: input, shape index: {}]
  %s4 = inlined_call_operand.hbm [shape: f32[1,768], index: 4, kind: input, shape index: {}]
  %s5 = inlined_call_operand.hbm [shape: bf16[768,128], index: 5, kind: input, shape index: {}]
  %s6 = inlined_call_operand.hbm [shape: f32[1,128], index: 6, kind: input, shape index: {}]
  %s7 = inlined_call_operand.hbm [shape: f32[8,128], index: 7, kind: output, shape index: {}]
  %s8 = sld [smem:[#allocation0]]
  $region66: #{tpu_custom_call.1} parent=0
    _
  %s10 = ssub.s32 1, %s8
  %s11 = scalar_select 0, %s10, %s8
  $region1: #{tpu_custom_call.1} parent=0
    #allocation2 [shape = 'u8[16384]{0}', space=vmem, size = 0x4000, scoped, tag = 'input window, operand 0, single buffered']
    #allocation3 [shape = 's32[1]{0}', space=sflag, size = 0x4, scoped, tag = 'scoped memory for tpu_custom_call.1']
    #allocation4 [shape = 's32[1]{0}', space=sflag, size = 0x4, scoped, tag = 'scoped memory for tpu_custom_call.1']
    #allocation5 [shape = 'u8[2097152]{0}', space=vmem, size = 0x200000, scoped, tag = 'input window, operand 1, single buffered']
    #allocation6 [shape = 's32[1]{0}', space=sflag, size = 0x4, scoped, tag = 'scoped memory for tpu_custom_call.1']
    #allocation7 [shape = 'u8[4096]{0}', space=vmem, size = 0x1000, scoped, tag = 'input window, operand 2, single buffered']
    #allocation8 [shape = 'u8[1572864]{0}', space=vmem, size = 0x180000, scoped, tag = 'input window, operand 3, single buffered']
    #allocation9 [shape = 's32[1]{0}', space=sflag, size = 0x4, scoped, tag = 'scoped memory for tpu_custom_call.1']
    #allocation10 [shape = 'u8[3072]{0}', space=vmem, size = 0xc00, scoped, tag = 'input window, operand 4, single buffered']
    #allocation11 [shape = 'u8[196608]{0}', space=vmem, size = 0x30000, scoped, tag = 'input window, operand 5, single buffered']
    #allocation12 [shape = 's32[1]{0}', space=sflag, size = 0x4, scoped, tag = 'scoped memory for tpu_custom_call.1']
    #allocation13 [shape = 'u8[512]{0}', space=vmem, size = 0x400, scoped, tag = 'input window, operand 6, single buffered']
    #allocation14 [shape = 'u8[4096]{0}', space=vmem, size = 0x1000, scoped, tag = 'output window, operand 0, single buffered']
    %12 = vsyncpa [#allocation3], 0
    %13 = vsyncpa [#allocation6], 0
    %14 = vsyncpa [#allocation9], 0
    %15 = vsyncpa [#allocation12], 0
    %16 = vsyncpa [#allocation4], 0
    // Predicated region
    $region2: #{tpu_custom_call.1} parent=1 // pred_check
      _
    $region3: #{tpu_custom_call.1} parent=1 // pred_check_branch
      %18 = sbr.rel (0) target = $region5
    $region4: #{tpu_custom_call.1} parent=1 // pred_region
      %s20 = ssub.s32 512, 512
      %21 = vsyncadd [#allocation3], %s20
      %s23 = sshll.u32 [#allocation2], 4
      %s24 = int_to_ptr.vmem [resolvable:$true] %s23
      %26 = dma.hbm_to_vmem [thread:$0]  %s0, 512, %s24, [#allocation3]
    $region5: #{tpu_custom_call.1} parent=1 // pred_fallthru
      _
    // Predicated region
    $region6: #{tpu_custom_call.1} parent=1 // pred_check
      _
    $region7: #{tpu_custom_call.1} parent=1 // pred_check_branch
      %28 = sbr.rel (0) target = $region9
    $region8: #{tpu_custom_call.1} parent=1 // pred_region
      %s30 = ssub.s32 65536, 65536
      %31 = vsyncadd [#allocation6], %s30
      %s32 = sshll.u32 [#allocation5], 4
      %s33 = int_to_ptr.vmem [resolvable:$true] %s32
      %38 = dma.hbm_to_vmem [thread:$0]  %s1, 65536, %s33, [#allocation6], 512, 512, 32
    $region9: #{tpu_custom_call.1} parent=1 // pred_fallthru
      _
    // Predicated region
    $region10: #{tpu_custom_call.1} parent=1 // pred_check
      _
    $region11: #{tpu_custom_call.1} parent=1 // pred_check_branch
      %40 = sbr.rel (0) target = $region13
    $region12: #{tpu_custom_call.1} parent=1 // pred_region
      %s42 = ssub.s32 128, 128
      %43 = vsyncadd [#allocation6], %s42
      %s45 = sshll.u32 [#allocation7], 4
      %s46 = int_to_ptr.vmem [resolvable:$true] %s45
      %48 = dma.hbm_to_vmem [thread:$0]  %s2, 128, %s46, [#allocation6]
    $region13: #{tpu_custom_call.1} parent=1 // pred_fallthru
      _
    // Predicated region
    $region14: #{tpu_custom_call.1} parent=1 // pred_check
      _
    $region15: #{tpu_custom_call.1} parent=1 // pred_check_branch
      %50 = sbr.rel (0) target = $region17
    $region16: #{tpu_custom_call.1} parent=1 // pred_region
      %s52 = ssub.s32 49152, 49152
      %53 = vsyncadd [#allocation9], %s52
      %s54 = sshll.u32 [#allocation8], 4
      %s55 = int_to_ptr.vmem [resolvable:$true] %s54
      %60 = dma.hbm_to_vmem [thread:$0]  %s3, 49152, %s55, [#allocation9], 384, 384, 24
    $region17: #{tpu_custom_call.1} parent=1 // pred_fallthru
      _
    // Predicated region
    $region18: #{tpu_custom_call.1} parent=1 // pred_check
      _
    $region19: #{tpu_custom_call.1} parent=1 // pred_check_branch
      %62 = sbr.rel (0) target = $region21
    $region20: #{tpu_custom_call.1} parent=1 // pred_region
      %s64 = ssub.s32 96, 96
      %65 = vsyncadd [#allocation9], %s64
      %s67 = sshll.u32 [#allocation10], 4
      %s68 = int_to_ptr.vmem [resolvable:$true] %s67
      %70 = dma.hbm_to_vmem [thread:$0]  %s4, 96, %s68, [#allocation9]
    $region21: #{tpu_custom_call.1} parent=1 // pred_fallthru
      _
    // Predicated region
    $region22: #{tpu_custom_call.1} parent=1 // pred_check
      _
    $region23: #{tpu_custom_call.1} parent=1 // pred_check_branch
      %72 = sbr.rel (0) target = $region25
    $region24: #{tpu_custom_call.1} parent=1 // pred_region
      %s74 = ssub.s32 6144, 6144
      %75 = vsyncadd [#allocation12], %s74
      %s76 = sshll.u32 [#allocation11], 4
      %s77 = int_to_ptr.vmem [resolvable:$true] %s76
      %82 = dma.hbm_to_vmem [thread:$0]  %s5, 6144, %s77, [#allocation12], 64, 64, 4
    $region25: #{tpu_custom_call.1} parent=1 // pred_fallthru
      _
    // Predicated region
    $region26: #{tpu_custom_call.1} parent=1 // pred_check
      _
    $region27: #{tpu_custom_call.1} parent=1 // pred_check_branch
      %84 = sbr.rel (0) target = $region29
    $region28: #{tpu_custom_call.1} parent=1 // pred_region
      %s86 = ssub.s32 16, 16
      %87 = vsyncadd [#allocation12], %s86
      %s89 = sshll.u32 [#allocation13], 4
      %s90 = int_to_ptr.vmem [resolvable:$true] %s89
      %92 = dma.hbm_to_vmem [thread:$0]  %s6, 16, %s90, [#allocation12]
    $region29: #{tpu_custom_call.1} parent=1 // pred_fallthru
      _
    // Predicated region
    $region30: #{tpu_custom_call.1} parent=1 // pred_check
      _
    $region31: #{tpu_custom_call.1} parent=1 // pred_check_branch
      %94 = sbr.rel (0) target = $region33
    $region32: #{tpu_custom_call.1} parent=1 // pred_region
      %95 = dma.done [#allocation3], 512
    $region33: #{tpu_custom_call.1} parent=1 // pred_fallthru
      _
    // Predicated region
    $region34: #{tpu_custom_call.1} parent=1 // pred_check
      _
    $region35: #{tpu_custom_call.1} parent=1 // pred_check_branch
      %97 = sbr.rel (0) target = $region37
    $region36: #{tpu_custom_call.1} parent=1 // pred_region
      %98 = dma.done [#allocation6], 65536
    $region37: #{tpu_custom_call.1} parent=1 // pred_fallthru
      _
    // Predicated region
    $region38: #{tpu_custom_call.1} parent=1 // pred_check
      _
    $region39: #{tpu_custom_call.1} parent=1 // pred_check_branch
      %100 = sbr.rel (0) target = $region41
    $region40: #{tpu_custom_call.1} parent=1 // pred_region
      %101 = dma.done [#allocation6], 128
    $region41: #{tpu_custom_call.1} parent=1 // pred_fallthru
      _
    // Predicated region
    $region42: #{tpu_custom_call.1} parent=1 // pred_check
      _
    $region43: #{tpu_custom_call.1} parent=1 // pred_check_branch
      %103 = sbr.rel (0) target = $region45
    $region44: #{tpu_custom_call.1} parent=1 // pred_region
      %104 = dma.done [#allocation9], 49152
    $region45: #{tpu_custom_call.1} parent=1 // pred_fallthru
      _
    // Predicated region
    $region46: #{tpu_custom_call.1} parent=1 // pred_check
      _
    $region47: #{tpu_custom_call.1} parent=1 // pred_check_branch
      %106 = sbr.rel (0) target = $region49
    $region48: #{tpu_custom_call.1} parent=1 // pred_region
      %107 = dma.done [#allocation9], 96
    $region49: #{tpu_custom_call.1} parent=1 // pred_fallthru
      _
    // Predicated region
    $region50: #{tpu_custom_call.1} parent=1 // pred_check
      _
    $region51: #{tpu_custom_call.1} parent=1 // pred_check_branch
      %109 = sbr.rel (0) target = $region53
    $region52: #{tpu_custom_call.1} parent=1 // pred_region
      %110 = dma.done [#allocation12], 6144
    $region53: #{tpu_custom_call.1} parent=1 // pred_fallthru
      _
    // Predicated region
    $region54: #{tpu_custom_call.1} parent=1 // pred_check
      _
    $region55: #{tpu_custom_call.1} parent=1 // pred_check_branch
      %112 = sbr.rel (0) target = $region57
    $region56: #{tpu_custom_call.1} parent=1 // pred_region
      %113 = dma.done [#allocation12], 16
    $region57: #{tpu_custom_call.1} parent=1 // pred_fallthru
      _
    %v115 = vld [vmem:[#allocation2] sm:$0xff]
    %v116 = vld [vmem:[#allocation2 + $0x8] sm:$0xff]
    %v117 = vld [vmem:[#allocation2 + $0x10] sm:$0xff]
    %v118 = vld [vmem:[#allocation2 + $0x18] sm:$0xff]
    %v119 = vld [vmem:[#allocation5] sm:$0xff]
    %v120 = vld [vmem:[#allocation5 + $0x8] sm:$0xff]
    %v121 = vld [vmem:[#allocation5 + $0x10] sm:$0xff]
    %v122 = vld [vmem:[#allocation5 + $0x18] sm:$0xff]
    %v123 = vld [vmem:[#allocation5 + $0x20] sm:$0xff]
    %v124 = vld [vmem:[#allocation5 + $0x28] sm:$0xff]
    %v125 = vld [vmem:[#allocation5 + $0x30] sm:$0xff]
    %v126 = vld [vmem:[#allocation5 + $0x38] sm:$0xff]
    %v127 = vld [vmem:[#allocation5 + $0x40] sm:$0xff]
    %v128 = vld [vmem:[#allocation5 + $0x48] sm:$0xff]
    %v129 = vld [vmem:[#allocation5 + $0x50] sm:$0xff]
    %v130 = vld [vmem:[#allocation5 + $0x58] sm:$0xff]
    %v131 = vld [vmem:[#allocation5 + $0x60] sm:$0xff]
    %v132 = vld [vmem:[#allocation5 + $0x68] sm:$0xff]
    %v133 = vld [vmem:[#allocation5 + $0x70] sm:$0xff]
    %v134 = vld [vmem:[#allocation5 + $0x78] sm:$0xff]
    %v135 = vld [vmem:[#allocation5 + $0x80] sm:$0xff]
    %v136 = vld [vmem:[#allocation5 + $0x88] sm:$0xff]
    %v137 = vld [vmem:[#allocation5 + $0x90] sm:$0xff]
    %v138 = vld [vmem:[#allocation5 + $0x98] sm:$0xff]
    %v139 = vld [vmem:[#allocation5 + $0xa0] sm:$0xff]
    %v140 = vld [vmem:[#allocation5 + $0xa8] sm:$0xff]
    %v141 = vld [vmem:[#allocation5 + $0xb0] sm:$0xff]
    %v142 = vld [vmem:[#allocation5 + $0xb8] sm:$0xff]
    %v143 = vld [vmem:[#allocation5 + $0xc0] sm:$0xff]
    %v144 = vld [vmem:[#allocation5 + $0xc8] sm:$0xff]
    %v145 = vld [vmem:[#allocation5 + $0xd0] sm:$0xff]
    %v146 = vld [vmem:[#allocation5 + $0xd8] sm:$0xff]
    %v147 = vld [vmem:[#allocation5 + $0xe0] sm:$0xff]
    %v148 = vld [vmem:[#allocation5 + $0xe8] sm:$0xff]
    %v149 = vld [vmem:[#allocation5 + $0xf0] sm:$0xff]
    %v150 = vld [vmem:[#allocation5 + $0xf8] sm:$0xff]
    %v151 = vld [vmem:[#allocation5 + $0x100] sm:$0xff]
    %v152 = vld [vmem:[#allocation5 + $0x108] sm:$0xff]
    %v153 = vld [vmem:[#allocation5 + $0x110] sm:$0xff]
    %v154 = vld [vmem:[#allocation5 + $0x118] sm:$0xff]
    %v155 = vld [vmem:[#allocation5 + $0x120] sm:$0xff]
    %v156 = vld [vmem:[#allocation5 + $0x128] sm:$0xff]
    %v157 = vld [vmem:[#allocation5 + $0x130] sm:$0xff]
    %v158 = vld [vmem:[#allocation5 + $0x138] sm:$0xff]
    %v159 = vld [vmem:[#allocation5 + $0x140] sm:$0xff]
    %v160 = vld [vmem:[#allocation5 + $0x148] sm:$0xff]
    %v161 = vld [vmem:[#allocation5 + $0x150] sm:$0xff]
    %v162 = vld [vmem:[#allocation5 + $0x158] sm:$0xff]
    %v163 = vld [vmem:[#allocation5 + $0x160] sm:$0xff]
    %v164 = vld [vmem:[#allocation5 + $0x168] sm:$0xff]
    %v165 = vld [vmem:[#allocation5 + $0x170] sm:$0xff]
    %v166 = vld [vmem:[#allocation5 + $0x178] sm:$0xff]
    %v167 = vld [vmem:[#allocation5 + $0x180] sm:$0xff]
    %v168 = vld [vmem:[#allocation5 + $0x188] sm:$0xff]
    %v169 = vld [vmem:[#allocation5 + $0x190] sm:$0xff]
    %v170 = vld [vmem:[#allocation5 + $0x198] sm:$0xff]
    %v171 = vld [vmem:[#allocation5 + $0x1a0] sm:$0xff]
    %v172 = vld [vmem:[#allocation5 + $0x1a8] sm:$0xff]
    %v173 = vld [vmem:[#allocation5 + $0x1b0] sm:$0xff]
    %v174 = vld [vmem:[#allocation5 + $0x1b8] sm:$0xff]
    %v175 = vld [vmem:[#allocation5 + $0x1c0] sm:$0xff]
    %v176 = vld [vmem:[#allocation5 + $0x1c8] sm:$0xff]
    %v177 = vld [vmem:[#allocation5 + $0x1d0] sm:$0xff]
    %v178 = vld [vmem:[#allocation5 + $0x1d8] sm:$0xff]
    %v179 = vld [vmem:[#allocation5 + $0x1e0] sm:$0xff]
    %v180 = vld [vmem:[#allocation5 + $0x1e8] sm:$0xff]
    %v181 = vld [vmem:[#allocation5 + $0x1f0] sm:$0xff]
    %v182 = vld [vmem:[#allocation5 + $0x1f8] sm:$0xff]
    %v183 = vld [vmem:[#allocation5 + $0x200] sm:$0xff]
    %v184 = vld [vmem:[#allocation5 + $0x208] sm:$0xff]
    %v185 = vld [vmem:[#allocation5 + $0x210] sm:$0xff]
    %v186 = vld [vmem:[#allocation5 + $0x218] sm:$0xff]
    %v187 = vld [vmem:[#allocation5 + $0x220] sm:$0xff]
    %v188 = vld [vmem:[#allocation5 + $0x228] sm:$0xff]
    %v189 = vld [vmem:[#allocation5 + $0x230] sm:$0xff]
    %v190 = vld [vmem:[#allocation5 + $0x238] sm:$0xff]
    %v191 = vld [vmem:[#allocation5 + $0x240] sm:$0xff]
    %v192 = vld [vmem:[#allocation5 + $0x248] sm:$0xff]
    %v193 = vld [vmem:[#allocation5 + $0x250] sm:$0xff]
    %v194 = vld [vmem:[#allocation5 + $0x258] sm:$0xff]
    %v195 = vld [vmem:[#allocation5 + $0x260] sm:$0xff]
    %v196 = vld [vmem:[#allocation5 + $0x268] sm:$0xff]
    %v197 = vld [vmem:[#allocation5 + $0x270] sm:$0xff]
    %v198 = vld [vmem:[#allocation5 + $0x278] sm:$0xff]
    %v199 = vld [vmem:[#allocation5 + $0x280] sm:$0xff]
    %v200 = vld [vmem:[#allocation5 + $0x288] sm:$0xff]
    %v201 = vld [vmem:[#allocation5 + $0x290] sm:$0xff]
    %v202 = vld [vmem:[#allocation5 + $0x298] sm:$0xff]
    %v203 = vld [vmem:[#allocation5 + $0x2a0] sm:$0xff]
    %v204 = vld [vmem:[#allocation5 + $0x2a8] sm:$0xff]
    %v205 = vld [vmem:[#allocation5 + $0x2b0] sm:$0xff]
    %v206 = vld [vmem:[#allocation5 + $0x2b8] sm:$0xff]
    %v207 = vld [vmem:[#allocation5 + $0x2c0] sm:$0xff]
    %v208 = vld [vmem:[#allocation5 + $0x2c8] sm:$0xff]
    %v209 = vld [vmem:[#allocation5 + $0x2d0] sm:$0xff]
    %v210 = vld [vmem:[#allocation5 + $0x2d8] sm:$0xff]
    %v211 = vld [vmem:[#allocation5 + $0x2e0] sm:$0xff]
    %v212 = vld [vmem:[#allocation5 + $0x2e8] sm:$0xff]
    %v213 = vld [vmem:[#allocation5 + $0x2f0] sm:$0xff]
    %v214 = vld [vmem:[#allocation5 + $0x2f8] sm:$0xff]
    %v215 = vld [vmem:[#allocation5 + $0x300] sm:$0xff]
    %v216 = vld [vmem:[#allocation5 + $0x308] sm:$0xff]
    %v217 = vld [vmem:[#allocation5 + $0x310] sm:$0xff]
    %v218 = vld [vmem:[#allocation5 + $0x318] sm:$0xff]
    %v219 = vld [vmem:[#allocation5 + $0x320] sm:$0xff]
    %v220 = vld [vmem:[#allocation5 + $0x328] sm:$0xff]
    %v221 = vld [vmem:[#allocation5 + $0x330] sm:$0xff]
    %v222 = vld [vmem:[#allocation5 + $0x338] sm:$0xff]
    %v223 = vld [vmem:[#allocation5 + $0x340] sm:$0xff]
    %v224 = vld [vmem:[#allocation5 + $0x348] sm:$0xff]
    %v225 = vld [vmem:[#allocation5 + $0x350] sm:$0xff]
    %v226 = vld [vmem:[#allocation5 + $0x358] sm:$0xff]
    %v227 = vld [vmem:[#allocation5 + $0x360] sm:$0xff]
    %v228 = vld [vmem:[#allocation5 + $0x368] sm:$0xff]
    %v229 = vld [vmem:[#allocation5 + $0x370] sm:$0xff]
    %v230 = vld [vmem:[#allocation5 + $0x378] sm:$0xff]
    %v231 = vld [vmem:[#allocation5 + $0x380] sm:$0xff]
    %v232 = vld [vmem:[#allocation5 + $0x388] sm:$0xff]
    %v233 = vld [vmem:[#allocation5 + $0x390] sm:$0xff]
    %v234 = vld [vmem:[#allocation5 + $0x398] sm:$0xff]
    %v235 = vld [vmem:[#allocation5 + $0x3a0] sm:$0xff]
    %v236 = vld [vmem:[#allocation5 + $0x3a8] sm:$0xff]
    %v237 = vld [vmem:[#allocation5 + $0x3b0] sm:$0xff]
    %v238 = vld [vmem:[#allocation5 + $0x3b8] sm:$0xff]
    %v239 = vld [vmem:[#allocation5 + $0x3c0] sm:$0xff]
    %v240 = vld [vmem:[#allocation5 + $0x3c8] sm:$0xff]
    %v241 = vld [vmem:[#allocation5 + $0x3d0] sm:$0xff]
    %v242 = vld [vmem:[#allocation5 + $0x3d8] sm:$0xff]
    %v243 = vld [vmem:[#allocation5 + $0x3e0] sm:$0xff]
    %v244 = vld [vmem:[#allocation5 + $0x3e8] sm:$0xff]
    %v245 = vld [vmem:[#allocation5 + $0x3f0] sm:$0xff]
    %v246 = vld [vmem:[#allocation5 + $0x3f8] sm:$0xff]
    %v247 = vld [vmem:[#allocation5 + $0x400] sm:$0xff]
    %v248 = vld [vmem:[#allocation5 + $0x408] sm:$0xff]
    %v249 = vld [vmem:[#allocation5 + $0x410] sm:$0xff]
    %v250 = vld [vmem:[#allocation5 + $0x418] sm:$0xff]
    %v251 = vld [vmem:[#allocation5 + $0x420] sm:$0xff]
    %v252 = vld [vmem:[#allocation5 + $0x428] sm:$0xff]
    %v253 = vld [vmem:[#allocation5 + $0x430] sm:$0xff]
    %v254 = vld [vmem:[#allocation5 + $0x438] sm:$0xff]
    %v255 = vld [vmem:[#allocation5 + $0x440] sm:$0xff]
    %v256 = vld [vmem:[#allocation5 + $0x448] sm:$0xff]
    %v257 = vld [vmem:[#allocation5 + $0x450] sm:$0xff]
    %v258 = vld [vmem:[#allocation5 + $0x458] sm:$0xff]
    %v259 = vld [vmem:[#allocation5 + $0x460] sm:$0xff]
    %v260 = vld [vmem:[#allocation5 + $0x468] sm:$0xff]
    %v261 = vld [vmem:[#allocation5 + $0x470] sm:$0xff]
    %v262 = vld [vmem:[#allocation5 + $0x478] sm:$0xff]
    %v263 = vld [vmem:[#allocation5 + $0x480] sm:$0xff]
    %v264 = vld [vmem:[#allocation5 + $0x488] sm:$0xff]
    %v265 = vld [vmem:[#allocation5 + $0x490] sm:$0xff]
    %v266 = vld [vmem:[#allocation5 + $0x498] sm:$0xff]
    %v267 = vld [vmem:[#allocation5 + $0x4a0] sm:$0xff]
    %v268 = vld [vmem:[#allocation5 + $0x4a8] sm:$0xff]
    %v269 = vld [vmem:[#allocation5 + $0x4b0] sm:$0xff]
    %v270 = vld [vmem:[#allocation5 + $0x4b8] sm:$0xff]
    %v271 = vld [vmem:[#allocation5 + $0x4c0] sm:$0xff]
    %v272 = vld [vmem:[#allocation5 + $0x4c8] sm:$0xff]
    %v273 = vld [vmem:[#allocation5 + $0x4d0] sm:$0xff]
    %v274 = vld [vmem:[#allocation5 + $0x4d8] sm:$0xff]
    %v275 = vld [vmem:[#allocation5 + $0x4e0] sm:$0xff]
    %v276 = vld [vmem:[#allocation5 + $0x4e8] sm:$0xff]
    %v277 = vld [vmem:[#allocation5 + $0x4f0] sm:$0xff]
    %v278 = vld [vmem:[#allocation5 + $0x4f8] sm:$0xff]
    %v279 = vld [vmem:[#allocation5 + $0x500] sm:$0xff]
    %v280 = vld [vmem:[#allocation5 + $0x508] sm:$0xff]
    %v281 = vld [vmem:[#allocation5 + $0x510] sm:$0xff]
    %v282 = vld [vmem:[#allocation5 + $0x518] sm:$0xff]
    %v283 = vld [vmem:[#allocation5 + $0x520] sm:$0xff]
    %v284 = vld [vmem:[#allocation5 + $0x528] sm:$0xff]
    %v285 = vld [vmem:[#allocation5 + $0x530] sm:$0xff]
    %v286 = vld [vmem:[#allocation5 + $0x538] sm:$0xff]
    %v287 = vld [vmem:[#allocation5 + $0x540] sm:$0xff]
    %v288 = vld [vmem:[#allocation5 + $0x548] sm:$0xff]
    %v289 = vld [vmem:[#allocation5 + $0x550] sm:$0xff]
    %v290 = vld [vmem:[#allocation5 + $0x558] sm:$0xff]
    %v291 = vld [vmem:[#allocation5 + $0x560] sm:$0xff]
    %v292 = vld [vmem:[#allocation5 + $0x568] sm:$0xff]
    %v293 = vld [vmem:[#allocation5 + $0x570] sm:$0xff]
    %v294 = vld [vmem:[#allocation5 + $0x578] sm:$0xff]
    %v295 = vld [vmem:[#allocation5 + $0x580] sm:$0xff]
    %v296 = vld [vmem:[#allocation5 + $0x588] sm:$0xff]
    %v297 = vld [vmem:[#allocation5 + $0x590] sm:$0xff]
    %v298 = vld [vmem:[#allocation5 + $0x598] sm:$0xff]
    %v299 = vld [vmem:[#allocation5 + $0x5a0] sm:$0xff]
    %v300 = vld [vmem:[#allocation5 + $0x5a8] sm:$0xff]
    %v301 = vld [vmem:[#allocation5 + $0x5b0] sm:$0xff]
    %v302 = vld [vmem:[#allocation5 + $0x5b8] sm:$0xff]
    %v303 = vld [vmem:[#allocation5 + $0x5c0] sm:$0xff]
    %v304 = vld [vmem:[#allocation5 + $0x5c8] sm:$0xff]
    %v305 = vld [vmem:[#allocation5 + $0x5d0] sm:$0xff]
    %v306 = vld [vmem:[#allocation5 + $0x5d8] sm:$0xff]
    %v307 = vld [vmem:[#allocation5 + $0x5e0] sm:$0xff]
    %v308 = vld [vmem:[#allocation5 + $0x5e8] sm:$0xff]
    %v309 = vld [vmem:[#allocation5 + $0x5f0] sm:$0xff]
    %v310 = vld [vmem:[#allocation5 + $0x5f8] sm:$0xff]
    %v311 = vld [vmem:[#allocation5 + $0x600] sm:$0xff]
    %v312 = vld [vmem:[#allocation5 + $0x608] sm:$0xff]
    %v313 = vld [vmem:[#allocation5 + $0x610] sm:$0xff]
    %v314 = vld [vmem:[#allocation5 + $0x618] sm:$0xff]
    %v315 = vld [vmem:[#allocation5 + $0x620] sm:$0xff]
    %v316 = vld [vmem:[#allocation5 + $0x628] sm:$0xff]
    %v317 = vld [vmem:[#allocation5 + $0x630] sm:$0xff]
    %v318 = vld [vmem:[#allocation5 + $0x638] sm:$0xff]
    %v319 = vld [vmem:[#allocation5 + $0x640] sm:$0xff]
    %v320 = vld [vmem:[#allocation5 + $0x648] sm:$0xff]
    %v321 = vld [vmem:[#allocation5 + $0x650] sm:$0xff]
    %v322 = vld [vmem:[#allocation5 + $0x658] sm:$0xff]
    %v323 = vld [vmem:[#allocation5 + $0x660] sm:$0xff]
    %v324 = vld [vmem:[#allocation5 + $0x668] sm:$0xff]
    %v325 = vld [vmem:[#allocation5 + $0x670] sm:$0xff]
    %v326 = vld [vmem:[#allocation5 + $0x678] sm:$0xff]
    %v327 = vld [vmem:[#allocation5 + $0x680] sm:$0xff]
    %v328 = vld [vmem:[#allocation5 + $0x688] sm:$0xff]
    %v329 = vld [vmem:[#allocation5 + $0x690] sm:$0xff]
    %v330 = vld [vmem:[#allocation5 + $0x698] sm:$0xff]
    %v331 = vld [vmem:[#allocation5 + $0x6a0] sm:$0xff]
    %v332 = vld [vmem:[#allocation5 + $0x6a8] sm:$0xff]
    %v333 = vld [vmem:[#allocation5 + $0x6b0] sm:$0xff]
    %v334 = vld [vmem:[#allocation5 + $0x6b8] sm:$0xff]
    %v335 = vld [vmem:[#allocation5 + $0x6c0] sm:$0xff]
    %v336 = vld [vmem:[#allocation5 + $0x6c8] sm:$0xff]
    %v337 = vld [vmem:[#allocation5 + $0x6d0] sm:$0xff]
    %v338 = vld [vmem:[#allocation5 + $0x6d8] sm:$0xff]
    %v339 = vld [vmem:[#allocation5 + $0x6e0] sm:$0xff]
    %v340 = vld [vmem:[#allocation5 + $0x6e8] sm:$0xff]
    %v341 = vld [vmem:[#allocation5 + $0x6f0] sm:$0xff]
    %v342 = vld [vmem:[#allocation5 + $0x6f8] sm:$0xff]
    %v343 = vld [vmem:[#allocation5 + $0x700] sm:$0xff]
    %v344 = vld [vmem:[#allocation5 + $0x708] sm:$0xff]
    %v345 = vld [vmem:[#allocation5 + $0x710] sm:$0xff]
    %v346 = vld [vmem:[#allocation5 + $0x718] sm:$0xff]
    %v347 = vld [vmem:[#allocation5 + $0x720] sm:$0xff]
    %v348 = vld [vmem:[#allocation5 + $0x728] sm:$0xff]
    %v349 = vld [vmem:[#allocation5 + $0x730] sm:$0xff]
    %v350 = vld [vmem:[#allocation5 + $0x738] sm:$0xff]
    %v351 = vld [vmem:[#allocation5 + $0x740] sm:$0xff]
    %v352 = vld [vmem:[#allocation5 + $0x748] sm:$0xff]
    %v353 = vld [vmem:[#allocation5 + $0x750] sm:$0xff]
    %v354 = vld [vmem:[#allocation5 + $0x758] sm:$0xff]
    %v355 = vld [vmem:[#allocation5 + $0x760] sm:$0xff]
    %v356 = vld [vmem:[#allocation5 + $0x768] sm:$0xff]
    %v357 = vld [vmem:[#allocation5 + $0x770] sm:$0xff]
    %v358 = vld [vmem:[#allocation5 + $0x778] sm:$0xff]
    %v359 = vld [vmem:[#allocation5 + $0x780] sm:$0xff]
    %v360 = vld [vmem:[#allocation5 + $0x788] sm:$0xff]
    %v361 = vld [vmem:[#allocation5 + $0x790] sm:$0xff]
    %v362 = vld [vmem:[#allocation5 + $0x798] sm:$0xff]
    %v363 = vld [vmem:[#allocation5 + $0x7a0] sm:$0xff]
    %v364 = vld [vmem:[#allocation5 + $0x7a8] sm:$0xff]
    %v365 = vld [vmem:[#allocation5 + $0x7b0] sm:$0xff]
    %v366 = vld [vmem:[#allocation5 + $0x7b8] sm:$0xff]
    %v367 = vld [vmem:[#allocation5 + $0x7c0] sm:$0xff]
    %v368 = vld [vmem:[#allocation5 + $0x7c8] sm:$0xff]
    %v369 = vld [vmem:[#allocation5 + $0x7d0] sm:$0xff]
    %v370 = vld [vmem:[#allocation5 + $0x7d8] sm:$0xff]
    %v371 = vld [vmem:[#allocation5 + $0x7e0] sm:$0xff]
    %v372 = vld [vmem:[#allocation5 + $0x7e8] sm:$0xff]
    %v373 = vld [vmem:[#allocation5 + $0x7f0] sm:$0xff]
    %v374 = vld [vmem:[#allocation5 + $0x7f8] sm:$0xff]
    %v375 = vld [vmem:[#allocation5 + $0x800] sm:$0xff]
    %v376 = vld [vmem:[#allocation5 + $0x808] sm:$0xff]
    %v377 = vld [vmem:[#allocation5 + $0x810] sm:$0xff]
    %v378 = vld [vmem:[#allocation5 + $0x818] sm:$0xff]
    %v379 = vld [vmem:[#allocation5 + $0x820] sm:$0xff]
    %v380 = vld [vmem:[#allocation5 + $0x828] sm:$0xff]
    %v381 = vld [vmem:[#allocation5 + $0x830] sm:$0xff]
    %v382 = vld [vmem:[#allocation5 + $0x838] sm:$0xff]
    %v383 = vld [vmem:[#allocation5 + $0x840] sm:$0xff]
    %v384 = vld [vmem:[#allocation5 + $0x848] sm:$0xff]
    %v385 = vld [vmem:[#allocation5 + $0x850] sm:$0xff]
    %v386 = vld [vmem:[#allocation5 + $0x858] sm:$0xff]
    %v387 = vld [vmem:[#allocation5 + $0x860] sm:$0xff]
    %v388 = vld [vmem:[#allocation5 + $0x868] sm:$0xff]
    %v389 = vld [vmem:[#allocation5 + $0x870] sm:$0xff]
    %v390 = vld [vmem:[#allocation5 + $0x878] sm:$0xff]
    %v391 = vld [vmem:[#allocation5 + $0x880] sm:$0xff]
    %v392 = vld [vmem:[#allocation5 + $0x888] sm:$0xff]
    %v393 = vld [vmem:[#allocation5 + $0x890] sm:$0xff]
    %v394 = vld [vmem:[#allocation5 + $0x898] sm:$0xff]
    %v395 = vld [vmem:[#allocation5 + $0x8a0] sm:$0xff]
    %v396 = vld [vmem:[#allocation5 + $0x8a8] sm:$0xff]
    %v397 = vld [vmem:[#allocation5 + $0x8b0] sm:$0xff]
    %v398 = vld [vmem:[#allocation5 + $0x8b8] sm:$0xff]
    %v399 = vld [vmem:[#allocation5 + $0x8c0] sm:$0xff]
    %v400 = vld [vmem:[#allocation5 + $0x8c8] sm:$0xff]
    %v401 = vld [vmem:[#allocation5 + $0x8d0] sm:$0xff]
    %v402 = vld [vmem:[#allocation5 + $0x8d8] sm:$0xff]
    %v403 = vld [vmem:[#allocation5 + $0x8e0] sm:$0xff]
    %v404 = vld [vmem:[#allocation5 + $0x8e8] sm:$0xff]
    %v405 = vld [vmem:[#allocation5 + $0x8f0] sm:$0xff]
    %v406 = vld [vmem:[#allocation5 + $0x8f8] sm:$0xff]
    %v407 = vld [vmem:[#allocation5 + $0x900] sm:$0xff]
    %v408 = vld [vmem:[#allocation5 + $0x908] sm:$0xff]
    %v409 = vld [vmem:[#allocation5 + $0x910] sm:$0xff]
    %v410 = vld [vmem:[#allocation5 + $0x918] sm:$0xff]
    %v411 = vld [vmem:[#allocation5 + $0x920] sm:$0xff]
    %v412 = vld [vmem:[#allocation5 + $0x928] sm:$0xff]
    %v413 = vld [vmem:[#allocation5 + $0x930] sm:$0xff]
    %v414 = vld [vmem:[#allocation5 + $0x938] sm:$0xff]
    %v415 = vld [vmem:[#allocation5 + $0x940] sm:$0xff]
    %v416 = vld [vmem:[#allocation5 + $0x948] sm:$0xff]
    %v417 = vld [vmem:[#allocation5 + $0x950] sm:$0xff]
    %v418 = vld [vmem:[#allocation5 + $0x958] sm:$0xff]
    %v419 = vld [vmem:[#allocation5 + $0x960] sm:$0xff]
    %v420 = vld [vmem:[#allocation5 + $0x968] sm:$0xff]
    %v421 = vld [vmem:[#allocation5 + $0x970] sm:$0xff]
    %v422 = vld [vmem:[#allocation5 + $0x978] sm:$0xff]
    %v423 = vld [vmem:[#allocation5 + $0x980] sm:$0xff]
    %v424 = vld [vmem:[#allocation5 + $0x988] sm:$0xff]
    %v425 = vld [vmem:[#allocation5 + $0x990] sm:$0xff]
    %v426 = vld [vmem:[#allocation5 + $0x998] sm:$0xff]
    %v427 = vld [vmem:[#allocation5 + $0x9a0] sm:$0xff]
    %v428 = vld [vmem:[#allocation5 + $0x9a8] sm:$0xff]
    %v429 = vld [vmem:[#allocation5 + $0x9b0] sm:$0xff]
    %v430 = vld [vmem:[#allocation5 + $0x9b8] sm:$0xff]
    %v431 = vld [vmem:[#allocation5 + $0x9c0] sm:$0xff]
    %v432 = vld [vmem:[#allocation5 + $0x9c8] sm:$0xff]
    %v433 = vld [vmem:[#allocation5 + $0x9d0] sm:$0xff]
    %v434 = vld [vmem:[#allocation5 + $0x9d8] sm:$0xff]
    %v435 = vld [vmem:[#allocation5 + $0x9e0] sm:$0xff]
    %v436 = vld [vmem:[#allocation5 + $0x9e8] sm:$0xff]
    %v437 = vld [vmem:[#allocation5 + $0x9f0] sm:$0xff]
    %v438 = vld [vmem:[#allocation5 + $0x9f8] sm:$0xff]
    %v439 = vld [vmem:[#allocation5 + $0xa00] sm:$0xff]
    %v440 = vld [vmem:[#allocation5 + $0xa08] sm:$0xff]
    %v441 = vld [vmem:[#allocation5 + $0xa10] sm:$0xff]
    %v442 = vld [vmem:[#allocation5 + $0xa18] sm:$0xff]
    %v443 = vld [vmem:[#allocation5 + $0xa20] sm:$0xff]
    %v444 = vld [vmem:[#allocation5 + $0xa28] sm:$0xff]
    %v445 = vld [vmem:[#allocation5 + $0xa30] sm:$0xff]
    %v446 = vld [vmem:[#allocation5 + $0xa38] sm:$0xff]
    %v447 = vld [vmem:[#allocation5 + $0xa40] sm:$0xff]
    %v448 = vld [vmem:[#allocation5 + $0xa48] sm:$0xff]
    %v449 = vld [vmem:[#allocation5 + $0xa50] sm:$0xff]
    %v450 = vld [vmem:[#allocation5 + $0xa58] sm:$0xff]
    %v451 = vld [vmem:[#allocation5 + $0xa60] sm:$0xff]
    %v452 = vld [vmem:[#allocation5 + $0xa68] sm:$0xff]
    %v453 = vld [vmem:[#allocation5 + $0xa70] sm:$0xff]
    %v454 = vld [vmem:[#allocation5 + $0xa78] sm:$0xff]
    %v455 = vld [vmem:[#allocation5 + $0xa80] sm:$0xff]
    %v456 = vld [vmem:[#allocation5 + $0xa88] sm:$0xff]
    %v457 = vld [vmem:[#allocation5 + $0xa90] sm:$0xff]
    %v458 = vld [vmem:[#allocation5 + $0xa98] sm:$0xff]
    %v459 = vld [vmem:[#allocation5 + $0xaa0] sm:$0xff]
    %v460 = vld [vmem:[#allocation5 + $0xaa8] sm:$0xff]
    %v461 = vld [vmem:[#allocation5 + $0xab0] sm:$0xff]
    %v462 = vld [vmem:[#allocation5 + $0xab8] sm:$0xff]
    %v463 = vld [vmem:[#allocation5 + $0xac0] sm:$0xff]
    %v464 = vld [vmem:[#allocation5 + $0xac8] sm:$0xff]
    %v465 = vld [vmem:[#allocation5 + $0xad0] sm:$0xff]
    %v466 = vld [vmem:[#allocation5 + $0xad8] sm:$0xff]
    %v467 = vld [vmem:[#allocation5 + $0xae0] sm:$0xff]
    %v468 = vld [vmem:[#allocation5 + $0xae8] sm:$0xff]
    %v469 = vld [vmem:[#allocation5 + $0xaf0] sm:$0xff]
    %v470 = vld [vmem:[#allocation5 + $0xaf8] sm:$0xff]
    %v471 = vld [vmem:[#allocation5 + $0xb00] sm:$0xff]
    %v472 = vld [vmem:[#allocation5 + $0xb08] sm:$0xff]
    %v473 = vld [vmem:[#allocation5 + $0xb10] sm:$0xff]
    %v474 = vld [vmem:[#allocation5 + $0xb18] sm:$0xff]
    %v475 = vld [vmem:[#allocation5 + $0xb20] sm:$0xff]
    %v476 = vld [vmem:[#allocation5 + $0xb28] sm:$0xff]
    %v477 = vld [vmem:[#allocation5 + $0xb30] sm:$0xff]
    %v478 = vld [vmem:[#allocation5 + $0xb38] sm:$0xff]
    %v479 = vld [vmem:[#allocation5 + $0xb40] sm:$0xff]
    %v480 = vld [vmem:[#allocation5 + $0xb48] sm:$0xff]
    %v481 = vld [vmem:[#allocation5 + $0xb50] sm:$0xff]
    %v482 = vld [vmem:[#allocation5 + $0xb58] sm:$0xff]
    %v483 = vld [vmem:[#allocation5 + $0xb60] sm:$0xff]
    %v484 = vld [vmem:[#allocation5 + $0xb68] sm:$0xff]
    %v485 = vld [vmem:[#allocation5 + $0xb70] sm:$0xff]
    %v486 = vld [vmem:[#allocation5 + $0xb78] sm:$0xff]
    %v487 = vld [vmem:[#allocation5 + $0xb80] sm:$0xff]
    %v488 = vld [vmem:[#allocation5 + $0xb88] sm:$0xff]
    %v489 = vld [vmem:[#allocation5 + $0xb90] sm:$0xff]
    %v490 = vld [vmem:[#allocation5 + $0xb98] sm:$0xff]
    %v491 = vld [vmem:[#allocation5 + $0xba0] sm:$0xff]
    %v492 = vld [vmem:[#allocation5 + $0xba8] sm:$0xff]
    %v493 = vld [vmem:[#allocation5 + $0xbb0] sm:$0xff]
    %v494 = vld [vmem:[#allocation5 + $0xbb8] sm:$0xff]
    %v495 = vld [vmem:[#allocation5 + $0xbc0] sm:$0xff]
    %v496 = vld [vmem:[#allocation5 + $0xbc8] sm:$0xff]
    %v497 = vld [vmem:[#allocation5 + $0xbd0] sm:$0xff]
    %v498 = vld [vmem:[#allocation5 + $0xbd8] sm:$0xff]
    %v499 = vld [vmem:[#allocation5 + $0xbe0] sm:$0xff]
    %v500 = vld [vmem:[#allocation5 + $0xbe8] sm:$0xff]
    %v501 = vld [vmem:[#allocation5 + $0xbf0] sm:$0xff]
    %v502 = vld [vmem:[#allocation5 + $0xbf8] sm:$0xff]
    %v503 = vld [vmem:[#allocation5 + $0xc00] sm:$0xff]
    %v504 = vld [vmem:[#allocation5 + $0xc08] sm:$0xff]
    %v505 = vld [vmem:[#allocation5 + $0xc10] sm:$0xff]
    %v506 = vld [vmem:[#allocation5 + $0xc18] sm:$0xff]
    %v507 = vld [vmem:[#allocation5 + $0xc20] sm:$0xff]
    %v508 = vld [vmem:[#allocation5 + $0xc28] sm:$0xff]
    %v509 = vld [vmem:[#allocation5 + $0xc30] sm:$0xff]
    %v510 = vld [vmem:[#allocation5 + $0xc38] sm:$0xff]
    %v511 = vld [vmem:[#allocation5 + $0xc40] sm:$0xff]
    %v512 = vld [vmem:[#allocation5 + $0xc48] sm:$0xff]
    %v513 = vld [vmem:[#allocation5 + $0xc50] sm:$0xff]
    %v514 = vld [vmem:[#allocation5 + $0xc58] sm:$0xff]
    %v515 = vld [vmem:[#allocation5 + $0xc60] sm:$0xff]
    %v516 = vld [vmem:[#allocation5 + $0xc68] sm:$0xff]
    %v517 = vld [vmem:[#allocation5 + $0xc70] sm:$0xff]
    %v518 = vld [vmem:[#allocation5 + $0xc78] sm:$0xff]
    %v519 = vld [vmem:[#allocation5 + $0xc80] sm:$0xff]
    %v520 = vld [vmem:[#allocation5 + $0xc88] sm:$0xff]
    %v521 = vld [vmem:[#allocation5 + $0xc90] sm:$0xff]
    %v522 = vld [vmem:[#allocation5 + $0xc98] sm:$0xff]
    %v523 = vld [vmem:[#allocation5 + $0xca0] sm:$0xff]
    %v524 = vld [vmem:[#allocation5 + $0xca8] sm:$0xff]
    %v525 = vld [vmem:[#allocation5 + $0xcb0] sm:$0xff]
    %v526 = vld [vmem:[#allocation5 + $0xcb8] sm:$0xff]
    %v527 = vld [vmem:[#allocation5 + $0xcc0] sm:$0xff]
    %v528 = vld [vmem:[#allocation5 + $0xcc8] sm:$0xff]
    %v529 = vld [vmem:[#allocation5 + $0xcd0] sm:$0xff]
    %v530 = vld [vmem:[#allocation5 + $0xcd8] sm:$0xff]
    %v531 = vld [vmem:[#allocation5 + $0xce0] sm:$0xff]
    %v532 = vld [vmem:[#allocation5 + $0xce8] sm:$0xff]
    %v533 = vld [vmem:[#allocation5 + $0xcf0] sm:$0xff]
    %v534 = vld [vmem:[#allocation5 + $0xcf8] sm:$0xff]
    %v535 = vld [vmem:[#allocation5 + $0xd00] sm:$0xff]
    %v536 = vld [vmem:[#allocation5 + $0xd08] sm:$0xff]
    %v537 = vld [vmem:[#allocation5 + $0xd10] sm:$0xff]
    %v538 = vld [vmem:[#allocation5 + $0xd18] sm:$0xff]
    %v539 = vld [vmem:[#allocation5 + $0xd20] sm:$0xff]
    %v540 = vld [vmem:[#allocation5 + $0xd28] sm:$0xff]
    %v541 = vld [vmem:[#allocation5 + $0xd30] sm:$0xff]
    %v542 = vld [vmem:[#allocation5 + $0xd38] sm:$0xff]
    %v543 = vld [vmem:[#allocation5 + $0xd40] sm:$0xff]
    %v544 = vld [vmem:[#allocation5 + $0xd48] sm:$0xff]
    %v545 = vld [vmem:[#allocation5 + $0xd50] sm:$0xff]
    %v546 = vld [vmem:[#allocation5 + $0xd58] sm:$0xff]
    %v547 = vld [vmem:[#allocation5 + $0xd60] sm:$0xff]
    %v548 = vld [vmem:[#allocation5 + $0xd68] sm:$0xff]
    %v549 = vld [vmem:[#allocation5 + $0xd70] sm:$0xff]
    %v550 = vld [vmem:[#allocation5 + $0xd78] sm:$0xff]
    %v551 = vld [vmem:[#allocation5 + $0xd80] sm:$0xff]
    %v552 = vld [vmem:[#allocation5 + $0xd88] sm:$0xff]
    %v553 = vld [vmem:[#allocation5 + $0xd90] sm:$0xff]
    %v554 = vld [vmem:[#allocation5 + $0xd98] sm:$0xff]
    %v555 = vld [vmem:[#allocation5 + $0xda0] sm:$0xff]
    %v556 = vld [vmem:[#allocation5 + $0xda8] sm:$0xff]
    %v557 = vld [vmem:[#allocation5 + $0xdb0] sm:$0xff]
    %v558 = vld [vmem:[#allocation5 + $0xdb8] sm:$0xff]
    %v559 = vld [vmem:[#allocation5 + $0xdc0] sm:$0xff]
    %v560 = vld [vmem:[#allocation5 + $0xdc8] sm:$0xff]
    %v561 = vld [vmem:[#allocation5 + $0xdd0] sm:$0xff]
    %v562 = vld [vmem:[#allocation5 + $0xdd8] sm:$0xff]
    %v563 = vld [vmem:[#allocation5 + $0xde0] sm:$0xff]
    %v564 = vld [vmem:[#allocation5 + $0xde8] sm:$0xff]
    %v565 = vld [vmem:[#allocation5 + $0xdf0] sm:$0xff]
    %v566 = vld [vmem:[#allocation5 + $0xdf8] sm:$0xff]
    %v567 = vld [vmem:[#allocation5 + $0xe00] sm:$0xff]
    %v568 = vld [vmem:[#allocation5 + $0xe08] sm:$0xff]
    %v569 = vld [vmem:[#allocation5 + $0xe10] sm:$0xff]
    %v570 = vld [vmem:[#allocation5 + $0xe18] sm:$0xff]
    %v571 = vld [vmem:[#allocation5 + $0xe20] sm:$0xff]
    %v572 = vld [vmem:[#allocation5 + $0xe28] sm:$0xff]
    %v573 = vld [vmem:[#allocation5 + $0xe30] sm:$0xff]
    %v574 = vld [vmem:[#allocation5 + $0xe38] sm:$0xff]
    %v575 = vld [vmem:[#allocation5 + $0xe40] sm:$0xff]
    %v576 = vld [vmem:[#allocation5 + $0xe48] sm:$0xff]
    %v577 = vld [vmem:[#allocation5 + $0xe50] sm:$0xff]
    %v578 = vld [vmem:[#allocation5 + $0xe58] sm:$0xff]
    %v579 = vld [vmem:[#allocation5 + $0xe60] sm:$0xff]
    %v580 = vld [vmem:[#allocation5 + $0xe68] sm:$0xff]
    %v581 = vld [vmem:[#allocation5 + $0xe70] sm:$0xff]
    %v582 = vld [vmem:[#allocation5 + $0xe78] sm:$0xff]
    %v583 = vld [vmem:[#allocation5 + $0xe80] sm:$0xff]
    %v584 = vld [vmem:[#allocation5 + $0xe88] sm:$0xff]
    %v585 = vld [vmem:[#allocation5 + $0xe90] sm:$0xff]
    %v586 = vld [vmem:[#allocation5 + $0xe98] sm:$0xff]
    %v587 = vld [vmem:[#allocation5 + $0xea0] sm:$0xff]
    %v588 = vld [vmem:[#allocation5 + $0xea8] sm:$0xff]
    %v589 = vld [vmem:[#allocation5 + $0xeb0] sm:$0xff]
    %v590 = vld [vmem:[#allocation5 + $0xeb8] sm:$0xff]
    %v591 = vld [vmem:[#allocation5 + $0xec0] sm:$0xff]
    %v592 = vld [vmem:[#allocation5 + $0xec8] sm:$0xff]
    %v593 = vld [vmem:[#allocation5 + $0xed0] sm:$0xff]
    %v594 = vld [vmem:[#allocation5 + $0xed8] sm:$0xff]
    %v595 = vld [vmem:[#allocation5 + $0xee0] sm:$0xff]
    %v596 = vld [vmem:[#allocation5 + $0xee8] sm:$0xff]
    %v597 = vld [vmem:[#allocation5 + $0xef0] sm:$0xff]
    %v598 = vld [vmem:[#allocation5 + $0xef8] sm:$0xff]
    %v599 = vld [vmem:[#allocation5 + $0xf00] sm:$0xff]
    %v600 = vld [vmem:[#allocation5 + $0xf08] sm:$0xff]
    %v601 = vld [vmem:[#allocation5 + $0xf10] sm:$0xff]
    %v602 = vld [vmem:[#allocation5 + $0xf18] sm:$0xff]
    %v603 = vld [vmem:[#allocation5 + $0xf20] sm:$0xff]
    %v604 = vld [vmem:[#allocation5 + $0xf28] sm:$0xff]
    %v605 = vld [vmem:[#allocation5 + $0xf30] sm:$0xff]
    %v606 = vld [vmem:[#allocation5 + $0xf38] sm:$0xff]
    %v607 = vld [vmem:[#allocation5 + $0xf40] sm:$0xff]
    %v608 = vld [vmem:[#allocation5 + $0xf48] sm:$0xff]
    %v609 = vld [vmem:[#allocation5 + $0xf50] sm:$0xff]
    %v610 = vld [vmem:[#allocation5 + $0xf58] sm:$0xff]
    %v611 = vld [vmem:[#allocation5 + $0xf60] sm:$0xff]
    %v612 = vld [vmem:[#allocation5 + $0xf68] sm:$0xff]
    %v613 = vld [vmem:[#allocation5 + $0xf70] sm:$0xff]
    %v614 = vld [vmem:[#allocation5 + $0xf78] sm:$0xff]
    %v615 = vld [vmem:[#allocation5 + $0xf80] sm:$0xff]
    %v616 = vld [vmem:[#allocation5 + $0xf88] sm:$0xff]
    %v617 = vld [vmem:[#allocation5 + $0xf90] sm:$0xff]
    %v618 = vld [vmem:[#allocation5 + $0xf98] sm:$0xff]
    %v619 = vld [vmem:[#allocation5 + $0xfa0] sm:$0xff]
    %v620 = vld [vmem:[#allocation5 + $0xfa8] sm:$0xff]
    %v621 = vld [vmem:[#allocation5 + $0xfb0] sm:$0xff]
    %v622 = vld [vmem:[#allocation5 + $0xfb8] sm:$0xff]
    %v623 = vld [vmem:[#allocation5 + $0xfc0] sm:$0xff]
    %v624 = vld [vmem:[#allocation5 + $0xfc8] sm:$0xff]
    %v625 = vld [vmem:[#allocation5 + $0xfd0] sm:$0xff]
    %v626 = vld [vmem:[#allocation5 + $0xfd8] sm:$0xff]
    %v627 = vld [vmem:[#allocation5 + $0xfe0] sm:$0xff]
    %v628 = vld [vmem:[#allocation5 + $0xfe8] sm:$0xff]
    %v629 = vld [vmem:[#allocation5 + $0xff0] sm:$0xff]
    %v630 = vld [vmem:[#allocation5 + $0xff8] sm:$0xff]
    %v631 = vld [vmem:[#allocation7] sm:$0xff]
    %v633 = vlaneseq
    %v634 = vshrl.u32 %v633, 7
    %v635 = vsub.s32 0, %v634
    %v636 = vrot.slane %v631, %v635
    %v637 = vlaneseq
    %v638 = vshrl.u32 %v637, 7
    %v639 = vsub.s32 1, %v638
    %v640 = vrot.slane %v631, %v639
    %v641 = vlaneseq
    %v642 = vshrl.u32 %v641, 7
    %v643 = vsub.s32 2, %v642
    %v644 = vrot.slane %v631, %v643
    %v645 = vlaneseq
    %v646 = vshrl.u32 %v645, 7
    %v647 = vsub.s32 3, %v646
    %v648 = vrot.slane %v631, %v647
    %v649 = vlaneseq
    %v650 = vshrl.u32 %v649, 7
    %v651 = vsub.s32 4, %v650
    %v652 = vrot.slane %v631, %v651
    %v653 = vlaneseq
    %v654 = vshrl.u32 %v653, 7
    %v655 = vsub.s32 5, %v654
    %v656 = vrot.slane %v631, %v655
    %v657 = vlaneseq
    %v658 = vshrl.u32 %v657, 7
    %v659 = vsub.s32 6, %v658
    %v660 = vrot.slane %v631, %v659
    %v661 = vlaneseq
    %v662 = vshrl.u32 %v661, 7
    %v663 = vsub.s32 7, %v662
    %v664 = vrot.slane %v631, %v663
    %v677 = vunpack.c.l.b16 %v115
    %v678 = vunpack.c.h.b16 %v115
    %v679 = vunpack.c.l.b16 %v116
    %v680 = vunpack.c.h.b16 %v116
    %v681 = vunpack.c.l.b16 %v117
    %v682 = vunpack.c.h.b16 %v117
    %v683 = vunpack.c.l.b16 %v118
    %v684 = vunpack.c.h.b16 %v118
    %v685 = vpack.c.b16 %v677, %v677
    %v686 = vpack.c.b16 %v678, %v678
    %v687 = vpack.c.b16 %v679, %v679
    %v688 = vpack.c.b16 %v680, %v680
    %v689 = vpack.c.b16 %v681, %v681
    %v690 = vpack.c.b16 %v682, %v682
    %v691 = vpack.c.b16 %v683, %v683
    %v692 = vpack.c.b16 %v684, %v684
    %v1213 = vunpack.c.l.b16 %v119
    %v1214 = vunpack.c.h.b16 %v119
    %v1215 = vunpack.c.l.b16 %v120
    %v1216 = vunpack.c.h.b16 %v120
    %v1217 = vunpack.c.l.b16 %v121
    %v1218 = vunpack.c.h.b16 %v121
    %v1219 = vunpack.c.l.b16 %v122
    %v1220 = vunpack.c.h.b16 %v122
    %v1221 = vunpack.c.l.b16 %v123
    %v1222 = vunpack.c.h.b16 %v123
    %v1223 = vunpack.c.l.b16 %v124
    %v1224 = vunpack.c.h.b16 %v124
    %v1225 = vunpack.c.l.b16 %v125
    %v1226 = vunpack.c.h.b16 %v125
    %v1227 = vunpack.c.l.b16 %v126
    %v1228 = vunpack.c.h.b16 %v126
    %v1229 = vunpack.c.l.b16 %v127
    %v1230 = vunpack.c.h.b16 %v127
    %v1231 = vunpack.c.l.b16 %v128
    %v1232 = vunpack.c.h.b16 %v128
    %v1233 = vunpack.c.l.b16 %v129
    %v1234 = vunpack.c.h.b16 %v129
    %v1235 = vunpack.c.l.b16 %v130
    %v1236 = vunpack.c.h.b16 %v130
    %v1237 = vunpack.c.l.b16 %v131
    %v1238 = vunpack.c.h.b16 %v131
    %v1239 = vunpack.c.l.b16 %v132
    %v1240 = vunpack.c.h.b16 %v132
    %v1241 = vunpack.c.l.b16 %v133
    %v1242 = vunpack.c.h.b16 %v133
    %v1243 = vunpack.c.l.b16 %v134
    %v1244 = vunpack.c.h.b16 %v134
    %v1245 = vunpack.c.l.b16 %v135
    %v1246 = vunpack.c.h.b16 %v135
    %v1247 = vunpack.c.l.b16 %v136
    %v1248 = vunpack.c.h.b16 %v136
    %v1249 = vunpack.c.l.b16 %v137
    %v1250 = vunpack.c.h.b16 %v137
    %v1251 = vunpack.c.l.b16 %v138
    %v1252 = vunpack.c.h.b16 %v138
    %v1253 = vunpack.c.l.b16 %v139
    %v1254 = vunpack.c.h.b16 %v139
    %v1255 = vunpack.c.l.b16 %v140
    %v1256 = vunpack.c.h.b16 %v140
    %v1257 = vunpack.c.l.b16 %v141
    %v1258 = vunpack.c.h.b16 %v141
    %v1259 = vunpack.c.l.b16 %v142
    %v1260 = vunpack.c.h.b16 %v142
    %v1261 = vunpack.c.l.b16 %v143
    %v1262 = vunpack.c.h.b16 %v143
    %v1263 = vunpack.c.l.b16 %v144
    %v1264 = vunpack.c.h.b16 %v144
    %v1265 = vunpack.c.l.b16 %v145
    %v1266 = vunpack.c.h.b16 %v145
    %v1267 = vunpack.c.l.b16 %v146
    %v1268 = vunpack.c.h.b16 %v146
    %v1269 = vunpack.c.l.b16 %v147
    %v1270 = vunpack.c.h.b16 %v147
    %v1271 = vunpack.c.l.b16 %v148
    %v1272 = vunpack.c.h.b16 %v148
    %v1273 = vunpack.c.l.b16 %v149
    %v1274 = vunpack.c.h.b16 %v149
    %v1275 = vunpack.c.l.b16 %v150
    %v1276 = vunpack.c.h.b16 %v150
    %v1277 = vunpack.c.l.b16 %v151
    %v1278 = vunpack.c.h.b16 %v151
    %v1279 = vunpack.c.l.b16 %v152
    %v1280 = vunpack.c.h.b16 %v152
    %v1281 = vunpack.c.l.b16 %v153
    %v1282 = vunpack.c.h.b16 %v153
    %v1283 = vunpack.c.l.b16 %v154
    %v1284 = vunpack.c.h.b16 %v154
    %v1285 = vunpack.c.l.b16 %v155
    %v1286 = vunpack.c.h.b16 %v155
    %v1287 = vunpack.c.l.b16 %v156
    %v1288 = vunpack.c.h.b16 %v156
    %v1289 = vunpack.c.l.b16 %v157
    %v1290 = vunpack.c.h.b16 %v157
    %v1291 = vunpack.c.l.b16 %v158
    %v1292 = vunpack.c.h.b16 %v158
    %v1293 = vunpack.c.l.b16 %v159
    %v1294 = vunpack.c.h.b16 %v159
    %v1295 = vunpack.c.l.b16 %v160
    %v1296 = vunpack.c.h.b16 %v160
    %v1297 = vunpack.c.l.b16 %v161
    %v1298 = vunpack.c.h.b16 %v161
    %v1299 = vunpack.c.l.b16 %v162
    %v1300 = vunpack.c.h.b16 %v162
    %v1301 = vunpack.c.l.b16 %v163
    %v1302 = vunpack.c.h.b16 %v163
    %v1303 = vunpack.c.l.b16 %v164
    %v1304 = vunpack.c.h.b16 %v164
    %v1305 = vunpack.c.l.b16 %v165
    %v1306 = vunpack.c.h.b16 %v165
    %v1307 = vunpack.c.l.b16 %v166
    %v1308 = vunpack.c.h.b16 %v166
    %v1309 = vunpack.c.l.b16 %v167
    %v1310 = vunpack.c.h.b16 %v167
    %v1311 = vunpack.c.l.b16 %v168
    %v1312 = vunpack.c.h.b16 %v168
    %v1313 = vunpack.c.l.b16 %v169
    %v1314 = vunpack.c.h.b16 %v169
    %v1315 = vunpack.c.l.b16 %v170
    %v1316 = vunpack.c.h.b16 %v170
    %v1317 = vunpack.c.l.b16 %v171
    %v1318 = vunpack.c.h.b16 %v171
    %v1319 = vunpack.c.l.b16 %v172
    %v1320 = vunpack.c.h.b16 %v172
    %v1321 = vunpack.c.l.b16 %v173
    %v1322 = vunpack.c.h.b16 %v173
    %v1323 = vunpack.c.l.b16 %v174
    %v1324 = vunpack.c.h.b16 %v174
    %v1325 = vunpack.c.l.b16 %v175
    %v1326 = vunpack.c.h.b16 %v175
    %v1327 = vunpack.c.l.b16 %v176
    %v1328 = vunpack.c.h.b16 %v176
    %v1329 = vunpack.c.l.b16 %v177
    %v1330 = vunpack.c.h.b16 %v177
    %v1331 = vunpack.c.l.b16 %v178
    %v1332 = vunpack.c.h.b16 %v178
    %v1333 = vunpack.c.l.b16 %v179
    %v1334 = vunpack.c.h.b16 %v179
    %v1335 = vunpack.c.l.b16 %v180
    %v1336 = vunpack.c.h.b16 %v180
    %v1337 = vunpack.c.l.b16 %v181
    %v1338 = vunpack.c.h.b16 %v181
    %v1339 = vunpack.c.l.b16 %v182
    %v1340 = vunpack.c.h.b16 %v182
    %v1341 = vunpack.c.l.b16 %v183
    %v1342 = vunpack.c.h.b16 %v183
    %v1343 = vunpack.c.l.b16 %v184
    %v1344 = vunpack.c.h.b16 %v184
    %v1345 = vunpack.c.l.b16 %v185
    %v1346 = vunpack.c.h.b16 %v185
    %v1347 = vunpack.c.l.b16 %v186
    %v1348 = vunpack.c.h.b16 %v186
    %v1349 = vunpack.c.l.b16 %v187
    %v1350 = vunpack.c.h.b16 %v187
    %v1351 = vunpack.c.l.b16 %v188
    %v1352 = vunpack.c.h.b16 %v188
    %v1353 = vunpack.c.l.b16 %v189
    %v1354 = vunpack.c.h.b16 %v189
    %v1355 = vunpack.c.l.b16 %v190
    %v1356 = vunpack.c.h.b16 %v190
    %v1357 = vunpack.c.l.b16 %v191
    %v1358 = vunpack.c.h.b16 %v191
    %v1359 = vunpack.c.l.b16 %v192
    %v1360 = vunpack.c.h.b16 %v192
    %v1361 = vunpack.c.l.b16 %v193
    %v1362 = vunpack.c.h.b16 %v193
    %v1363 = vunpack.c.l.b16 %v194
    %v1364 = vunpack.c.h.b16 %v194
    %v1365 = vunpack.c.l.b16 %v195
    %v1366 = vunpack.c.h.b16 %v195
    %v1367 = vunpack.c.l.b16 %v196
    %v1368 = vunpack.c.h.b16 %v196
    %v1369 = vunpack.c.l.b16 %v197
    %v1370 = vunpack.c.h.b16 %v197
    %v1371 = vunpack.c.l.b16 %v198
    %v1372 = vunpack.c.h.b16 %v198
    %v1373 = vunpack.c.l.b16 %v199
    %v1374 = vunpack.c.h.b16 %v199
    %v1375 = vunpack.c.l.b16 %v200
    %v1376 = vunpack.c.h.b16 %v200
    %v1377 = vunpack.c.l.b16 %v201
    %v1378 = vunpack.c.h.b16 %v201
    %v1379 = vunpack.c.l.b16 %v202
    %v1380 = vunpack.c.h.b16 %v202
    %v1381 = vunpack.c.l.b16 %v203
    %v1382 = vunpack.c.h.b16 %v203
    %v1383 = vunpack.c.l.b16 %v204
    %v1384 = vunpack.c.h.b16 %v204
    %v1385 = vunpack.c.l.b16 %v205
    %v1386 = vunpack.c.h.b16 %v205
    %v1387 = vunpack.c.l.b16 %v206
    %v1388 = vunpack.c.h.b16 %v206
    %v1389 = vunpack.c.l.b16 %v207
    %v1390 = vunpack.c.h.b16 %v207
    %v1391 = vunpack.c.l.b16 %v208
    %v1392 = vunpack.c.h.b16 %v208
    %v1393 = vunpack.c.l.b16 %v209
    %v1394 = vunpack.c.h.b16 %v209
    %v1395 = vunpack.c.l.b16 %v210
    %v1396 = vunpack.c.h.b16 %v210
    %v1397 = vunpack.c.l.b16 %v211
    %v1398 = vunpack.c.h.b16 %v211
    %v1399 = vunpack.c.l.b16 %v212
    %v1400 = vunpack.c.h.b16 %v212
    %v1401 = vunpack.c.l.b16 %v213
    %v1402 = vunpack.c.h.b16 %v213
    %v1403 = vunpack.c.l.b16 %v214
    %v1404 = vunpack.c.h.b16 %v214
    %v1405 = vunpack.c.l.b16 %v215
    %v1406 = vunpack.c.h.b16 %v215
    %v1407 = vunpack.c.l.b16 %v216
    %v1408 = vunpack.c.h.b16 %v216
    %v1409 = vunpack.c.l.b16 %v217
    %v1410 = vunpack.c.h.b16 %v217
    %v1411 = vunpack.c.l.b16 %v218
    %v1412 = vunpack.c.h.b16 %v218
    %v1413 = vunpack.c.l.b16 %v219
    %v1414 = vunpack.c.h.b16 %v219
    %v1415 = vunpack.c.l.b16 %v220
    %v1416 = vunpack.c.h.b16 %v220
    %v1417 = vunpack.c.l.b16 %v221
    %v1418 = vunpack.c.h.b16 %v221
    %v1419 = vunpack.c.l.b16 %v222
    %v1420 = vunpack.c.h.b16 %v222
    %v1421 = vunpack.c.l.b16 %v223
    %v1422 = vunpack.c.h.b16 %v223
    %v1423 = vunpack.c.l.b16 %v224
    %v1424 = vunpack.c.h.b16 %v224
    %v1425 = vunpack.c.l.b16 %v225
    %v1426 = vunpack.c.h.b16 %v225
    %v1427 = vunpack.c.l.b16 %v226
    %v1428 = vunpack.c.h.b16 %v226
    %v1429 = vunpack.c.l.b16 %v227
    %v1430 = vunpack.c.h.b16 %v227
    %v1431 = vunpack.c.l.b16 %v228
    %v1432 = vunpack.c.h.b16 %v228
    %v1433 = vunpack.c.l.b16 %v229
    %v1434 = vunpack.c.h.b16 %v229
    %v1435 = vunpack.c.l.b16 %v230
    %v1436 = vunpack.c.h.b16 %v230
    %v1437 = vunpack.c.l.b16 %v231
    %v1438 = vunpack.c.h.b16 %v231
    %v1439 = vunpack.c.l.b16 %v232
    %v1440 = vunpack.c.h.b16 %v232
    %v1441 = vunpack.c.l.b16 %v233
    %v1442 = vunpack.c.h.b16 %v233
    %v1443 = vunpack.c.l.b16 %v234
    %v1444 = vunpack.c.h.b16 %v234
    %v1445 = vunpack.c.l.b16 %v235
    %v1446 = vunpack.c.h.b16 %v235
    %v1447 = vunpack.c.l.b16 %v236
    %v1448 = vunpack.c.h.b16 %v236
    %v1449 = vunpack.c.l.b16 %v237
    %v1450 = vunpack.c.h.b16 %v237
    %v1451 = vunpack.c.l.b16 %v238
    %v1452 = vunpack.c.h.b16 %v238
    %v1453 = vunpack.c.l.b16 %v239
    %v1454 = vunpack.c.h.b16 %v239
    %v1455 = vunpack.c.l.b16 %v240
    %v1456 = vunpack.c.h.b16 %v240
    %v1457 = vunpack.c.l.b16 %v241
    %v1458 = vunpack.c.h.b16 %v241
    %v1459 = vunpack.c.l.b16 %v242
    %v1460 = vunpack.c.h.b16 %v242
    %v1461 = vunpack.c.l.b16 %v243
    %v1462 = vunpack.c.h.b16 %v243
    %v1463 = vunpack.c.l.b16 %v244
    %v1464 = vunpack.c.h.b16 %v244
    %v1465 = vunpack.c.l.b16 %v245
    %v1466 = vunpack.c.h.b16 %v245
    %v1467 = vunpack.c.l.b16 %v246
    %v1468 = vunpack.c.h.b16 %v246
    %v1469 = vunpack.c.l.b16 %v247
    %v1470 = vunpack.c.h.b16 %v247
    %v1471 = vunpack.c.l.b16 %v248
    %v1472 = vunpack.c.h.b16 %v248
    %v1473 = vunpack.c.l.b16 %v249
    %v1474 = vunpack.c.h.b16 %v249
    %v1475 = vunpack.c.l.b16 %v250
    %v1476 = vunpack.c.h.b16 %v250
    %v1477 = vunpack.c.l.b16 %v251
    %v1478 = vunpack.c.h.b16 %v251
    %v1479 = vunpack.c.l.b16 %v252
    %v1480 = vunpack.c.h.b16 %v252
    %v1481 = vunpack.c.l.b16 %v253
    %v1482 = vunpack.c.h.b16 %v253
    %v1483 = vunpack.c.l.b16 %v254
    %v1484 = vunpack.c.h.b16 %v254
    %v1485 = vunpack.c.l.b16 %v255
    %v1486 = vunpack.c.h.b16 %v255
    %v1487 = vunpack.c.l.b16 %v256
    %v1488 = vunpack.c.h.b16 %v256
    %v1489 = vunpack.c.l.b16 %v257
    %v1490 = vunpack.c.h.b16 %v257
    %v1491 = vunpack.c.l.b16 %v258
    %v1492 = vunpack.c.h.b16 %v258
    %v1493 = vunpack.c.l.b16 %v259
    %v1494 = vunpack.c.h.b16 %v259
    %v1495 = vunpack.c.l.b16 %v260
    %v1496 = vunpack.c.h.b16 %v260
    %v1497 = vunpack.c.l.b16 %v261
    %v1498 = vunpack.c.h.b16 %v261
    %v1499 = vunpack.c.l.b16 %v262
    %v1500 = vunpack.c.h.b16 %v262
    %v1501 = vunpack.c.l.b16 %v263
    %v1502 = vunpack.c.h.b16 %v263
    %v1503 = vunpack.c.l.b16 %v264
    %v1504 = vunpack.c.h.b16 %v264
    %v1505 = vunpack.c.l.b16 %v265
    %v1506 = vunpack.c.h.b16 %v265
    %v1507 = vunpack.c.l.b16 %v266
    %v1508 = vunpack.c.h.b16 %v266
    %v1509 = vunpack.c.l.b16 %v267
    %v1510 = vunpack.c.h.b16 %v267
    %v1511 = vunpack.c.l.b16 %v268
    %v1512 = vunpack.c.h.b16 %v268
    %v1513 = vunpack.c.l.b16 %v269
    %v1514 = vunpack.c.h.b16 %v269
    %v1515 = vunpack.c.l.b16 %v270
    %v1516 = vunpack.c.h.b16 %v270
    %v1517 = vunpack.c.l.b16 %v271
    %v1518 = vunpack.c.h.b16 %v271
    %v1519 = vunpack.c.l.b16 %v272
    %v1520 = vunpack.c.h.b16 %v272
    %v1521 = vunpack.c.l.b16 %v273
    %v1522 = vunpack.c.h.b16 %v273
    %v1523 = vunpack.c.l.b16 %v274
    %v1524 = vunpack.c.h.b16 %v274
    %v1525 = vunpack.c.l.b16 %v275
    %v1526 = vunpack.c.h.b16 %v275
    %v1527 = vunpack.c.l.b16 %v276
    %v1528 = vunpack.c.h.b16 %v276
    %v1529 = vunpack.c.l.b16 %v277
    %v1530 = vunpack.c.h.b16 %v277
    %v1531 = vunpack.c.l.b16 %v278
    %v1532 = vunpack.c.h.b16 %v278
    %v1533 = vunpack.c.l.b16 %v279
    %v1534 = vunpack.c.h.b16 %v279
    %v1535 = vunpack.c.l.b16 %v280
    %v1536 = vunpack.c.h.b16 %v280
    %v1537 = vunpack.c.l.b16 %v281
    %v1538 = vunpack.c.h.b16 %v281
    %v1539 = vunpack.c.l.b16 %v282
    %v1540 = vunpack.c.h.b16 %v282
    %v1541 = vunpack.c.l.b16 %v283
    %v1542 = vunpack.c.h.b16 %v283
    %v1543 = vunpack.c.l.b16 %v284
    %v1544 = vunpack.c.h.b16 %v284
    %v1545 = vunpack.c.l.b16 %v285
    %v1546 = vunpack.c.h.b16 %v285
    %v1547 = vunpack.c.l.b16 %v286
    %v1548 = vunpack.c.h.b16 %v286
    %v1549 = vunpack.c.l.b16 %v287
    %v1550 = vunpack.c.h.b16 %v287
    %v1551 = vunpack.c.l.b16 %v288
    %v1552 = vunpack.c.h.b16 %v288
    %v1553 = vunpack.c.l.b16 %v289
    %v1554 = vunpack.c.h.b16 %v289
    %v1555 = vunpack.c.l.b16 %v290
    %v1556 = vunpack.c.h.b16 %v290
    %v1557 = vunpack.c.l.b16 %v291
    %v1558 = vunpack.c.h.b16 %v291
    %v1559 = vunpack.c.l.b16 %v292
    %v1560 = vunpack.c.h.b16 %v292
    %v1561 = vunpack.c.l.b16 %v293
    %v1562 = vunpack.c.h.b16 %v293
    %v1563 = vunpack.c.l.b16 %v294
    %v1564 = vunpack.c.h.b16 %v294
    %v1565 = vunpack.c.l.b16 %v295
    %v1566 = vunpack.c.h.b16 %v295
    %v1567 = vunpack.c.l.b16 %v296
    %v1568 = vunpack.c.h.b16 %v296
    %v1569 = vunpack.c.l.b16 %v297
    %v1570 = vunpack.c.h.b16 %v297
    %v1571 = vunpack.c.l.b16 %v298
    %v1572 = vunpack.c.h.b16 %v298
    %v1573 = vunpack.c.l.b16 %v299
    %v1574 = vunpack.c.h.b16 %v299
    %v1575 = vunpack.c.l.b16 %v300
    %v1576 = vunpack.c.h.b16 %v300
    %v1577 = vunpack.c.l.b16 %v301
    %v1578 = vunpack.c.h.b16 %v301
    %v1579 = vunpack.c.l.b16 %v302
    %v1580 = vunpack.c.h.b16 %v302
    %v1581 = vunpack.c.l.b16 %v303
    %v1582 = vunpack.c.h.b16 %v303
    %v1583 = vunpack.c.l.b16 %v304
    %v1584 = vunpack.c.h.b16 %v304
    %v1585 = vunpack.c.l.b16 %v305
    %v1586 = vunpack.c.h.b16 %v305
    %v1587 = vunpack.c.l.b16 %v306
    %v1588 = vunpack.c.h.b16 %v306
    %v1589 = vunpack.c.l.b16 %v307
    %v1590 = vunpack.c.h.b16 %v307
    %v1591 = vunpack.c.l.b16 %v308
    %v1592 = vunpack.c.h.b16 %v308
    %v1593 = vunpack.c.l.b16 %v309
    %v1594 = vunpack.c.h.b16 %v309
    %v1595 = vunpack.c.l.b16 %v310
    %v1596 = vunpack.c.h.b16 %v310
    %v1597 = vunpack.c.l.b16 %v311
    %v1598 = vunpack.c.h.b16 %v311
    %v1599 = vunpack.c.l.b16 %v312
    %v1600 = vunpack.c.h.b16 %v312
    %v1601 = vunpack.c.l.b16 %v313
    %v1602 = vunpack.c.h.b16 %v313
    %v1603 = vunpack.c.l.b16 %v314
    %v1604 = vunpack.c.h.b16 %v314
    %v1605 = vunpack.c.l.b16 %v315
    %v1606 = vunpack.c.h.b16 %v315
    %v1607 = vunpack.c.l.b16 %v316
    %v1608 = vunpack.c.h.b16 %v316
    %v1609 = vunpack.c.l.b16 %v317
    %v1610 = vunpack.c.h.b16 %v317
    %v1611 = vunpack.c.l.b16 %v318
    %v1612 = vunpack.c.h.b16 %v318
    %v1613 = vunpack.c.l.b16 %v319
    %v1614 = vunpack.c.h.b16 %v319
    %v1615 = vunpack.c.l.b16 %v320
    %v1616 = vunpack.c.h.b16 %v320
    %v1617 = vunpack.c.l.b16 %v321
    %v1618 = vunpack.c.h.b16 %v321
    %v1619 = vunpack.c.l.b16 %v322
    %v1620 = vunpack.c.h.b16 %v322
    %v1621 = vunpack.c.l.b16 %v323
    %v1622 = vunpack.c.h.b16 %v323
    %v1623 = vunpack.c.l.b16 %v324
    %v1624 = vunpack.c.h.b16 %v324
    %v1625 = vunpack.c.l.b16 %v325
    %v1626 = vunpack.c.h.b16 %v325
    %v1627 = vunpack.c.l.b16 %v326
    %v1628 = vunpack.c.h.b16 %v326
    %v1629 = vunpack.c.l.b16 %v327
    %v1630 = vunpack.c.h.b16 %v327
    %v1631 = vunpack.c.l.b16 %v328
    %v1632 = vunpack.c.h.b16 %v328
    %v1633 = vunpack.c.l.b16 %v329
    %v1634 = vunpack.c.h.b16 %v329
    %v1635 = vunpack.c.l.b16 %v330
    %v1636 = vunpack.c.h.b16 %v330
    %v1637 = vunpack.c.l.b16 %v331
    %v1638 = vunpack.c.h.b16 %v331
    %v1639 = vunpack.c.l.b16 %v332
    %v1640 = vunpack.c.h.b16 %v332
    %v1641 = vunpack.c.l.b16 %v333
    %v1642 = vunpack.c.h.b16 %v333
    %v1643 = vunpack.c.l.b16 %v334
    %v1644 = vunpack.c.h.b16 %v334
    %v1645 = vunpack.c.l.b16 %v335
    %v1646 = vunpack.c.h.b16 %v335
    %v1647 = vunpack.c.l.b16 %v336
    %v1648 = vunpack.c.h.b16 %v336
    %v1649 = vunpack.c.l.b16 %v337
    %v1650 = vunpack.c.h.b16 %v337
    %v1651 = vunpack.c.l.b16 %v338
    %v1652 = vunpack.c.h.b16 %v338
    %v1653 = vunpack.c.l.b16 %v339
    %v1654 = vunpack.c.h.b16 %v339
    %v1655 = vunpack.c.l.b16 %v340
    %v1656 = vunpack.c.h.b16 %v340
    %v1657 = vunpack.c.l.b16 %v341
    %v1658 = vunpack.c.h.b16 %v341
    %v1659 = vunpack.c.l.b16 %v342
    %v1660 = vunpack.c.h.b16 %v342
    %v1661 = vunpack.c.l.b16 %v343
    %v1662 = vunpack.c.h.b16 %v343
    %v1663 = vunpack.c.l.b16 %v344
    %v1664 = vunpack.c.h.b16 %v344
    %v1665 = vunpack.c.l.b16 %v345
    %v1666 = vunpack.c.h.b16 %v345
    %v1667 = vunpack.c.l.b16 %v346
    %v1668 = vunpack.c.h.b16 %v346
    %v1669 = vunpack.c.l.b16 %v347
    %v1670 = vunpack.c.h.b16 %v347
    %v1671 = vunpack.c.l.b16 %v348
    %v1672 = vunpack.c.h.b16 %v348
    %v1673 = vunpack.c.l.b16 %v349
    %v1674 = vunpack.c.h.b16 %v349
    %v1675 = vunpack.c.l.b16 %v350
    %v1676 = vunpack.c.h.b16 %v350
    %v1677 = vunpack.c.l.b16 %v351
    %v1678 = vunpack.c.h.b16 %v351
    %v1679 = vunpack.c.l.b16 %v352
    %v1680 = vunpack.c.h.b16 %v352
    %v1681 = vunpack.c.l.b16 %v353
    %v1682 = vunpack.c.h.b16 %v353
    %v1683 = vunpack.c.l.b16 %v354
    %v1684 = vunpack.c.h.b16 %v354
    %v1685 = vunpack.c.l.b16 %v355
    %v1686 = vunpack.c.h.b16 %v355
    %v1687 = vunpack.c.l.b16 %v356
    %v1688 = vunpack.c.h.b16 %v356
    %v1689 = vunpack.c.l.b16 %v357
    %v1690 = vunpack.c.h.b16 %v357
    %v1691 = vunpack.c.l.b16 %v358
    %v1692 = vunpack.c.h.b16 %v358
    %v1693 = vunpack.c.l.b16 %v359
    %v1694 = vunpack.c.h.b16 %v359
    %v1695 = vunpack.c.l.b16 %v360
    %v1696 = vunpack.c.h.b16 %v360
    %v1697 = vunpack.c.l.b16 %v361
    %v1698 = vunpack.c.h.b16 %v361
    %v1699 = vunpack.c.l.b16 %v362
    %v1700 = vunpack.c.h.b16 %v362
    %v1701 = vunpack.c.l.b16 %v363
    %v1702 = vunpack.c.h.b16 %v363
    %v1703 = vunpack.c.l.b16 %v364
    %v1704 = vunpack.c.h.b16 %v364
    %v1705 = vunpack.c.l.b16 %v365
    %v1706 = vunpack.c.h.b16 %v365
    %v1707 = vunpack.c.l.b16 %v366
    %v1708 = vunpack.c.h.b16 %v366
    %v1709 = vunpack.c.l.b16 %v367
    %v1710 = vunpack.c.h.b16 %v367
    %v1711 = vunpack.c.l.b16 %v368
    %v1712 = vunpack.c.h.b16 %v368
    %v1713 = vunpack.c.l.b16 %v369
    %v1714 = vunpack.c.h.b16 %v369
    %v1715 = vunpack.c.l.b16 %v370
    %v1716 = vunpack.c.h.b16 %v370
    %v1717 = vunpack.c.l.b16 %v371
    %v1718 = vunpack.c.h.b16 %v371
    %v1719 = vunpack.c.l.b16 %v372
    %v1720 = vunpack.c.h.b16 %v372
    %v1721 = vunpack.c.l.b16 %v373
    %v1722 = vunpack.c.h.b16 %v373
    %v1723 = vunpack.c.l.b16 %v374
    %v1724 = vunpack.c.h.b16 %v374
    %v1725 = vunpack.c.l.b16 %v375
    %v1726 = vunpack.c.h.b16 %v375
    %v1727 = vunpack.c.l.b16 %v376
    %v1728 = vunpack.c.h.b16 %v376
    %v1729 = vunpack.c.l.b16 %v377
    %v1730 = vunpack.c.h.b16 %v377
    %v1731 = vunpack.c.l.b16 %v378
    %v1732 = vunpack.c.h.b16 %v378
    %v1733 = vunpack.c.l.b16 %v379
    %v1734 = vunpack.c.h.b16 %v379
    %v1735 = vunpack.c.l.b16 %v380
    %v1736 = vunpack.c.h.b16 %v380
    %v1737 = vunpack.c.l.b16 %v381
    %v1738 = vunpack.c.h.b16 %v381
    %v1739 = vunpack.c.l.b16 %v382
    %v1740 = vunpack.c.h.b16 %v382
    %v1741 = vunpack.c.l.b16 %v383
    %v1742 = vunpack.c.h.b16 %v383
    %v1743 = vunpack.c.l.b16 %v384
    %v1744 = vunpack.c.h.b16 %v384
    %v1745 = vunpack.c.l.b16 %v385
    %v1746 = vunpack.c.h.b16 %v385
    %v1747 = vunpack.c.l.b16 %v386
    %v1748 = vunpack.c.h.b16 %v386
    %v1749 = vunpack.c.l.b16 %v387
    %v1750 = vunpack.c.h.b16 %v387
    %v1751 = vunpack.c.l.b16 %v388
    %v1752 = vunpack.c.h.b16 %v388
    %v1753 = vunpack.c.l.b16 %v389
    %v1754 = vunpack.c.h.b16 %v389
    %v1755 = vunpack.c.l.b16 %v390
    %v1756 = vunpack.c.h.b16 %v390
    %v1757 = vunpack.c.l.b16 %v391
    %v1758 = vunpack.c.h.b16 %v391
    %v1759 = vunpack.c.l.b16 %v392
    %v1760 = vunpack.c.h.b16 %v392
    %v1761 = vunpack.c.l.b16 %v393
    %v1762 = vunpack.c.h.b16 %v393
    %v1763 = vunpack.c.l.b16 %v394
    %v1764 = vunpack.c.h.b16 %v394
    %v1765 = vunpack.c.l.b16 %v395
    %v1766 = vunpack.c.h.b16 %v395
    %v1767 = vunpack.c.l.b16 %v396
    %v1768 = vunpack.c.h.b16 %v396
    %v1769 = vunpack.c.l.b16 %v397
    %v1770 = vunpack.c.h.b16 %v397
    %v1771 = vunpack.c.l.b16 %v398
    %v1772 = vunpack.c.h.b16 %v398
    %v1773 = vunpack.c.l.b16 %v399
    %v1774 = vunpack.c.h.b16 %v399
    %v1775 = vunpack.c.l.b16 %v400
    %v1776 = vunpack.c.h.b16 %v400
    %v1777 = vunpack.c.l.b16 %v401
    %v1778 = vunpack.c.h.b16 %v401
    %v1779 = vunpack.c.l.b16 %v402
    %v1780 = vunpack.c.h.b16 %v402
    %v1781 = vunpack.c.l.b16 %v403
    %v1782 = vunpack.c.h.b16 %v403
    %v1783 = vunpack.c.l.b16 %v404
    %v1784 = vunpack.c.h.b16 %v404
    %v1785 = vunpack.c.l.b16 %v405
    %v1786 = vunpack.c.h.b16 %v405
    %v1787 = vunpack.c.l.b16 %v406
    %v1788 = vunpack.c.h.b16 %v406
    %v1789 = vunpack.c.l.b16 %v407
    %v1790 = vunpack.c.h.b16 %v407
    %v1791 = vunpack.c.l.b16 %v408
    %v1792 = vunpack.c.h.b16 %v408
    %v1793 = vunpack.c.l.b16 %v409
    %v1794 = vunpack.c.h.b16 %v409
    %v1795 = vunpack.c.l.b16 %v410
    %v1796 = vunpack.c.h.b16 %v410
    %v1797 = vunpack.c.l.b16 %v411
    %v1798 = vunpack.c.h.b16 %v411
    %v1799 = vunpack.c.l.b16 %v412
    %v1800 = vunpack.c.h.b16 %v412
    %v1801 = vunpack.c.l.b16 %v413
    %v1802 = vunpack.c.h.b16 %v413
    %v1803 = vunpack.c.l.b16 %v414
    %v1804 = vunpack.c.h.b16 %v414
    %v1805 = vunpack.c.l.b16 %v415
    %v1806 = vunpack.c.h.b16 %v415
    %v1807 = vunpack.c.l.b16 %v416
    %v1808 = vunpack.c.h.b16 %v416
    %v1809 = vunpack.c.l.b16 %v417
    %v1810 = vunpack.c.h.b16 %v417
    %v1811 = vunpack.c.l.b16 %v418
    %v1812 = vunpack.c.h.b16 %v418
    %v1813 = vunpack.c.l.b16 %v419
    %v1814 = vunpack.c.h.b16 %v419
    %v1815 = vunpack.c.l.b16 %v420
    %v1816 = vunpack.c.h.b16 %v420
    %v1817 = vunpack.c.l.b16 %v421
    %v1818 = vunpack.c.h.b16 %v421
    %v1819 = vunpack.c.l.b16 %v422
    %v1820 = vunpack.c.h.b16 %v422
    %v1821 = vunpack.c.l.b16 %v423
    %v1822 = vunpack.c.h.b16 %v423
    %v1823 = vunpack.c.l.b16 %v424
    %v1824 = vunpack.c.h.b16 %v424
    %v1825 = vunpack.c.l.b16 %v425
    %v1826 = vunpack.c.h.b16 %v425
    %v1827 = vunpack.c.l.b16 %v426
    %v1828 = vunpack.c.h.b16 %v426
    %v1829 = vunpack.c.l.b16 %v427
    %v1830 = vunpack.c.h.b16 %v427
    %v1831 = vunpack.c.l.b16 %v428
    %v1832 = vunpack.c.h.b16 %v428
    %v1833 = vunpack.c.l.b16 %v429
    %v1834 = vunpack.c.h.b16 %v429
    %v1835 = vunpack.c.l.b16 %v430
    %v1836 = vunpack.c.h.b16 %v430
    %v1837 = vunpack.c.l.b16 %v431
    %v1838 = vunpack.c.h.b16 %v431
    %v1839 = vunpack.c.l.b16 %v432
    %v1840 = vunpack.c.h.b16 %v432
    %v1841 = vunpack.c.l.b16 %v433
    %v1842 = vunpack.c.h.b16 %v433
    %v1843 = vunpack.c.l.b16 %v434
    %v1844 = vunpack.c.h.b16 %v434
    %v1845 = vunpack.c.l.b16 %v435
    %v1846 = vunpack.c.h.b16 %v435
    %v1847 = vunpack.c.l.b16 %v436
    %v1848 = vunpack.c.h.b16 %v436
    %v1849 = vunpack.c.l.b16 %v437
    %v1850 = vunpack.c.h.b16 %v437
    %v1851 = vunpack.c.l.b16 %v438
    %v1852 = vunpack.c.h.b16 %v438
    %v1853 = vunpack.c.l.b16 %v439
    %v1854 = vunpack.c.h.b16 %v439
    %v1855 = vunpack.c.l.b16 %v440
    %v1856 = vunpack.c.h.b16 %v440
    %v1857 = vunpack.c.l.b16 %v441
    %v1858 = vunpack.c.h.b16 %v441
    %v1859 = vunpack.c.l.b16 %v442
    %v1860 = vunpack.c.h.b16 %v442
    %v1861 = vunpack.c.l.b16 %v443
    %v1862 = vunpack.c.h.b16 %v443
    %v1863 = vunpack.c.l.b16 %v444
    %v1864 = vunpack.c.h.b16 %v444
    %v1865 = vunpack.c.l.b16 %v445
    %v1866 = vunpack.c.h.b16 %v445
    %v1867 = vunpack.c.l.b16 %v446
    %v1868 = vunpack.c.h.b16 %v446
    %v1869 = vunpack.c.l.b16 %v447
    %v1870 = vunpack.c.h.b16 %v447
    %v1871 = vunpack.c.l.b16 %v448
    %v1872 = vunpack.c.h.b16 %v448
    %v1873 = vunpack.c.l.b16 %v449
    %v1874 = vunpack.c.h.b16 %v449
    %v1875 = vunpack.c.l.b16 %v450
    %v1876 = vunpack.c.h.b16 %v450
    %v1877 = vunpack.c.l.b16 %v451
    %v1878 = vunpack.c.h.b16 %v451
    %v1879 = vunpack.c.l.b16 %v452
    %v1880 = vunpack.c.h.b16 %v452
    %v1881 = vunpack.c.l.b16 %v453
    %v1882 = vunpack.c.h.b16 %v453
    %v1883 = vunpack.c.l.b16 %v454
    %v1884 = vunpack.c.h.b16 %v454
    %v1885 = vunpack.c.l.b16 %v455
    %v1886 = vunpack.c.h.b16 %v455
    %v1887 = vunpack.c.l.b16 %v456
    %v1888 = vunpack.c.h.b16 %v456
    %v1889 = vunpack.c.l.b16 %v457
    %v1890 = vunpack.c.h.b16 %v457
    %v1891 = vunpack.c.l.b16 %v458
    %v1892 = vunpack.c.h.b16 %v458
    %v1893 = vunpack.c.l.b16 %v459
    %v1894 = vunpack.c.h.b16 %v459
    %v1895 = vunpack.c.l.b16 %v460
    %v1896 = vunpack.c.h.b16 %v460
    %v1897 = vunpack.c.l.b16 %v461
    %v1898 = vunpack.c.h.b16 %v461
    %v1899 = vunpack.c.l.b16 %v462
    %v1900 = vunpack.c.h.b16 %v462
    %v1901 = vunpack.c.l.b16 %v463
    %v1902 = vunpack.c.h.b16 %v463
    %v1903 = vunpack.c.l.b16 %v464
    %v1904 = vunpack.c.h.b16 %v464
    %v1905 = vunpack.c.l.b16 %v465
    %v1906 = vunpack.c.h.b16 %v465
    %v1907 = vunpack.c.l.b16 %v466
    %v1908 = vunpack.c.h.b16 %v466
    %v1909 = vunpack.c.l.b16 %v467
    %v1910 = vunpack.c.h.b16 %v467
    %v1911 = vunpack.c.l.b16 %v468
    %v1912 = vunpack.c.h.b16 %v468
    %v1913 = vunpack.c.l.b16 %v469
    %v1914 = vunpack.c.h.b16 %v469
    %v1915 = vunpack.c.l.b16 %v470
    %v1916 = vunpack.c.h.b16 %v470
    %v1917 = vunpack.c.l.b16 %v471
    %v1918 = vunpack.c.h.b16 %v471
    %v1919 = vunpack.c.l.b16 %v472
    %v1920 = vunpack.c.h.b16 %v472
    %v1921 = vunpack.c.l.b16 %v473
    %v1922 = vunpack.c.h.b16 %v473
    %v1923 = vunpack.c.l.b16 %v474
    %v1924 = vunpack.c.h.b16 %v474
    %v1925 = vunpack.c.l.b16 %v475
    %v1926 = vunpack.c.h.b16 %v475
    %v1927 = vunpack.c.l.b16 %v476
    %v1928 = vunpack.c.h.b16 %v476
    %v1929 = vunpack.c.l.b16 %v477
    %v1930 = vunpack.c.h.b16 %v477
    %v1931 = vunpack.c.l.b16 %v478
    %v1932 = vunpack.c.h.b16 %v478
    %v1933 = vunpack.c.l.b16 %v479
    %v1934 = vunpack.c.h.b16 %v479
    %v1935 = vunpack.c.l.b16 %v480
    %v1936 = vunpack.c.h.b16 %v480
    %v1937 = vunpack.c.l.b16 %v481
    %v1938 = vunpack.c.h.b16 %v481
    %v1939 = vunpack.c.l.b16 %v482
    %v1940 = vunpack.c.h.b16 %v482
    %v1941 = vunpack.c.l.b16 %v483
    %v1942 = vunpack.c.h.b16 %v483
    %v1943 = vunpack.c.l.b16 %v484
    %v1944 = vunpack.c.h.b16 %v484
    %v1945 = vunpack.c.l.b16 %v485
    %v1946 = vunpack.c.h.b16 %v485
    %v1947 = vunpack.c.l.b16 %v486
    %v1948 = vunpack.c.h.b16 %v486
    %v1949 = vunpack.c.l.b16 %v487
    %v1950 = vunpack.c.h.b16 %v487
    %v1951 = vunpack.c.l.b16 %v488
    %v1952 = vunpack.c.h.b16 %v488
    %v1953 = vunpack.c.l.b16 %v489
    %v1954 = vunpack.c.h.b16 %v489
    %v1955 = vunpack.c.l.b16 %v490
    %v1956 = vunpack.c.h.b16 %v490
    %v1957 = vunpack.c.l.b16 %v491
    %v1958 = vunpack.c.h.b16 %v491
    %v1959 = vunpack.c.l.b16 %v492
    %v1960 = vunpack.c.h.b16 %v492
    %v1961 = vunpack.c.l.b16 %v493
    %v1962 = vunpack.c.h.b16 %v493
    %v1963 = vunpack.c.l.b16 %v494
    %v1964 = vunpack.c.h.b16 %v494
    %v1965 = vunpack.c.l.b16 %v495
    %v1966 = vunpack.c.h.b16 %v495
    %v1967 = vunpack.c.l.b16 %v496
    %v1968 = vunpack.c.h.b16 %v496
    %v1969 = vunpack.c.l.b16 %v497
    %v1970 = vunpack.c.h.b16 %v497
    %v1971 = vunpack.c.l.b16 %v498
    %v1972 = vunpack.c.h.b16 %v498
    %v1973 = vunpack.c.l.b16 %v499
    %v1974 = vunpack.c.h.b16 %v499
    %v1975 = vunpack.c.l.b16 %v500
    %v1976 = vunpack.c.h.b16 %v500
    %v1977 = vunpack.c.l.b16 %v501
    %v1978 = vunpack.c.h.b16 %v501
    %v1979 = vunpack.c.l.b16 %v502
    %v1980 = vunpack.c.h.b16 %v502
    %v1981 = vunpack.c.l.b16 %v503
    %v1982 = vunpack.c.h.b16 %v503
    %v1983 = vunpack.c.l.b16 %v504
    %v1984 = vunpack.c.h.b16 %v504
    %v1985 = vunpack.c.l.b16 %v505
    %v1986 = vunpack.c.h.b16 %v505
    %v1987 = vunpack.c.l.b16 %v506
    %v1988 = vunpack.c.h.b16 %v506
    %v1989 = vunpack.c.l.b16 %v507
    %v1990 = vunpack.c.h.b16 %v507
    %v1991 = vunpack.c.l.b16 %v508
    %v1992 = vunpack.c.h.b16 %v508
    %v1993 = vunpack.c.l.b16 %v509
    %v1994 = vunpack.c.h.b16 %v509
    %v1995 = vunpack.c.l.b16 %v510
    %v1996 = vunpack.c.h.b16 %v510
    %v1997 = vunpack.c.l.b16 %v511
    %v1998 = vunpack.c.h.b16 %v511
    %v1999 = vunpack.c.l.b16 %v512
    %v2000 = vunpack.c.h.b16 %v512
    %v2001 = vunpack.c.l.b16 %v513
    %v2002 = vunpack.c.h.b16 %v513
    %v2003 = vunpack.c.l.b16 %v514
    %v2004 = vunpack.c.h.b16 %v514
    %v2005 = vunpack.c.l.b16 %v515
    %v2006 = vunpack.c.h.b16 %v515
    %v2007 = vunpack.c.l.b16 %v516
    %v2008 = vunpack.c.h.b16 %v516
    %v2009 = vunpack.c.l.b16 %v517
    %v2010 = vunpack.c.h.b16 %v517
    %v2011 = vunpack.c.l.b16 %v518
    %v2012 = vunpack.c.h.b16 %v518
    %v2013 = vunpack.c.l.b16 %v519
    %v2014 = vunpack.c.h.b16 %v519
    %v2015 = vunpack.c.l.b16 %v520
    %v2016 = vunpack.c.h.b16 %v520
    %v2017 = vunpack.c.l.b16 %v521
    %v2018 = vunpack.c.h.b16 %v521
    %v2019 = vunpack.c.l.b16 %v522
    %v2020 = vunpack.c.h.b16 %v522
    %v2021 = vunpack.c.l.b16 %v523
    %v2022 = vunpack.c.h.b16 %v523
    %v2023 = vunpack.c.l.b16 %v524
    %v2024 = vunpack.c.h.b16 %v524
    %v2025 = vunpack.c.l.b16 %v525
    %v2026 = vunpack.c.h.b16 %v525
    %v2027 = vunpack.c.l.b16 %v526
    %v2028 = vunpack.c.h.b16 %v526
    %v2029 = vunpack.c.l.b16 %v527
    %v2030 = vunpack.c.h.b16 %v527
    %v2031 = vunpack.c.l.b16 %v528
    %v2032 = vunpack.c.h.b16 %v528
    %v2033 = vunpack.c.l.b16 %v529
    %v2034 = vunpack.c.h.b16 %v529
    %v2035 = vunpack.c.l.b16 %v530
    %v2036 = vunpack.c.h.b16 %v530
    %v2037 = vunpack.c.l.b16 %v531
    %v2038 = vunpack.c.h.b16 %v531
    %v2039 = vunpack.c.l.b16 %v532
    %v2040 = vunpack.c.h.b16 %v532
    %v2041 = vunpack.c.l.b16 %v533
    %v2042 = vunpack.c.h.b16 %v533
    %v2043 = vunpack.c.l.b16 %v534
    %v2044 = vunpack.c.h.b16 %v534
    %v2045 = vunpack.c.l.b16 %v535
    %v2046 = vunpack.c.h.b16 %v535
    %v2047 = vunpack.c.l.b16 %v536
    %v2048 = vunpack.c.h.b16 %v536
    %v2049 = vunpack.c.l.b16 %v537
    %v2050 = vunpack.c.h.b16 %v537
    %v2051 = vunpack.c.l.b16 %v538
    %v2052 = vunpack.c.h.b16 %v538
    %v2053 = vunpack.c.l.b16 %v539
    %v2054 = vunpack.c.h.b16 %v539
    %v2055 = vunpack.c.l.b16 %v540
    %v2056 = vunpack.c.h.b16 %v540
    %v2057 = vunpack.c.l.b16 %v541
    %v2058 = vunpack.c.h.b16 %v541
    %v2059 = vunpack.c.l.b16 %v542
    %v2060 = vunpack.c.h.b16 %v542
    %v2061 = vunpack.c.l.b16 %v543
    %v2062 = vunpack.c.h.b16 %v543
    %v2063 = vunpack.c.l.b16 %v544
    %v2064 = vunpack.c.h.b16 %v544
    %v2065 = vunpack.c.l.b16 %v545
    %v2066 = vunpack.c.h.b16 %v545
    %v2067 = vunpack.c.l.b16 %v546
    %v2068 = vunpack.c.h.b16 %v546
    %v2069 = vunpack.c.l.b16 %v547
    %v2070 = vunpack.c.h.b16 %v547
    %v2071 = vunpack.c.l.b16 %v548
    %v2072 = vunpack.c.h.b16 %v548
    %v2073 = vunpack.c.l.b16 %v549
    %v2074 = vunpack.c.h.b16 %v549
    %v2075 = vunpack.c.l.b16 %v550
    %v2076 = vunpack.c.h.b16 %v550
    %v2077 = vunpack.c.l.b16 %v551
    %v2078 = vunpack.c.h.b16 %v551
    %v2079 = vunpack.c.l.b16 %v552
    %v2080 = vunpack.c.h.b16 %v552
    %v2081 = vunpack.c.l.b16 %v553
    %v2082 = vunpack.c.h.b16 %v553
    %v2083 = vunpack.c.l.b16 %v554
    %v2084 = vunpack.c.h.b16 %v554
    %v2085 = vunpack.c.l.b16 %v555
    %v2086 = vunpack.c.h.b16 %v555
    %v2087 = vunpack.c.l.b16 %v556
    %v2088 = vunpack.c.h.b16 %v556
    %v2089 = vunpack.c.l.b16 %v557
    %v2090 = vunpack.c.h.b16 %v557
    %v2091 = vunpack.c.l.b16 %v558
    %v2092 = vunpack.c.h.b16 %v558
    %v2093 = vunpack.c.l.b16 %v559
    %v2094 = vunpack.c.h.b16 %v559
    %v2095 = vunpack.c.l.b16 %v560
    %v2096 = vunpack.c.h.b16 %v560
    %v2097 = vunpack.c.l.b16 %v561
    %v2098 = vunpack.c.h.b16 %v561
    %v2099 = vunpack.c.l.b16 %v562
    %v2100 = vunpack.c.h.b16 %v562
    %v2101 = vunpack.c.l.b16 %v563
    %v2102 = vunpack.c.h.b16 %v563
    %v2103 = vunpack.c.l.b16 %v564
    %v2104 = vunpack.c.h.b16 %v564
    %v2105 = vunpack.c.l.b16 %v565
    %v2106 = vunpack.c.h.b16 %v565
    %v2107 = vunpack.c.l.b16 %v566
    %v2108 = vunpack.c.h.b16 %v566
    %v2109 = vunpack.c.l.b16 %v567
    %v2110 = vunpack.c.h.b16 %v567
    %v2111 = vunpack.c.l.b16 %v568
    %v2112 = vunpack.c.h.b16 %v568
    %v2113 = vunpack.c.l.b16 %v569
    %v2114 = vunpack.c.h.b16 %v569
    %v2115 = vunpack.c.l.b16 %v570
    %v2116 = vunpack.c.h.b16 %v570
    %v2117 = vunpack.c.l.b16 %v571
    %v2118 = vunpack.c.h.b16 %v571
    %v2119 = vunpack.c.l.b16 %v572
    %v2120 = vunpack.c.h.b16 %v572
    %v2121 = vunpack.c.l.b16 %v573
    %v2122 = vunpack.c.h.b16 %v573
    %v2123 = vunpack.c.l.b16 %v574
    %v2124 = vunpack.c.h.b16 %v574
    %v2125 = vunpack.c.l.b16 %v575
    %v2126 = vunpack.c.h.b16 %v575
    %v2127 = vunpack.c.l.b16 %v576
    %v2128 = vunpack.c.h.b16 %v576
    %v2129 = vunpack.c.l.b16 %v577
    %v2130 = vunpack.c.h.b16 %v577
    %v2131 = vunpack.c.l.b16 %v578
    %v2132 = vunpack.c.h.b16 %v578
    %v2133 = vunpack.c.l.b16 %v579
    %v2134 = vunpack.c.h.b16 %v579
    %v2135 = vunpack.c.l.b16 %v580
    %v2136 = vunpack.c.h.b16 %v580
    %v2137 = vunpack.c.l.b16 %v581
    %v2138 = vunpack.c.h.b16 %v581
    %v2139 = vunpack.c.l.b16 %v582
    %v2140 = vunpack.c.h.b16 %v582
    %v2141 = vunpack.c.l.b16 %v583
    %v2142 = vunpack.c.h.b16 %v583
    %v2143 = vunpack.c.l.b16 %v584
    %v2144 = vunpack.c.h.b16 %v584
    %v2145 = vunpack.c.l.b16 %v585
    %v2146 = vunpack.c.h.b16 %v585
    %v2147 = vunpack.c.l.b16 %v586
    %v2148 = vunpack.c.h.b16 %v586
    %v2149 = vunpack.c.l.b16 %v587
    %v2150 = vunpack.c.h.b16 %v587
    %v2151 = vunpack.c.l.b16 %v588
    %v2152 = vunpack.c.h.b16 %v588
    %v2153 = vunpack.c.l.b16 %v589
    %v2154 = vunpack.c.h.b16 %v589
    %v2155 = vunpack.c.l.b16 %v590
    %v2156 = vunpack.c.h.b16 %v590
    %v2157 = vunpack.c.l.b16 %v591
    %v2158 = vunpack.c.h.b16 %v591
    %v2159 = vunpack.c.l.b16 %v592
    %v2160 = vunpack.c.h.b16 %v592
    %v2161 = vunpack.c.l.b16 %v593
    %v2162 = vunpack.c.h.b16 %v593
    %v2163 = vunpack.c.l.b16 %v594
    %v2164 = vunpack.c.h.b16 %v594
    %v2165 = vunpack.c.l.b16 %v595
    %v2166 = vunpack.c.h.b16 %v595
    %v2167 = vunpack.c.l.b16 %v596
    %v2168 = vunpack.c.h.b16 %v596
    %v2169 = vunpack.c.l.b16 %v597
    %v2170 = vunpack.c.h.b16 %v597
    %v2171 = vunpack.c.l.b16 %v598
    %v2172 = vunpack.c.h.b16 %v598
    %v2173 = vunpack.c.l.b16 %v599
    %v2174 = vunpack.c.h.b16 %v599
    %v2175 = vunpack.c.l.b16 %v600
    %v2176 = vunpack.c.h.b16 %v600
    %v2177 = vunpack.c.l.b16 %v601
    %v2178 = vunpack.c.h.b16 %v601
    %v2179 = vunpack.c.l.b16 %v602
    %v2180 = vunpack.c.h.b16 %v602
    %v2181 = vunpack.c.l.b16 %v603
    %v2182 = vunpack.c.h.b16 %v603
    %v2183 = vunpack.c.l.b16 %v604
    %v2184 = vunpack.c.h.b16 %v604
    %v2185 = vunpack.c.l.b16 %v605
    %v2186 = vunpack.c.h.b16 %v605
    %v2187 = vunpack.c.l.b16 %v606
    %v2188 = vunpack.c.h.b16 %v606
    %v2189 = vunpack.c.l.b16 %v607
    %v2190 = vunpack.c.h.b16 %v607
    %v2191 = vunpack.c.l.b16 %v608
    %v2192 = vunpack.c.h.b16 %v608
    %v2193 = vunpack.c.l.b16 %v609
    %v2194 = vunpack.c.h.b16 %v609
    %v2195 = vunpack.c.l.b16 %v610
    %v2196 = vunpack.c.h.b16 %v610
    %v2197 = vunpack.c.l.b16 %v611
    %v2198 = vunpack.c.h.b16 %v611
    %v2199 = vunpack.c.l.b16 %v612
    %v2200 = vunpack.c.h.b16 %v612
    %v2201 = vunpack.c.l.b16 %v613
    %v2202 = vunpack.c.h.b16 %v613
    %v2203 = vunpack.c.l.b16 %v614
    %v2204 = vunpack.c.h.b16 %v614
    %v2205 = vunpack.c.l.b16 %v615
    %v2206 = vunpack.c.h.b16 %v615
    %v2207 = vunpack.c.l.b16 %v616
    %v2208 = vunpack.c.h.b16 %v616
    %v2209 = vunpack.c.l.b16 %v617
    %v2210 = vunpack.c.h.b16 %v617
    %v2211 = vunpack.c.l.b16 %v618
    %v2212 = vunpack.c.h.b16 %v618
    %v2213 = vunpack.c.l.b16 %v619
    %v2214 = vunpack.c.h.b16 %v619
    %v2215 = vunpack.c.l.b16 %v620
    %v2216 = vunpack.c.h.b16 %v620
    %v2217 = vunpack.c.l.b16 %v621
    %v2218 = vunpack.c.h.b16 %v621
    %v2219 = vunpack.c.l.b16 %v622
    %v2220 = vunpack.c.h.b16 %v622
    %v2221 = vunpack.c.l.b16 %v623
    %v2222 = vunpack.c.h.b16 %v623
    %v2223 = vunpack.c.l.b16 %v624
    %v2224 = vunpack.c.h.b16 %v624
    %v2225 = vunpack.c.l.b16 %v625
    %v2226 = vunpack.c.h.b16 %v625
    %v2227 = vunpack.c.l.b16 %v626
    %v2228 = vunpack.c.h.b16 %v626
    %v2229 = vunpack.c.l.b16 %v627
    %v2230 = vunpack.c.h.b16 %v627
    %v2231 = vunpack.c.l.b16 %v628
    %v2232 = vunpack.c.h.b16 %v628
    %v2233 = vunpack.c.l.b16 %v629
    %v2234 = vunpack.c.h.b16 %v629
    %v2235 = vunpack.c.l.b16 %v630
    %v2236 = vunpack.c.h.b16 %v630
    %v2237 = vpack.c.b16 %v1221, %v1213
    %v2238 = vpack.c.b16 %v1222, %v1214
    %v2239 = vpack.c.b16 %v1223, %v1215
    %v2240 = vpack.c.b16 %v1224, %v1216
    %v2241 = vpack.c.b16 %v1225, %v1217
    %v2242 = vpack.c.b16 %v1226, %v1218
    %v2243 = vpack.c.b16 %v1227, %v1219
    %v2244 = vpack.c.b16 %v1228, %v1220
    %v2245 = vpack.c.b16 %v1237, %v1229
    %v2246 = vpack.c.b16 %v1238, %v1230
    %v2247 = vpack.c.b16 %v1239, %v1231
    %v2248 = vpack.c.b16 %v1240, %v1232
    %v2249 = vpack.c.b16 %v1241, %v1233
    %v2250 = vpack.c.b16 %v1242, %v1234
    %v2251 = vpack.c.b16 %v1243, %v1235
    %v2252 = vpack.c.b16 %v1244, %v1236
    %v2253 = vpack.c.b16 %v1253, %v1245
    %v2254 = vpack.c.b16 %v1254, %v1246
    %v2255 = vpack.c.b16 %v1255, %v1247
    %v2256 = vpack.c.b16 %v1256, %v1248
    %v2257 = vpack.c.b16 %v1257, %v1249
    %v2258 = vpack.c.b16 %v1258, %v1250
    %v2259 = vpack.c.b16 %v1259, %v1251
    %v2260 = vpack.c.b16 %v1260, %v1252
    %v2261 = vpack.c.b16 %v1269, %v1261
    %v2262 = vpack.c.b16 %v1270, %v1262
    %v2263 = vpack.c.b16 %v1271, %v1263
    %v2264 = vpack.c.b16 %v1272, %v1264
    %v2265 = vpack.c.b16 %v1273, %v1265
    %v2266 = vpack.c.b16 %v1274, %v1266
    %v2267 = vpack.c.b16 %v1275, %v1267
    %v2268 = vpack.c.b16 %v1276, %v1268
    %v2269 = vpack.c.b16 %v1285, %v1277
    %v2270 = vpack.c.b16 %v1286, %v1278
    %v2271 = vpack.c.b16 %v1287, %v1279
    %v2272 = vpack.c.b16 %v1288, %v1280
    %v2273 = vpack.c.b16 %v1289, %v1281
    %v2274 = vpack.c.b16 %v1290, %v1282
    %v2275 = vpack.c.b16 %v1291, %v1283
    %v2276 = vpack.c.b16 %v1292, %v1284
    %v2277 = vpack.c.b16 %v1301, %v1293
    %v2278 = vpack.c.b16 %v1302, %v1294
    %v2279 = vpack.c.b16 %v1303, %v1295
    %v2280 = vpack.c.b16 %v1304, %v1296
    %v2281 = vpack.c.b16 %v1305, %v1297
    %v2282 = vpack.c.b16 %v1306, %v1298
    %v2283 = vpack.c.b16 %v1307, %v1299
    %v2284 = vpack.c.b16 %v1308, %v1300
    %v2285 = vpack.c.b16 %v1317, %v1309
    %v2286 = vpack.c.b16 %v1318, %v1310
    %v2287 = vpack.c.b16 %v1319, %v1311
    %v2288 = vpack.c.b16 %v1320, %v1312
    %v2289 = vpack.c.b16 %v1321, %v1313
    %v2290 = vpack.c.b16 %v1322, %v1314
    %v2291 = vpack.c.b16 %v1323, %v1315
    %v2292 = vpack.c.b16 %v1324, %v1316
    %v2293 = vpack.c.b16 %v1333, %v1325
    %v2294 = vpack.c.b16 %v1334, %v1326
    %v2295 = vpack.c.b16 %v1335, %v1327
    %v2296 = vpack.c.b16 %v1336, %v1328
    %v2297 = vpack.c.b16 %v1337, %v1329
    %v2298 = vpack.c.b16 %v1338, %v1330
    %v2299 = vpack.c.b16 %v1339, %v1331
    %v2300 = vpack.c.b16 %v1340, %v1332
    %v2301 = vpack.c.b16 %v1349, %v1341
    %v2302 = vpack.c.b16 %v1350, %v1342
    %v2303 = vpack.c.b16 %v1351, %v1343
    %v2304 = vpack.c.b16 %v1352, %v1344
    %v2305 = vpack.c.b16 %v1353, %v1345
    %v2306 = vpack.c.b16 %v1354, %v1346
    %v2307 = vpack.c.b16 %v1355, %v1347
    %v2308 = vpack.c.b16 %v1356, %v1348
    %v2309 = vpack.c.b16 %v1365, %v1357
    %v2310 = vpack.c.b16 %v1366, %v1358
    %v2311 = vpack.c.b16 %v1367, %v1359
    %v2312 = vpack.c.b16 %v1368, %v1360
    %v2313 = vpack.c.b16 %v1369, %v1361
    %v2314 = vpack.c.b16 %v1370, %v1362
    %v2315 = vpack.c.b16 %v1371, %v1363
    %v2316 = vpack.c.b16 %v1372, %v1364
    %v2317 = vpack.c.b16 %v1381, %v1373
    %v2318 = vpack.c.b16 %v1382, %v1374
    %v2319 = vpack.c.b16 %v1383, %v1375
    %v2320 = vpack.c.b16 %v1384, %v1376
    %v2321 = vpack.c.b16 %v1385, %v1377
    %v2322 = vpack.c.b16 %v1386, %v1378
    %v2323 = vpack.c.b16 %v1387, %v1379
    %v2324 = vpack.c.b16 %v1388, %v1380
    %v2325 = vpack.c.b16 %v1397, %v1389
    %v2326 = vpack.c.b16 %v1398, %v1390
    %v2327 = vpack.c.b16 %v1399, %v1391
    %v2328 = vpack.c.b16 %v1400, %v1392
    %v2329 = vpack.c.b16 %v1401, %v1393
    %v2330 = vpack.c.b16 %v1402, %v1394
    %v2331 = vpack.c.b16 %v1403, %v1395
    %v2332 = vpack.c.b16 %v1404, %v1396
    %v2333 = vpack.c.b16 %v1413, %v1405
    %v2334 = vpack.c.b16 %v1414, %v1406
    %v2335 = vpack.c.b16 %v1415, %v1407
    %v2336 = vpack.c.b16 %v1416, %v1408
    %v2337 = vpack.c.b16 %v1417, %v1409
    %v2338 = vpack.c.b16 %v1418, %v1410
    %v2339 = vpack.c.b16 %v1419, %v1411
    %v2340 = vpack.c.b16 %v1420, %v1412
    %v2341 = vpack.c.b16 %v1429, %v1421
    %v2342 = vpack.c.b16 %v1430, %v1422
    %v2343 = vpack.c.b16 %v1431, %v1423
    %v2344 = vpack.c.b16 %v1432, %v1424
    %v2345 = vpack.c.b16 %v1433, %v1425
    %v2346 = vpack.c.b16 %v1434, %v1426
    %v2347 = vpack.c.b16 %v1435, %v1427
    %v2348 = vpack.c.b16 %v1436, %v1428
    %v2349 = vpack.c.b16 %v1445, %v1437
    %v2350 = vpack.c.b16 %v1446, %v1438
    %v2351 = vpack.c.b16 %v1447, %v1439
    %v2352 = vpack.c.b16 %v1448, %v1440
    %v2353 = vpack.c.b16 %v1449, %v1441
    %v2354 = vpack.c.b16 %v1450, %v1442
    %v2355 = vpack.c.b16 %v1451, %v1443
    %v2356 = vpack.c.b16 %v1452, %v1444
    %v2357 = vpack.c.b16 %v1461, %v1453
    %v2358 = vpack.c.b16 %v1462, %v1454
    %v2359 = vpack.c.b16 %v1463, %v1455
    %v2360 = vpack.c.b16 %v1464, %v1456
    %v2361 = vpack.c.b16 %v1465, %v1457
    %v2362 = vpack.c.b16 %v1466, %v1458
    %v2363 = vpack.c.b16 %v1467, %v1459
    %v2364 = vpack.c.b16 %v1468, %v1460
    %v2365 = vpack.c.b16 %v1477, %v1469
    %v2366 = vpack.c.b16 %v1478, %v1470
    %v2367 = vpack.c.b16 %v1479, %v1471
    %v2368 = vpack.c.b16 %v1480, %v1472
    %v2369 = vpack.c.b16 %v1481, %v1473
    %v2370 = vpack.c.b16 %v1482, %v1474
    %v2371 = vpack.c.b16 %v1483, %v1475
    %v2372 = vpack.c.b16 %v1484, %v1476
    %v2373 = vpack.c.b16 %v1493, %v1485
    %v2374 = vpack.c.b16 %v1494, %v1486
    %v2375 = vpack.c.b16 %v1495, %v1487
    %v2376 = vpack.c.b16 %v1496, %v1488
    %v2377 = vpack.c.b16 %v1497, %v1489
    %v2378 = vpack.c.b16 %v1498, %v1490
    %v2379 = vpack.c.b16 %v1499, %v1491
    %v2380 = vpack.c.b16 %v1500, %v1492
    %v2381 = vpack.c.b16 %v1509, %v1501
    %v2382 = vpack.c.b16 %v1510, %v1502
    %v2383 = vpack.c.b16 %v1511, %v1503
    %v2384 = vpack.c.b16 %v1512, %v1504
    %v2385 = vpack.c.b16 %v1513, %v1505
    %v2386 = vpack.c.b16 %v1514, %v1506
    %v2387 = vpack.c.b16 %v1515, %v1507
    %v2388 = vpack.c.b16 %v1516, %v1508
    %v2389 = vpack.c.b16 %v1525, %v1517
    %v2390 = vpack.c.b16 %v1526, %v1518
    %v2391 = vpack.c.b16 %v1527, %v1519
    %v2392 = vpack.c.b16 %v1528, %v1520
    %v2393 = vpack.c.b16 %v1529, %v1521
    %v2394 = vpack.c.b16 %v1530, %v1522
    %v2395 = vpack.c.b16 %v1531, %v1523
    %v2396 = vpack.c.b16 %v1532, %v1524
    %v2397 = vpack.c.b16 %v1541, %v1533
    %v2398 = vpack.c.b16 %v1542, %v1534
    %v2399 = vpack.c.b16 %v1543, %v1535
    %v2400 = vpack.c.b16 %v1544, %v1536
    %v2401 = vpack.c.b16 %v1545, %v1537
    %v2402 = vpack.c.b16 %v1546, %v1538
    %v2403 = vpack.c.b16 %v1547, %v1539
    %v2404 = vpack.c.b16 %v1548, %v1540
    %v2405 = vpack.c.b16 %v1557, %v1549
    %v2406 = vpack.c.b16 %v1558, %v1550
    %v2407 = vpack.c.b16 %v1559, %v1551
    %v2408 = vpack.c.b16 %v1560, %v1552
    %v2409 = vpack.c.b16 %v1561, %v1553
    %v2410 = vpack.c.b16 %v1562, %v1554
    %v2411 = vpack.c.b16 %v1563, %v1555
    %v2412 = vpack.c.b16 %v1564, %v1556
    %v2413 = vpack.c.b16 %v1573, %v1565
    %v2414 = vpack.c.b16 %v1574, %v1566
    %v2415 = vpack.c.b16 %v1575, %v1567
    %v2416 = vpack.c.b16 %v1576, %v1568
    %v2417 = vpack.c.b16 %v1577, %v1569
    %v2418 = vpack.c.b16 %v1578, %v1570
    %v2419 = vpack.c.b16 %v1579, %v1571
    %v2420 = vpack.c.b16 %v1580, %v1572
    %v2421 = vpack.c.b16 %v1589, %v1581
    %v2422 = vpack.c.b16 %v1590, %v1582
    %v2423 = vpack.c.b16 %v1591, %v1583
    %v2424 = vpack.c.b16 %v1592, %v1584
    %v2425 = vpack.c.b16 %v1593, %v1585
    %v2426 = vpack.c.b16 %v1594, %v1586
    %v2427 = vpack.c.b16 %v1595, %v1587
    %v2428 = vpack.c.b16 %v1596, %v1588
    %v2429 = vpack.c.b16 %v1605, %v1597
    %v2430 = vpack.c.b16 %v1606, %v1598
    %v2431 = vpack.c.b16 %v1607, %v1599
    %v2432 = vpack.c.b16 %v1608, %v1600
    %v2433 = vpack.c.b16 %v1609, %v1601
    %v2434 = vpack.c.b16 %v1610, %v1602
    %v2435 = vpack.c.b16 %v1611, %v1603
    %v2436 = vpack.c.b16 %v1612, %v1604
    %v2437 = vpack.c.b16 %v1621, %v1613
    %v2438 = vpack.c.b16 %v1622, %v1614
    %v2439 = vpack.c.b16 %v1623, %v1615
    %v2440 = vpack.c.b16 %v1624, %v1616
    %v2441 = vpack.c.b16 %v1625, %v1617
    %v2442 = vpack.c.b16 %v1626, %v1618
    %v2443 = vpack.c.b16 %v1627, %v1619
    %v2444 = vpack.c.b16 %v1628, %v1620
    %v2445 = vpack.c.b16 %v1637, %v1629
    %v2446 = vpack.c.b16 %v1638, %v1630
    %v2447 = vpack.c.b16 %v1639, %v1631
    %v2448 = vpack.c.b16 %v1640, %v1632
    %v2449 = vpack.c.b16 %v1641, %v1633
    %v2450 = vpack.c.b16 %v1642, %v1634
    %v2451 = vpack.c.b16 %v1643, %v1635
    %v2452 = vpack.c.b16 %v1644, %v1636
    %v2453 = vpack.c.b16 %v1653, %v1645
    %v2454 = vpack.c.b16 %v1654, %v1646
    %v2455 = vpack.c.b16 %v1655, %v1647
    %v2456 = vpack.c.b16 %v1656, %v1648
    %v2457 = vpack.c.b16 %v1657, %v1649
    %v2458 = vpack.c.b16 %v1658, %v1650
    %v2459 = vpack.c.b16 %v1659, %v1651
    %v2460 = vpack.c.b16 %v1660, %v1652
    %v2461 = vpack.c.b16 %v1669, %v1661
    %v2462 = vpack.c.b16 %v1670, %v1662
    %v2463 = vpack.c.b16 %v1671, %v1663
    %v2464 = vpack.c.b16 %v1672, %v1664
    %v2465 = vpack.c.b16 %v1673, %v1665
    %v2466 = vpack.c.b16 %v1674, %v1666
    %v2467 = vpack.c.b16 %v1675, %v1667
    %v2468 = vpack.c.b16 %v1676, %v1668
    %v2469 = vpack.c.b16 %v1685, %v1677
    %v2470 = vpack.c.b16 %v1686, %v1678
    %v2471 = vpack.c.b16 %v1687, %v1679
    %v2472 = vpack.c.b16 %v1688, %v1680
    %v2473 = vpack.c.b16 %v1689, %v1681
    %v2474 = vpack.c.b16 %v1690, %v1682
    %v2475 = vpack.c.b16 %v1691, %v1683
    %v2476 = vpack.c.b16 %v1692, %v1684
    %v2477 = vpack.c.b16 %v1701, %v1693
    %v2478 = vpack.c.b16 %v1702, %v1694
    %v2479 = vpack.c.b16 %v1703, %v1695
    %v2480 = vpack.c.b16 %v1704, %v1696
    %v2481 = vpack.c.b16 %v1705, %v1697
    %v2482 = vpack.c.b16 %v1706, %v1698
    %v2483 = vpack.c.b16 %v1707, %v1699
    %v2484 = vpack.c.b16 %v1708, %v1700
    %v2485 = vpack.c.b16 %v1717, %v1709
    %v2486 = vpack.c.b16 %v1718, %v1710
    %v2487 = vpack.c.b16 %v1719, %v1711
    %v2488 = vpack.c.b16 %v1720, %v1712
    %v2489 = vpack.c.b16 %v1721, %v1713
    %v2490 = vpack.c.b16 %v1722, %v1714
    %v2491 = vpack.c.b16 %v1723, %v1715
    %v2492 = vpack.c.b16 %v1724, %v1716
    %v2493 = vpack.c.b16 %v1733, %v1725
    %v2494 = vpack.c.b16 %v1734, %v1726
    %v2495 = vpack.c.b16 %v1735, %v1727
    %v2496 = vpack.c.b16 %v1736, %v1728
    %v2497 = vpack.c.b16 %v1737, %v1729
    %v2498 = vpack.c.b16 %v1738, %v1730
    %v2499 = vpack.c.b16 %v1739, %v1731
    %v2500 = vpack.c.b16 %v1740, %v1732
    %v2501 = vpack.c.b16 %v1749, %v1741
    %v2502 = vpack.c.b16 %v1750, %v1742
    %v2503 = vpack.c.b16 %v1751, %v1743
    %v2504 = vpack.c.b16 %v1752, %v1744
    %v2505 = vpack.c.b16 %v1753, %v1745
    %v2506 = vpack.c.b16 %v1754, %v1746
    %v2507 = vpack.c.b16 %v1755, %v1747
    %v2508 = vpack.c.b16 %v1756, %v1748
    %v2509 = vpack.c.b16 %v1765, %v1757
    %v2510 = vpack.c.b16 %v1766, %v1758
    %v2511 = vpack.c.b16 %v1767, %v1759
    %v2512 = vpack.c.b16 %v1768, %v1760
    %v2513 = vpack.c.b16 %v1769, %v1761
    %v2514 = vpack.c.b16 %v1770, %v1762
    %v2515 = vpack.c.b16 %v1771, %v1763
    %v2516 = vpack.c.b16 %v1772, %v1764
    %v2517 = vpack.c.b16 %v1781, %v1773
    %v2518 = vpack.c.b16 %v1782, %v1774
    %v2519 = vpack.c.b16 %v1783, %v1775
    %v2520 = vpack.c.b16 %v1784, %v1776
    %v2521 = vpack.c.b16 %v1785, %v1777
    %v2522 = vpack.c.b16 %v1786, %v1778
    %v2523 = vpack.c.b16 %v1787, %v1779
    %v2524 = vpack.c.b16 %v1788, %v1780
    %v2525 = vpack.c.b16 %v1797, %v1789
    %v2526 = vpack.c.b16 %v1798, %v1790
    %v2527 = vpack.c.b16 %v1799, %v1791
    %v2528 = vpack.c.b16 %v1800, %v1792
    %v2529 = vpack.c.b16 %v1801, %v1793
    %v2530 = vpack.c.b16 %v1802, %v1794
    %v2531 = vpack.c.b16 %v1803, %v1795
    %v2532 = vpack.c.b16 %v1804, %v1796
    %v2533 = vpack.c.b16 %v1813, %v1805
    %v2534 = vpack.c.b16 %v1814, %v1806
    %v2535 = vpack.c.b16 %v1815, %v1807
    %v2536 = vpack.c.b16 %v1816, %v1808
    %v2537 = vpack.c.b16 %v1817, %v1809
    %v2538 = vpack.c.b16 %v1818, %v1810
    %v2539 = vpack.c.b16 %v1819, %v1811
    %v2540 = vpack.c.b16 %v1820, %v1812
    %v2541 = vpack.c.b16 %v1829, %v1821
    %v2542 = vpack.c.b16 %v1830, %v1822
    %v2543 = vpack.c.b16 %v1831, %v1823
    %v2544 = vpack.c.b16 %v1832, %v1824
    %v2545 = vpack.c.b16 %v1833, %v1825
    %v2546 = vpack.c.b16 %v1834, %v1826
    %v2547 = vpack.c.b16 %v1835, %v1827
    %v2548 = vpack.c.b16 %v1836, %v1828
    %v2549 = vpack.c.b16 %v1845, %v1837
    %v2550 = vpack.c.b16 %v1846, %v1838
    %v2551 = vpack.c.b16 %v1847, %v1839
    %v2552 = vpack.c.b16 %v1848, %v1840
    %v2553 = vpack.c.b16 %v1849, %v1841
    %v2554 = vpack.c.b16 %v1850, %v1842
    %v2555 = vpack.c.b16 %v1851, %v1843
    %v2556 = vpack.c.b16 %v1852, %v1844
    %v2557 = vpack.c.b16 %v1861, %v1853
    %v2558 = vpack.c.b16 %v1862, %v1854
    %v2559 = vpack.c.b16 %v1863, %v1855
    %v2560 = vpack.c.b16 %v1864, %v1856
    %v2561 = vpack.c.b16 %v1865, %v1857
    %v2562 = vpack.c.b16 %v1866, %v1858
    %v2563 = vpack.c.b16 %v1867, %v1859
    %v2564 = vpack.c.b16 %v1868, %v1860
    %v2565 = vpack.c.b16 %v1877, %v1869
    %v2566 = vpack.c.b16 %v1878, %v1870
    %v2567 = vpack.c.b16 %v1879, %v1871
    %v2568 = vpack.c.b16 %v1880, %v1872
    %v2569 = vpack.c.b16 %v1881, %v1873
    %v2570 = vpack.c.b16 %v1882, %v1874
    %v2571 = vpack.c.b16 %v1883, %v1875
    %v2572 = vpack.c.b16 %v1884, %v1876
    %v2573 = vpack.c.b16 %v1893, %v1885
    %v2574 = vpack.c.b16 %v1894, %v1886
    %v2575 = vpack.c.b16 %v1895, %v1887
    %v2576 = vpack.c.b16 %v1896, %v1888
    %v2577 = vpack.c.b16 %v1897, %v1889
    %v2578 = vpack.c.b16 %v1898, %v1890
    %v2579 = vpack.c.b16 %v1899, %v1891
    %v2580 = vpack.c.b16 %v1900, %v1892
    %v2581 = vpack.c.b16 %v1909, %v1901
    %v2582 = vpack.c.b16 %v1910, %v1902
    %v2583 = vpack.c.b16 %v1911, %v1903
    %v2584 = vpack.c.b16 %v1912, %v1904
    %v2585 = vpack.c.b16 %v1913, %v1905
    %v2586 = vpack.c.b16 %v1914, %v1906
    %v2587 = vpack.c.b16 %v1915, %v1907
    %v2588 = vpack.c.b16 %v1916, %v1908
    %v2589 = vpack.c.b16 %v1925, %v1917
    %v2590 = vpack.c.b16 %v1926, %v1918
    %v2591 = vpack.c.b16 %v1927, %v1919
    %v2592 = vpack.c.b16 %v1928, %v1920
    %v2593 = vpack.c.b16 %v1929, %v1921
    %v2594 = vpack.c.b16 %v1930, %v1922
    %v2595 = vpack.c.b16 %v1931, %v1923
    %v2596 = vpack.c.b16 %v1932, %v1924
    %v2597 = vpack.c.b16 %v1941, %v1933
    %v2598 = vpack.c.b16 %v1942, %v1934
    %v2599 = vpack.c.b16 %v1943, %v1935
    %v2600 = vpack.c.b16 %v1944, %v1936
    %v2601 = vpack.c.b16 %v1945, %v1937
    %v2602 = vpack.c.b16 %v1946, %v1938
    %v2603 = vpack.c.b16 %v1947, %v1939
    %v2604 = vpack.c.b16 %v1948, %v1940
    %v2605 = vpack.c.b16 %v1957, %v1949
    %v2606 = vpack.c.b16 %v1958, %v1950
    %v2607 = vpack.c.b16 %v1959, %v1951
    %v2608 = vpack.c.b16 %v1960, %v1952
    %v2609 = vpack.c.b16 %v1961, %v1953
    %v2610 = vpack.c.b16 %v1962, %v1954
    %v2611 = vpack.c.b16 %v1963, %v1955
    %v2612 = vpack.c.b16 %v1964, %v1956
    %v2613 = vpack.c.b16 %v1973, %v1965
    %v2614 = vpack.c.b16 %v1974, %v1966
    %v2615 = vpack.c.b16 %v1975, %v1967
    %v2616 = vpack.c.b16 %v1976, %v1968
    %v2617 = vpack.c.b16 %v1977, %v1969
    %v2618 = vpack.c.b16 %v1978, %v1970
    %v2619 = vpack.c.b16 %v1979, %v1971
    %v2620 = vpack.c.b16 %v1980, %v1972
    %v2621 = vpack.c.b16 %v1989, %v1981
    %v2622 = vpack.c.b16 %v1990, %v1982
    %v2623 = vpack.c.b16 %v1991, %v1983
    %v2624 = vpack.c.b16 %v1992, %v1984
    %v2625 = vpack.c.b16 %v1993, %v1985
    %v2626 = vpack.c.b16 %v1994, %v1986
    %v2627 = vpack.c.b16 %v1995, %v1987
    %v2628 = vpack.c.b16 %v1996, %v1988
    %v2629 = vpack.c.b16 %v2005, %v1997
    %v2630 = vpack.c.b16 %v2006, %v1998
    %v2631 = vpack.c.b16 %v2007, %v1999
    %v2632 = vpack.c.b16 %v2008, %v2000
    %v2633 = vpack.c.b16 %v2009, %v2001
    %v2634 = vpack.c.b16 %v2010, %v2002
    %v2635 = vpack.c.b16 %v2011, %v2003
    %v2636 = vpack.c.b16 %v2012, %v2004
    %v2637 = vpack.c.b16 %v2021, %v2013
    %v2638 = vpack.c.b16 %v2022, %v2014
    %v2639 = vpack.c.b16 %v2023, %v2015
    %v2640 = vpack.c.b16 %v2024, %v2016
    %v2641 = vpack.c.b16 %v2025, %v2017
    %v2642 = vpack.c.b16 %v2026, %v2018
    %v2643 = vpack.c.b16 %v2027, %v2019
    %v2644 = vpack.c.b16 %v2028, %v2020
    %v2645 = vpack.c.b16 %v2037, %v2029
    %v2646 = vpack.c.b16 %v2038, %v2030
    %v2647 = vpack.c.b16 %v2039, %v2031
    %v2648 = vpack.c.b16 %v2040, %v2032
    %v2649 = vpack.c.b16 %v2041, %v2033
    %v2650 = vpack.c.b16 %v2042, %v2034
    %v2651 = vpack.c.b16 %v2043, %v2035
    %v2652 = vpack.c.b16 %v2044, %v2036
    %v2653 = vpack.c.b16 %v2053, %v2045
    %v2654 = vpack.c.b16 %v2054, %v2046
    %v2655 = vpack.c.b16 %v2055, %v2047
    %v2656 = vpack.c.b16 %v2056, %v2048
    %v2657 = vpack.c.b16 %v2057, %v2049
    %v2658 = vpack.c.b16 %v2058, %v2050
    %v2659 = vpack.c.b16 %v2059, %v2051
    %v2660 = vpack.c.b16 %v2060, %v2052
    %v2661 = vpack.c.b16 %v2069, %v2061
    %v2662 = vpack.c.b16 %v2070, %v2062
    %v2663 = vpack.c.b16 %v2071, %v2063
    %v2664 = vpack.c.b16 %v2072, %v2064
    %v2665 = vpack.c.b16 %v2073, %v2065
    %v2666 = vpack.c.b16 %v2074, %v2066
    %v2667 = vpack.c.b16 %v2075, %v2067
    %v2668 = vpack.c.b16 %v2076, %v2068
    %v2669 = vpack.c.b16 %v2085, %v2077
    %v2670 = vpack.c.b16 %v2086, %v2078
    %v2671 = vpack.c.b16 %v2087, %v2079
    %v2672 = vpack.c.b16 %v2088, %v2080
    %v2673 = vpack.c.b16 %v2089, %v2081
    %v2674 = vpack.c.b16 %v2090, %v2082
    %v2675 = vpack.c.b16 %v2091, %v2083
    %v2676 = vpack.c.b16 %v2092, %v2084
    %v2677 = vpack.c.b16 %v2101, %v2093
    %v2678 = vpack.c.b16 %v2102, %v2094
    %v2679 = vpack.c.b16 %v2103, %v2095
    %v2680 = vpack.c.b16 %v2104, %v2096
    %v2681 = vpack.c.b16 %v2105, %v2097
    %v2682 = vpack.c.b16 %v2106, %v2098
    %v2683 = vpack.c.b16 %v2107, %v2099
    %v2684 = vpack.c.b16 %v2108, %v2100
    %v2685 = vpack.c.b16 %v2117, %v2109
    %v2686 = vpack.c.b16 %v2118, %v2110
    %v2687 = vpack.c.b16 %v2119, %v2111
    %v2688 = vpack.c.b16 %v2120, %v2112
    %v2689 = vpack.c.b16 %v2121, %v2113
    %v2690 = vpack.c.b16 %v2122, %v2114
    %v2691 = vpack.c.b16 %v2123, %v2115
    %v2692 = vpack.c.b16 %v2124, %v2116
    %v2693 = vpack.c.b16 %v2133, %v2125
    %v2694 = vpack.c.b16 %v2134, %v2126
    %v2695 = vpack.c.b16 %v2135, %v2127
    %v2696 = vpack.c.b16 %v2136, %v2128
    %v2697 = vpack.c.b16 %v2137, %v2129
    %v2698 = vpack.c.b16 %v2138, %v2130
    %v2699 = vpack.c.b16 %v2139, %v2131
    %v2700 = vpack.c.b16 %v2140, %v2132
    %v2701 = vpack.c.b16 %v2149, %v2141
    %v2702 = vpack.c.b16 %v2150, %v2142
    %v2703 = vpack.c.b16 %v2151, %v2143
    %v2704 = vpack.c.b16 %v2152, %v2144
    %v2705 = vpack.c.b16 %v2153, %v2145
    %v2706 = vpack.c.b16 %v2154, %v2146
    %v2707 = vpack.c.b16 %v2155, %v2147
    %v2708 = vpack.c.b16 %v2156, %v2148
    %v2709 = vpack.c.b16 %v2165, %v2157
    %v2710 = vpack.c.b16 %v2166, %v2158
    %v2711 = vpack.c.b16 %v2167, %v2159
    %v2712 = vpack.c.b16 %v2168, %v2160
    %v2713 = vpack.c.b16 %v2169, %v2161
    %v2714 = vpack.c.b16 %v2170, %v2162
    %v2715 = vpack.c.b16 %v2171, %v2163
    %v2716 = vpack.c.b16 %v2172, %v2164
    %v2717 = vpack.c.b16 %v2181, %v2173
    %v2718 = vpack.c.b16 %v2182, %v2174
    %v2719 = vpack.c.b16 %v2183, %v2175
    %v2720 = vpack.c.b16 %v2184, %v2176
    %v2721 = vpack.c.b16 %v2185, %v2177
    %v2722 = vpack.c.b16 %v2186, %v2178
    %v2723 = vpack.c.b16 %v2187, %v2179
    %v2724 = vpack.c.b16 %v2188, %v2180
    %v2725 = vpack.c.b16 %v2197, %v2189
    %v2726 = vpack.c.b16 %v2198, %v2190
    %v2727 = vpack.c.b16 %v2199, %v2191
    %v2728 = vpack.c.b16 %v2200, %v2192
    %v2729 = vpack.c.b16 %v2201, %v2193
    %v2730 = vpack.c.b16 %v2202, %v2194
    %v2731 = vpack.c.b16 %v2203, %v2195
    %v2732 = vpack.c.b16 %v2204, %v2196
    %v2733 = vpack.c.b16 %v2213, %v2205
    %v2734 = vpack.c.b16 %v2214, %v2206
    %v2735 = vpack.c.b16 %v2215, %v2207
    %v2736 = vpack.c.b16 %v2216, %v2208
    %v2737 = vpack.c.b16 %v2217, %v2209
    %v2738 = vpack.c.b16 %v2218, %v2210
    %v2739 = vpack.c.b16 %v2219, %v2211
    %v2740 = vpack.c.b16 %v2220, %v2212
    %v2741 = vpack.c.b16 %v2229, %v2221
    %v2742 = vpack.c.b16 %v2230, %v2222
    %v2743 = vpack.c.b16 %v2231, %v2223
    %v2744 = vpack.c.b16 %v2232, %v2224
    %v2745 = vpack.c.b16 %v2233, %v2225
    %v2746 = vpack.c.b16 %v2234, %v2226
    %v2747 = vpack.c.b16 %v2235, %v2227
    %v2748 = vpack.c.b16 %v2236, %v2228
    %3261 = vmatprep.subr.bf16.mxu0 %v2238
    %3262 = vmatpush1.bf16.msra.mxu0 %v2237
    %3263 = vmatprep.subr.bf16.mxu0 %v2246
    %3264 = vmatpush1.bf16.msra.mxu0 %v2245
    %3265 = vmatprep.subr.bf16.mxu0 %v2254
    %3266 = vmatpush1.bf16.msra.mxu0 %v2253
    %3267 = vmatprep.subr.bf16.mxu0 %v2262
    %3268 = vmatpush1.bf16.msra.mxu0 %v2261
    %3269 = vmatprep.subr.bf16.mxu0 %v2270
    %3270 = vmatpush1.bf16.msra.mxu0 %v2269
    %3271 = vmatprep.subr.bf16.mxu0 %v2278
    %3272 = vmatpush1.bf16.msra.mxu0 %v2277
    %3273 = vmatprep.subr.bf16.mxu0 %v2286
    %3274 = vmatpush1.bf16.msra.mxu0 %v2285
    %3275 = vmatprep.subr.bf16.mxu0 %v2294
    %3276 = vmatpush1.bf16.msra.mxu0 %v2293
    %3277 = vmatprep.subr.bf16.mxu0 %v2302
    %3278 = vmatpush1.bf16.msra.mxu0 %v2301
    %3279 = vmatprep.subr.bf16.mxu0 %v2310
    %3280 = vmatpush1.bf16.msra.mxu0 %v2309
    %3281 = vmatprep.subr.bf16.mxu0 %v2318
    %3282 = vmatpush1.bf16.msra.mxu0 %v2317
    %3283 = vmatprep.subr.bf16.mxu0 %v2326
    %3284 = vmatpush1.bf16.msra.mxu0 %v2325
    %3285 = vmatprep.subr.bf16.mxu0 %v2334
    %3286 = vmatpush1.bf16.msra.mxu0 %v2333
    %3287 = vmatprep.subr.bf16.mxu0 %v2342
    %3288 = vmatpush1.bf16.msra.mxu0 %v2341
    %3289 = vmatprep.subr.bf16.mxu0 %v2350
    %3290 = vmatpush1.bf16.msra.mxu0 %v2349
    %3291 = vmatprep.subr.bf16.mxu0 %v2358
    %3292 = vmatpush1.bf16.msra.mxu0 %v2357
    %3293 = vmatprep.mubr.bf16.mxu0 %v686
    %3294 = vmatmul.mubr.bf16.gmra.mrb[0].mxu0 %v685
    %v3295 = vpop.f32.mrb[0].mxu0
    %v3296 = vadd.f32 %v636, %v3295
    %v3297 = vpop.f32.mrb[0].mxu0
    %v3298 = vadd.f32 %v640, %v3297
    %v3299 = vpop.f32.mrb[0].mxu0
    %v3300 = vpop.f32.mrb[0].mxu0
    %3301 = vdwg.mxu0
    %3302 = vmatprep.subr.bf16.mxu0 %v2366
    %3303 = vmatpush1.bf16.msra.mxu0 %v2365
    %3304 = vmatprep.subr.bf16.mxu0 %v2374
    %3305 = vmatpush1.bf16.msra.mxu0 %v2373
    %3306 = vmatprep.subr.bf16.mxu0 %v2382
    %3307 = vmatpush1.bf16.msra.mxu0 %v2381
    %3308 = vmatprep.subr.bf16.mxu0 %v2390
    %3309 = vmatpush1.bf16.msra.mxu0 %v2389
    %3310 = vmatprep.subr.bf16.mxu0 %v2398
    %3311 = vmatpush1.bf16.msra.mxu0 %v2397
    %3312 = vmatprep.subr.bf16.mxu0 %v2406
    %3313 = vmatpush1.bf16.msra.mxu0 %v2405
    %3314 = vmatprep.subr.bf16.mxu0 %v2414
    %3315 = vmatpush1.bf16.msra.mxu0 %v2413
    %3316 = vmatprep.subr.bf16.mxu0 %v2422
    %3317 = vmatpush1.bf16.msra.mxu0 %v2421
    %3318 = vmatprep.subr.bf16.mxu0 %v2430
    %3319 = vmatpush1.bf16.msra.mxu0 %v2429
    %3320 = vmatprep.subr.bf16.mxu0 %v2438
    %3321 = vmatpush1.bf16.msra.mxu0 %v2437
    %3322 = vmatprep.subr.bf16.mxu0 %v2446
    %3323 = vmatpush1.bf16.msra.mxu0 %v2445
    %3324 = vmatprep.subr.bf16.mxu0 %v2454
    %3325 = vmatpush1.bf16.msra.mxu0 %v2453
    %3326 = vmatprep.subr.bf16.mxu0 %v2462
    %3327 = vmatpush1.bf16.msra.mxu0 %v2461
    %3328 = vmatprep.subr.bf16.mxu0 %v2470
    %3329 = vmatpush1.bf16.msra.mxu0 %v2469
    %3330 = vmatprep.subr.bf16.mxu0 %v2478
    %3331 = vmatpush1.bf16.msra.mxu0 %v2477
    %3332 = vmatprep.subr.bf16.mxu0 %v2486
    %3333 = vmatpush1.bf16.msra.mxu0 %v2485
    %3334 = vmatprep.mubr.bf16.mxu0 %v688
    %3335 = vmatmul.mubr.bf16.gmra.mrb[0].mxu0 %v687
    %v3336 = vpop.f32.mrb[0].mxu0
    %v3337 = vadd.f32 %v3296, %v3336
    %v3338 = vpop.f32.mrb[0].mxu0
    %v3339 = vadd.f32 %v3298, %v3338
    %v3340 = vpop.f32.mrb[0].mxu0
    %v3341 = vpop.f32.mrb[0].mxu0
    %3342 = vdwg.mxu0
    %3343 = vmatprep.subr.bf16.mxu0 %v2494
    %3344 = vmatpush1.bf16.msra.mxu0 %v2493
    %3345 = vmatprep.subr.bf16.mxu0 %v2502
    %3346 = vmatpush1.bf16.msra.mxu0 %v2501
    %3347 = vmatprep.subr.bf16.mxu0 %v2510
    %3348 = vmatpush1.bf16.msra.mxu0 %v2509
    %3349 = vmatprep.subr.bf16.mxu0 %v2518
    %3350 = vmatpush1.bf16.msra.mxu0 %v2517
    %3351 = vmatprep.subr.bf16.mxu0 %v2526
    %3352 = vmatpush1.bf16.msra.mxu0 %v2525
    %3353 = vmatprep.subr.bf16.mxu0 %v2534
    %3354 = vmatpush1.bf16.msra.mxu0 %v2533
    %3355 = vmatprep.subr.bf16.mxu0 %v2542
    %3356 = vmatpush1.bf16.msra.mxu0 %v2541
    %3357 = vmatprep.subr.bf16.mxu0 %v2550
    %3358 = vmatpush1.bf16.msra.mxu0 %v2549
    %3359 = vmatprep.subr.bf16.mxu0 %v2558
    %3360 = vmatpush1.bf16.msra.mxu0 %v2557
    %3361 = vmatprep.subr.bf16.mxu0 %v2566
    %3362 = vmatpush1.bf16.msra.mxu0 %v2565
    %3363 = vmatprep.subr.bf16.mxu0 %v2574
    %3364 = vmatpush1.bf16.msra.mxu0 %v2573
    %3365 = vmatprep.subr.bf16.mxu0 %v2582
    %3366 = vmatpush1.bf16.msra.mxu0 %v2581
    %3367 = vmatprep.subr.bf16.mxu0 %v2590
    %3368 = vmatpush1.bf16.msra.mxu0 %v2589
    %3369 = vmatprep.subr.bf16.mxu0 %v2598
    %3370 = vmatpush1.bf16.msra.mxu0 %v2597
    %3371 = vmatprep.subr.bf16.mxu0 %v2606
    %3372 = vmatpush1.bf16.msra.mxu0 %v2605
    %3373 = vmatprep.subr.bf16.mxu0 %v2614
    %3374 = vmatpush1.bf16.msra.mxu0 %v2613
    %3375 = vmatprep.mubr.bf16.mxu0 %v690
    %3376 = vmatmul.mubr.bf16.gmra.mrb[0].mxu0 %v689
    %v3377 = vpop.f32.mrb[0].mxu0
    %v3378 = vadd.f32 %v3337, %v3377
    %v3379 = vpop.f32.mrb[0].mxu0
    %v3380 = vadd.f32 %v3339, %v3379
    %v3381 = vpop.f32.mrb[0].mxu0
    %v3382 = vpop.f32.mrb[0].mxu0
    %3383 = vdwg.mxu0
    %3384 = vmatprep.subr.bf16.mxu0 %v2622
    %3385 = vmatpush1.bf16.msra.mxu0 %v2621
    %3386 = vmatprep.subr.bf16.mxu0 %v2630
    %3387 = vmatpush1.bf16.msra.mxu0 %v2629
    %3388 = vmatprep.subr.bf16.mxu0 %v2638
    %3389 = vmatpush1.bf16.msra.mxu0 %v2637
    %3390 = vmatprep.subr.bf16.mxu0 %v2646
    %3391 = vmatpush1.bf16.msra.mxu0 %v2645
    %3392 = vmatprep.subr.bf16.mxu0 %v2654
    %3393 = vmatpush1.bf16.msra.mxu0 %v2653
    %3394 = vmatprep.subr.bf16.mxu0 %v2662
    %3395 = vmatpush1.bf16.msra.mxu0 %v2661
    %3396 = vmatprep.subr.bf16.mxu0 %v2670
    %3397 = vmatpush1.bf16.msra.mxu0 %v2669
    %3398 = vmatprep.subr.bf16.mxu0 %v2678
    %3399 = vmatpush1.bf16.msra.mxu0 %v2677
    %3400 = vmatprep.subr.bf16.mxu0 %v2686
    %3401 = vmatpush1.bf16.msra.mxu0 %v2685
    %3402 = vmatprep.subr.bf16.mxu0 %v2694
    %3403 = vmatpush1.bf16.msra.mxu0 %v2693
    %3404 = vmatprep.subr.bf16.mxu0 %v2702
    %3405 = vmatpush1.bf16.msra.mxu0 %v2701
    %3406 = vmatprep.subr.bf16.mxu0 %v2710
    %3407 = vmatpush1.bf16.msra.mxu0 %v2709
    %3408 = vmatprep.subr.bf16.mxu0 %v2718
    %3409 = vmatpush1.bf16.msra.mxu0 %v2717
    %3410 = vmatprep.subr.bf16.mxu0 %v2726
    %3411 = vmatpush1.bf16.msra.mxu0 %v2725
    %3412 = vmatprep.subr.bf16.mxu0 %v2734
    %3413 = vmatpush1.bf16.msra.mxu0 %v2733
    %3414 = vmatprep.subr.bf16.mxu0 %v2742
    %3415 = vmatpush1.bf16.msra.mxu0 %v2741
    %3416 = vmatprep.mubr.bf16.mxu0 %v692
    %3417 = vmatmul.mubr.bf16.gmra.mrb[0].mxu0 %v691
    %v3418 = vpop.f32.mrb[0].mxu0
    %v3419 = vadd.f32 %v3378, %v3418
    %v3420 = vpop.f32.mrb[0].mxu0
    %v3421 = vadd.f32 %v3380, %v3420
    %v3422 = vpop.f32.mrb[0].mxu0
    %v3423 = vpop.f32.mrb[0].mxu0
    %3424 = vdwg.mxu0
    %3425 = vmatprep.subr.bf16.mxu0 %v2240
    %3426 = vmatpush1.bf16.msra.mxu0 %v2239
    %3427 = vmatprep.subr.bf16.mxu0 %v2248
    %3428 = vmatpush1.bf16.msra.mxu0 %v2247
    %3429 = vmatprep.subr.bf16.mxu0 %v2256
    %3430 = vmatpush1.bf16.msra.mxu0 %v2255
    %3431 = vmatprep.subr.bf16.mxu0 %v2264
    %3432 = vmatpush1.bf16.msra.mxu0 %v2263
    %3433 = vmatprep.subr.bf16.mxu0 %v2272
    %3434 = vmatpush1.bf16.msra.mxu0 %v2271
    %3435 = vmatprep.subr.bf16.mxu0 %v2280
    %3436 = vmatpush1.bf16.msra.mxu0 %v2279
    %3437 = vmatprep.subr.bf16.mxu0 %v2288
    %3438 = vmatpush1.bf16.msra.mxu0 %v2287
    %3439 = vmatprep.subr.bf16.mxu0 %v2296
    %3440 = vmatpush1.bf16.msra.mxu0 %v2295
    %3441 = vmatprep.subr.bf16.mxu0 %v2304
    %3442 = vmatpush1.bf16.msra.mxu0 %v2303
    %3443 = vmatprep.subr.bf16.mxu0 %v2312
    %3444 = vmatpush1.bf16.msra.mxu0 %v2311
    %3445 = vmatprep.subr.bf16.mxu0 %v2320
    %3446 = vmatpush1.bf16.msra.mxu0 %v2319
    %3447 = vmatprep.subr.bf16.mxu0 %v2328
    %3448 = vmatpush1.bf16.msra.mxu0 %v2327
    %3449 = vmatprep.subr.bf16.mxu0 %v2336
    %3450 = vmatpush1.bf16.msra.mxu0 %v2335
    %3451 = vmatprep.subr.bf16.mxu0 %v2344
    %3452 = vmatpush1.bf16.msra.mxu0 %v2343
    %3453 = vmatprep.subr.bf16.mxu0 %v2352
    %3454 = vmatpush1.bf16.msra.mxu0 %v2351
    %3455 = vmatprep.subr.bf16.mxu0 %v2360
    %3456 = vmatpush1.bf16.msra.mxu0 %v2359
    %3457 = vmatprep.mubr.bf16.mxu0 %v686
    %3458 = vmatmul.mubr.bf16.gmra.mrb[0].mxu0 %v685
    %v3459 = vpop.f32.mrb[0].mxu0
    %v3460 = vadd.f32 %v644, %v3459
    %v3461 = vpop.f32.mrb[0].mxu0
    %v3462 = vadd.f32 %v648, %v3461
    %v3463 = vpop.f32.mrb[0].mxu0
    %v3464 = vpop.f32.mrb[0].mxu0
    %3465 = vdwg.mxu0
    %3466 = vmatprep.subr.bf16.mxu0 %v2368
    %3467 = vmatpush1.bf16.msra.mxu0 %v2367
    %3468 = vmatprep.subr.bf16.mxu0 %v2376
    %3469 = vmatpush1.bf16.msra.mxu0 %v2375
    %3470 = vmatprep.subr.bf16.mxu0 %v2384
    %3471 = vmatpush1.bf16.msra.mxu0 %v2383
    %3472 = vmatprep.subr.bf16.mxu0 %v2392
    %3473 = vmatpush1.bf16.msra.mxu0 %v2391
    %3474 = vmatprep.subr.bf16.mxu0 %v2400
    %3475 = vmatpush1.bf16.msra.mxu0 %v2399
    %3476 = vmatprep.subr.bf16.mxu0 %v2408
    %3477 = vmatpush1.bf16.msra.mxu0 %v2407
    %3478 = vmatprep.subr.bf16.mxu0 %v2416
    %3479 = vmatpush1.bf16.msra.mxu0 %v2415
    %3480 = vmatprep.subr.bf16.mxu0 %v2424
    %3481 = vmatpush1.bf16.msra.mxu0 %v2423
    %3482 = vmatprep.subr.bf16.mxu0 %v2432
    %3483 = vmatpush1.bf16.msra.mxu0 %v2431
    %3484 = vmatprep.subr.bf16.mxu0 %v2440
    %3485 = vmatpush1.bf16.msra.mxu0 %v2439
    %3486 = vmatprep.subr.bf16.mxu0 %v2448
    %3487 = vmatpush1.bf16.msra.mxu0 %v2447
    %3488 = vmatprep.subr.bf16.mxu0 %v2456
    %3489 = vmatpush1.bf16.msra.mxu0 %v2455
    %3490 = vmatprep.subr.bf16.mxu0 %v2464
    %3491 = vmatpush1.bf16.msra.mxu0 %v2463
    %3492 = vmatprep.subr.bf16.mxu0 %v2472
    %3493 = vmatpush1.bf16.msra.mxu0 %v2471
    %3494 = vmatprep.subr.bf16.mxu0 %v2480
    %3495 = vmatpush1.bf16.msra.mxu0 %v2479
    %3496 = vmatprep.subr.bf16.mxu0 %v2488
    %3497 = vmatpush1.bf16.msra.mxu0 %v2487
    %3498 = vmatprep.mubr.bf16.mxu0 %v688
    %3499 = vmatmul.mubr.bf16.gmra.mrb[0].mxu0 %v687
    %v3500 = vpop.f32.mrb[0].mxu0
    %v3501 = vadd.f32 %v3460, %v3500
    %v3502 = vpop.f32.mrb[0].mxu0
    %v3503 = vadd.f32 %v3462, %v3502
    %v3504 = vpop.f32.mrb[0].mxu0
    %v3505 = vpop.f32.mrb[0].mxu0
    %3506 = vdwg.mxu0
    %3507 = vmatprep.subr.bf16.mxu0 %v2496
    %3508 = vmatpush1.bf16.msra.mxu0 %v2495
    %3509 = vmatprep.subr.bf16.mxu0 %v2504
    %3510 = vmatpush1.bf16.msra.mxu0 %v2503
    %3511 = vmatprep.subr.bf16.mxu0 %v2512
    %3512 = vmatpush1.bf16.msra.mxu0 %v2511
    %3513 = vmatprep.subr.bf16.mxu0 %v2520
    %3514 = vmatpush1.bf16.msra.mxu0 %v2519
    %3515 = vmatprep.subr.bf16.mxu0 %v2528
    %3516 = vmatpush1.bf16.msra.mxu0 %v2527
    %3517 = vmatprep.subr.bf16.mxu0 %v2536
    %3518 = vmatpush1.bf16.msra.mxu0 %v2535
    %3519 = vmatprep.subr.bf16.mxu0 %v2544
    %3520 = vmatpush1.bf16.msra.mxu0 %v2543
    %3521 = vmatprep.subr.bf16.mxu0 %v2552
    %3522 = vmatpush1.bf16.msra.mxu0 %v2551
    %3523 = vmatprep.subr.bf16.mxu0 %v2560
    %3524 = vmatpush1.bf16.msra.mxu0 %v2559
    %3525 = vmatprep.subr.bf16.mxu0 %v2568
    %3526 = vmatpush1.bf16.msra.mxu0 %v2567
    %3527 = vmatprep.subr.bf16.mxu0 %v2576
    %3528 = vmatpush1.bf16.msra.mxu0 %v2575
    %3529 = vmatprep.subr.bf16.mxu0 %v2584
    %3530 = vmatpush1.bf16.msra.mxu0 %v2583
    %3531 = vmatprep.subr.bf16.mxu0 %v2592
    %3532 = vmatpush1.bf16.msra.mxu0 %v2591
    %3533 = vmatprep.subr.bf16.mxu0 %v2600
    %3534 = vmatpush1.bf16.msra.mxu0 %v2599
    %3535 = vmatprep.subr.bf16.mxu0 %v2608
    %3536 = vmatpush1.bf16.msra.mxu0 %v2607
    %3537 = vmatprep.subr.bf16.mxu0 %v2616
    %3538 = vmatpush1.bf16.msra.mxu0 %v2615
    %3539 = vmatprep.mubr.bf16.mxu0 %v690
    %3540 = vmatmul.mubr.bf16.gmra.mrb[0].mxu0 %v689
    %v3541 = vpop.f32.mrb[0].mxu0
    %v3542 = vadd.f32 %v3501, %v3541
    %v3543 = vpop.f32.mrb[0].mxu0
    %v3544 = vadd.f32 %v3503, %v3543
    %v3545 = vpop.f32.mrb[0].mxu0
    %v3546 = vpop.f32.mrb[0].mxu0
    %3547 = vdwg.mxu0
    %3548 = vmatprep.subr.bf16.mxu0 %v2624
    %3549 = vmatpush1.bf16.msra.mxu0 %v2623
    %3550 = vmatprep.subr.bf16.mxu0 %v2632
    %3551 = vmatpush1.bf16.msra.mxu0 %v2631
    %3552 = vmatprep.subr.bf16.mxu0 %v2640
    %3553 = vmatpush1.bf16.msra.mxu0 %v2639
    %3554 = vmatprep.subr.bf16.mxu0 %v2648
    %3555 = vmatpush1.bf16.msra.mxu0 %v2647
    %3556 = vmatprep.subr.bf16.mxu0 %v2656
    %3557 = vmatpush1.bf16.msra.mxu0 %v2655
    %3558 = vmatprep.subr.bf16.mxu0 %v2664
    %3559 = vmatpush1.bf16.msra.mxu0 %v2663
    %3560 = vmatprep.subr.bf16.mxu0 %v2672
    %3561 = vmatpush1.bf16.msra.mxu0 %v2671
    %3562 = vmatprep.subr.bf16.mxu0 %v2680
    %3563 = vmatpush1.bf16.msra.mxu0 %v2679
    %3564 = vmatprep.subr.bf16.mxu0 %v2688
    %3565 = vmatpush1.bf16.msra.mxu0 %v2687
    %3566 = vmatprep.subr.bf16.mxu0 %v2696
    %3567 = vmatpush1.bf16.msra.mxu0 %v2695
    %3568 = vmatprep.subr.bf16.mxu0 %v2704
    %3569 = vmatpush1.bf16.msra.mxu0 %v2703
    %3570 = vmatprep.subr.bf16.mxu0 %v2712
    %3571 = vmatpush1.bf16.msra.mxu0 %v2711
    %3572 = vmatprep.subr.bf16.mxu0 %v2720
    %3573 = vmatpush1.bf16.msra.mxu0 %v2719
    %3574 = vmatprep.subr.bf16.mxu0 %v2728
    %3575 = vmatpush1.bf16.msra.mxu0 %v2727
    %3576 = vmatprep.subr.bf16.mxu0 %v2736
    %3577 = vmatpush1.bf16.msra.mxu0 %v2735
    %3578 = vmatprep.subr.bf16.mxu0 %v2744
    %3579 = vmatpush1.bf16.msra.mxu0 %v2743
    %3580 = vmatprep.mubr.bf16.mxu0 %v692
    %3581 = vmatmul.mubr.bf16.gmra.mrb[0].mxu0 %v691
    %v3582 = vpop.f32.mrb[0].mxu0
    %v3583 = vadd.f32 %v3542, %v3582
    %v3584 = vpop.f32.mrb[0].mxu0
    %v3585 = vadd.f32 %v3544, %v3584
    %v3586 = vpop.f32.mrb[0].mxu0
    %v3587 = vpop.f32.mrb[0].mxu0
    %3588 = vdwg.mxu0
    %3589 = vmatprep.subr.bf16.mxu0 %v2242
    %3590 = vmatpush1.bf16.msra.mxu0 %v2241
    %3591 = vmatprep.subr.bf16.mxu0 %v2250
    %3592 = vmatpush1.bf16.msra.mxu0 %v2249
    %3593 = vmatprep.subr.bf16.mxu0 %v2258
    %3594 = vmatpush1.bf16.msra.mxu0 %v2257
    %3595 = vmatprep.subr.bf16.mxu0 %v2266
    %3596 = vmatpush1.bf16.msra.mxu0 %v2265
    %3597 = vmatprep.subr.bf16.mxu0 %v2274
    %3598 = vmatpush1.bf16.msra.mxu0 %v2273
    %3599 = vmatprep.subr.bf16.mxu0 %v2282
    %3600 = vmatpush1.bf16.msra.mxu0 %v2281
    %3601 = vmatprep.subr.bf16.mxu0 %v2290
    %3602 = vmatpush1.bf16.msra.mxu0 %v2289
    %3603 = vmatprep.subr.bf16.mxu0 %v2298
    %3604 = vmatpush1.bf16.msra.mxu0 %v2297
    %3605 = vmatprep.subr.bf16.mxu0 %v2306
    %3606 = vmatpush1.bf16.msra.mxu0 %v2305
    %3607 = vmatprep.subr.bf16.mxu0 %v2314
    %3608 = vmatpush1.bf16.msra.mxu0 %v2313
    %3609 = vmatprep.subr.bf16.mxu0 %v2322
    %3610 = vmatpush1.bf16.msra.mxu0 %v2321
    %3611 = vmatprep.subr.bf16.mxu0 %v2330
    %3612 = vmatpush1.bf16.msra.mxu0 %v2329
    %3613 = vmatprep.subr.bf16.mxu0 %v2338
    %3614 = vmatpush1.bf16.msra.mxu0 %v2337
    %3615 = vmatprep.subr.bf16.mxu0 %v2346
    %3616 = vmatpush1.bf16.msra.mxu0 %v2345
    %3617 = vmatprep.subr.bf16.mxu0 %v2354
    %3618 = vmatpush1.bf16.msra.mxu0 %v2353
    %3619 = vmatprep.subr.bf16.mxu0 %v2362
    %3620 = vmatpush1.bf16.msra.mxu0 %v2361
    %3621 = vmatprep.mubr.bf16.mxu0 %v686
    %3622 = vmatmul.mubr.bf16.gmra.mrb[0].mxu0 %v685
    %v3623 = vpop.f32.mrb[0].mxu0
    %v3624 = vadd.f32 %v652, %v3623
    %v3625 = vpop.f32.mrb[0].mxu0
    %v3626 = vadd.f32 %v656, %v3625
    %v3627 = vpop.f32.mrb[0].mxu0
    %v3628 = vpop.f32.mrb[0].mxu0
    %3629 = vdwg.mxu0
    %3630 = vmatprep.subr.bf16.mxu0 %v2370
    %3631 = vmatpush1.bf16.msra.mxu0 %v2369
    %3632 = vmatprep.subr.bf16.mxu0 %v2378
    %3633 = vmatpush1.bf16.msra.mxu0 %v2377
    %3634 = vmatprep.subr.bf16.mxu0 %v2386
    %3635 = vmatpush1.bf16.msra.mxu0 %v2385
    %3636 = vmatprep.subr.bf16.mxu0 %v2394
    %3637 = vmatpush1.bf16.msra.mxu0 %v2393
    %3638 = vmatprep.subr.bf16.mxu0 %v2402
    %3639 = vmatpush1.bf16.msra.mxu0 %v2401
    %3640 = vmatprep.subr.bf16.mxu0 %v2410
    %3641 = vmatpush1.bf16.msra.mxu0 %v2409
    %3642 = vmatprep.subr.bf16.mxu0 %v2418
    %3643 = vmatpush1.bf16.msra.mxu0 %v2417
    %3644 = vmatprep.subr.bf16.mxu0 %v2426
    %3645 = vmatpush1.bf16.msra.mxu0 %v2425
    %3646 = vmatprep.subr.bf16.mxu0 %v2434
    %3647 = vmatpush1.bf16.msra.mxu0 %v2433
    %3648 = vmatprep.subr.bf16.mxu0 %v2442
    %3649 = vmatpush1.bf16.msra.mxu0 %v2441
    %3650 = vmatprep.subr.bf16.mxu0 %v2450
    %3651 = vmatpush1.bf16.msra.mxu0 %v2449
    %3652 = vmatprep.subr.bf16.mxu0 %v2458
    %3653 = vmatpush1.bf16.msra.mxu0 %v2457
    %3654 = vmatprep.subr.bf16.mxu0 %v2466
    %3655 = vmatpush1.bf16.msra.mxu0 %v2465
    %3656 = vmatprep.subr.bf16.mxu0 %v2474
    %3657 = vmatpush1.bf16.msra.mxu0 %v2473
    %3658 = vmatprep.subr.bf16.mxu0 %v2482
    %3659 = vmatpush1.bf16.msra.mxu0 %v2481
    %3660 = vmatprep.subr.bf16.mxu0 %v2490
    %3661 = vmatpush1.bf16.msra.mxu0 %v2489
    %3662 = vmatprep.mubr.bf16.mxu0 %v688
    %3663 = vmatmul.mubr.bf16.gmra.mrb[0].mxu0 %v687
    %v3664 = vpop.f32.mrb[0].mxu0
    %v3665 = vadd.f32 %v3624, %v3664
    %v3666 = vpop.f32.mrb[0].mxu0
    %v3667 = vadd.f32 %v3626, %v3666
    %v3668 = vpop.f32.mrb[0].mxu0
    %v3669 = vpop.f32.mrb[0].mxu0
    %3670 = vdwg.mxu0
    %3671 = vmatprep.subr.bf16.mxu0 %v2498
    %3672 = vmatpush1.bf16.msra.mxu0 %v2497
    %3673 = vmatprep.subr.bf16.mxu0 %v2506
    %3674 = vmatpush1.bf16.msra.mxu0 %v2505
    %3675 = vmatprep.subr.bf16.mxu0 %v2514
    %3676 = vmatpush1.bf16.msra.mxu0 %v2513
    %3677 = vmatprep.subr.bf16.mxu0 %v2522
    %3678 = vmatpush1.bf16.msra.mxu0 %v2521
    %3679 = vmatprep.subr.bf16.mxu0 %v2530
    %3680 = vmatpush1.bf16.msra.mxu0 %v2529
    %3681 = vmatprep.subr.bf16.mxu0 %v2538
    %3682 = vmatpush1.bf16.msra.mxu0 %v2537
    %3683 = vmatprep.subr.bf16.mxu0 %v2546
    %3684 = vmatpush1.bf16.msra.mxu0 %v2545
    %3685 = vmatprep.subr.bf16.mxu0 %v2554
    %3686 = vmatpush1.bf16.msra.mxu0 %v2553
    %3687 = vmatprep.subr.bf16.mxu0 %v2562
    %3688 = vmatpush1.bf16.msra.mxu0 %v2561
    %3689 = vmatprep.subr.bf16.mxu0 %v2570
    %3690 = vmatpush1.bf16.msra.mxu0 %v2569
    %3691 = vmatprep.subr.bf16.mxu0 %v2578
    %3692 = vmatpush1.bf16.msra.mxu0 %v2577
    %3693 = vmatprep.subr.bf16.mxu0 %v2586
    %3694 = vmatpush1.bf16.msra.mxu0 %v2585
    %3695 = vmatprep.subr.bf16.mxu0 %v2594
    %3696 = vmatpush1.bf16.msra.mxu0 %v2593
    %3697 = vmatprep.subr.bf16.mxu0 %v2602
    %3698 = vmatpush1.bf16.msra.mxu0 %v2601
    %3699 = vmatprep.subr.bf16.mxu0 %v2610
    %3700 = vmatpush1.bf16.msra.mxu0 %v2609
    %3701 = vmatprep.subr.bf16.mxu0 %v2618
    %3702 = vmatpush1.bf16.msra.mxu0 %v2617
    %3703 = vmatprep.mubr.bf16.mxu0 %v690
    %3704 = vmatmul.mubr.bf16.gmra.mrb[0].mxu0 %v689
    %v3705 = vpop.f32.mrb[0].mxu0
    %v3706 = vadd.f32 %v3665, %v3705
    %v3707 = vpop.f32.mrb[0].mxu0
    %v3708 = vadd.f32 %v3667, %v3707
    %v3709 = vpop.f32.mrb[0].mxu0
    %v3710 = vpop.f32.mrb[0].mxu0
    %3711 = vdwg.mxu0
    %3712 = vmatprep.subr.bf16.mxu0 %v2626
    %3713 = vmatpush1.bf16.msra.mxu0 %v2625
    %3714 = vmatprep.subr.bf16.mxu0 %v2634
    %3715 = vmatpush1.bf16.msra.mxu0 %v2633
    %3716 = vmatprep.subr.bf16.mxu0 %v2642
    %3717 = vmatpush1.bf16.msra.mxu0 %v2641
    %3718 = vmatprep.subr.bf16.mxu0 %v2650
    %3719 = vmatpush1.bf16.msra.mxu0 %v2649
    %3720 = vmatprep.subr.bf16.mxu0 %v2658
    %3721 = vmatpush1.bf16.msra.mxu0 %v2657
    %3722 = vmatprep.subr.bf16.mxu0 %v2666
    %3723 = vmatpush1.bf16.msra.mxu0 %v2665
    %3724 = vmatprep.subr.bf16.mxu0 %v2674
    %3725 = vmatpush1.bf16.msra.mxu0 %v2673
    %3726 = vmatprep.subr.bf16.mxu0 %v2682
    %3727 = vmatpush1.bf16.msra.mxu0 %v2681
    %3728 = vmatprep.subr.bf16.mxu0 %v2690
    %3729 = vmatpush1.bf16.msra.mxu0 %v2689
    %3730 = vmatprep.subr.bf16.mxu0 %v2698
    %3731 = vmatpush1.bf16.msra.mxu0 %v2697
    %3732 = vmatprep.subr.bf16.mxu0 %v2706
    %3733 = vmatpush1.bf16.msra.mxu0 %v2705
    %3734 = vmatprep.subr.bf16.mxu0 %v2714
    %3735 = vmatpush1.bf16.msra.mxu0 %v2713
    %3736 = vmatprep.subr.bf16.mxu0 %v2722
    %3737 = vmatpush1.bf16.msra.mxu0 %v2721
    %3738 = vmatprep.subr.bf16.mxu0 %v2730
    %3739 = vmatpush1.bf16.msra.mxu0 %v2729
    %3740 = vmatprep.subr.bf16.mxu0 %v2738
    %3741 = vmatpush1.bf16.msra.mxu0 %v2737
    %3742 = vmatprep.subr.bf16.mxu0 %v2746
    %3743 = vmatpush1.bf16.msra.mxu0 %v2745
    %3744 = vmatprep.mubr.bf16.mxu0 %v692
    %3745 = vmatmul.mubr.bf16.gmra.mrb[0].mxu0 %v691
    %v3746 = vpop.f32.mrb[0].mxu0
    %v3747 = vadd.f32 %v3706, %v3746
    %v3748 = vpop.f32.mrb[0].mxu0
    %v3749 = vadd.f32 %v3708, %v3748
    %v3750 = vpop.f32.mrb[0].mxu0
    %v3751 = vpop.f32.mrb[0].mxu0
    %3752 = vdwg.mxu0
    %3753 = vmatprep.subr.bf16.mxu0 %v2244
    %3754 = vmatpush1.bf16.msra.mxu0 %v2243
    %3755 = vmatprep.subr.bf16.mxu0 %v2252
    %3756 = vmatpush1.bf16.msra.mxu0 %v2251
    %3757 = vmatprep.subr.bf16.mxu0 %v2260
    %3758 = vmatpush1.bf16.msra.mxu0 %v2259
    %3759 = vmatprep.subr.bf16.mxu0 %v2268
    %3760 = vmatpush1.bf16.msra.mxu0 %v2267
    %3761 = vmatprep.subr.bf16.mxu0 %v2276
    %3762 = vmatpush1.bf16.msra.mxu0 %v2275
    %3763 = vmatprep.subr.bf16.mxu0 %v2284
    %3764 = vmatpush1.bf16.msra.mxu0 %v2283
    %3765 = vmatprep.subr.bf16.mxu0 %v2292
    %3766 = vmatpush1.bf16.msra.mxu0 %v2291
    %3767 = vmatprep.subr.bf16.mxu0 %v2300
    %3768 = vmatpush1.bf16.msra.mxu0 %v2299
    %3769 = vmatprep.subr.bf16.mxu0 %v2308
    %3770 = vmatpush1.bf16.msra.mxu0 %v2307
    %3771 = vmatprep.subr.bf16.mxu0 %v2316
    %3772 = vmatpush1.bf16.msra.mxu0 %v2315
    %3773 = vmatprep.subr.bf16.mxu0 %v2324
    %3774 = vmatpush1.bf16.msra.mxu0 %v2323
    %3775 = vmatprep.subr.bf16.mxu0 %v2332
    %3776 = vmatpush1.bf16.msra.mxu0 %v2331
    %3777 = vmatprep.subr.bf16.mxu0 %v2340
    %3778 = vmatpush1.bf16.msra.mxu0 %v2339
    %3779 = vmatprep.subr.bf16.mxu0 %v2348
    %3780 = vmatpush1.bf16.msra.mxu0 %v2347
    %3781 = vmatprep.subr.bf16.mxu0 %v2356
    %3782 = vmatpush1.bf16.msra.mxu0 %v2355
    %3783 = vmatprep.subr.bf16.mxu0 %v2364
    %3784 = vmatpush1.bf16.msra.mxu0 %v2363
    %3785 = vmatprep.mubr.bf16.mxu0 %v686
    %3786 = vmatmul.mubr.bf16.gmra.mrb[0].mxu0 %v685
    %v3787 = vpop.f32.mrb[0].mxu0
    %v3788 = vadd.f32 %v660, %v3787
    %v3789 = vpop.f32.mrb[0].mxu0
    %v3790 = vadd.f32 %v664, %v3789
    %v3791 = vpop.f32.mrb[0].mxu0
    %v3792 = vpop.f32.mrb[0].mxu0
    %3793 = vdwg.mxu0
    %3794 = vmatprep.subr.bf16.mxu0 %v2372
    %3795 = vmatpush1.bf16.msra.mxu0 %v2371
    %3796 = vmatprep.subr.bf16.mxu0 %v2380
    %3797 = vmatpush1.bf16.msra.mxu0 %v2379
    %3798 = vmatprep.subr.bf16.mxu0 %v2388
    %3799 = vmatpush1.bf16.msra.mxu0 %v2387
    %3800 = vmatprep.subr.bf16.mxu0 %v2396
    %3801 = vmatpush1.bf16.msra.mxu0 %v2395
    %3802 = vmatprep.subr.bf16.mxu0 %v2404
    %3803 = vmatpush1.bf16.msra.mxu0 %v2403
    %3804 = vmatprep.subr.bf16.mxu0 %v2412
    %3805 = vmatpush1.bf16.msra.mxu0 %v2411
    %3806 = vmatprep.subr.bf16.mxu0 %v2420
    %3807 = vmatpush1.bf16.msra.mxu0 %v2419
    %3808 = vmatprep.subr.bf16.mxu0 %v2428
    %3809 = vmatpush1.bf16.msra.mxu0 %v2427
    %3810 = vmatprep.subr.bf16.mxu0 %v2436
    %3811 = vmatpush1.bf16.msra.mxu0 %v2435
    %3812 = vmatprep.subr.bf16.mxu0 %v2444
    %3813 = vmatpush1.bf16.msra.mxu0 %v2443
    %3814 = vmatprep.subr.bf16.mxu0 %v2452
    %3815 = vmatpush1.bf16.msra.mxu0 %v2451
    %3816 = vmatprep.subr.bf16.mxu0 %v2460
    %3817 = vmatpush1.bf16.msra.mxu0 %v2459
    %3818 = vmatprep.subr.bf16.mxu0 %v2468
    %3819 = vmatpush1.bf16.msra.mxu0 %v2467
    %3820 = vmatprep.subr.bf16.mxu0 %v2476
    %3821 = vmatpush1.bf16.msra.mxu0 %v2475
    %3822 = vmatprep.subr.bf16.mxu0 %v2484
    %3823 = vmatpush1.bf16.msra.mxu0 %v2483
    %3824 = vmatprep.subr.bf16.mxu0 %v2492
    %3825 = vmatpush1.bf16.msra.mxu0 %v2491
    %3826 = vmatprep.mubr.bf16.mxu0 %v688
    %3827 = vmatmul.mubr.bf16.gmra.mrb[0].mxu0 %v687
    %v3828 = vpop.f32.mrb[0].mxu0
    %v3829 = vadd.f32 %v3788, %v3828
    %v3830 = vpop.f32.mrb[0].mxu0
    %v3831 = vadd.f32 %v3790, %v3830
    %v3832 = vpop.f32.mrb[0].mxu0
    %v3833 = vpop.f32.mrb[0].mxu0
    %3834 = vdwg.mxu0
    %3835 = vmatprep.subr.bf16.mxu0 %v2500
    %3836 = vmatpush1.bf16.msra.mxu0 %v2499
    %3837 = vmatprep.subr.bf16.mxu0 %v2508
    %3838 = vmatpush1.bf16.msra.mxu0 %v2507
    %3839 = vmatprep.subr.bf16.mxu0 %v2516
    %3840 = vmatpush1.bf16.msra.mxu0 %v2515
    %3841 = vmatprep.subr.bf16.mxu0 %v2524
    %3842 = vmatpush1.bf16.msra.mxu0 %v2523
    %3843 = vmatprep.subr.bf16.mxu0 %v2532
    %3844 = vmatpush1.bf16.msra.mxu0 %v2531
    %3845 = vmatprep.subr.bf16.mxu0 %v2540
    %3846 = vmatpush1.bf16.msra.mxu0 %v2539
    %3847 = vmatprep.subr.bf16.mxu0 %v2548
    %3848 = vmatpush1.bf16.msra.mxu0 %v2547
    %3849 = vmatprep.subr.bf16.mxu0 %v2556
    %3850 = vmatpush1.bf16.msra.mxu0 %v2555
    %3851 = vmatprep.subr.bf16.mxu0 %v2564
    %3852 = vmatpush1.bf16.msra.mxu0 %v2563
    %3853 = vmatprep.subr.bf16.mxu0 %v2572
    %3854 = vmatpush1.bf16.msra.mxu0 %v2571
    %3855 = vmatprep.subr.bf16.mxu0 %v2580
    %3856 = vmatpush1.bf16.msra.mxu0 %v2579
    %3857 = vmatprep.subr.bf16.mxu0 %v2588
    %3858 = vmatpush1.bf16.msra.mxu0 %v2587
    %3859 = vmatprep.subr.bf16.mxu0 %v2596
    %3860 = vmatpush1.bf16.msra.mxu0 %v2595
    %3861 = vmatprep.subr.bf16.mxu0 %v2604
    %3862 = vmatpush1.bf16.msra.mxu0 %v2603
    %3863 = vmatprep.subr.bf16.mxu0 %v2612
    %3864 = vmatpush1.bf16.msra.mxu0 %v2611
    %3865 = vmatprep.subr.bf16.mxu0 %v2620
    %3866 = vmatpush1.bf16.msra.mxu0 %v2619
    %3867 = vmatprep.mubr.bf16.mxu0 %v690
    %3868 = vmatmul.mubr.bf16.gmra.mrb[0].mxu0 %v689
    %v3869 = vpop.f32.mrb[0].mxu0
    %v3870 = vadd.f32 %v3829, %v3869
    %v3871 = vpop.f32.mrb[0].mxu0
    %v3872 = vadd.f32 %v3831, %v3871
    %v3873 = vpop.f32.mrb[0].mxu0
    %v3874 = vpop.f32.mrb[0].mxu0
    %3875 = vdwg.mxu0
    %3876 = vmatprep.subr.bf16.mxu0 %v2628
    %3877 = vmatpush1.bf16.msra.mxu0 %v2627
    %3878 = vmatprep.subr.bf16.mxu0 %v2636
    %3879 = vmatpush1.bf16.msra.mxu0 %v2635
    %3880 = vmatprep.subr.bf16.mxu0 %v2644
    %3881 = vmatpush1.bf16.msra.mxu0 %v2643
    %3882 = vmatprep.subr.bf16.mxu0 %v2652
    %3883 = vmatpush1.bf16.msra.mxu0 %v2651
    %3884 = vmatprep.subr.bf16.mxu0 %v2660
    %3885 = vmatpush1.bf16.msra.mxu0 %v2659
    %3886 = vmatprep.subr.bf16.mxu0 %v2668
    %3887 = vmatpush1.bf16.msra.mxu0 %v2667
    %3888 = vmatprep.subr.bf16.mxu0 %v2676
    %3889 = vmatpush1.bf16.msra.mxu0 %v2675
    %3890 = vmatprep.subr.bf16.mxu0 %v2684
    %3891 = vmatpush1.bf16.msra.mxu0 %v2683
    %3892 = vmatprep.subr.bf16.mxu0 %v2692
    %3893 = vmatpush1.bf16.msra.mxu0 %v2691
    %3894 = vmatprep.subr.bf16.mxu0 %v2700
    %3895 = vmatpush1.bf16.msra.mxu0 %v2699
    %3896 = vmatprep.subr.bf16.mxu0 %v2708
    %3897 = vmatpush1.bf16.msra.mxu0 %v2707
    %3898 = vmatprep.subr.bf16.mxu0 %v2716
    %3899 = vmatpush1.bf16.msra.mxu0 %v2715
    %3900 = vmatprep.subr.bf16.mxu0 %v2724
    %3901 = vmatpush1.bf16.msra.mxu0 %v2723
    %3902 = vmatprep.subr.bf16.mxu0 %v2732
    %3903 = vmatpush1.bf16.msra.mxu0 %v2731
    %3904 = vmatprep.subr.bf16.mxu0 %v2740
    %3905 = vmatpush1.bf16.msra.mxu0 %v2739
    %3906 = vmatprep.subr.bf16.mxu0 %v2748
    %3907 = vmatpush1.bf16.msra.mxu0 %v2747
    %3908 = vmatprep.mubr.bf16.mxu0 %v692
    %3909 = vmatmul.mubr.bf16.gmra.mrb[0].mxu0 %v691
    %v3910 = vpop.f32.mrb[0].mxu0
    %v3911 = vadd.f32 %v3870, %v3910
    %v3912 = vpop.f32.mrb[0].mxu0
    %v3913 = vadd.f32 %v3872, %v3912
    %v3914 = vpop.f32.mrb[0].mxu0
    %v3915 = vpop.f32.mrb[0].mxu0
    %3916 = vdwg.mxu0
    %v3917 = vtanh.pop %v3419
    %v3918 = vtanh.pop %v3421
    %v3919 = vtanh.pop %v3583
    %v3920 = vtanh.pop %v3585
    %v3921 = vtanh.pop %v3747
    %v3922 = vtanh.pop %v3749
    %v3923 = vtanh.pop %v3911
    %v3924 = vtanh.pop %v3913
    %v3925 = vpack.c.bf16 %v3917, %v3917
    %v3926 = vpack.c.bf16 %v3918, %v3918
    %v3927 = vpack.c.bf16 %v3919, %v3919
    %v3928 = vpack.c.bf16 %v3920, %v3920
    %v3929 = vpack.c.bf16 %v3921, %v3921
    %v3930 = vpack.c.bf16 %v3922, %v3922
    %v3931 = vpack.c.bf16 %v3923, %v3923
    %v3932 = vpack.c.bf16 %v3924, %v3924
    %v3933 = vld [vmem:[#allocation8] sm:$0xff]
    %v3934 = vld [vmem:[#allocation8 + $0x8] sm:$0xff]
    %v3935 = vld [vmem:[#allocation8 + $0x10] sm:$0xff]
    %v3936 = vld [vmem:[#allocation8 + $0x18] sm:$0xff]
    %v3937 = vld [vmem:[#allocation8 + $0x20] sm:$0xff]
    %v3938 = vld [vmem:[#allocation8 + $0x28] sm:$0xff]
    %v3939 = vld [vmem:[#allocation8 + $0x30] sm:$0xff]
    %v3940 = vld [vmem:[#allocation8 + $0x38] sm:$0xff]
    %v3941 = vld [vmem:[#allocation8 + $0x40] sm:$0xff]
    %v3942 = vld [vmem:[#allocation8 + $0x48] sm:$0xff]
    %v3943 = vld [vmem:[#allocation8 + $0x50] sm:$0xff]
    %v3944 = vld [vmem:[#allocation8 + $0x58] sm:$0xff]
    %v3945 = vld [vmem:[#allocation8 + $0x60] sm:$0xff]
    %v3946 = vld [vmem:[#allocation8 + $0x68] sm:$0xff]
    %v3947 = vld [vmem:[#allocation8 + $0x70] sm:$0xff]
    %v3948 = vld [vmem:[#allocation8 + $0x78] sm:$0xff]
    %v3949 = vld [vmem:[#allocation8 + $0x80] sm:$0xff]
    %v3950 = vld [vmem:[#allocation8 + $0x88] sm:$0xff]
    %v3951 = vld [vmem:[#allocation8 + $0x90] sm:$0xff]
    %v3952 = vld [vmem:[#allocation8 + $0x98] sm:$0xff]
    %v3953 = vld [vmem:[#allocation8 + $0xa0] sm:$0xff]
    %v3954 = vld [vmem:[#allocation8 + $0xa8] sm:$0xff]
    %v3955 = vld [vmem:[#allocation8 + $0xb0] sm:$0xff]
    %v3956 = vld [vmem:[#allocation8 + $0xb8] sm:$0xff]
    %v3957 = vld [vmem:[#allocation8 + $0xc0] sm:$0xff]
    %v3958 = vld [vmem:[#allocation8 + $0xc8] sm:$0xff]
    %v3959 = vld [vmem:[#allocation8 + $0xd0] sm:$0xff]
    %v3960 = vld [vmem:[#allocation8 + $0xd8] sm:$0xff]
    %v3961 = vld [vmem:[#allocation8 + $0xe0] sm:$0xff]
    %v3962 = vld [vmem:[#allocation8 + $0xe8] sm:$0xff]
    %v3963 = vld [vmem:[#allocation8 + $0xf0] sm:$0xff]
    %v3964 = vld [vmem:[#allocation8 + $0xf8] sm:$0xff]
    %v3965 = vld [vmem:[#allocation8 + $0x100] sm:$0xff]
    %v3966 = vld [vmem:[#allocation8 + $0x108] sm:$0xff]
    %v3967 = vld [vmem:[#allocation8 + $0x110] sm:$0xff]
    %v3968 = vld [vmem:[#allocation8 + $0x118] sm:$0xff]
    %v3969 = vld [vmem:[#allocation8 + $0x120] sm:$0xff]
    %v3970 = vld [vmem:[#allocation8 + $0x128] sm:$0xff]
    %v3971 = vld [vmem:[#allocation8 + $0x130] sm:$0xff]
    %v3972 = vld [vmem:[#allocation8 + $0x138] sm:$0xff]
    %v3973 = vld [vmem:[#allocation8 + $0x140] sm:$0xff]
    %v3974 = vld [vmem:[#allocation8 + $0x148] sm:$0xff]
    %v3975 = vld [vmem:[#allocation8 + $0x150] sm:$0xff]
    %v3976 = vld [vmem:[#allocation8 + $0x158] sm:$0xff]
    %v3977 = vld [vmem:[#allocation8 + $0x160] sm:$0xff]
    %v3978 = vld [vmem:[#allocation8 + $0x168] sm:$0xff]
    %v3979 = vld [vmem:[#allocation8 + $0x170] sm:$0xff]
    %v3980 = vld [vmem:[#allocation8 + $0x178] sm:$0xff]
    %v3981 = vld [vmem:[#allocation8 + $0x180] sm:$0xff]
    %v3982 = vld [vmem:[#allocation8 + $0x188] sm:$0xff]
    %v3983 = vld [vmem:[#allocation8 + $0x190] sm:$0xff]
    %v3984 = vld [vmem:[#allocation8 + $0x198] sm:$0xff]
    %v3985 = vld [vmem:[#allocation8 + $0x1a0] sm:$0xff]
    %v3986 = vld [vmem:[#allocation8 + $0x1a8] sm:$0xff]
    %v3987 = vld [vmem:[#allocation8 + $0x1b0] sm:$0xff]
    %v3988 = vld [vmem:[#allocation8 + $0x1b8] sm:$0xff]
    %v3989 = vld [vmem:[#allocation8 + $0x1c0] sm:$0xff]
    %v3990 = vld [vmem:[#allocation8 + $0x1c8] sm:$0xff]
    %v3991 = vld [vmem:[#allocation8 + $0x1d0] sm:$0xff]
    %v3992 = vld [vmem:[#allocation8 + $0x1d8] sm:$0xff]
    %v3993 = vld [vmem:[#allocation8 + $0x1e0] sm:$0xff]
    %v3994 = vld [vmem:[#allocation8 + $0x1e8] sm:$0xff]
    %v3995 = vld [vmem:[#allocation8 + $0x1f0] sm:$0xff]
    %v3996 = vld [vmem:[#allocation8 + $0x1f8] sm:$0xff]
    %v3997 = vld [vmem:[#allocation8 + $0x200] sm:$0xff]
    %v3998 = vld [vmem:[#allocation8 + $0x208] sm:$0xff]
    %v3999 = vld [vmem:[#allocation8 + $0x210] sm:$0xff]
    %v4000 = vld [vmem:[#allocation8 + $0x218] sm:$0xff]
    %v4001 = vld [vmem:[#allocation8 + $0x220] sm:$0xff]
    %v4002 = vld [vmem:[#allocation8 + $0x228] sm:$0xff]
    %v4003 = vld [vmem:[#allocation8 + $0x230] sm:$0xff]
    %v4004 = vld [vmem:[#allocation8 + $0x238] sm:$0xff]
    %v4005 = vld [vmem:[#allocation8 + $0x240] sm:$0xff]
    %v4006 = vld [vmem:[#allocation8 + $0x248] sm:$0xff]
    %v4007 = vld [vmem:[#allocation8 + $0x250] sm:$0xff]
    %v4008 = vld [vmem:[#allocation8 + $0x258] sm:$0xff]
    %v4009 = vld [vmem:[#allocation8 + $0x260] sm:$0xff]
    %v4010 = vld [vmem:[#allocation8 + $0x268] sm:$0xff]
    %v4011 = vld [vmem:[#allocation8 + $0x270] sm:$0xff]
    %v4012 = vld [vmem:[#allocation8 + $0x278] sm:$0xff]
    %v4013 = vld [vmem:[#allocation8 + $0x280] sm:$0xff]
    %v4014 = vld [vmem:[#allocation8 + $0x288] sm:$0xff]
    %v4015 = vld [vmem:[#allocation8 + $0x290] sm:$0xff]
    %v4016 = vld [vmem:[#allocation8 + $0x298] sm:$0xff]
    %v4017 = vld [vmem:[#allocation8 + $0x2a0] sm:$0xff]
    %v4018 = vld [vmem:[#allocation8 + $0x2a8] sm:$0xff]
    %v4019 = vld [vmem:[#allocation8 + $0x2b0] sm:$0xff]
    %v4020 = vld [vmem:[#allocation8 + $0x2b8] sm:$0xff]
    %v4021 = vld [vmem:[#allocation8 + $0x2c0] sm:$0xff]
    %v4022 = vld [vmem:[#allocation8 + $0x2c8] sm:$0xff]
    %v4023 = vld [vmem:[#allocation8 + $0x2d0] sm:$0xff]
    %v4024 = vld [vmem:[#allocation8 + $0x2d8] sm:$0xff]
    %v4025 = vld [vmem:[#allocation8 + $0x2e0] sm:$0xff]
    %v4026 = vld [vmem:[#allocation8 + $0x2e8] sm:$0xff]
    %v4027 = vld [vmem:[#allocation8 + $0x2f0] sm:$0xff]
    %v4028 = vld [vmem:[#allocation8 + $0x2f8] sm:$0xff]
    %v4029 = vld [vmem:[#allocation8 + $0x300] sm:$0xff]
    %v4030 = vld [vmem:[#allocation8 + $0x308] sm:$0xff]
    %v4031 = vld [vmem:[#allocation8 + $0x310] sm:$0xff]
    %v4032 = vld [vmem:[#allocation8 + $0x318] sm:$0xff]
    %v4033 = vld [vmem:[#allocation8 + $0x320] sm:$0xff]
    %v4034 = vld [vmem:[#allocation8 + $0x328] sm:$0xff]
    %v4035 = vld [vmem:[#allocation8 + $0x330] sm:$0xff]
    %v4036 = vld [vmem:[#allocation8 + $0x338] sm:$0xff]
    %v4037 = vld [vmem:[#allocation8 + $0x340] sm:$0xff]
    %v4038 = vld [vmem:[#allocation8 + $0x348] sm:$0xff]
    %v4039 = vld [vmem:[#allocation8 + $0x350] sm:$0xff]
    %v4040 = vld [vmem:[#allocation8 + $0x358] sm:$0xff]
    %v4041 = vld [vmem:[#allocation8 + $0x360] sm:$0xff]
    %v4042 = vld [vmem:[#allocation8 + $0x368] sm:$0xff]
    %v4043 = vld [vmem:[#allocation8 + $0x370] sm:$0xff]
    %v4044 = vld [vmem:[#allocation8 + $0x378] sm:$0xff]
    %v4045 = vld [vmem:[#allocation8 + $0x380] sm:$0xff]
    %v4046 = vld [vmem:[#allocation8 + $0x388] sm:$0xff]
    %v4047 = vld [vmem:[#allocation8 + $0x390] sm:$0xff]
    %v4048 = vld [vmem:[#allocation8 + $0x398] sm:$0xff]
    %v4049 = vld [vmem:[#allocation8 + $0x3a0] sm:$0xff]
    %v4050 = vld [vmem:[#allocation8 + $0x3a8] sm:$0xff]
    %v4051 = vld [vmem:[#allocation8 + $0x3b0] sm:$0xff]
    %v4052 = vld [vmem:[#allocation8 + $0x3b8] sm:$0xff]
    %v4053 = vld [vmem:[#allocation8 + $0x3c0] sm:$0xff]
    %v4054 = vld [vmem:[#allocation8 + $0x3c8] sm:$0xff]
    %v4055 = vld [vmem:[#allocation8 + $0x3d0] sm:$0xff]
    %v4056 = vld [vmem:[#allocation8 + $0x3d8] sm:$0xff]
    %v4057 = vld [vmem:[#allocation8 + $0x3e0] sm:$0xff]
    %v4058 = vld [vmem:[#allocation8 + $0x3e8] sm:$0xff]
    %v4059 = vld [vmem:[#allocation8 + $0x3f0] sm:$0xff]
    %v4060 = vld [vmem:[#allocation8 + $0x3f8] sm:$0xff]
    %v4061 = vld [vmem:[#allocation8 + $0x400] sm:$0xff]
    %v4062 = vld [vmem:[#allocation8 + $0x408] sm:$0xff]
    %v4063 = vld [vmem:[#allocation8 + $0x410] sm:$0xff]
    %v4064 = vld [vmem:[#allocation8 + $0x418] sm:$0xff]
    %v4065 = vld [vmem:[#allocation8 + $0x420] sm:$0xff]
    %v4066 = vld [vmem:[#allocation8 + $0x428] sm:$0xff]
    %v4067 = vld [vmem:[#allocation8 + $0x430] sm:$0xff]
    %v4068 = vld [vmem:[#allocation8 + $0x438] sm:$0xff]
    %v4069 = vld [vmem:[#allocation8 + $0x440] sm:$0xff]
    %v4070 = vld [vmem:[#allocation8 + $0x448] sm:$0xff]
    %v4071 = vld [vmem:[#allocation8 + $0x450] sm:$0xff]
    %v4072 = vld [vmem:[#allocation8 + $0x458] sm:$0xff]
    %v4073 = vld [vmem:[#allocation8 + $0x460] sm:$0xff]
    %v4074 = vld [vmem:[#allocation8 + $0x468] sm:$0xff]
    %v4075 = vld [vmem:[#allocation8 + $0x470] sm:$0xff]
    %v4076 = vld [vmem:[#allocation8 + $0x478] sm:$0xff]
    %v4077 = vld [vmem:[#allocation8 + $0x480] sm:$0xff]
    %v4078 = vld [vmem:[#allocation8 + $0x488] sm:$0xff]
    %v4079 = vld [vmem:[#allocation8 + $0x490] sm:$0xff]
    %v4080 = vld [vmem:[#allocation8 + $0x498] sm:$0xff]
    %v4081 = vld [vmem:[#allocation8 + $0x4a0] sm:$0xff]
    %v4082 = vld [vmem:[#allocation8 + $0x4a8] sm:$0xff]
    %v4083 = vld [vmem:[#allocation8 + $0x4b0] sm:$0xff]
    %v4084 = vld [vmem:[#allocation8 + $0x4b8] sm:$0xff]
    %v4085 = vld [vmem:[#allocation8 + $0x4c0] sm:$0xff]
    %v4086 = vld [vmem:[#allocation8 + $0x4c8] sm:$0xff]
    %v4087 = vld [vmem:[#allocation8 + $0x4d0] sm:$0xff]
    %v4088 = vld [vmem:[#allocation8 + $0x4d8] sm:$0xff]
    %v4089 = vld [vmem:[#allocation8 + $0x4e0] sm:$0xff]
    %v4090 = vld [vmem:[#allocation8 + $0x4e8] sm:$0xff]
    %v4091 = vld [vmem:[#allocation8 + $0x4f0] sm:$0xff]
    %v4092 = vld [vmem:[#allocation8 + $0x4f8] sm:$0xff]
    %v4093 = vld [vmem:[#allocation8 + $0x500] sm:$0xff]
    %v4094 = vld [vmem:[#allocation8 + $0x508] sm:$0xff]
    %v4095 = vld [vmem:[#allocation8 + $0x510] sm:$0xff]
    %v4096 = vld [vmem:[#allocation8 + $0x518] sm:$0xff]
    %v4097 = vld [vmem:[#allocation8 + $0x520] sm:$0xff]
    %v4098 = vld [vmem:[#allocation8 + $0x528] sm:$0xff]
    %v4099 = vld [vmem:[#allocation8 + $0x530] sm:$0xff]
    %v4100 = vld [vmem:[#allocation8 + $0x538] sm:$0xff]
    %v4101 = vld [vmem:[#allocation8 + $0x540] sm:$0xff]
    %v4102 = vld [vmem:[#allocation8 + $0x548] sm:$0xff]
    %v4103 = vld [vmem:[#allocation8 + $0x550] sm:$0xff]
    %v4104 = vld [vmem:[#allocation8 + $0x558] sm:$0xff]
    %v4105 = vld [vmem:[#allocation8 + $0x560] sm:$0xff]
    %v4106 = vld [vmem:[#allocation8 + $0x568] sm:$0xff]
    %v4107 = vld [vmem:[#allocation8 + $0x570] sm:$0xff]
    %v4108 = vld [vmem:[#allocation8 + $0x578] sm:$0xff]
    %v4109 = vld [vmem:[#allocation8 + $0x580] sm:$0xff]
    %v4110 = vld [vmem:[#allocation8 + $0x588] sm:$0xff]
    %v4111 = vld [vmem:[#allocation8 + $0x590] sm:$0xff]
    %v4112 = vld [vmem:[#allocation8 + $0x598] sm:$0xff]
    %v4113 = vld [vmem:[#allocation8 + $0x5a0] sm:$0xff]
    %v4114 = vld [vmem:[#allocation8 + $0x5a8] sm:$0xff]
    %v4115 = vld [vmem:[#allocation8 + $0x5b0] sm:$0xff]
    %v4116 = vld [vmem:[#allocation8 + $0x5b8] sm:$0xff]
    %v4117 = vld [vmem:[#allocation8 + $0x5c0] sm:$0xff]
    %v4118 = vld [vmem:[#allocation8 + $0x5c8] sm:$0xff]
    %v4119 = vld [vmem:[#allocation8 + $0x5d0] sm:$0xff]
    %v4120 = vld [vmem:[#allocation8 + $0x5d8] sm:$0xff]
    %v4121 = vld [vmem:[#allocation8 + $0x5e0] sm:$0xff]
    %v4122 = vld [vmem:[#allocation8 + $0x5e8] sm:$0xff]
    %v4123 = vld [vmem:[#allocation8 + $0x5f0] sm:$0xff]
    %v4124 = vld [vmem:[#allocation8 + $0x5f8] sm:$0xff]
    %v4125 = vld [vmem:[#allocation8 + $0x600] sm:$0xff]
    %v4126 = vld [vmem:[#allocation8 + $0x608] sm:$0xff]
    %v4127 = vld [vmem:[#allocation8 + $0x610] sm:$0xff]
    %v4128 = vld [vmem:[#allocation8 + $0x618] sm:$0xff]
    %v4129 = vld [vmem:[#allocation8 + $0x620] sm:$0xff]
    %v4130 = vld [vmem:[#allocation8 + $0x628] sm:$0xff]
    %v4131 = vld [vmem:[#allocation8 + $0x630] sm:$0xff]
    %v4132 = vld [vmem:[#allocation8 + $0x638] sm:$0xff]
    %v4133 = vld [vmem:[#allocation8 + $0x640] sm:$0xff]
    %v4134 = vld [vmem:[#allocation8 + $0x648] sm:$0xff]
    %v4135 = vld [vmem:[#allocation8 + $0x650] sm:$0xff]
    %v4136 = vld [vmem:[#allocation8 + $0x658] sm:$0xff]
    %v4137 = vld [vmem:[#allocation8 + $0x660] sm:$0xff]
    %v4138 = vld [vmem:[#allocation8 + $0x668] sm:$0xff]
    %v4139 = vld [vmem:[#allocation8 + $0x670] sm:$0xff]
    %v4140 = vld [vmem:[#allocation8 + $0x678] sm:$0xff]
    %v4141 = vld [vmem:[#allocation8 + $0x680] sm:$0xff]
    %v4142 = vld [vmem:[#allocation8 + $0x688] sm:$0xff]
    %v4143 = vld [vmem:[#allocation8 + $0x690] sm:$0xff]
    %v4144 = vld [vmem:[#allocation8 + $0x698] sm:$0xff]
    %v4145 = vld [vmem:[#allocation8 + $0x6a0] sm:$0xff]
    %v4146 = vld [vmem:[#allocation8 + $0x6a8] sm:$0xff]
    %v4147 = vld [vmem:[#allocation8 + $0x6b0] sm:$0xff]
    %v4148 = vld [vmem:[#allocation8 + $0x6b8] sm:$0xff]
    %v4149 = vld [vmem:[#allocation8 + $0x6c0] sm:$0xff]
    %v4150 = vld [vmem:[#allocation8 + $0x6c8] sm:$0xff]
    %v4151 = vld [vmem:[#allocation8 + $0x6d0] sm:$0xff]
    %v4152 = vld [vmem:[#allocation8 + $0x6d8] sm:$0xff]
    %v4153 = vld [vmem:[#allocation8 + $0x6e0] sm:$0xff]
    %v4154 = vld [vmem:[#allocation8 + $0x6e8] sm:$0xff]
    %v4155 = vld [vmem:[#allocation8 + $0x6f0] sm:$0xff]
    %v4156 = vld [vmem:[#allocation8 + $0x6f8] sm:$0xff]
    %v4157 = vld [vmem:[#allocation8 + $0x700] sm:$0xff]
    %v4158 = vld [vmem:[#allocation8 + $0x708] sm:$0xff]
    %v4159 = vld [vmem:[#allocation8 + $0x710] sm:$0xff]
    %v4160 = vld [vmem:[#allocation8 + $0x718] sm:$0xff]
    %v4161 = vld [vmem:[#allocation8 + $0x720] sm:$0xff]
    %v4162 = vld [vmem:[#allocation8 + $0x728] sm:$0xff]
    %v4163 = vld [vmem:[#allocation8 + $0x730] sm:$0xff]
    %v4164 = vld [vmem:[#allocation8 + $0x738] sm:$0xff]
    %v4165 = vld [vmem:[#allocation8 + $0x740] sm:$0xff]
    %v4166 = vld [vmem:[#allocation8 + $0x748] sm:$0xff]
    %v4167 = vld [vmem:[#allocation8 + $0x750] sm:$0xff]
    %v4168 = vld [vmem:[#allocation8 + $0x758] sm:$0xff]
    %v4169 = vld [vmem:[#allocation8 + $0x760] sm:$0xff]
    %v4170 = vld [vmem:[#allocation8 + $0x768] sm:$0xff]
    %v4171 = vld [vmem:[#allocation8 + $0x770] sm:$0xff]
    %v4172 = vld [vmem:[#allocation8 + $0x778] sm:$0xff]
    %v4173 = vld [vmem:[#allocation8 + $0x780] sm:$0xff]
    %v4174 = vld [vmem:[#allocation8 + $0x788] sm:$0xff]
    %v4175 = vld [vmem:[#allocation8 + $0x790] sm:$0xff]
    %v4176 = vld [vmem:[#allocation8 + $0x798] sm:$0xff]
    %v4177 = vld [vmem:[#allocation8 + $0x7a0] sm:$0xff]
    %v4178 = vld [vmem:[#allocation8 + $0x7a8] sm:$0xff]
    %v4179 = vld [vmem:[#allocation8 + $0x7b0] sm:$0xff]
    %v4180 = vld [vmem:[#allocation8 + $0x7b8] sm:$0xff]
    %v4181 = vld [vmem:[#allocation8 + $0x7c0] sm:$0xff]
    %v4182 = vld [vmem:[#allocation8 + $0x7c8] sm:$0xff]
    %v4183 = vld [vmem:[#allocation8 + $0x7d0] sm:$0xff]
    %v4184 = vld [vmem:[#allocation8 + $0x7d8] sm:$0xff]
    %v4185 = vld [vmem:[#allocation8 + $0x7e0] sm:$0xff]
    %v4186 = vld [vmem:[#allocation8 + $0x7e8] sm:$0xff]
    %v4187 = vld [vmem:[#allocation8 + $0x7f0] sm:$0xff]
    %v4188 = vld [vmem:[#allocation8 + $0x7f8] sm:$0xff]
    %v4189 = vld [vmem:[#allocation8 + $0x800] sm:$0xff]
    %v4190 = vld [vmem:[#allocation8 + $0x808] sm:$0xff]
    %v4191 = vld [vmem:[#allocation8 + $0x810] sm:$0xff]
    %v4192 = vld [vmem:[#allocation8 + $0x818] sm:$0xff]
    %v4193 = vld [vmem:[#allocation8 + $0x820] sm:$0xff]
    %v4194 = vld [vmem:[#allocation8 + $0x828] sm:$0xff]
    %v4195 = vld [vmem:[#allocation8 + $0x830] sm:$0xff]
    %v4196 = vld [vmem:[#allocation8 + $0x838] sm:$0xff]
    %v4197 = vld [vmem:[#allocation8 + $0x840] sm:$0xff]
    %v4198 = vld [vmem:[#allocation8 + $0x848] sm:$0xff]
    %v4199 = vld [vmem:[#allocation8 + $0x850] sm:$0xff]
    %v4200 = vld [vmem:[#allocation8 + $0x858] sm:$0xff]
    %v4201 = vld [vmem:[#allocation8 + $0x860] sm:$0xff]
    %v4202 = vld [vmem:[#allocation8 + $0x868] sm:$0xff]
    %v4203 = vld [vmem:[#allocation8 + $0x870] sm:$0xff]
    %v4204 = vld [vmem:[#allocation8 + $0x878] sm:$0xff]
    %v4205 = vld [vmem:[#allocation8 + $0x880] sm:$0xff]
    %v4206 = vld [vmem:[#allocation8 + $0x888] sm:$0xff]
    %v4207 = vld [vmem:[#allocation8 + $0x890] sm:$0xff]
    %v4208 = vld [vmem:[#allocation8 + $0x898] sm:$0xff]
    %v4209 = vld [vmem:[#allocation8 + $0x8a0] sm:$0xff]
    %v4210 = vld [vmem:[#allocation8 + $0x8a8] sm:$0xff]
    %v4211 = vld [vmem:[#allocation8 + $0x8b0] sm:$0xff]
    %v4212 = vld [vmem:[#allocation8 + $0x8b8] sm:$0xff]
    %v4213 = vld [vmem:[#allocation8 + $0x8c0] sm:$0xff]
    %v4214 = vld [vmem:[#allocation8 + $0x8c8] sm:$0xff]
    %v4215 = vld [vmem:[#allocation8 + $0x8d0] sm:$0xff]
    %v4216 = vld [vmem:[#allocation8 + $0x8d8] sm:$0xff]
    %v4217 = vld [vmem:[#allocation8 + $0x8e0] sm:$0xff]
    %v4218 = vld [vmem:[#allocation8 + $0x8e8] sm:$0xff]
    %v4219 = vld [vmem:[#allocation8 + $0x8f0] sm:$0xff]
    %v4220 = vld [vmem:[#allocation8 + $0x8f8] sm:$0xff]
    %v4221 = vld [vmem:[#allocation8 + $0x900] sm:$0xff]
    %v4222 = vld [vmem:[#allocation8 + $0x908] sm:$0xff]
    %v4223 = vld [vmem:[#allocation8 + $0x910] sm:$0xff]
    %v4224 = vld [vmem:[#allocation8 + $0x918] sm:$0xff]
    %v4225 = vld [vmem:[#allocation8 + $0x920] sm:$0xff]
    %v4226 = vld [vmem:[#allocation8 + $0x928] sm:$0xff]
    %v4227 = vld [vmem:[#allocation8 + $0x930] sm:$0xff]
    %v4228 = vld [vmem:[#allocation8 + $0x938] sm:$0xff]
    %v4229 = vld [vmem:[#allocation8 + $0x940] sm:$0xff]
    %v4230 = vld [vmem:[#allocation8 + $0x948] sm:$0xff]
    %v4231 = vld [vmem:[#allocation8 + $0x950] sm:$0xff]
    %v4232 = vld [vmem:[#allocation8 + $0x958] sm:$0xff]
    %v4233 = vld [vmem:[#allocation8 + $0x960] sm:$0xff]
    %v4234 = vld [vmem:[#allocation8 + $0x968] sm:$0xff]
    %v4235 = vld [vmem:[#allocation8 + $0x970] sm:$0xff]
    %v4236 = vld [vmem:[#allocation8 + $0x978] sm:$0xff]
    %v4237 = vld [vmem:[#allocation8 + $0x980] sm:$0xff]
    %v4238 = vld [vmem:[#allocation8 + $0x988] sm:$0xff]
    %v4239 = vld [vmem:[#allocation8 + $0x990] sm:$0xff]
    %v4240 = vld [vmem:[#allocation8 + $0x998] sm:$0xff]
    %v4241 = vld [vmem:[#allocation8 + $0x9a0] sm:$0xff]
    %v4242 = vld [vmem:[#allocation8 + $0x9a8] sm:$0xff]
    %v4243 = vld [vmem:[#allocation8 + $0x9b0] sm:$0xff]
    %v4244 = vld [vmem:[#allocation8 + $0x9b8] sm:$0xff]
    %v4245 = vld [vmem:[#allocation8 + $0x9c0] sm:$0xff]
    %v4246 = vld [vmem:[#allocation8 + $0x9c8] sm:$0xff]
    %v4247 = vld [vmem:[#allocation8 + $0x9d0] sm:$0xff]
    %v4248 = vld [vmem:[#allocation8 + $0x9d8] sm:$0xff]
    %v4249 = vld [vmem:[#allocation8 + $0x9e0] sm:$0xff]
    %v4250 = vld [vmem:[#allocation8 + $0x9e8] sm:$0xff]
    %v4251 = vld [vmem:[#allocation8 + $0x9f0] sm:$0xff]
    %v4252 = vld [vmem:[#allocation8 + $0x9f8] sm:$0xff]
    %v4253 = vld [vmem:[#allocation8 + $0xa00] sm:$0xff]
    %v4254 = vld [vmem:[#allocation8 + $0xa08] sm:$0xff]
    %v4255 = vld [vmem:[#allocation8 + $0xa10] sm:$0xff]
    %v4256 = vld [vmem:[#allocation8 + $0xa18] sm:$0xff]
    %v4257 = vld [vmem:[#allocation8 + $0xa20] sm:$0xff]
    %v4258 = vld [vmem:[#allocation8 + $0xa28] sm:$0xff]
    %v4259 = vld [vmem:[#allocation8 + $0xa30] sm:$0xff]
    %v4260 = vld [vmem:[#allocation8 + $0xa38] sm:$0xff]
    %v4261 = vld [vmem:[#allocation8 + $0xa40] sm:$0xff]
    %v4262 = vld [vmem:[#allocation8 + $0xa48] sm:$0xff]
    %v4263 = vld [vmem:[#allocation8 + $0xa50] sm:$0xff]
    %v4264 = vld [vmem:[#allocation8 + $0xa58] sm:$0xff]
    %v4265 = vld [vmem:[#allocation8 + $0xa60] sm:$0xff]
    %v4266 = vld [vmem:[#allocation8 + $0xa68] sm:$0xff]
    %v4267 = vld [vmem:[#allocation8 + $0xa70] sm:$0xff]
    %v4268 = vld [vmem:[#allocation8 + $0xa78] sm:$0xff]
    %v4269 = vld [vmem:[#allocation8 + $0xa80] sm:$0xff]
    %v4270 = vld [vmem:[#allocation8 + $0xa88] sm:$0xff]
    %v4271 = vld [vmem:[#allocation8 + $0xa90] sm:$0xff]
    %v4272 = vld [vmem:[#allocation8 + $0xa98] sm:$0xff]
    %v4273 = vld [vmem:[#allocation8 + $0xaa0] sm:$0xff]
    %v4274 = vld [vmem:[#allocation8 + $0xaa8] sm:$0xff]
    %v4275 = vld [vmem:[#allocation8 + $0xab0] sm:$0xff]
    %v4276 = vld [vmem:[#allocation8 + $0xab8] sm:$0xff]
    %v4277 = vld [vmem:[#allocation8 + $0xac0] sm:$0xff]
    %v4278 = vld [vmem:[#allocation8 + $0xac8] sm:$0xff]
    %v4279 = vld [vmem:[#allocation8 + $0xad0] sm:$0xff]
    %v4280 = vld [vmem:[#allocation8 + $0xad8] sm:$0xff]
    %v4281 = vld [vmem:[#allocation8 + $0xae0] sm:$0xff]
    %v4282 = vld [vmem:[#allocation8 + $0xae8] sm:$0xff]
    %v4283 = vld [vmem:[#allocation8 + $0xaf0] sm:$0xff]
    %v4284 = vld [vmem:[#allocation8 + $0xaf8] sm:$0xff]
    %v4285 = vld [vmem:[#allocation8 + $0xb00] sm:$0xff]
    %v4286 = vld [vmem:[#allocation8 + $0xb08] sm:$0xff]
    %v4287 = vld [vmem:[#allocation8 + $0xb10] sm:$0xff]
    %v4288 = vld [vmem:[#allocation8 + $0xb18] sm:$0xff]
    %v4289 = vld [vmem:[#allocation8 + $0xb20] sm:$0xff]
    %v4290 = vld [vmem:[#allocation8 + $0xb28] sm:$0xff]
    %v4291 = vld [vmem:[#allocation8 + $0xb30] sm:$0xff]
    %v4292 = vld [vmem:[#allocation8 + $0xb38] sm:$0xff]
    %v4293 = vld [vmem:[#allocation8 + $0xb40] sm:$0xff]
    %v4294 = vld [vmem:[#allocation8 + $0xb48] sm:$0xff]
    %v4295 = vld [vmem:[#allocation8 + $0xb50] sm:$0xff]
    %v4296 = vld [vmem:[#allocation8 + $0xb58] sm:$0xff]
    %v4297 = vld [vmem:[#allocation8 + $0xb60] sm:$0xff]
    %v4298 = vld [vmem:[#allocation8 + $0xb68] sm:$0xff]
    %v4299 = vld [vmem:[#allocation8 + $0xb70] sm:$0xff]
    %v4300 = vld [vmem:[#allocation8 + $0xb78] sm:$0xff]
    %v4301 = vld [vmem:[#allocation8 + $0xb80] sm:$0xff]
    %v4302 = vld [vmem:[#allocation8 + $0xb88] sm:$0xff]
    %v4303 = vld [vmem:[#allocation8 + $0xb90] sm:$0xff]
    %v4304 = vld [vmem:[#allocation8 + $0xb98] sm:$0xff]
    %v4305 = vld [vmem:[#allocation8 + $0xba0] sm:$0xff]
    %v4306 = vld [vmem:[#allocation8 + $0xba8] sm:$0xff]
    %v4307 = vld [vmem:[#allocation8 + $0xbb0] sm:$0xff]
    %v4308 = vld [vmem:[#allocation8 + $0xbb8] sm:$0xff]
    %v4309 = vld [vmem:[#allocation8 + $0xbc0] sm:$0xff]
    %v4310 = vld [vmem:[#allocation8 + $0xbc8] sm:$0xff]
    %v4311 = vld [vmem:[#allocation8 + $0xbd0] sm:$0xff]
    %v4312 = vld [vmem:[#allocation8 + $0xbd8] sm:$0xff]
    %v4313 = vld [vmem:[#allocation8 + $0xbe0] sm:$0xff]
    %v4314 = vld [vmem:[#allocation8 + $0xbe8] sm:$0xff]
    %v4315 = vld [vmem:[#allocation8 + $0xbf0] sm:$0xff]
    %v4316 = vld [vmem:[#allocation8 + $0xbf8] sm:$0xff]
    %v4317 = vld [vmem:[#allocation10] sm:$0x3f]
    %v4319 = vlaneseq
    %v4320 = vshrl.u32 %v4319, 7
    %v4321 = vsub.s32 0, %v4320
    %v4322 = vrot.slane %v4317, %v4321
    %v4323 = vlaneseq
    %v4324 = vshrl.u32 %v4323, 7
    %v4325 = vsub.s32 1, %v4324
    %v4326 = vrot.slane %v4317, %v4325
    %v4327 = vlaneseq
    %v4328 = vshrl.u32 %v4327, 7
    %v4329 = vsub.s32 2, %v4328
    %v4330 = vrot.slane %v4317, %v4329
    %v4331 = vlaneseq
    %v4332 = vshrl.u32 %v4331, 7
    %v4333 = vsub.s32 3, %v4332
    %v4334 = vrot.slane %v4317, %v4333
    %v4335 = vlaneseq
    %v4336 = vshrl.u32 %v4335, 7
    %v4337 = vsub.s32 4, %v4336
    %v4338 = vrot.slane %v4317, %v4337
    %v4339 = vlaneseq
    %v4340 = vshrl.u32 %v4339, 7
    %v4341 = vsub.s32 5, %v4340
    %v4342 = vrot.slane %v4317, %v4341
    %v4733 = vunpack.c.l.b16 %v3933
    %v4734 = vunpack.c.h.b16 %v3933
    %v4735 = vunpack.c.l.b16 %v3934
    %v4736 = vunpack.c.h.b16 %v3934
    %v4737 = vunpack.c.l.b16 %v3935
    %v4738 = vunpack.c.h.b16 %v3935
    %v4739 = vunpack.c.l.b16 %v3936
    %v4740 = vunpack.c.h.b16 %v3936
    %v4741 = vunpack.c.l.b16 %v3937
    %v4742 = vunpack.c.h.b16 %v3937
    %v4743 = vunpack.c.l.b16 %v3938
    %v4744 = vunpack.c.h.b16 %v3938
    %v4745 = vunpack.c.l.b16 %v3939
    %v4746 = vunpack.c.h.b16 %v3939
    %v4747 = vunpack.c.l.b16 %v3940
    %v4748 = vunpack.c.h.b16 %v3940
    %v4749 = vunpack.c.l.b16 %v3941
    %v4750 = vunpack.c.h.b16 %v3941
    %v4751 = vunpack.c.l.b16 %v3942
    %v4752 = vunpack.c.h.b16 %v3942
    %v4753 = vunpack.c.l.b16 %v3943
    %v4754 = vunpack.c.h.b16 %v3943
    %v4755 = vunpack.c.l.b16 %v3944
    %v4756 = vunpack.c.h.b16 %v3944
    %v4757 = vunpack.c.l.b16 %v3945
    %v4758 = vunpack.c.h.b16 %v3945
    %v4759 = vunpack.c.l.b16 %v3946
    %v4760 = vunpack.c.h.b16 %v3946
    %v4761 = vunpack.c.l.b16 %v3947
    %v4762 = vunpack.c.h.b16 %v3947
    %v4763 = vunpack.c.l.b16 %v3948
    %v4764 = vunpack.c.h.b16 %v3948
    %v4765 = vunpack.c.l.b16 %v3949
    %v4766 = vunpack.c.h.b16 %v3949
    %v4767 = vunpack.c.l.b16 %v3950
    %v4768 = vunpack.c.h.b16 %v3950
    %v4769 = vunpack.c.l.b16 %v3951
    %v4770 = vunpack.c.h.b16 %v3951
    %v4771 = vunpack.c.l.b16 %v3952
    %v4772 = vunpack.c.h.b16 %v3952
    %v4773 = vunpack.c.l.b16 %v3953
    %v4774 = vunpack.c.h.b16 %v3953
    %v4775 = vunpack.c.l.b16 %v3954
    %v4776 = vunpack.c.h.b16 %v3954
    %v4777 = vunpack.c.l.b16 %v3955
    %v4778 = vunpack.c.h.b16 %v3955
    %v4779 = vunpack.c.l.b16 %v3956
    %v4780 = vunpack.c.h.b16 %v3956
    %v4781 = vunpack.c.l.b16 %v3957
    %v4782 = vunpack.c.h.b16 %v3957
    %v4783 = vunpack.c.l.b16 %v3958
    %v4784 = vunpack.c.h.b16 %v3958
    %v4785 = vunpack.c.l.b16 %v3959
    %v4786 = vunpack.c.h.b16 %v3959
    %v4787 = vunpack.c.l.b16 %v3960
    %v4788 = vunpack.c.h.b16 %v3960
    %v4789 = vunpack.c.l.b16 %v3961
    %v4790 = vunpack.c.h.b16 %v3961
    %v4791 = vunpack.c.l.b16 %v3962
    %v4792 = vunpack.c.h.b16 %v3962
    %v4793 = vunpack.c.l.b16 %v3963
    %v4794 = vunpack.c.h.b16 %v3963
    %v4795 = vunpack.c.l.b16 %v3964
    %v4796 = vunpack.c.h.b16 %v3964
    %v4797 = vunpack.c.l.b16 %v3965
    %v4798 = vunpack.c.h.b16 %v3965
    %v4799 = vunpack.c.l.b16 %v3966
    %v4800 = vunpack.c.h.b16 %v3966
    %v4801 = vunpack.c.l.b16 %v3967
    %v4802 = vunpack.c.h.b16 %v3967
    %v4803 = vunpack.c.l.b16 %v3968
    %v4804 = vunpack.c.h.b16 %v3968
    %v4805 = vunpack.c.l.b16 %v3969
    %v4806 = vunpack.c.h.b16 %v3969
    %v4807 = vunpack.c.l.b16 %v3970
    %v4808 = vunpack.c.h.b16 %v3970
    %v4809 = vunpack.c.l.b16 %v3971
    %v4810 = vunpack.c.h.b16 %v3971
    %v4811 = vunpack.c.l.b16 %v3972
    %v4812 = vunpack.c.h.b16 %v3972
    %v4813 = vunpack.c.l.b16 %v3973
    %v4814 = vunpack.c.h.b16 %v3973
    %v4815 = vunpack.c.l.b16 %v3974
    %v4816 = vunpack.c.h.b16 %v3974
    %v4817 = vunpack.c.l.b16 %v3975
    %v4818 = vunpack.c.h.b16 %v3975
    %v4819 = vunpack.c.l.b16 %v3976
    %v4820 = vunpack.c.h.b16 %v3976
    %v4821 = vunpack.c.l.b16 %v3977
    %v4822 = vunpack.c.h.b16 %v3977
    %v4823 = vunpack.c.l.b16 %v3978
    %v4824 = vunpack.c.h.b16 %v3978
    %v4825 = vunpack.c.l.b16 %v3979
    %v4826 = vunpack.c.h.b16 %v3979
    %v4827 = vunpack.c.l.b16 %v3980
    %v4828 = vunpack.c.h.b16 %v3980
    %v4829 = vunpack.c.l.b16 %v3981
    %v4830 = vunpack.c.h.b16 %v3981
    %v4831 = vunpack.c.l.b16 %v3982
    %v4832 = vunpack.c.h.b16 %v3982
    %v4833 = vunpack.c.l.b16 %v3983
    %v4834 = vunpack.c.h.b16 %v3983
    %v4835 = vunpack.c.l.b16 %v3984
    %v4836 = vunpack.c.h.b16 %v3984
    %v4837 = vunpack.c.l.b16 %v3985
    %v4838 = vunpack.c.h.b16 %v3985
    %v4839 = vunpack.c.l.b16 %v3986
    %v4840 = vunpack.c.h.b16 %v3986
    %v4841 = vunpack.c.l.b16 %v3987
    %v4842 = vunpack.c.h.b16 %v3987
    %v4843 = vunpack.c.l.b16 %v3988
    %v4844 = vunpack.c.h.b16 %v3988
    %v4845 = vunpack.c.l.b16 %v3989
    %v4846 = vunpack.c.h.b16 %v3989
    %v4847 = vunpack.c.l.b16 %v3990
    %v4848 = vunpack.c.h.b16 %v3990
    %v4849 = vunpack.c.l.b16 %v3991
    %v4850 = vunpack.c.h.b16 %v3991
    %v4851 = vunpack.c.l.b16 %v3992
    %v4852 = vunpack.c.h.b16 %v3992
    %v4853 = vunpack.c.l.b16 %v3993
    %v4854 = vunpack.c.h.b16 %v3993
    %v4855 = vunpack.c.l.b16 %v3994
    %v4856 = vunpack.c.h.b16 %v3994
    %v4857 = vunpack.c.l.b16 %v3995
    %v4858 = vunpack.c.h.b16 %v3995
    %v4859 = vunpack.c.l.b16 %v3996
    %v4860 = vunpack.c.h.b16 %v3996
    %v4861 = vunpack.c.l.b16 %v3997
    %v4862 = vunpack.c.h.b16 %v3997
    %v4863 = vunpack.c.l.b16 %v3998
    %v4864 = vunpack.c.h.b16 %v3998
    %v4865 = vunpack.c.l.b16 %v3999
    %v4866 = vunpack.c.h.b16 %v3999
    %v4867 = vunpack.c.l.b16 %v4000
    %v4868 = vunpack.c.h.b16 %v4000
    %v4869 = vunpack.c.l.b16 %v4001
    %v4870 = vunpack.c.h.b16 %v4001
    %v4871 = vunpack.c.l.b16 %v4002
    %v4872 = vunpack.c.h.b16 %v4002
    %v4873 = vunpack.c.l.b16 %v4003
    %v4874 = vunpack.c.h.b16 %v4003
    %v4875 = vunpack.c.l.b16 %v4004
    %v4876 = vunpack.c.h.b16 %v4004
    %v4877 = vunpack.c.l.b16 %v4005
    %v4878 = vunpack.c.h.b16 %v4005
    %v4879 = vunpack.c.l.b16 %v4006
    %v4880 = vunpack.c.h.b16 %v4006
    %v4881 = vunpack.c.l.b16 %v4007
    %v4882 = vunpack.c.h.b16 %v4007
    %v4883 = vunpack.c.l.b16 %v4008
    %v4884 = vunpack.c.h.b16 %v4008
    %v4885 = vunpack.c.l.b16 %v4009
    %v4886 = vunpack.c.h.b16 %v4009
    %v4887 = vunpack.c.l.b16 %v4010
    %v4888 = vunpack.c.h.b16 %v4010
    %v4889 = vunpack.c.l.b16 %v4011
    %v4890 = vunpack.c.h.b16 %v4011
    %v4891 = vunpack.c.l.b16 %v4012
    %v4892 = vunpack.c.h.b16 %v4012
    %v4893 = vunpack.c.l.b16 %v4013
    %v4894 = vunpack.c.h.b16 %v4013
    %v4895 = vunpack.c.l.b16 %v4014
    %v4896 = vunpack.c.h.b16 %v4014
    %v4897 = vunpack.c.l.b16 %v4015
    %v4898 = vunpack.c.h.b16 %v4015
    %v4899 = vunpack.c.l.b16 %v4016
    %v4900 = vunpack.c.h.b16 %v4016
    %v4901 = vunpack.c.l.b16 %v4017
    %v4902 = vunpack.c.h.b16 %v4017
    %v4903 = vunpack.c.l.b16 %v4018
    %v4904 = vunpack.c.h.b16 %v4018
    %v4905 = vunpack.c.l.b16 %v4019
    %v4906 = vunpack.c.h.b16 %v4019
    %v4907 = vunpack.c.l.b16 %v4020
    %v4908 = vunpack.c.h.b16 %v4020
    %v4909 = vunpack.c.l.b16 %v4021
    %v4910 = vunpack.c.h.b16 %v4021
    %v4911 = vunpack.c.l.b16 %v4022
    %v4912 = vunpack.c.h.b16 %v4022
    %v4913 = vunpack.c.l.b16 %v4023
    %v4914 = vunpack.c.h.b16 %v4023
    %v4915 = vunpack.c.l.b16 %v4024
    %v4916 = vunpack.c.h.b16 %v4024
    %v4917 = vunpack.c.l.b16 %v4025
    %v4918 = vunpack.c.h.b16 %v4025
    %v4919 = vunpack.c.l.b16 %v4026
    %v4920 = vunpack.c.h.b16 %v4026
    %v4921 = vunpack.c.l.b16 %v4027
    %v4922 = vunpack.c.h.b16 %v4027
    %v4923 = vunpack.c.l.b16 %v4028
    %v4924 = vunpack.c.h.b16 %v4028
    %v4925 = vunpack.c.l.b16 %v4029
    %v4926 = vunpack.c.h.b16 %v4029
    %v4927 = vunpack.c.l.b16 %v4030
    %v4928 = vunpack.c.h.b16 %v4030
    %v4929 = vunpack.c.l.b16 %v4031
    %v4930 = vunpack.c.h.b16 %v4031
    %v4931 = vunpack.c.l.b16 %v4032
    %v4932 = vunpack.c.h.b16 %v4032
    %v4933 = vunpack.c.l.b16 %v4033
    %v4934 = vunpack.c.h.b16 %v4033
    %v4935 = vunpack.c.l.b16 %v4034
    %v4936 = vunpack.c.h.b16 %v4034
    %v4937 = vunpack.c.l.b16 %v4035
    %v4938 = vunpack.c.h.b16 %v4035
    %v4939 = vunpack.c.l.b16 %v4036
    %v4940 = vunpack.c.h.b16 %v4036
    %v4941 = vunpack.c.l.b16 %v4037
    %v4942 = vunpack.c.h.b16 %v4037
    %v4943 = vunpack.c.l.b16 %v4038
    %v4944 = vunpack.c.h.b16 %v4038
    %v4945 = vunpack.c.l.b16 %v4039
    %v4946 = vunpack.c.h.b16 %v4039
    %v4947 = vunpack.c.l.b16 %v4040
    %v4948 = vunpack.c.h.b16 %v4040
    %v4949 = vunpack.c.l.b16 %v4041
    %v4950 = vunpack.c.h.b16 %v4041
    %v4951 = vunpack.c.l.b16 %v4042
    %v4952 = vunpack.c.h.b16 %v4042
    %v4953 = vunpack.c.l.b16 %v4043
    %v4954 = vunpack.c.h.b16 %v4043
    %v4955 = vunpack.c.l.b16 %v4044
    %v4956 = vunpack.c.h.b16 %v4044
    %v4957 = vunpack.c.l.b16 %v4045
    %v4958 = vunpack.c.h.b16 %v4045
    %v4959 = vunpack.c.l.b16 %v4046
    %v4960 = vunpack.c.h.b16 %v4046
    %v4961 = vunpack.c.l.b16 %v4047
    %v4962 = vunpack.c.h.b16 %v4047
    %v4963 = vunpack.c.l.b16 %v4048
    %v4964 = vunpack.c.h.b16 %v4048
    %v4965 = vunpack.c.l.b16 %v4049
    %v4966 = vunpack.c.h.b16 %v4049
    %v4967 = vunpack.c.l.b16 %v4050
    %v4968 = vunpack.c.h.b16 %v4050
    %v4969 = vunpack.c.l.b16 %v4051
    %v4970 = vunpack.c.h.b16 %v4051
    %v4971 = vunpack.c.l.b16 %v4052
    %v4972 = vunpack.c.h.b16 %v4052
    %v4973 = vunpack.c.l.b16 %v4053
    %v4974 = vunpack.c.h.b16 %v4053
    %v4975 = vunpack.c.l.b16 %v4054
    %v4976 = vunpack.c.h.b16 %v4054
    %v4977 = vunpack.c.l.b16 %v4055
    %v4978 = vunpack.c.h.b16 %v4055
    %v4979 = vunpack.c.l.b16 %v4056
    %v4980 = vunpack.c.h.b16 %v4056
    %v4981 = vunpack.c.l.b16 %v4057
    %v4982 = vunpack.c.h.b16 %v4057
    %v4983 = vunpack.c.l.b16 %v4058
    %v4984 = vunpack.c.h.b16 %v4058
    %v4985 = vunpack.c.l.b16 %v4059
    %v4986 = vunpack.c.h.b16 %v4059
    %v4987 = vunpack.c.l.b16 %v4060
    %v4988 = vunpack.c.h.b16 %v4060
    %v4989 = vunpack.c.l.b16 %v4061
    %v4990 = vunpack.c.h.b16 %v4061
    %v4991 = vunpack.c.l.b16 %v4062
    %v4992 = vunpack.c.h.b16 %v4062
    %v4993 = vunpack.c.l.b16 %v4063
    %v4994 = vunpack.c.h.b16 %v4063
    %v4995 = vunpack.c.l.b16 %v4064
    %v4996 = vunpack.c.h.b16 %v4064
    %v4997 = vunpack.c.l.b16 %v4065
    %v4998 = vunpack.c.h.b16 %v4065
    %v4999 = vunpack.c.l.b16 %v4066
    %v5000 = vunpack.c.h.b16 %v4066
    %v5001 = vunpack.c.l.b16 %v4067
    %v5002 = vunpack.c.h.b16 %v4067
    %v5003 = vunpack.c.l.b16 %v4068
    %v5004 = vunpack.c.h.b16 %v4068
    %v5005 = vunpack.c.l.b16 %v4069
    %v5006 = vunpack.c.h.b16 %v4069
    %v5007 = vunpack.c.l.b16 %v4070
    %v5008 = vunpack.c.h.b16 %v4070
    %v5009 = vunpack.c.l.b16 %v4071
    %v5010 = vunpack.c.h.b16 %v4071
    %v5011 = vunpack.c.l.b16 %v4072
    %v5012 = vunpack.c.h.b16 %v4072
    %v5013 = vunpack.c.l.b16 %v4073
    %v5014 = vunpack.c.h.b16 %v4073
    %v5015 = vunpack.c.l.b16 %v4074
    %v5016 = vunpack.c.h.b16 %v4074
    %v5017 = vunpack.c.l.b16 %v4075
    %v5018 = vunpack.c.h.b16 %v4075
    %v5019 = vunpack.c.l.b16 %v4076
    %v5020 = vunpack.c.h.b16 %v4076
    %v5021 = vunpack.c.l.b16 %v4077
    %v5022 = vunpack.c.h.b16 %v4077
    %v5023 = vunpack.c.l.b16 %v4078
    %v5024 = vunpack.c.h.b16 %v4078
    %v5025 = vunpack.c.l.b16 %v4079
    %v5026 = vunpack.c.h.b16 %v4079
    %v5027 = vunpack.c.l.b16 %v4080
    %v5028 = vunpack.c.h.b16 %v4080
    %v5029 = vunpack.c.l.b16 %v4081
    %v5030 = vunpack.c.h.b16 %v4081
    %v5031 = vunpack.c.l.b16 %v4082
    %v5032 = vunpack.c.h.b16 %v4082
    %v5033 = vunpack.c.l.b16 %v4083
    %v5034 = vunpack.c.h.b16 %v4083
    %v5035 = vunpack.c.l.b16 %v4084
    %v5036 = vunpack.c.h.b16 %v4084
    %v5037 = vunpack.c.l.b16 %v4085
    %v5038 = vunpack.c.h.b16 %v4085
    %v5039 = vunpack.c.l.b16 %v4086
    %v5040 = vunpack.c.h.b16 %v4086
    %v5041 = vunpack.c.l.b16 %v4087
    %v5042 = vunpack.c.h.b16 %v4087
    %v5043 = vunpack.c.l.b16 %v4088
    %v5044 = vunpack.c.h.b16 %v4088
    %v5045 = vunpack.c.l.b16 %v4089
    %v5046 = vunpack.c.h.b16 %v4089
    %v5047 = vunpack.c.l.b16 %v4090
    %v5048 = vunpack.c.h.b16 %v4090
    %v5049 = vunpack.c.l.b16 %v4091
    %v5050 = vunpack.c.h.b16 %v4091
    %v5051 = vunpack.c.l.b16 %v4092
    %v5052 = vunpack.c.h.b16 %v4092
    %v5053 = vunpack.c.l.b16 %v4093
    %v5054 = vunpack.c.h.b16 %v4093
    %v5055 = vunpack.c.l.b16 %v4094
    %v5056 = vunpack.c.h.b16 %v4094
    %v5057 = vunpack.c.l.b16 %v4095
    %v5058 = vunpack.c.h.b16 %v4095
    %v5059 = vunpack.c.l.b16 %v4096
    %v5060 = vunpack.c.h.b16 %v4096
    %v5061 = vunpack.c.l.b16 %v4097
    %v5062 = vunpack.c.h.b16 %v4097
    %v5063 = vunpack.c.l.b16 %v4098
    %v5064 = vunpack.c.h.b16 %v4098
    %v5065 = vunpack.c.l.b16 %v4099
    %v5066 = vunpack.c.h.b16 %v4099
    %v5067 = vunpack.c.l.b16 %v4100
    %v5068 = vunpack.c.h.b16 %v4100
    %v5069 = vunpack.c.l.b16 %v4101
    %v5070 = vunpack.c.h.b16 %v4101
    %v5071 = vunpack.c.l.b16 %v4102
    %v5072 = vunpack.c.h.b16 %v4102
    %v5073 = vunpack.c.l.b16 %v4103
    %v5074 = vunpack.c.h.b16 %v4103
    %v5075 = vunpack.c.l.b16 %v4104
    %v5076 = vunpack.c.h.b16 %v4104
    %v5077 = vunpack.c.l.b16 %v4105
    %v5078 = vunpack.c.h.b16 %v4105
    %v5079 = vunpack.c.l.b16 %v4106
    %v5080 = vunpack.c.h.b16 %v4106
    %v5081 = vunpack.c.l.b16 %v4107
    %v5082 = vunpack.c.h.b16 %v4107
    %v5083 = vunpack.c.l.b16 %v4108
    %v5084 = vunpack.c.h.b16 %v4108
    %v5085 = vunpack.c.l.b16 %v4109
    %v5086 = vunpack.c.h.b16 %v4109
    %v5087 = vunpack.c.l.b16 %v4110
    %v5088 = vunpack.c.h.b16 %v4110
    %v5089 = vunpack.c.l.b16 %v4111
    %v5090 = vunpack.c.h.b16 %v4111
    %v5091 = vunpack.c.l.b16 %v4112
    %v5092 = vunpack.c.h.b16 %v4112
    %v5093 = vunpack.c.l.b16 %v4113
    %v5094 = vunpack.c.h.b16 %v4113
    %v5095 = vunpack.c.l.b16 %v4114
    %v5096 = vunpack.c.h.b16 %v4114
    %v5097 = vunpack.c.l.b16 %v4115
    %v5098 = vunpack.c.h.b16 %v4115
    %v5099 = vunpack.c.l.b16 %v4116
    %v5100 = vunpack.c.h.b16 %v4116
    %v5101 = vunpack.c.l.b16 %v4117
    %v5102 = vunpack.c.h.b16 %v4117
    %v5103 = vunpack.c.l.b16 %v4118
    %v5104 = vunpack.c.h.b16 %v4118
    %v5105 = vunpack.c.l.b16 %v4119
    %v5106 = vunpack.c.h.b16 %v4119
    %v5107 = vunpack.c.l.b16 %v4120
    %v5108 = vunpack.c.h.b16 %v4120
    %v5109 = vunpack.c.l.b16 %v4121
    %v5110 = vunpack.c.h.b16 %v4121
    %v5111 = vunpack.c.l.b16 %v4122
    %v5112 = vunpack.c.h.b16 %v4122
    %v5113 = vunpack.c.l.b16 %v4123
    %v5114 = vunpack.c.h.b16 %v4123
    %v5115 = vunpack.c.l.b16 %v4124
    %v5116 = vunpack.c.h.b16 %v4124
    %v5117 = vunpack.c.l.b16 %v4125
    %v5118 = vunpack.c.h.b16 %v4125
    %v5119 = vunpack.c.l.b16 %v4126
    %v5120 = vunpack.c.h.b16 %v4126
    %v5121 = vunpack.c.l.b16 %v4127
    %v5122 = vunpack.c.h.b16 %v4127
    %v5123 = vunpack.c.l.b16 %v4128
    %v5124 = vunpack.c.h.b16 %v4128
    %v5125 = vunpack.c.l.b16 %v4129
    %v5126 = vunpack.c.h.b16 %v4129
    %v5127 = vunpack.c.l.b16 %v4130
    %v5128 = vunpack.c.h.b16 %v4130
    %v5129 = vunpack.c.l.b16 %v4131
    %v5130 = vunpack.c.h.b16 %v4131
    %v5131 = vunpack.c.l.b16 %v4132
    %v5132 = vunpack.c.h.b16 %v4132
    %v5133 = vunpack.c.l.b16 %v4133
    %v5134 = vunpack.c.h.b16 %v4133
    %v5135 = vunpack.c.l.b16 %v4134
    %v5136 = vunpack.c.h.b16 %v4134
    %v5137 = vunpack.c.l.b16 %v4135
    %v5138 = vunpack.c.h.b16 %v4135
    %v5139 = vunpack.c.l.b16 %v4136
    %v5140 = vunpack.c.h.b16 %v4136
    %v5141 = vunpack.c.l.b16 %v4137
    %v5142 = vunpack.c.h.b16 %v4137
    %v5143 = vunpack.c.l.b16 %v4138
    %v5144 = vunpack.c.h.b16 %v4138
    %v5145 = vunpack.c.l.b16 %v4139
    %v5146 = vunpack.c.h.b16 %v4139
    %v5147 = vunpack.c.l.b16 %v4140
    %v5148 = vunpack.c.h.b16 %v4140
    %v5149 = vunpack.c.l.b16 %v4141
    %v5150 = vunpack.c.h.b16 %v4141
    %v5151 = vunpack.c.l.b16 %v4142
    %v5152 = vunpack.c.h.b16 %v4142
    %v5153 = vunpack.c.l.b16 %v4143
    %v5154 = vunpack.c.h.b16 %v4143
    %v5155 = vunpack.c.l.b16 %v4144
    %v5156 = vunpack.c.h.b16 %v4144
    %v5157 = vunpack.c.l.b16 %v4145
    %v5158 = vunpack.c.h.b16 %v4145
    %v5159 = vunpack.c.l.b16 %v4146
    %v5160 = vunpack.c.h.b16 %v4146
    %v5161 = vunpack.c.l.b16 %v4147
    %v5162 = vunpack.c.h.b16 %v4147
    %v5163 = vunpack.c.l.b16 %v4148
    %v5164 = vunpack.c.h.b16 %v4148
    %v5165 = vunpack.c.l.b16 %v4149
    %v5166 = vunpack.c.h.b16 %v4149
    %v5167 = vunpack.c.l.b16 %v4150
    %v5168 = vunpack.c.h.b16 %v4150
    %v5169 = vunpack.c.l.b16 %v4151
    %v5170 = vunpack.c.h.b16 %v4151
    %v5171 = vunpack.c.l.b16 %v4152
    %v5172 = vunpack.c.h.b16 %v4152
    %v5173 = vunpack.c.l.b16 %v4153
    %v5174 = vunpack.c.h.b16 %v4153
    %v5175 = vunpack.c.l.b16 %v4154
    %v5176 = vunpack.c.h.b16 %v4154
    %v5177 = vunpack.c.l.b16 %v4155
    %v5178 = vunpack.c.h.b16 %v4155
    %v5179 = vunpack.c.l.b16 %v4156
    %v5180 = vunpack.c.h.b16 %v4156
    %v5181 = vunpack.c.l.b16 %v4157
    %v5182 = vunpack.c.h.b16 %v4157
    %v5183 = vunpack.c.l.b16 %v4158
    %v5184 = vunpack.c.h.b16 %v4158
    %v5185 = vunpack.c.l.b16 %v4159
    %v5186 = vunpack.c.h.b16 %v4159
    %v5187 = vunpack.c.l.b16 %v4160
    %v5188 = vunpack.c.h.b16 %v4160
    %v5189 = vunpack.c.l.b16 %v4161
    %v5190 = vunpack.c.h.b16 %v4161
    %v5191 = vunpack.c.l.b16 %v4162
    %v5192 = vunpack.c.h.b16 %v4162
    %v5193 = vunpack.c.l.b16 %v4163
    %v5194 = vunpack.c.h.b16 %v4163
    %v5195 = vunpack.c.l.b16 %v4164
    %v5196 = vunpack.c.h.b16 %v4164
    %v5197 = vunpack.c.l.b16 %v4165
    %v5198 = vunpack.c.h.b16 %v4165
    %v5199 = vunpack.c.l.b16 %v4166
    %v5200 = vunpack.c.h.b16 %v4166
    %v5201 = vunpack.c.l.b16 %v4167
    %v5202 = vunpack.c.h.b16 %v4167
    %v5203 = vunpack.c.l.b16 %v4168
    %v5204 = vunpack.c.h.b16 %v4168
    %v5205 = vunpack.c.l.b16 %v4169
    %v5206 = vunpack.c.h.b16 %v4169
    %v5207 = vunpack.c.l.b16 %v4170
    %v5208 = vunpack.c.h.b16 %v4170
    %v5209 = vunpack.c.l.b16 %v4171
    %v5210 = vunpack.c.h.b16 %v4171
    %v5211 = vunpack.c.l.b16 %v4172
    %v5212 = vunpack.c.h.b16 %v4172
    %v5213 = vunpack.c.l.b16 %v4173
    %v5214 = vunpack.c.h.b16 %v4173
    %v5215 = vunpack.c.l.b16 %v4174
    %v5216 = vunpack.c.h.b16 %v4174
    %v5217 = vunpack.c.l.b16 %v4175
    %v5218 = vunpack.c.h.b16 %v4175
    %v5219 = vunpack.c.l.b16 %v4176
    %v5220 = vunpack.c.h.b16 %v4176
    %v5221 = vunpack.c.l.b16 %v4177
    %v5222 = vunpack.c.h.b16 %v4177
    %v5223 = vunpack.c.l.b16 %v4178
    %v5224 = vunpack.c.h.b16 %v4178
    %v5225 = vunpack.c.l.b16 %v4179
    %v5226 = vunpack.c.h.b16 %v4179
    %v5227 = vunpack.c.l.b16 %v4180
    %v5228 = vunpack.c.h.b16 %v4180
    %v5229 = vunpack.c.l.b16 %v4181
    %v5230 = vunpack.c.h.b16 %v4181
    %v5231 = vunpack.c.l.b16 %v4182
    %v5232 = vunpack.c.h.b16 %v4182
    %v5233 = vunpack.c.l.b16 %v4183
    %v5234 = vunpack.c.h.b16 %v4183
    %v5235 = vunpack.c.l.b16 %v4184
    %v5236 = vunpack.c.h.b16 %v4184
    %v5237 = vunpack.c.l.b16 %v4185
    %v5238 = vunpack.c.h.b16 %v4185
    %v5239 = vunpack.c.l.b16 %v4186
    %v5240 = vunpack.c.h.b16 %v4186
    %v5241 = vunpack.c.l.b16 %v4187
    %v5242 = vunpack.c.h.b16 %v4187
    %v5243 = vunpack.c.l.b16 %v4188
    %v5244 = vunpack.c.h.b16 %v4188
    %v5245 = vunpack.c.l.b16 %v4189
    %v5246 = vunpack.c.h.b16 %v4189
    %v5247 = vunpack.c.l.b16 %v4190
    %v5248 = vunpack.c.h.b16 %v4190
    %v5249 = vunpack.c.l.b16 %v4191
    %v5250 = vunpack.c.h.b16 %v4191
    %v5251 = vunpack.c.l.b16 %v4192
    %v5252 = vunpack.c.h.b16 %v4192
    %v5253 = vunpack.c.l.b16 %v4193
    %v5254 = vunpack.c.h.b16 %v4193
    %v5255 = vunpack.c.l.b16 %v4194
    %v5256 = vunpack.c.h.b16 %v4194
    %v5257 = vunpack.c.l.b16 %v4195
    %v5258 = vunpack.c.h.b16 %v4195
    %v5259 = vunpack.c.l.b16 %v4196
    %v5260 = vunpack.c.h.b16 %v4196
    %v5261 = vunpack.c.l.b16 %v4197
    %v5262 = vunpack.c.h.b16 %v4197
    %v5263 = vunpack.c.l.b16 %v4198
    %v5264 = vunpack.c.h.b16 %v4198
    %v5265 = vunpack.c.l.b16 %v4199
    %v5266 = vunpack.c.h.b16 %v4199
    %v5267 = vunpack.c.l.b16 %v4200
    %v5268 = vunpack.c.h.b16 %v4200
    %v5269 = vunpack.c.l.b16 %v4201
    %v5270 = vunpack.c.h.b16 %v4201
    %v5271 = vunpack.c.l.b16 %v4202
    %v5272 = vunpack.c.h.b16 %v4202
    %v5273 = vunpack.c.l.b16 %v4203
    %v5274 = vunpack.c.h.b16 %v4203
    %v5275 = vunpack.c.l.b16 %v4204
    %v5276 = vunpack.c.h.b16 %v4204
    %v5277 = vunpack.c.l.b16 %v4205
    %v5278 = vunpack.c.h.b16 %v4205
    %v5279 = vunpack.c.l.b16 %v4206
    %v5280 = vunpack.c.h.b16 %v4206
    %v5281 = vunpack.c.l.b16 %v4207
    %v5282 = vunpack.c.h.b16 %v4207
    %v5283 = vunpack.c.l.b16 %v4208
    %v5284 = vunpack.c.h.b16 %v4208
    %v5285 = vunpack.c.l.b16 %v4209
    %v5286 = vunpack.c.h.b16 %v4209
    %v5287 = vunpack.c.l.b16 %v4210
    %v5288 = vunpack.c.h.b16 %v4210
    %v5289 = vunpack.c.l.b16 %v4211
    %v5290 = vunpack.c.h.b16 %v4211
    %v5291 = vunpack.c.l.b16 %v4212
    %v5292 = vunpack.c.h.b16 %v4212
    %v5293 = vunpack.c.l.b16 %v4213
    %v5294 = vunpack.c.h.b16 %v4213
    %v5295 = vunpack.c.l.b16 %v4214
    %v5296 = vunpack.c.h.b16 %v4214
    %v5297 = vunpack.c.l.b16 %v4215
    %v5298 = vunpack.c.h.b16 %v4215
    %v5299 = vunpack.c.l.b16 %v4216
    %v5300 = vunpack.c.h.b16 %v4216
    %v5301 = vunpack.c.l.b16 %v4217
    %v5302 = vunpack.c.h.b16 %v4217
    %v5303 = vunpack.c.l.b16 %v4218
    %v5304 = vunpack.c.h.b16 %v4218
    %v5305 = vunpack.c.l.b16 %v4219
    %v5306 = vunpack.c.h.b16 %v4219
    %v5307 = vunpack.c.l.b16 %v4220
    %v5308 = vunpack.c.h.b16 %v4220
    %v5309 = vunpack.c.l.b16 %v4221
    %v5310 = vunpack.c.h.b16 %v4221
    %v5311 = vunpack.c.l.b16 %v4222
    %v5312 = vunpack.c.h.b16 %v4222
    %v5313 = vunpack.c.l.b16 %v4223
    %v5314 = vunpack.c.h.b16 %v4223
    %v5315 = vunpack.c.l.b16 %v4224
    %v5316 = vunpack.c.h.b16 %v4224
    %v5317 = vunpack.c.l.b16 %v4225
    %v5318 = vunpack.c.h.b16 %v4225
    %v5319 = vunpack.c.l.b16 %v4226
    %v5320 = vunpack.c.h.b16 %v4226
    %v5321 = vunpack.c.l.b16 %v4227
    %v5322 = vunpack.c.h.b16 %v4227
    %v5323 = vunpack.c.l.b16 %v4228
    %v5324 = vunpack.c.h.b16 %v4228
    %v5325 = vunpack.c.l.b16 %v4229
    %v5326 = vunpack.c.h.b16 %v4229
    %v5327 = vunpack.c.l.b16 %v4230
    %v5328 = vunpack.c.h.b16 %v4230
    %v5329 = vunpack.c.l.b16 %v4231
    %v5330 = vunpack.c.h.b16 %v4231
    %v5331 = vunpack.c.l.b16 %v4232
    %v5332 = vunpack.c.h.b16 %v4232
    %v5333 = vunpack.c.l.b16 %v4233
    %v5334 = vunpack.c.h.b16 %v4233
    %v5335 = vunpack.c.l.b16 %v4234
    %v5336 = vunpack.c.h.b16 %v4234
    %v5337 = vunpack.c.l.b16 %v4235
    %v5338 = vunpack.c.h.b16 %v4235
    %v5339 = vunpack.c.l.b16 %v4236
    %v5340 = vunpack.c.h.b16 %v4236
    %v5341 = vunpack.c.l.b16 %v4237
    %v5342 = vunpack.c.h.b16 %v4237
    %v5343 = vunpack.c.l.b16 %v4238
    %v5344 = vunpack.c.h.b16 %v4238
    %v5345 = vunpack.c.l.b16 %v4239
    %v5346 = vunpack.c.h.b16 %v4239
    %v5347 = vunpack.c.l.b16 %v4240
    %v5348 = vunpack.c.h.b16 %v4240
    %v5349 = vunpack.c.l.b16 %v4241
    %v5350 = vunpack.c.h.b16 %v4241
    %v5351 = vunpack.c.l.b16 %v4242
    %v5352 = vunpack.c.h.b16 %v4242
    %v5353 = vunpack.c.l.b16 %v4243
    %v5354 = vunpack.c.h.b16 %v4243
    %v5355 = vunpack.c.l.b16 %v4244
    %v5356 = vunpack.c.h.b16 %v4244
    %v5357 = vunpack.c.l.b16 %v4245
    %v5358 = vunpack.c.h.b16 %v4245
    %v5359 = vunpack.c.l.b16 %v4246
    %v5360 = vunpack.c.h.b16 %v4246
    %v5361 = vunpack.c.l.b16 %v4247
    %v5362 = vunpack.c.h.b16 %v4247
    %v5363 = vunpack.c.l.b16 %v4248
    %v5364 = vunpack.c.h.b16 %v4248
    %v5365 = vunpack.c.l.b16 %v4249
    %v5366 = vunpack.c.h.b16 %v4249
    %v5367 = vunpack.c.l.b16 %v4250
    %v5368 = vunpack.c.h.b16 %v4250
    %v5369 = vunpack.c.l.b16 %v4251
    %v5370 = vunpack.c.h.b16 %v4251
    %v5371 = vunpack.c.l.b16 %v4252
    %v5372 = vunpack.c.h.b16 %v4252
    %v5373 = vunpack.c.l.b16 %v4253
    %v5374 = vunpack.c.h.b16 %v4253
    %v5375 = vunpack.c.l.b16 %v4254
    %v5376 = vunpack.c.h.b16 %v4254
    %v5377 = vunpack.c.l.b16 %v4255
    %v5378 = vunpack.c.h.b16 %v4255
    %v5379 = vunpack.c.l.b16 %v4256
    %v5380 = vunpack.c.h.b16 %v4256
    %v5381 = vunpack.c.l.b16 %v4257
    %v5382 = vunpack.c.h.b16 %v4257
    %v5383 = vunpack.c.l.b16 %v4258
    %v5384 = vunpack.c.h.b16 %v4258
    %v5385 = vunpack.c.l.b16 %v4259
    %v5386 = vunpack.c.h.b16 %v4259
    %v5387 = vunpack.c.l.b16 %v4260
    %v5388 = vunpack.c.h.b16 %v4260
    %v5389 = vunpack.c.l.b16 %v4261
    %v5390 = vunpack.c.h.b16 %v4261
    %v5391 = vunpack.c.l.b16 %v4262
    %v5392 = vunpack.c.h.b16 %v4262
    %v5393 = vunpack.c.l.b16 %v4263
    %v5394 = vunpack.c.h.b16 %v4263
    %v5395 = vunpack.c.l.b16 %v4264
    %v5396 = vunpack.c.h.b16 %v4264
    %v5397 = vunpack.c.l.b16 %v4265
    %v5398 = vunpack.c.h.b16 %v4265
    %v5399 = vunpack.c.l.b16 %v4266
    %v5400 = vunpack.c.h.b16 %v4266
    %v5401 = vunpack.c.l.b16 %v4267
    %v5402 = vunpack.c.h.b16 %v4267
    %v5403 = vunpack.c.l.b16 %v4268
    %v5404 = vunpack.c.h.b16 %v4268
    %v5405 = vunpack.c.l.b16 %v4269
    %v5406 = vunpack.c.h.b16 %v4269
    %v5407 = vunpack.c.l.b16 %v4270
    %v5408 = vunpack.c.h.b16 %v4270
    %v5409 = vunpack.c.l.b16 %v4271
    %v5410 = vunpack.c.h.b16 %v4271
    %v5411 = vunpack.c.l.b16 %v4272
    %v5412 = vunpack.c.h.b16 %v4272
    %v5413 = vunpack.c.l.b16 %v4273
    %v5414 = vunpack.c.h.b16 %v4273
    %v5415 = vunpack.c.l.b16 %v4274
    %v5416 = vunpack.c.h.b16 %v4274
    %v5417 = vunpack.c.l.b16 %v4275
    %v5418 = vunpack.c.h.b16 %v4275
    %v5419 = vunpack.c.l.b16 %v4276
    %v5420 = vunpack.c.h.b16 %v4276
    %v5421 = vunpack.c.l.b16 %v4277
    %v5422 = vunpack.c.h.b16 %v4277
    %v5423 = vunpack.c.l.b16 %v4278
    %v5424 = vunpack.c.h.b16 %v4278
    %v5425 = vunpack.c.l.b16 %v4279
    %v5426 = vunpack.c.h.b16 %v4279
    %v5427 = vunpack.c.l.b16 %v4280
    %v5428 = vunpack.c.h.b16 %v4280
    %v5429 = vunpack.c.l.b16 %v4281
    %v5430 = vunpack.c.h.b16 %v4281
    %v5431 = vunpack.c.l.b16 %v4282
    %v5432 = vunpack.c.h.b16 %v4282
    %v5433 = vunpack.c.l.b16 %v4283
    %v5434 = vunpack.c.h.b16 %v4283
    %v5435 = vunpack.c.l.b16 %v4284
    %v5436 = vunpack.c.h.b16 %v4284
    %v5437 = vunpack.c.l.b16 %v4285
    %v5438 = vunpack.c.h.b16 %v4285
    %v5439 = vunpack.c.l.b16 %v4286
    %v5440 = vunpack.c.h.b16 %v4286
    %v5441 = vunpack.c.l.b16 %v4287
    %v5442 = vunpack.c.h.b16 %v4287
    %v5443 = vunpack.c.l.b16 %v4288
    %v5444 = vunpack.c.h.b16 %v4288
    %v5445 = vunpack.c.l.b16 %v4289
    %v5446 = vunpack.c.h.b16 %v4289
    %v5447 = vunpack.c.l.b16 %v4290
    %v5448 = vunpack.c.h.b16 %v4290
    %v5449 = vunpack.c.l.b16 %v4291
    %v5450 = vunpack.c.h.b16 %v4291
    %v5451 = vunpack.c.l.b16 %v4292
    %v5452 = vunpack.c.h.b16 %v4292
    %v5453 = vunpack.c.l.b16 %v4293
    %v5454 = vunpack.c.h.b16 %v4293
    %v5455 = vunpack.c.l.b16 %v4294
    %v5456 = vunpack.c.h.b16 %v4294
    %v5457 = vunpack.c.l.b16 %v4295
    %v5458 = vunpack.c.h.b16 %v4295
    %v5459 = vunpack.c.l.b16 %v4296
    %v5460 = vunpack.c.h.b16 %v4296
    %v5461 = vunpack.c.l.b16 %v4297
    %v5462 = vunpack.c.h.b16 %v4297
    %v5463 = vunpack.c.l.b16 %v4298
    %v5464 = vunpack.c.h.b16 %v4298
    %v5465 = vunpack.c.l.b16 %v4299
    %v5466 = vunpack.c.h.b16 %v4299
    %v5467 = vunpack.c.l.b16 %v4300
    %v5468 = vunpack.c.h.b16 %v4300
    %v5469 = vunpack.c.l.b16 %v4301
    %v5470 = vunpack.c.h.b16 %v4301
    %v5471 = vunpack.c.l.b16 %v4302
    %v5472 = vunpack.c.h.b16 %v4302
    %v5473 = vunpack.c.l.b16 %v4303
    %v5474 = vunpack.c.h.b16 %v4303
    %v5475 = vunpack.c.l.b16 %v4304
    %v5476 = vunpack.c.h.b16 %v4304
    %v5477 = vunpack.c.l.b16 %v4305
    %v5478 = vunpack.c.h.b16 %v4305
    %v5479 = vunpack.c.l.b16 %v4306
    %v5480 = vunpack.c.h.b16 %v4306
    %v5481 = vunpack.c.l.b16 %v4307
    %v5482 = vunpack.c.h.b16 %v4307
    %v5483 = vunpack.c.l.b16 %v4308
    %v5484 = vunpack.c.h.b16 %v4308
    %v5485 = vunpack.c.l.b16 %v4309
    %v5486 = vunpack.c.h.b16 %v4309
    %v5487 = vunpack.c.l.b16 %v4310
    %v5488 = vunpack.c.h.b16 %v4310
    %v5489 = vunpack.c.l.b16 %v4311
    %v5490 = vunpack.c.h.b16 %v4311
    %v5491 = vunpack.c.l.b16 %v4312
    %v5492 = vunpack.c.h.b16 %v4312
    %v5493 = vunpack.c.l.b16 %v4313
    %v5494 = vunpack.c.h.b16 %v4313
    %v5495 = vunpack.c.l.b16 %v4314
    %v5496 = vunpack.c.h.b16 %v4314
    %v5497 = vunpack.c.l.b16 %v4315
    %v5498 = vunpack.c.h.b16 %v4315
    %v5499 = vunpack.c.l.b16 %v4316
    %v5500 = vunpack.c.h.b16 %v4316
    %v5501 = vpack.c.b16 %v4739, %v4733
    %v5502 = vpack.c.b16 %v4740, %v4734
    %v5503 = vpack.c.b16 %v4741, %v4735
    %v5504 = vpack.c.b16 %v4742, %v4736
    %v5505 = vpack.c.b16 %v4743, %v4737
    %v5506 = vpack.c.b16 %v4744, %v4738
    %v5507 = vpack.c.b16 %v4751, %v4745
    %v5508 = vpack.c.b16 %v4752, %v4746
    %v5509 = vpack.c.b16 %v4753, %v4747
    %v5510 = vpack.c.b16 %v4754, %v4748
    %v5511 = vpack.c.b16 %v4755, %v4749
    %v5512 = vpack.c.b16 %v4756, %v4750
    %v5513 = vpack.c.b16 %v4763, %v4757
    %v5514 = vpack.c.b16 %v4764, %v4758
    %v5515 = vpack.c.b16 %v4765, %v4759
    %v5516 = vpack.c.b16 %v4766, %v4760
    %v5517 = vpack.c.b16 %v4767, %v4761
    %v5518 = vpack.c.b16 %v4768, %v4762
    %v5519 = vpack.c.b16 %v4775, %v4769
    %v5520 = vpack.c.b16 %v4776, %v4770
    %v5521 = vpack.c.b16 %v4777, %v4771
    %v5522 = vpack.c.b16 %v4778, %v4772
    %v5523 = vpack.c.b16 %v4779, %v4773
    %v5524 = vpack.c.b16 %v4780, %v4774
    %v5525 = vpack.c.b16 %v4787, %v4781
    %v5526 = vpack.c.b16 %v4788, %v4782
    %v5527 = vpack.c.b16 %v4789, %v4783
    %v5528 = vpack.c.b16 %v4790, %v4784
    %v5529 = vpack.c.b16 %v4791, %v4785
    %v5530 = vpack.c.b16 %v4792, %v4786
    %v5531 = vpack.c.b16 %v4799, %v4793
    %v5532 = vpack.c.b16 %v4800, %v4794
    %v5533 = vpack.c.b16 %v4801, %v4795
    %v5534 = vpack.c.b16 %v4802, %v4796
    %v5535 = vpack.c.b16 %v4803, %v4797
    %v5536 = vpack.c.b16 %v4804, %v4798
    %v5537 = vpack.c.b16 %v4811, %v4805
    %v5538 = vpack.c.b16 %v4812, %v4806
    %v5539 = vpack.c.b16 %v4813, %v4807
    %v5540 = vpack.c.b16 %v4814, %v4808
    %v5541 = vpack.c.b16 %v4815, %v4809
    %v5542 = vpack.c.b16 %v4816, %v4810
    %v5543 = vpack.c.b16 %v4823, %v4817
    %v5544 = vpack.c.b16 %v4824, %v4818
    %v5545 = vpack.c.b16 %v4825, %v4819
    %v5546 = vpack.c.b16 %v4826, %v4820
    %v5547 = vpack.c.b16 %v4827, %v4821
    %v5548 = vpack.c.b16 %v4828, %v4822
    %v5549 = vpack.c.b16 %v4835, %v4829
    %v5550 = vpack.c.b16 %v4836, %v4830
    %v5551 = vpack.c.b16 %v4837, %v4831
    %v5552 = vpack.c.b16 %v4838, %v4832
    %v5553 = vpack.c.b16 %v4839, %v4833
    %v5554 = vpack.c.b16 %v4840, %v4834
    %v5555 = vpack.c.b16 %v4847, %v4841
    %v5556 = vpack.c.b16 %v4848, %v4842
    %v5557 = vpack.c.b16 %v4849, %v4843
    %v5558 = vpack.c.b16 %v4850, %v4844
    %v5559 = vpack.c.b16 %v4851, %v4845
    %v5560 = vpack.c.b16 %v4852, %v4846
    %v5561 = vpack.c.b16 %v4859, %v4853
    %v5562 = vpack.c.b16 %v4860, %v4854
    %v5563 = vpack.c.b16 %v4861, %v4855
    %v5564 = vpack.c.b16 %v4862, %v4856
    %v5565 = vpack.c.b16 %v4863, %v4857
    %v5566 = vpack.c.b16 %v4864, %v4858
    %v5567 = vpack.c.b16 %v4871, %v4865
    %v5568 = vpack.c.b16 %v4872, %v4866
    %v5569 = vpack.c.b16 %v4873, %v4867
    %v5570 = vpack.c.b16 %v4874, %v4868
    %v5571 = vpack.c.b16 %v4875, %v4869
    %v5572 = vpack.c.b16 %v4876, %v4870
    %v5573 = vpack.c.b16 %v4883, %v4877
    %v5574 = vpack.c.b16 %v4884, %v4878
    %v5575 = vpack.c.b16 %v4885, %v4879
    %v5576 = vpack.c.b16 %v4886, %v4880
    %v5577 = vpack.c.b16 %v4887, %v4881
    %v5578 = vpack.c.b16 %v4888, %v4882
    %v5579 = vpack.c.b16 %v4895, %v4889
    %v5580 = vpack.c.b16 %v4896, %v4890
    %v5581 = vpack.c.b16 %v4897, %v4891
    %v5582 = vpack.c.b16 %v4898, %v4892
    %v5583 = vpack.c.b16 %v4899, %v4893
    %v5584 = vpack.c.b16 %v4900, %v4894
    %v5585 = vpack.c.b16 %v4907, %v4901
    %v5586 = vpack.c.b16 %v4908, %v4902
    %v5587 = vpack.c.b16 %v4909, %v4903
    %v5588 = vpack.c.b16 %v4910, %v4904
    %v5589 = vpack.c.b16 %v4911, %v4905
    %v5590 = vpack.c.b16 %v4912, %v4906
    %v5591 = vpack.c.b16 %v4919, %v4913
    %v5592 = vpack.c.b16 %v4920, %v4914
    %v5593 = vpack.c.b16 %v4921, %v4915
    %v5594 = vpack.c.b16 %v4922, %v4916
    %v5595 = vpack.c.b16 %v4923, %v4917
    %v5596 = vpack.c.b16 %v4924, %v4918
    %v5597 = vpack.c.b16 %v4931, %v4925
    %v5598 = vpack.c.b16 %v4932, %v4926
    %v5599 = vpack.c.b16 %v4933, %v4927
    %v5600 = vpack.c.b16 %v4934, %v4928
    %v5601 = vpack.c.b16 %v4935, %v4929
    %v5602 = vpack.c.b16 %v4936, %v4930
    %v5603 = vpack.c.b16 %v4943, %v4937
    %v5604 = vpack.c.b16 %v4944, %v4938
    %v5605 = vpack.c.b16 %v4945, %v4939
    %v5606 = vpack.c.b16 %v4946, %v4940
    %v5607 = vpack.c.b16 %v4947, %v4941
    %v5608 = vpack.c.b16 %v4948, %v4942
    %v5609 = vpack.c.b16 %v4955, %v4949
    %v5610 = vpack.c.b16 %v4956, %v4950
    %v5611 = vpack.c.b16 %v4957, %v4951
    %v5612 = vpack.c.b16 %v4958, %v4952
    %v5613 = vpack.c.b16 %v4959, %v4953
    %v5614 = vpack.c.b16 %v4960, %v4954
    %v5615 = vpack.c.b16 %v4967, %v4961
    %v5616 = vpack.c.b16 %v4968, %v4962
    %v5617 = vpack.c.b16 %v4969, %v4963
    %v5618 = vpack.c.b16 %v4970, %v4964
    %v5619 = vpack.c.b16 %v4971, %v4965
    %v5620 = vpack.c.b16 %v4972, %v4966
    %v5621 = vpack.c.b16 %v4979, %v4973
    %v5622 = vpack.c.b16 %v4980, %v4974
    %v5623 = vpack.c.b16 %v4981, %v4975
    %v5624 = vpack.c.b16 %v4982, %v4976
    %v5625 = vpack.c.b16 %v4983, %v4977
    %v5626 = vpack.c.b16 %v4984, %v4978
    %v5627 = vpack.c.b16 %v4991, %v4985
    %v5628 = vpack.c.b16 %v4992, %v4986
    %v5629 = vpack.c.b16 %v4993, %v4987
    %v5630 = vpack.c.b16 %v4994, %v4988
    %v5631 = vpack.c.b16 %v4995, %v4989
    %v5632 = vpack.c.b16 %v4996, %v4990
    %v5633 = vpack.c.b16 %v5003, %v4997
    %v5634 = vpack.c.b16 %v5004, %v4998
    %v5635 = vpack.c.b16 %v5005, %v4999
    %v5636 = vpack.c.b16 %v5006, %v5000
    %v5637 = vpack.c.b16 %v5007, %v5001
    %v5638 = vpack.c.b16 %v5008, %v5002
    %v5639 = vpack.c.b16 %v5015, %v5009
    %v5640 = vpack.c.b16 %v5016, %v5010
    %v5641 = vpack.c.b16 %v5017, %v5011
    %v5642 = vpack.c.b16 %v5018, %v5012
    %v5643 = vpack.c.b16 %v5019, %v5013
    %v5644 = vpack.c.b16 %v5020, %v5014
    %v5645 = vpack.c.b16 %v5027, %v5021
    %v5646 = vpack.c.b16 %v5028, %v5022
    %v5647 = vpack.c.b16 %v5029, %v5023
    %v5648 = vpack.c.b16 %v5030, %v5024
    %v5649 = vpack.c.b16 %v5031, %v5025
    %v5650 = vpack.c.b16 %v5032, %v5026
    %v5651 = vpack.c.b16 %v5039, %v5033
    %v5652 = vpack.c.b16 %v5040, %v5034
    %v5653 = vpack.c.b16 %v5041, %v5035
    %v5654 = vpack.c.b16 %v5042, %v5036
    %v5655 = vpack.c.b16 %v5043, %v5037
    %v5656 = vpack.c.b16 %v5044, %v5038
    %v5657 = vpack.c.b16 %v5051, %v5045
    %v5658 = vpack.c.b16 %v5052, %v5046
    %v5659 = vpack.c.b16 %v5053, %v5047
    %v5660 = vpack.c.b16 %v5054, %v5048
    %v5661 = vpack.c.b16 %v5055, %v5049
    %v5662 = vpack.c.b16 %v5056, %v5050
    %v5663 = vpack.c.b16 %v5063, %v5057
    %v5664 = vpack.c.b16 %v5064, %v5058
    %v5665 = vpack.c.b16 %v5065, %v5059
    %v5666 = vpack.c.b16 %v5066, %v5060
    %v5667 = vpack.c.b16 %v5067, %v5061
    %v5668 = vpack.c.b16 %v5068, %v5062
    %v5669 = vpack.c.b16 %v5075, %v5069
    %v5670 = vpack.c.b16 %v5076, %v5070
    %v5671 = vpack.c.b16 %v5077, %v5071
    %v5672 = vpack.c.b16 %v5078, %v5072
    %v5673 = vpack.c.b16 %v5079, %v5073
    %v5674 = vpack.c.b16 %v5080, %v5074
    %v5675 = vpack.c.b16 %v5087, %v5081
    %v5676 = vpack.c.b16 %v5088, %v5082
    %v5677 = vpack.c.b16 %v5089, %v5083
    %v5678 = vpack.c.b16 %v5090, %v5084
    %v5679 = vpack.c.b16 %v5091, %v5085
    %v5680 = vpack.c.b16 %v5092, %v5086
    %v5681 = vpack.c.b16 %v5099, %v5093
    %v5682 = vpack.c.b16 %v5100, %v5094
    %v5683 = vpack.c.b16 %v5101, %v5095
    %v5684 = vpack.c.b16 %v5102, %v5096
    %v5685 = vpack.c.b16 %v5103, %v5097
    %v5686 = vpack.c.b16 %v5104, %v5098
    %v5687 = vpack.c.b16 %v5111, %v5105
    %v5688 = vpack.c.b16 %v5112, %v5106
    %v5689 = vpack.c.b16 %v5113, %v5107
    %v5690 = vpack.c.b16 %v5114, %v5108
    %v5691 = vpack.c.b16 %v5115, %v5109
    %v5692 = vpack.c.b16 %v5116, %v5110
    %v5693 = vpack.c.b16 %v5123, %v5117
    %v5694 = vpack.c.b16 %v5124, %v5118
    %v5695 = vpack.c.b16 %v5125, %v5119
    %v5696 = vpack.c.b16 %v5126, %v5120
    %v5697 = vpack.c.b16 %v5127, %v5121
    %v5698 = vpack.c.b16 %v5128, %v5122
    %v5699 = vpack.c.b16 %v5135, %v5129
    %v5700 = vpack.c.b16 %v5136, %v5130
    %v5701 = vpack.c.b16 %v5137, %v5131
    %v5702 = vpack.c.b16 %v5138, %v5132
    %v5703 = vpack.c.b16 %v5139, %v5133
    %v5704 = vpack.c.b16 %v5140, %v5134
    %v5705 = vpack.c.b16 %v5147, %v5141
    %v5706 = vpack.c.b16 %v5148, %v5142
    %v5707 = vpack.c.b16 %v5149, %v5143
    %v5708 = vpack.c.b16 %v5150, %v5144
    %v5709 = vpack.c.b16 %v5151, %v5145
    %v5710 = vpack.c.b16 %v5152, %v5146
    %v5711 = vpack.c.b16 %v5159, %v5153
    %v5712 = vpack.c.b16 %v5160, %v5154
    %v5713 = vpack.c.b16 %v5161, %v5155
    %v5714 = vpack.c.b16 %v5162, %v5156
    %v5715 = vpack.c.b16 %v5163, %v5157
    %v5716 = vpack.c.b16 %v5164, %v5158
    %v5717 = vpack.c.b16 %v5171, %v5165
    %v5718 = vpack.c.b16 %v5172, %v5166
    %v5719 = vpack.c.b16 %v5173, %v5167
    %v5720 = vpack.c.b16 %v5174, %v5168
    %v5721 = vpack.c.b16 %v5175, %v5169
    %v5722 = vpack.c.b16 %v5176, %v5170
    %v5723 = vpack.c.b16 %v5183, %v5177
    %v5724 = vpack.c.b16 %v5184, %v5178
    %v5725 = vpack.c.b16 %v5185, %v5179
    %v5726 = vpack.c.b16 %v5186, %v5180
    %v5727 = vpack.c.b16 %v5187, %v5181
    %v5728 = vpack.c.b16 %v5188, %v5182
    %v5729 = vpack.c.b16 %v5195, %v5189
    %v5730 = vpack.c.b16 %v5196, %v5190
    %v5731 = vpack.c.b16 %v5197, %v5191
    %v5732 = vpack.c.b16 %v5198, %v5192
    %v5733 = vpack.c.b16 %v5199, %v5193
    %v5734 = vpack.c.b16 %v5200, %v5194
    %v5735 = vpack.c.b16 %v5207, %v5201
    %v5736 = vpack.c.b16 %v5208, %v5202
    %v5737 = vpack.c.b16 %v5209, %v5203
    %v5738 = vpack.c.b16 %v5210, %v5204
    %v5739 = vpack.c.b16 %v5211, %v5205
    %v5740 = vpack.c.b16 %v5212, %v5206
    %v5741 = vpack.c.b16 %v5219, %v5213
    %v5742 = vpack.c.b16 %v5220, %v5214
    %v5743 = vpack.c.b16 %v5221, %v5215
    %v5744 = vpack.c.b16 %v5222, %v5216
    %v5745 = vpack.c.b16 %v5223, %v5217
    %v5746 = vpack.c.b16 %v5224, %v5218
    %v5747 = vpack.c.b16 %v5231, %v5225
    %v5748 = vpack.c.b16 %v5232, %v5226
    %v5749 = vpack.c.b16 %v5233, %v5227
    %v5750 = vpack.c.b16 %v5234, %v5228
    %v5751 = vpack.c.b16 %v5235, %v5229
    %v5752 = vpack.c.b16 %v5236, %v5230
    %v5753 = vpack.c.b16 %v5243, %v5237
    %v5754 = vpack.c.b16 %v5244, %v5238
    %v5755 = vpack.c.b16 %v5245, %v5239
    %v5756 = vpack.c.b16 %v5246, %v5240
    %v5757 = vpack.c.b16 %v5247, %v5241
    %v5758 = vpack.c.b16 %v5248, %v5242
    %v5759 = vpack.c.b16 %v5255, %v5249
    %v5760 = vpack.c.b16 %v5256, %v5250
    %v5761 = vpack.c.b16 %v5257, %v5251
    %v5762 = vpack.c.b16 %v5258, %v5252
    %v5763 = vpack.c.b16 %v5259, %v5253
    %v5764 = vpack.c.b16 %v5260, %v5254
    %v5765 = vpack.c.b16 %v5267, %v5261
    %v5766 = vpack.c.b16 %v5268, %v5262
    %v5767 = vpack.c.b16 %v5269, %v5263
    %v5768 = vpack.c.b16 %v5270, %v5264
    %v5769 = vpack.c.b16 %v5271, %v5265
    %v5770 = vpack.c.b16 %v5272, %v5266
    %v5771 = vpack.c.b16 %v5279, %v5273
    %v5772 = vpack.c.b16 %v5280, %v5274
    %v5773 = vpack.c.b16 %v5281, %v5275
    %v5774 = vpack.c.b16 %v5282, %v5276
    %v5775 = vpack.c.b16 %v5283, %v5277
    %v5776 = vpack.c.b16 %v5284, %v5278
    %v5777 = vpack.c.b16 %v5291, %v5285
    %v5778 = vpack.c.b16 %v5292, %v5286
    %v5779 = vpack.c.b16 %v5293, %v5287
    %v5780 = vpack.c.b16 %v5294, %v5288
    %v5781 = vpack.c.b16 %v5295, %v5289
    %v5782 = vpack.c.b16 %v5296, %v5290
    %v5783 = vpack.c.b16 %v5303, %v5297
    %v5784 = vpack.c.b16 %v5304, %v5298
    %v5785 = vpack.c.b16 %v5305, %v5299
    %v5786 = vpack.c.b16 %v5306, %v5300
    %v5787 = vpack.c.b16 %v5307, %v5301
    %v5788 = vpack.c.b16 %v5308, %v5302
    %v5789 = vpack.c.b16 %v5315, %v5309
    %v5790 = vpack.c.b16 %v5316, %v5310
    %v5791 = vpack.c.b16 %v5317, %v5311
    %v5792 = vpack.c.b16 %v5318, %v5312
    %v5793 = vpack.c.b16 %v5319, %v5313
    %v5794 = vpack.c.b16 %v5320, %v5314
    %v5795 = vpack.c.b16 %v5327, %v5321
    %v5796 = vpack.c.b16 %v5328, %v5322
    %v5797 = vpack.c.b16 %v5329, %v5323
    %v5798 = vpack.c.b16 %v5330, %v5324
    %v5799 = vpack.c.b16 %v5331, %v5325
    %v5800 = vpack.c.b16 %v5332, %v5326
    %v5801 = vpack.c.b16 %v5339, %v5333
    %v5802 = vpack.c.b16 %v5340, %v5334
    %v5803 = vpack.c.b16 %v5341, %v5335
    %v5804 = vpack.c.b16 %v5342, %v5336
    %v5805 = vpack.c.b16 %v5343, %v5337
    %v5806 = vpack.c.b16 %v5344, %v5338
    %v5807 = vpack.c.b16 %v5351, %v5345
    %v5808 = vpack.c.b16 %v5352, %v5346
    %v5809 = vpack.c.b16 %v5353, %v5347
    %v5810 = vpack.c.b16 %v5354, %v5348
    %v5811 = vpack.c.b16 %v5355, %v5349
    %v5812 = vpack.c.b16 %v5356, %v5350
    %v5813 = vpack.c.b16 %v5363, %v5357
    %v5814 = vpack.c.b16 %v5364, %v5358
    %v5815 = vpack.c.b16 %v5365, %v5359
    %v5816 = vpack.c.b16 %v5366, %v5360
    %v5817 = vpack.c.b16 %v5367, %v5361
    %v5818 = vpack.c.b16 %v5368, %v5362
    %v5819 = vpack.c.b16 %v5375, %v5369
    %v5820 = vpack.c.b16 %v5376, %v5370
    %v5821 = vpack.c.b16 %v5377, %v5371
    %v5822 = vpack.c.b16 %v5378, %v5372
    %v5823 = vpack.c.b16 %v5379, %v5373
    %v5824 = vpack.c.b16 %v5380, %v5374
    %v5825 = vpack.c.b16 %v5387, %v5381
    %v5826 = vpack.c.b16 %v5388, %v5382
    %v5827 = vpack.c.b16 %v5389, %v5383
    %v5828 = vpack.c.b16 %v5390, %v5384
    %v5829 = vpack.c.b16 %v5391, %v5385
    %v5830 = vpack.c.b16 %v5392, %v5386
    %v5831 = vpack.c.b16 %v5399, %v5393
    %v5832 = vpack.c.b16 %v5400, %v5394
    %v5833 = vpack.c.b16 %v5401, %v5395
    %v5834 = vpack.c.b16 %v5402, %v5396
    %v5835 = vpack.c.b16 %v5403, %v5397
    %v5836 = vpack.c.b16 %v5404, %v5398
    %v5837 = vpack.c.b16 %v5411, %v5405
    %v5838 = vpack.c.b16 %v5412, %v5406
    %v5839 = vpack.c.b16 %v5413, %v5407
    %v5840 = vpack.c.b16 %v5414, %v5408
    %v5841 = vpack.c.b16 %v5415, %v5409
    %v5842 = vpack.c.b16 %v5416, %v5410
    %v5843 = vpack.c.b16 %v5423, %v5417
    %v5844 = vpack.c.b16 %v5424, %v5418
    %v5845 = vpack.c.b16 %v5425, %v5419
    %v5846 = vpack.c.b16 %v5426, %v5420
    %v5847 = vpack.c.b16 %v5427, %v5421
    %v5848 = vpack.c.b16 %v5428, %v5422
    %v5849 = vpack.c.b16 %v5435, %v5429
    %v5850 = vpack.c.b16 %v5436, %v5430
    %v5851 = vpack.c.b16 %v5437, %v5431
    %v5852 = vpack.c.b16 %v5438, %v5432
    %v5853 = vpack.c.b16 %v5439, %v5433
    %v5854 = vpack.c.b16 %v5440, %v5434
    %v5855 = vpack.c.b16 %v5447, %v5441
    %v5856 = vpack.c.b16 %v5448, %v5442
    %v5857 = vpack.c.b16 %v5449, %v5443
    %v5858 = vpack.c.b16 %v5450, %v5444
    %v5859 = vpack.c.b16 %v5451, %v5445
    %v5860 = vpack.c.b16 %v5452, %v5446
    %v5861 = vpack.c.b16 %v5459, %v5453
    %v5862 = vpack.c.b16 %v5460, %v5454
    %v5863 = vpack.c.b16 %v5461, %v5455
    %v5864 = vpack.c.b16 %v5462, %v5456
    %v5865 = vpack.c.b16 %v5463, %v5457
    %v5866 = vpack.c.b16 %v5464, %v5458
    %v5867 = vpack.c.b16 %v5471, %v5465
    %v5868 = vpack.c.b16 %v5472, %v5466
    %v5869 = vpack.c.b16 %v5473, %v5467
    %v5870 = vpack.c.b16 %v5474, %v5468
    %v5871 = vpack.c.b16 %v5475, %v5469
    %v5872 = vpack.c.b16 %v5476, %v5470
    %v5873 = vpack.c.b16 %v5483, %v5477
    %v5874 = vpack.c.b16 %v5484, %v5478
    %v5875 = vpack.c.b16 %v5485, %v5479
    %v5876 = vpack.c.b16 %v5486, %v5480
    %v5877 = vpack.c.b16 %v5487, %v5481
    %v5878 = vpack.c.b16 %v5488, %v5482
    %v5879 = vpack.c.b16 %v5495, %v5489
    %v5880 = vpack.c.b16 %v5496, %v5490
    %v5881 = vpack.c.b16 %v5497, %v5491
    %v5882 = vpack.c.b16 %v5498, %v5492
    %v5883 = vpack.c.b16 %v5499, %v5493
    %v5884 = vpack.c.b16 %v5500, %v5494
    %6269 = vmatprep.subr.bf16.mxu0 %v5502
    %6270 = vmatpush1.bf16.msra.mxu0 %v5501
    %6271 = vmatprep.subr.bf16.mxu0 %v5508
    %6272 = vmatpush1.bf16.msra.mxu0 %v5507
    %6273 = vmatprep.subr.bf16.mxu0 %v5514
    %6274 = vmatpush1.bf16.msra.mxu0 %v5513
    %6275 = vmatprep.subr.bf16.mxu0 %v5520
    %6276 = vmatpush1.bf16.msra.mxu0 %v5519
    %6277 = vmatprep.subr.bf16.mxu0 %v5526
    %6278 = vmatpush1.bf16.msra.mxu0 %v5525
    %6279 = vmatprep.subr.bf16.mxu0 %v5532
    %6280 = vmatpush1.bf16.msra.mxu0 %v5531
    %6281 = vmatprep.subr.bf16.mxu0 %v5538
    %6282 = vmatpush1.bf16.msra.mxu0 %v5537
    %6283 = vmatprep.subr.bf16.mxu0 %v5544
    %6284 = vmatpush1.bf16.msra.mxu0 %v5543
    %6285 = vmatprep.subr.bf16.mxu0 %v5550
    %6286 = vmatpush1.bf16.msra.mxu0 %v5549
    %6287 = vmatprep.subr.bf16.mxu0 %v5556
    %6288 = vmatpush1.bf16.msra.mxu0 %v5555
    %6289 = vmatprep.subr.bf16.mxu0 %v5562
    %6290 = vmatpush1.bf16.msra.mxu0 %v5561
    %6291 = vmatprep.subr.bf16.mxu0 %v5568
    %6292 = vmatpush1.bf16.msra.mxu0 %v5567
    %6293 = vmatprep.subr.bf16.mxu0 %v5574
    %6294 = vmatpush1.bf16.msra.mxu0 %v5573
    %6295 = vmatprep.subr.bf16.mxu0 %v5580
    %6296 = vmatpush1.bf16.msra.mxu0 %v5579
    %6297 = vmatprep.subr.bf16.mxu0 %v5586
    %6298 = vmatpush1.bf16.msra.mxu0 %v5585
    %6299 = vmatprep.subr.bf16.mxu0 %v5592
    %6300 = vmatpush1.bf16.msra.mxu0 %v5591
    %6301 = vmatprep.mubr.bf16.mxu0 %v3926
    %6302 = vmatmul.mubr.bf16.gmra.mrb[0].mxu0 %v3925
    %v6303 = vpop.f32.mrb[0].mxu0
    %v6304 = vadd.f32 %v4322, %v6303
    %v6305 = vpop.f32.mrb[0].mxu0
    %v6306 = vadd.f32 %v4326, %v6305
    %v6307 = vpop.f32.mrb[0].mxu0
    %v6308 = vpop.f32.mrb[0].mxu0
    %6309 = vdwg.mxu0
    %6310 = vmatprep.subr.bf16.mxu0 %v5598
    %6311 = vmatpush1.bf16.msra.mxu0 %v5597
    %6312 = vmatprep.subr.bf16.mxu0 %v5604
    %6313 = vmatpush1.bf16.msra.mxu0 %v5603
    %6314 = vmatprep.subr.bf16.mxu0 %v5610
    %6315 = vmatpush1.bf16.msra.mxu0 %v5609
    %6316 = vmatprep.subr.bf16.mxu0 %v5616
    %6317 = vmatpush1.bf16.msra.mxu0 %v5615
    %6318 = vmatprep.subr.bf16.mxu0 %v5622
    %6319 = vmatpush1.bf16.msra.mxu0 %v5621
    %6320 = vmatprep.subr.bf16.mxu0 %v5628
    %6321 = vmatpush1.bf16.msra.mxu0 %v5627
    %6322 = vmatprep.subr.bf16.mxu0 %v5634
    %6323 = vmatpush1.bf16.msra.mxu0 %v5633
    %6324 = vmatprep.subr.bf16.mxu0 %v5640
    %6325 = vmatpush1.bf16.msra.mxu0 %v5639
    %6326 = vmatprep.subr.bf16.mxu0 %v5646
    %6327 = vmatpush1.bf16.msra.mxu0 %v5645
    %6328 = vmatprep.subr.bf16.mxu0 %v5652
    %6329 = vmatpush1.bf16.msra.mxu0 %v5651
    %6330 = vmatprep.subr.bf16.mxu0 %v5658
    %6331 = vmatpush1.bf16.msra.mxu0 %v5657
    %6332 = vmatprep.subr.bf16.mxu0 %v5664
    %6333 = vmatpush1.bf16.msra.mxu0 %v5663
    %6334 = vmatprep.subr.bf16.mxu0 %v5670
    %6335 = vmatpush1.bf16.msra.mxu0 %v5669
    %6336 = vmatprep.subr.bf16.mxu0 %v5676
    %6337 = vmatpush1.bf16.msra.mxu0 %v5675
    %6338 = vmatprep.subr.bf16.mxu0 %v5682
    %6339 = vmatpush1.bf16.msra.mxu0 %v5681
    %6340 = vmatprep.subr.bf16.mxu0 %v5688
    %6341 = vmatpush1.bf16.msra.mxu0 %v5687
    %6342 = vmatprep.mubr.bf16.mxu0 %v3928
    %6343 = vmatmul.mubr.bf16.gmra.mrb[0].mxu0 %v3927
    %v6344 = vpop.f32.mrb[0].mxu0
    %v6345 = vadd.f32 %v6304, %v6344
    %v6346 = vpop.f32.mrb[0].mxu0
    %v6347 = vadd.f32 %v6306, %v6346
    %v6348 = vpop.f32.mrb[0].mxu0
    %v6349 = vpop.f32.mrb[0].mxu0
    %6350 = vdwg.mxu0
    %6351 = vmatprep.subr.bf16.mxu0 %v5694
    %6352 = vmatpush1.bf16.msra.mxu0 %v5693
    %6353 = vmatprep.subr.bf16.mxu0 %v5700
    %6354 = vmatpush1.bf16.msra.mxu0 %v5699
    %6355 = vmatprep.subr.bf16.mxu0 %v5706
    %6356 = vmatpush1.bf16.msra.mxu0 %v5705
    %6357 = vmatprep.subr.bf16.mxu0 %v5712
    %6358 = vmatpush1.bf16.msra.mxu0 %v5711
    %6359 = vmatprep.subr.bf16.mxu0 %v5718
    %6360 = vmatpush1.bf16.msra.mxu0 %v5717
    %6361 = vmatprep.subr.bf16.mxu0 %v5724
    %6362 = vmatpush1.bf16.msra.mxu0 %v5723
    %6363 = vmatprep.subr.bf16.mxu0 %v5730
    %6364 = vmatpush1.bf16.msra.mxu0 %v5729
    %6365 = vmatprep.subr.bf16.mxu0 %v5736
    %6366 = vmatpush1.bf16.msra.mxu0 %v5735
    %6367 = vmatprep.subr.bf16.mxu0 %v5742
    %6368 = vmatpush1.bf16.msra.mxu0 %v5741
    %6369 = vmatprep.subr.bf16.mxu0 %v5748
    %6370 = vmatpush1.bf16.msra.mxu0 %v5747
    %6371 = vmatprep.subr.bf16.mxu0 %v5754
    %6372 = vmatpush1.bf16.msra.mxu0 %v5753
    %6373 = vmatprep.subr.bf16.mxu0 %v5760
    %6374 = vmatpush1.bf16.msra.mxu0 %v5759
    %6375 = vmatprep.subr.bf16.mxu0 %v5766
    %6376 = vmatpush1.bf16.msra.mxu0 %v5765
    %6377 = vmatprep.subr.bf16.mxu0 %v5772
    %6378 = vmatpush1.bf16.msra.mxu0 %v5771
    %6379 = vmatprep.subr.bf16.mxu0 %v5778
    %6380 = vmatpush1.bf16.msra.mxu0 %v5777
    %6381 = vmatprep.subr.bf16.mxu0 %v5784
    %6382 = vmatpush1.bf16.msra.mxu0 %v5783
    %6383 = vmatprep.mubr.bf16.mxu0 %v3930
    %6384 = vmatmul.mubr.bf16.gmra.mrb[0].mxu0 %v3929
    %v6385 = vpop.f32.mrb[0].mxu0
    %v6386 = vadd.f32 %v6345, %v6385
    %v6387 = vpop.f32.mrb[0].mxu0
    %v6388 = vadd.f32 %v6347, %v6387
    %v6389 = vpop.f32.mrb[0].mxu0
    %v6390 = vpop.f32.mrb[0].mxu0
    %6391 = vdwg.mxu0
    %6392 = vmatprep.subr.bf16.mxu0 %v5790
    %6393 = vmatpush1.bf16.msra.mxu0 %v5789
    %6394 = vmatprep.subr.bf16.mxu0 %v5796
    %6395 = vmatpush1.bf16.msra.mxu0 %v5795
    %6396 = vmatprep.subr.bf16.mxu0 %v5802
    %6397 = vmatpush1.bf16.msra.mxu0 %v5801
    %6398 = vmatprep.subr.bf16.mxu0 %v5808
    %6399 = vmatpush1.bf16.msra.mxu0 %v5807
    %6400 = vmatprep.subr.bf16.mxu0 %v5814
    %6401 = vmatpush1.bf16.msra.mxu0 %v5813
    %6402 = vmatprep.subr.bf16.mxu0 %v5820
    %6403 = vmatpush1.bf16.msra.mxu0 %v5819
    %6404 = vmatprep.subr.bf16.mxu0 %v5826
    %6405 = vmatpush1.bf16.msra.mxu0 %v5825
    %6406 = vmatprep.subr.bf16.mxu0 %v5832
    %6407 = vmatpush1.bf16.msra.mxu0 %v5831
    %6408 = vmatprep.subr.bf16.mxu0 %v5838
    %6409 = vmatpush1.bf16.msra.mxu0 %v5837
    %6410 = vmatprep.subr.bf16.mxu0 %v5844
    %6411 = vmatpush1.bf16.msra.mxu0 %v5843
    %6412 = vmatprep.subr.bf16.mxu0 %v5850
    %6413 = vmatpush1.bf16.msra.mxu0 %v5849
    %6414 = vmatprep.subr.bf16.mxu0 %v5856
    %6415 = vmatpush1.bf16.msra.mxu0 %v5855
    %6416 = vmatprep.subr.bf16.mxu0 %v5862
    %6417 = vmatpush1.bf16.msra.mxu0 %v5861
    %6418 = vmatprep.subr.bf16.mxu0 %v5868
    %6419 = vmatpush1.bf16.msra.mxu0 %v5867
    %6420 = vmatprep.subr.bf16.mxu0 %v5874
    %6421 = vmatpush1.bf16.msra.mxu0 %v5873
    %6422 = vmatprep.subr.bf16.mxu0 %v5880
    %6423 = vmatpush1.bf16.msra.mxu0 %v5879
    %6424 = vmatprep.mubr.bf16.mxu0 %v3932
    %6425 = vmatmul.mubr.bf16.gmra.mrb[0].mxu0 %v3931
    %v6426 = vpop.f32.mrb[0].mxu0
    %v6427 = vadd.f32 %v6386, %v6426
    %v6428 = vpop.f32.mrb[0].mxu0
    %v6429 = vadd.f32 %v6388, %v6428
    %v6430 = vpop.f32.mrb[0].mxu0
    %v6431 = vpop.f32.mrb[0].mxu0
    %6432 = vdwg.mxu0
    %6433 = vmatprep.subr.bf16.mxu0 %v5504
    %6434 = vmatpush1.bf16.msra.mxu0 %v5503
    %6435 = vmatprep.subr.bf16.mxu0 %v5510
    %6436 = vmatpush1.bf16.msra.mxu0 %v5509
    %6437 = vmatprep.subr.bf16.mxu0 %v5516
    %6438 = vmatpush1.bf16.msra.mxu0 %v5515
    %6439 = vmatprep.subr.bf16.mxu0 %v5522
    %6440 = vmatpush1.bf16.msra.mxu0 %v5521
    %6441 = vmatprep.subr.bf16.mxu0 %v5528
    %6442 = vmatpush1.bf16.msra.mxu0 %v5527
    %6443 = vmatprep.subr.bf16.mxu0 %v5534
    %6444 = vmatpush1.bf16.msra.mxu0 %v5533
    %6445 = vmatprep.subr.bf16.mxu0 %v5540
    %6446 = vmatpush1.bf16.msra.mxu0 %v5539
    %6447 = vmatprep.subr.bf16.mxu0 %v5546
    %6448 = vmatpush1.bf16.msra.mxu0 %v5545
    %6449 = vmatprep.subr.bf16.mxu0 %v5552
    %6450 = vmatpush1.bf16.msra.mxu0 %v5551
    %6451 = vmatprep.subr.bf16.mxu0 %v5558
    %6452 = vmatpush1.bf16.msra.mxu0 %v5557
    %6453 = vmatprep.subr.bf16.mxu0 %v5564
    %6454 = vmatpush1.bf16.msra.mxu0 %v5563
    %6455 = vmatprep.subr.bf16.mxu0 %v5570
    %6456 = vmatpush1.bf16.msra.mxu0 %v5569
    %6457 = vmatprep.subr.bf16.mxu0 %v5576
    %6458 = vmatpush1.bf16.msra.mxu0 %v5575
    %6459 = vmatprep.subr.bf16.mxu0 %v5582
    %6460 = vmatpush1.bf16.msra.mxu0 %v5581
    %6461 = vmatprep.subr.bf16.mxu0 %v5588
    %6462 = vmatpush1.bf16.msra.mxu0 %v5587
    %6463 = vmatprep.subr.bf16.mxu0 %v5594
    %6464 = vmatpush1.bf16.msra.mxu0 %v5593
    %6465 = vmatprep.mubr.bf16.mxu0 %v3926
    %6466 = vmatmul.mubr.bf16.gmra.mrb[0].mxu0 %v3925
    %v6467 = vpop.f32.mrb[0].mxu0
    %v6468 = vadd.f32 %v4330, %v6467
    %v6469 = vpop.f32.mrb[0].mxu0
    %v6470 = vadd.f32 %v4334, %v6469
    %v6471 = vpop.f32.mrb[0].mxu0
    %v6472 = vpop.f32.mrb[0].mxu0
    %6473 = vdwg.mxu0
    %6474 = vmatprep.subr.bf16.mxu0 %v5600
    %6475 = vmatpush1.bf16.msra.mxu0 %v5599
    %6476 = vmatprep.subr.bf16.mxu0 %v5606
    %6477 = vmatpush1.bf16.msra.mxu0 %v5605
    %6478 = vmatprep.subr.bf16.mxu0 %v5612
    %6479 = vmatpush1.bf16.msra.mxu0 %v5611
    %6480 = vmatprep.subr.bf16.mxu0 %v5618
    %6481 = vmatpush1.bf16.msra.mxu0 %v5617
    %6482 = vmatprep.subr.bf16.mxu0 %v5624
    %6483 = vmatpush1.bf16.msra.mxu0 %v5623
    %6484 = vmatprep.subr.bf16.mxu0 %v5630
    %6485 = vmatpush1.bf16.msra.mxu0 %v5629
    %6486 = vmatprep.subr.bf16.mxu0 %v5636
    %6487 = vmatpush1.bf16.msra.mxu0 %v5635
    %6488 = vmatprep.subr.bf16.mxu0 %v5642
    %6489 = vmatpush1.bf16.msra.mxu0 %v5641
    %6490 = vmatprep.subr.bf16.mxu0 %v5648
    %6491 = vmatpush1.bf16.msra.mxu0 %v5647
    %6492 = vmatprep.subr.bf16.mxu0 %v5654
    %6493 = vmatpush1.bf16.msra.mxu0 %v5653
    %6494 = vmatprep.subr.bf16.mxu0 %v5660
    %6495 = vmatpush1.bf16.msra.mxu0 %v5659
    %6496 = vmatprep.subr.bf16.mxu0 %v5666
    %6497 = vmatpush1.bf16.msra.mxu0 %v5665
    %6498 = vmatprep.subr.bf16.mxu0 %v5672
    %6499 = vmatpush1.bf16.msra.mxu0 %v5671
    %6500 = vmatprep.subr.bf16.mxu0 %v5678
    %6501 = vmatpush1.bf16.msra.mxu0 %v5677
    %6502 = vmatprep.subr.bf16.mxu0 %v5684
    %6503 = vmatpush1.bf16.msra.mxu0 %v5683
    %6504 = vmatprep.subr.bf16.mxu0 %v5690
    %6505 = vmatpush1.bf16.msra.mxu0 %v5689
    %6506 = vmatprep.mubr.bf16.mxu0 %v3928
    %6507 = vmatmul.mubr.bf16.gmra.mrb[0].mxu0 %v3927
    %v6508 = vpop.f32.mrb[0].mxu0
    %v6509 = vadd.f32 %v6468, %v6508
    %v6510 = vpop.f32.mrb[0].mxu0
    %v6511 = vadd.f32 %v6470, %v6510
    %v6512 = vpop.f32.mrb[0].mxu0
    %v6513 = vpop.f32.mrb[0].mxu0
    %6514 = vdwg.mxu0
    %6515 = vmatprep.subr.bf16.mxu0 %v5696
    %6516 = vmatpush1.bf16.msra.mxu0 %v5695
    %6517 = vmatprep.subr.bf16.mxu0 %v5702
    %6518 = vmatpush1.bf16.msra.mxu0 %v5701
    %6519 = vmatprep.subr.bf16.mxu0 %v5708
    %6520 = vmatpush1.bf16.msra.mxu0 %v5707
    %6521 = vmatprep.subr.bf16.mxu0 %v5714
    %6522 = vmatpush1.bf16.msra.mxu0 %v5713
    %6523 = vmatprep.subr.bf16.mxu0 %v5720
    %6524 = vmatpush1.bf16.msra.mxu0 %v5719
    %6525 = vmatprep.subr.bf16.mxu0 %v5726
    %6526 = vmatpush1.bf16.msra.mxu0 %v5725
    %6527 = vmatprep.subr.bf16.mxu0 %v5732
    %6528 = vmatpush1.bf16.msra.mxu0 %v5731
    %6529 = vmatprep.subr.bf16.mxu0 %v5738
    %6530 = vmatpush1.bf16.msra.mxu0 %v5737
    %6531 = vmatprep.subr.bf16.mxu0 %v5744
    %6532 = vmatpush1.bf16.msra.mxu0 %v5743
    %6533 = vmatprep.subr.bf16.mxu0 %v5750
    %6534 = vmatpush1.bf16.msra.mxu0 %v5749
    %6535 = vmatprep.subr.bf16.mxu0 %v5756
    %6536 = vmatpush1.bf16.msra.mxu0 %v5755
    %6537 = vmatprep.subr.bf16.mxu0 %v5762
    %6538 = vmatpush1.bf16.msra.mxu0 %v5761
    %6539 = vmatprep.subr.bf16.mxu0 %v5768
    %6540 = vmatpush1.bf16.msra.mxu0 %v5767
    %6541 = vmatprep.subr.bf16.mxu0 %v5774
    %6542 = vmatpush1.bf16.msra.mxu0 %v5773
    %6543 = vmatprep.subr.bf16.mxu0 %v5780
    %6544 = vmatpush1.bf16.msra.mxu0 %v5779
    %6545 = vmatprep.subr.bf16.mxu0 %v5786
    %6546 = vmatpush1.bf16.msra.mxu0 %v5785
    %6547 = vmatprep.mubr.bf16.mxu0 %v3930
    %6548 = vmatmul.mubr.bf16.gmra.mrb[0].mxu0 %v3929
    %v6549 = vpop.f32.mrb[0].mxu0
    %v6550 = vadd.f32 %v6509, %v6549
    %v6551 = vpop.f32.mrb[0].mxu0
    %v6552 = vadd.f32 %v6511, %v6551
    %v6553 = vpop.f32.mrb[0].mxu0
    %v6554 = vpop.f32.mrb[0].mxu0
    %6555 = vdwg.mxu0
    %6556 = vmatprep.subr.bf16.mxu0 %v5792
    %6557 = vmatpush1.bf16.msra.mxu0 %v5791
    %6558 = vmatprep.subr.bf16.mxu0 %v5798
    %6559 = vmatpush1.bf16.msra.mxu0 %v5797
    %6560 = vmatprep.subr.bf16.mxu0 %v5804
    %6561 = vmatpush1.bf16.msra.mxu0 %v5803
    %6562 = vmatprep.subr.bf16.mxu0 %v5810
    %6563 = vmatpush1.bf16.msra.mxu0 %v5809
    %6564 = vmatprep.subr.bf16.mxu0 %v5816
    %6565 = vmatpush1.bf16.msra.mxu0 %v5815
    %6566 = vmatprep.subr.bf16.mxu0 %v5822
    %6567 = vmatpush1.bf16.msra.mxu0 %v5821
    %6568 = vmatprep.subr.bf16.mxu0 %v5828
    %6569 = vmatpush1.bf16.msra.mxu0 %v5827
    %6570 = vmatprep.subr.bf16.mxu0 %v5834
    %6571 = vmatpush1.bf16.msra.mxu0 %v5833
    %6572 = vmatprep.subr.bf16.mxu0 %v5840
    %6573 = vmatpush1.bf16.msra.mxu0 %v5839
    %6574 = vmatprep.subr.bf16.mxu0 %v5846
    %6575 = vmatpush1.bf16.msra.mxu0 %v5845
    %6576 = vmatprep.subr.bf16.mxu0 %v5852
    %6577 = vmatpush1.bf16.msra.mxu0 %v5851
    %6578 = vmatprep.subr.bf16.mxu0 %v5858
    %6579 = vmatpush1.bf16.msra.mxu0 %v5857
    %6580 = vmatprep.subr.bf16.mxu0 %v5864
    %6581 = vmatpush1.bf16.msra.mxu0 %v5863
    %6582 = vmatprep.subr.bf16.mxu0 %v5870
    %6583 = vmatpush1.bf16.msra.mxu0 %v5869
    %6584 = vmatprep.subr.bf16.mxu0 %v5876
    %6585 = vmatpush1.bf16.msra.mxu0 %v5875
    %6586 = vmatprep.subr.bf16.mxu0 %v5882
    %6587 = vmatpush1.bf16.msra.mxu0 %v5881
    %6588 = vmatprep.mubr.bf16.mxu0 %v3932
    %6589 = vmatmul.mubr.bf16.gmra.mrb[0].mxu0 %v3931
    %v6590 = vpop.f32.mrb[0].mxu0
    %v6591 = vadd.f32 %v6550, %v6590
    %v6592 = vpop.f32.mrb[0].mxu0
    %v6593 = vadd.f32 %v6552, %v6592
    %v6594 = vpop.f32.mrb[0].mxu0
    %v6595 = vpop.f32.mrb[0].mxu0
    %6596 = vdwg.mxu0
    %6597 = vmatprep.subr.bf16.mxu0 %v5506
    %6598 = vmatpush1.bf16.msra.mxu0 %v5505
    %6599 = vmatprep.subr.bf16.mxu0 %v5512
    %6600 = vmatpush1.bf16.msra.mxu0 %v5511
    %6601 = vmatprep.subr.bf16.mxu0 %v5518
    %6602 = vmatpush1.bf16.msra.mxu0 %v5517
    %6603 = vmatprep.subr.bf16.mxu0 %v5524
    %6604 = vmatpush1.bf16.msra.mxu0 %v5523
    %6605 = vmatprep.subr.bf16.mxu0 %v5530
    %6606 = vmatpush1.bf16.msra.mxu0 %v5529
    %6607 = vmatprep.subr.bf16.mxu0 %v5536
    %6608 = vmatpush1.bf16.msra.mxu0 %v5535
    %6609 = vmatprep.subr.bf16.mxu0 %v5542
    %6610 = vmatpush1.bf16.msra.mxu0 %v5541
    %6611 = vmatprep.subr.bf16.mxu0 %v5548
    %6612 = vmatpush1.bf16.msra.mxu0 %v5547
    %6613 = vmatprep.subr.bf16.mxu0 %v5554
    %6614 = vmatpush1.bf16.msra.mxu0 %v5553
    %6615 = vmatprep.subr.bf16.mxu0 %v5560
    %6616 = vmatpush1.bf16.msra.mxu0 %v5559
    %6617 = vmatprep.subr.bf16.mxu0 %v5566
    %6618 = vmatpush1.bf16.msra.mxu0 %v5565
    %6619 = vmatprep.subr.bf16.mxu0 %v5572
    %6620 = vmatpush1.bf16.msra.mxu0 %v5571
    %6621 = vmatprep.subr.bf16.mxu0 %v5578
    %6622 = vmatpush1.bf16.msra.mxu0 %v5577
    %6623 = vmatprep.subr.bf16.mxu0 %v5584
    %6624 = vmatpush1.bf16.msra.mxu0 %v5583
    %6625 = vmatprep.subr.bf16.mxu0 %v5590
    %6626 = vmatpush1.bf16.msra.mxu0 %v5589
    %6627 = vmatprep.subr.bf16.mxu0 %v5596
    %6628 = vmatpush1.bf16.msra.mxu0 %v5595
    %6629 = vmatprep.mubr.bf16.mxu0 %v3926
    %6630 = vmatmul.mubr.bf16.gmra.mrb[0].mxu0 %v3925
    %v6631 = vpop.f32.mrb[0].mxu0
    %v6632 = vadd.f32 %v4338, %v6631
    %v6633 = vpop.f32.mrb[0].mxu0
    %v6634 = vadd.f32 %v4342, %v6633
    %v6635 = vpop.f32.mrb[0].mxu0
    %v6636 = vpop.f32.mrb[0].mxu0
    %6637 = vdwg.mxu0
    %6638 = vmatprep.subr.bf16.mxu0 %v5602
    %6639 = vmatpush1.bf16.msra.mxu0 %v5601
    %6640 = vmatprep.subr.bf16.mxu0 %v5608
    %6641 = vmatpush1.bf16.msra.mxu0 %v5607
    %6642 = vmatprep.subr.bf16.mxu0 %v5614
    %6643 = vmatpush1.bf16.msra.mxu0 %v5613
    %6644 = vmatprep.subr.bf16.mxu0 %v5620
    %6645 = vmatpush1.bf16.msra.mxu0 %v5619
    %6646 = vmatprep.subr.bf16.mxu0 %v5626
    %6647 = vmatpush1.bf16.msra.mxu0 %v5625
    %6648 = vmatprep.subr.bf16.mxu0 %v5632
    %6649 = vmatpush1.bf16.msra.mxu0 %v5631
    %6650 = vmatprep.subr.bf16.mxu0 %v5638
    %6651 = vmatpush1.bf16.msra.mxu0 %v5637
    %6652 = vmatprep.subr.bf16.mxu0 %v5644
    %6653 = vmatpush1.bf16.msra.mxu0 %v5643
    %6654 = vmatprep.subr.bf16.mxu0 %v5650
    %6655 = vmatpush1.bf16.msra.mxu0 %v5649
    %6656 = vmatprep.subr.bf16.mxu0 %v5656
    %6657 = vmatpush1.bf16.msra.mxu0 %v5655
    %6658 = vmatprep.subr.bf16.mxu0 %v5662
    %6659 = vmatpush1.bf16.msra.mxu0 %v5661
    %6660 = vmatprep.subr.bf16.mxu0 %v5668
    %6661 = vmatpush1.bf16.msra.mxu0 %v5667
    %6662 = vmatprep.subr.bf16.mxu0 %v5674
    %6663 = vmatpush1.bf16.msra.mxu0 %v5673
    %6664 = vmatprep.subr.bf16.mxu0 %v5680
    %6665 = vmatpush1.bf16.msra.mxu0 %v5679
    %6666 = vmatprep.subr.bf16.mxu0 %v5686
    %6667 = vmatpush1.bf16.msra.mxu0 %v5685
    %6668 = vmatprep.subr.bf16.mxu0 %v5692
    %6669 = vmatpush1.bf16.msra.mxu0 %v5691
    %6670 = vmatprep.mubr.bf16.mxu0 %v3928
    %6671 = vmatmul.mubr.bf16.gmra.mrb[0].mxu0 %v3927
    %v6672 = vpop.f32.mrb[0].mxu0
    %v6673 = vadd.f32 %v6632, %v6672
    %v6674 = vpop.f32.mrb[0].mxu0
    %v6675 = vadd.f32 %v6634, %v6674
    %v6676 = vpop.f32.mrb[0].mxu0
    %v6677 = vpop.f32.mrb[0].mxu0
    %6678 = vdwg.mxu0
    %6679 = vmatprep.subr.bf16.mxu0 %v5698
    %6680 = vmatpush1.bf16.msra.mxu0 %v5697
    %6681 = vmatprep.subr.bf16.mxu0 %v5704
    %6682 = vmatpush1.bf16.msra.mxu0 %v5703
    %6683 = vmatprep.subr.bf16.mxu0 %v5710
    %6684 = vmatpush1.bf16.msra.mxu0 %v5709
    %6685 = vmatprep.subr.bf16.mxu0 %v5716
    %6686 = vmatpush1.bf16.msra.mxu0 %v5715
    %6687 = vmatprep.subr.bf16.mxu0 %v5722
    %6688 = vmatpush1.bf16.msra.mxu0 %v5721
    %6689 = vmatprep.subr.bf16.mxu0 %v5728
    %6690 = vmatpush1.bf16.msra.mxu0 %v5727
    %6691 = vmatprep.subr.bf16.mxu0 %v5734
    %6692 = vmatpush1.bf16.msra.mxu0 %v5733
    %6693 = vmatprep.subr.bf16.mxu0 %v5740
    %6694 = vmatpush1.bf16.msra.mxu0 %v5739
    %6695 = vmatprep.subr.bf16.mxu0 %v5746
    %6696 = vmatpush1.bf16.msra.mxu0 %v5745
    %6697 = vmatprep.subr.bf16.mxu0 %v5752
    %6698 = vmatpush1.bf16.msra.mxu0 %v5751
    %6699 = vmatprep.subr.bf16.mxu0 %v5758
    %6700 = vmatpush1.bf16.msra.mxu0 %v5757
    %6701 = vmatprep.subr.bf16.mxu0 %v5764
    %6702 = vmatpush1.bf16.msra.mxu0 %v5763
    %6703 = vmatprep.subr.bf16.mxu0 %v5770
    %6704 = vmatpush1.bf16.msra.mxu0 %v5769
    %6705 = vmatprep.subr.bf16.mxu0 %v5776
    %6706 = vmatpush1.bf16.msra.mxu0 %v5775
    %6707 = vmatprep.subr.bf16.mxu0 %v5782
    %6708 = vmatpush1.bf16.msra.mxu0 %v5781
    %6709 = vmatprep.subr.bf16.mxu0 %v5788
    %6710 = vmatpush1.bf16.msra.mxu0 %v5787
    %6711 = vmatprep.mubr.bf16.mxu0 %v3930
    %6712 = vmatmul.mubr.bf16.gmra.mrb[0].mxu0 %v3929
    %v6713 = vpop.f32.mrb[0].mxu0
    %v6714 = vadd.f32 %v6673, %v6713
    %v6715 = vpop.f32.mrb[0].mxu0
    %v6716 = vadd.f32 %v6675, %v6715
    %v6717 = vpop.f32.mrb[0].mxu0
    %v6718 = vpop.f32.mrb[0].mxu0
    %6719 = vdwg.mxu0
    %6720 = vmatprep.subr.bf16.mxu0 %v5794
    %6721 = vmatpush1.bf16.msra.mxu0 %v5793
    %6722 = vmatprep.subr.bf16.mxu0 %v5800
    %6723 = vmatpush1.bf16.msra.mxu0 %v5799
    %6724 = vmatprep.subr.bf16.mxu0 %v5806
    %6725 = vmatpush1.bf16.msra.mxu0 %v5805
    %6726 = vmatprep.subr.bf16.mxu0 %v5812
    %6727 = vmatpush1.bf16.msra.mxu0 %v5811
    %6728 = vmatprep.subr.bf16.mxu0 %v5818
    %6729 = vmatpush1.bf16.msra.mxu0 %v5817
    %6730 = vmatprep.subr.bf16.mxu0 %v5824
    %6731 = vmatpush1.bf16.msra.mxu0 %v5823
    %6732 = vmatprep.subr.bf16.mxu0 %v5830
    %6733 = vmatpush1.bf16.msra.mxu0 %v5829
    %6734 = vmatprep.subr.bf16.mxu0 %v5836
    %6735 = vmatpush1.bf16.msra.mxu0 %v5835
    %6736 = vmatprep.subr.bf16.mxu0 %v5842
    %6737 = vmatpush1.bf16.msra.mxu0 %v5841
    %6738 = vmatprep.subr.bf16.mxu0 %v5848
    %6739 = vmatpush1.bf16.msra.mxu0 %v5847
    %6740 = vmatprep.subr.bf16.mxu0 %v5854
    %6741 = vmatpush1.bf16.msra.mxu0 %v5853
    %6742 = vmatprep.subr.bf16.mxu0 %v5860
    %6743 = vmatpush1.bf16.msra.mxu0 %v5859
    %6744 = vmatprep.subr.bf16.mxu0 %v5866
    %6745 = vmatpush1.bf16.msra.mxu0 %v5865
    %6746 = vmatprep.subr.bf16.mxu0 %v5872
    %6747 = vmatpush1.bf16.msra.mxu0 %v5871
    %6748 = vmatprep.subr.bf16.mxu0 %v5878
    %6749 = vmatpush1.bf16.msra.mxu0 %v5877
    %6750 = vmatprep.subr.bf16.mxu0 %v5884
    %6751 = vmatpush1.bf16.msra.mxu0 %v5883
    %6752 = vmatprep.mubr.bf16.mxu0 %v3932
    %6753 = vmatmul.mubr.bf16.gmra.mrb[0].mxu0 %v3931
    %v6754 = vpop.f32.mrb[0].mxu0
    %v6755 = vadd.f32 %v6714, %v6754
    %v6756 = vpop.f32.mrb[0].mxu0
    %v6757 = vadd.f32 %v6716, %v6756
    %v6758 = vpop.f32.mrb[0].mxu0
    %v6759 = vpop.f32.mrb[0].mxu0
    %6760 = vdwg.mxu0
    %v6761 = vmax.f32 %v6427, 0.0
    %v6762 = vmax.f32 %v6429, 0.0
    %v6763 = vmax.f32 %v6591, 0.0
    %v6764 = vmax.f32 %v6593, 0.0
    %v6765 = vmax.f32 %v6755, 0.0
    %v6766 = vmax.f32 %v6757, 0.0
    %v6767 = vpack.c.bf16 %v6761, %v6761
    %v6768 = vpack.c.bf16 %v6762, %v6762
    %v6769 = vpack.c.bf16 %v6763, %v6763
    %v6770 = vpack.c.bf16 %v6764, %v6764
    %v6771 = vpack.c.bf16 %v6765, %v6765
    %v6772 = vpack.c.bf16 %v6766, %v6766
    %v6773 = vld [vmem:[#allocation11] sm:$0xf]
    %v6774 = vld [vmem:[#allocation11 + $0x4] sm:$0xf]
    %v6775 = vld [vmem:[#allocation11 + $0x8] sm:$0xf]
    %v6776 = vld [vmem:[#allocation11 + $0xc] sm:$0xf]
    %v6777 = vld [vmem:[#allocation11 + $0x10] sm:$0xf]
    %v6778 = vld [vmem:[#allocation11 + $0x14] sm:$0xf]
    %v6779 = vld [vmem:[#allocation11 + $0x18] sm:$0xf]
    %v6780 = vld [vmem:[#allocation11 + $0x1c] sm:$0xf]
    %v6781 = vld [vmem:[#allocation11 + $0x20] sm:$0xf]
    %v6782 = vld [vmem:[#allocation11 + $0x24] sm:$0xf]
    %v6783 = vld [vmem:[#allocation11 + $0x28] sm:$0xf]
    %v6784 = vld [vmem:[#allocation11 + $0x2c] sm:$0xf]
    %v6785 = vld [vmem:[#allocation11 + $0x30] sm:$0xf]
    %v6786 = vld [vmem:[#allocation11 + $0x34] sm:$0xf]
    %v6787 = vld [vmem:[#allocation11 + $0x38] sm:$0xf]
    %v6788 = vld [vmem:[#allocation11 + $0x3c] sm:$0xf]
    %v6789 = vld [vmem:[#allocation11 + $0x40] sm:$0xf]
    %v6790 = vld [vmem:[#allocation11 + $0x44] sm:$0xf]
    %v6791 = vld [vmem:[#allocation11 + $0x48] sm:$0xf]
    %v6792 = vld [vmem:[#allocation11 + $0x4c] sm:$0xf]
    %v6793 = vld [vmem:[#allocation11 + $0x50] sm:$0xf]
    %v6794 = vld [vmem:[#allocation11 + $0x54] sm:$0xf]
    %v6795 = vld [vmem:[#allocation11 + $0x58] sm:$0xf]
    %v6796 = vld [vmem:[#allocation11 + $0x5c] sm:$0xf]
    %v6797 = vld [vmem:[#allocation11 + $0x60] sm:$0xf]
    %v6798 = vld [vmem:[#allocation11 + $0x64] sm:$0xf]
    %v6799 = vld [vmem:[#allocation11 + $0x68] sm:$0xf]
    %v6800 = vld [vmem:[#allocation11 + $0x6c] sm:$0xf]
    %v6801 = vld [vmem:[#allocation11 + $0x70] sm:$0xf]
    %v6802 = vld [vmem:[#allocation11 + $0x74] sm:$0xf]
    %v6803 = vld [vmem:[#allocation11 + $0x78] sm:$0xf]
    %v6804 = vld [vmem:[#allocation11 + $0x7c] sm:$0xf]
    %v6805 = vld [vmem:[#allocation11 + $0x80] sm:$0xf]
    %v6806 = vld [vmem:[#allocation11 + $0x84] sm:$0xf]
    %v6807 = vld [vmem:[#allocation11 + $0x88] sm:$0xf]
    %v6808 = vld [vmem:[#allocation11 + $0x8c] sm:$0xf]
    %v6809 = vld [vmem:[#allocation11 + $0x90] sm:$0xf]
    %v6810 = vld [vmem:[#allocation11 + $0x94] sm:$0xf]
    %v6811 = vld [vmem:[#allocation11 + $0x98] sm:$0xf]
    %v6812 = vld [vmem:[#allocation11 + $0x9c] sm:$0xf]
    %v6813 = vld [vmem:[#allocation11 + $0xa0] sm:$0xf]
    %v6814 = vld [vmem:[#allocation11 + $0xa4] sm:$0xf]
    %v6815 = vld [vmem:[#allocation11 + $0xa8] sm:$0xf]
    %v6816 = vld [vmem:[#allocation11 + $0xac] sm:$0xf]
    %v6817 = vld [vmem:[#allocation11 + $0xb0] sm:$0xf]
    %v6818 = vld [vmem:[#allocation11 + $0xb4] sm:$0xf]
    %v6819 = vld [vmem:[#allocation11 + $0xb8] sm:$0xf]
    %v6820 = vld [vmem:[#allocation11 + $0xbc] sm:$0xf]
    %v6821 = vld [vmem:[#allocation11 + $0xc0] sm:$0xf]
    %v6822 = vld [vmem:[#allocation11 + $0xc4] sm:$0xf]
    %v6823 = vld [vmem:[#allocation11 + $0xc8] sm:$0xf]
    %v6824 = vld [vmem:[#allocation11 + $0xcc] sm:$0xf]
    %v6825 = vld [vmem:[#allocation11 + $0xd0] sm:$0xf]
    %v6826 = vld [vmem:[#allocation11 + $0xd4] sm:$0xf]
    %v6827 = vld [vmem:[#allocation11 + $0xd8] sm:$0xf]
    %v6828 = vld [vmem:[#allocation11 + $0xdc] sm:$0xf]
    %v6829 = vld [vmem:[#allocation11 + $0xe0] sm:$0xf]
    %v6830 = vld [vmem:[#allocation11 + $0xe4] sm:$0xf]
    %v6831 = vld [vmem:[#allocation11 + $0xe8] sm:$0xf]
    %v6832 = vld [vmem:[#allocation11 + $0xec] sm:$0xf]
    %v6833 = vld [vmem:[#allocation11 + $0xf0] sm:$0xf]
    %v6834 = vld [vmem:[#allocation11 + $0xf4] sm:$0xf]
    %v6835 = vld [vmem:[#allocation11 + $0xf8] sm:$0xf]
    %v6836 = vld [vmem:[#allocation11 + $0xfc] sm:$0xf]
    %v6837 = vld [vmem:[#allocation11 + $0x100] sm:$0xf]
    %v6838 = vld [vmem:[#allocation11 + $0x104] sm:$0xf]
    %v6839 = vld [vmem:[#allocation11 + $0x108] sm:$0xf]
    %v6840 = vld [vmem:[#allocation11 + $0x10c] sm:$0xf]
    %v6841 = vld [vmem:[#allocation11 + $0x110] sm:$0xf]
    %v6842 = vld [vmem:[#allocation11 + $0x114] sm:$0xf]
    %v6843 = vld [vmem:[#allocation11 + $0x118] sm:$0xf]
    %v6844 = vld [vmem:[#allocation11 + $0x11c] sm:$0xf]
    %v6845 = vld [vmem:[#allocation11 + $0x120] sm:$0xf]
    %v6846 = vld [vmem:[#allocation11 + $0x124] sm:$0xf]
    %v6847 = vld [vmem:[#allocation11 + $0x128] sm:$0xf]
    %v6848 = vld [vmem:[#allocation11 + $0x12c] sm:$0xf]
    %v6849 = vld [vmem:[#allocation11 + $0x130] sm:$0xf]
    %v6850 = vld [vmem:[#allocation11 + $0x134] sm:$0xf]
    %v6851 = vld [vmem:[#allocation11 + $0x138] sm:$0xf]
    %v6852 = vld [vmem:[#allocation11 + $0x13c] sm:$0xf]
    %v6853 = vld [vmem:[#allocation11 + $0x140] sm:$0xf]
    %v6854 = vld [vmem:[#allocation11 + $0x144] sm:$0xf]
    %v6855 = vld [vmem:[#allocation11 + $0x148] sm:$0xf]
    %v6856 = vld [vmem:[#allocation11 + $0x14c] sm:$0xf]
    %v6857 = vld [vmem:[#allocation11 + $0x150] sm:$0xf]
    %v6858 = vld [vmem:[#allocation11 + $0x154] sm:$0xf]
    %v6859 = vld [vmem:[#allocation11 + $0x158] sm:$0xf]
    %v6860 = vld [vmem:[#allocation11 + $0x15c] sm:$0xf]
    %v6861 = vld [vmem:[#allocation11 + $0x160] sm:$0xf]
    %v6862 = vld [vmem:[#allocation11 + $0x164] sm:$0xf]
    %v6863 = vld [vmem:[#allocation11 + $0x168] sm:$0xf]
    %v6864 = vld [vmem:[#allocation11 + $0x16c] sm:$0xf]
    %v6865 = vld [vmem:[#allocation11 + $0x170] sm:$0xf]
    %v6866 = vld [vmem:[#allocation11 + $0x174] sm:$0xf]
    %v6867 = vld [vmem:[#allocation11 + $0x178] sm:$0xf]
    %v6868 = vld [vmem:[#allocation11 + $0x17c] sm:$0xf]
    %v6869 = vld [vmem:[#allocation13] sm:$0x1]
    %v6871 = vlaneseq
    %v6872 = vshrl.u32 %v6871, 7
    %v6873 = vsub.s32 0, %v6872
    %v6874 = vrot.slane %v6869, %v6873
    %v6972 = vunpack.c.l.b16 %v6773
    %v6973 = vunpack.c.l.b16 %v6774
    %v6974 = vunpack.c.l.b16 %v6775
    %v6975 = vunpack.c.l.b16 %v6776
    %v6976 = vunpack.c.l.b16 %v6777
    %v6977 = vunpack.c.l.b16 %v6778
    %v6978 = vunpack.c.l.b16 %v6779
    %v6979 = vunpack.c.l.b16 %v6780
    %v6980 = vunpack.c.l.b16 %v6781
    %v6981 = vunpack.c.l.b16 %v6782
    %v6982 = vunpack.c.l.b16 %v6783
    %v6983 = vunpack.c.l.b16 %v6784
    %v6984 = vunpack.c.l.b16 %v6785
    %v6985 = vunpack.c.l.b16 %v6786
    %v6986 = vunpack.c.l.b16 %v6787
    %v6987 = vunpack.c.l.b16 %v6788
    %v6988 = vunpack.c.l.b16 %v6789
    %v6989 = vunpack.c.l.b16 %v6790
    %v6990 = vunpack.c.l.b16 %v6791
    %v6991 = vunpack.c.l.b16 %v6792
    %v6992 = vunpack.c.l.b16 %v6793
    %v6993 = vunpack.c.l.b16 %v6794
    %v6994 = vunpack.c.l.b16 %v6795
    %v6995 = vunpack.c.l.b16 %v6796
    %v6996 = vunpack.c.l.b16 %v6797
    %v6997 = vunpack.c.l.b16 %v6798
    %v6998 = vunpack.c.l.b16 %v6799
    %v6999 = vunpack.c.l.b16 %v6800
    %v7000 = vunpack.c.l.b16 %v6801
    %v7001 = vunpack.c.l.b16 %v6802
    %v7002 = vunpack.c.l.b16 %v6803
    %v7003 = vunpack.c.l.b16 %v6804
    %v7004 = vunpack.c.l.b16 %v6805
    %v7005 = vunpack.c.l.b16 %v6806
    %v7006 = vunpack.c.l.b16 %v6807
    %v7007 = vunpack.c.l.b16 %v6808
    %v7008 = vunpack.c.l.b16 %v6809
    %v7009 = vunpack.c.l.b16 %v6810
    %v7010 = vunpack.c.l.b16 %v6811
    %v7011 = vunpack.c.l.b16 %v6812
    %v7012 = vunpack.c.l.b16 %v6813
    %v7013 = vunpack.c.l.b16 %v6814
    %v7014 = vunpack.c.l.b16 %v6815
    %v7015 = vunpack.c.l.b16 %v6816
    %v7016 = vunpack.c.l.b16 %v6817
    %v7017 = vunpack.c.l.b16 %v6818
    %v7018 = vunpack.c.l.b16 %v6819
    %v7019 = vunpack.c.l.b16 %v6820
    %v7020 = vunpack.c.l.b16 %v6821
    %v7021 = vunpack.c.l.b16 %v6822
    %v7022 = vunpack.c.l.b16 %v6823
    %v7023 = vunpack.c.l.b16 %v6824
    %v7024 = vunpack.c.l.b16 %v6825
    %v7025 = vunpack.c.l.b16 %v6826
    %v7026 = vunpack.c.l.b16 %v6827
    %v7027 = vunpack.c.l.b16 %v6828
    %v7028 = vunpack.c.l.b16 %v6829
    %v7029 = vunpack.c.l.b16 %v6830
    %v7030 = vunpack.c.l.b16 %v6831
    %v7031 = vunpack.c.l.b16 %v6832
    %v7032 = vunpack.c.l.b16 %v6833
    %v7033 = vunpack.c.l.b16 %v6834
    %v7034 = vunpack.c.l.b16 %v6835
    %v7035 = vunpack.c.l.b16 %v6836
    %v7036 = vunpack.c.l.b16 %v6837
    %v7037 = vunpack.c.l.b16 %v6838
    %v7038 = vunpack.c.l.b16 %v6839
    %v7039 = vunpack.c.l.b16 %v6840
    %v7040 = vunpack.c.l.b16 %v6841
    %v7041 = vunpack.c.l.b16 %v6842
    %v7042 = vunpack.c.l.b16 %v6843
    %v7043 = vunpack.c.l.b16 %v6844
    %v7044 = vunpack.c.l.b16 %v6845
    %v7045 = vunpack.c.l.b16 %v6846
    %v7046 = vunpack.c.l.b16 %v6847
    %v7047 = vunpack.c.l.b16 %v6848
    %v7048 = vunpack.c.l.b16 %v6849
    %v7049 = vunpack.c.l.b16 %v6850
    %v7050 = vunpack.c.l.b16 %v6851
    %v7051 = vunpack.c.l.b16 %v6852
    %v7052 = vunpack.c.l.b16 %v6853
    %v7053 = vunpack.c.l.b16 %v6854
    %v7054 = vunpack.c.l.b16 %v6855
    %v7055 = vunpack.c.l.b16 %v6856
    %v7056 = vunpack.c.l.b16 %v6857
    %v7057 = vunpack.c.l.b16 %v6858
    %v7058 = vunpack.c.l.b16 %v6859
    %v7059 = vunpack.c.l.b16 %v6860
    %v7060 = vunpack.c.l.b16 %v6861
    %v7061 = vunpack.c.l.b16 %v6862
    %v7062 = vunpack.c.l.b16 %v6863
    %v7063 = vunpack.c.l.b16 %v6864
    %v7064 = vunpack.c.l.b16 %v6865
    %v7065 = vunpack.c.l.b16 %v6866
    %v7066 = vunpack.c.l.b16 %v6867
    %v7067 = vunpack.c.l.b16 %v6868
    %v7068 = vpack.c.b16 %v6973, %v6972
    %v7069 = vpack.c.b16 %v6975, %v6974
    %v7070 = vpack.c.b16 %v6977, %v6976
    %v7071 = vpack.c.b16 %v6979, %v6978
    %v7072 = vpack.c.b16 %v6981, %v6980
    %v7073 = vpack.c.b16 %v6983, %v6982
    %v7074 = vpack.c.b16 %v6985, %v6984
    %v7075 = vpack.c.b16 %v6987, %v6986
    %v7076 = vpack.c.b16 %v6989, %v6988
    %v7077 = vpack.c.b16 %v6991, %v6990
    %v7078 = vpack.c.b16 %v6993, %v6992
    %v7079 = vpack.c.b16 %v6995, %v6994
    %v7080 = vpack.c.b16 %v6997, %v6996
    %v7081 = vpack.c.b16 %v6999, %v6998
    %v7082 = vpack.c.b16 %v7001, %v7000
    %v7083 = vpack.c.b16 %v7003, %v7002
    %v7084 = vpack.c.b16 %v7005, %v7004
    %v7085 = vpack.c.b16 %v7007, %v7006
    %v7086 = vpack.c.b16 %v7009, %v7008
    %v7087 = vpack.c.b16 %v7011, %v7010
    %v7088 = vpack.c.b16 %v7013, %v7012
    %v7089 = vpack.c.b16 %v7015, %v7014
    %v7090 = vpack.c.b16 %v7017, %v7016
    %v7091 = vpack.c.b16 %v7019, %v7018
    %v7092 = vpack.c.b16 %v7021, %v7020
    %v7093 = vpack.c.b16 %v7023, %v7022
    %v7094 = vpack.c.b16 %v7025, %v7024
    %v7095 = vpack.c.b16 %v7027, %v7026
    %v7096 = vpack.c.b16 %v7029, %v7028
    %v7097 = vpack.c.b16 %v7031, %v7030
    %v7098 = vpack.c.b16 %v7033, %v7032
    %v7099 = vpack.c.b16 %v7035, %v7034
    %v7100 = vpack.c.b16 %v7037, %v7036
    %v7101 = vpack.c.b16 %v7039, %v7038
    %v7102 = vpack.c.b16 %v7041, %v7040
    %v7103 = vpack.c.b16 %v7043, %v7042
    %v7104 = vpack.c.b16 %v7045, %v7044
    %v7105 = vpack.c.b16 %v7047, %v7046
    %v7106 = vpack.c.b16 %v7049, %v7048
    %v7107 = vpack.c.b16 %v7051, %v7050
    %v7108 = vpack.c.b16 %v7053, %v7052
    %v7109 = vpack.c.b16 %v7055, %v7054
    %v7110 = vpack.c.b16 %v7057, %v7056
    %v7111 = vpack.c.b16 %v7059, %v7058
    %v7112 = vpack.c.b16 %v7061, %v7060
    %v7113 = vpack.c.b16 %v7063, %v7062
    %v7114 = vpack.c.b16 %v7065, %v7064
    %v7115 = vpack.c.b16 %v7067, %v7066
    %7164 = vmatprep.subr.bf16.mxu0 0
    %7165 = vmatpush1.bf16.msra.mxu0 %v7068
    %7166 = vmatprep.subr.bf16.mxu0 0
    %7167 = vmatpush1.bf16.msra.mxu0 %v7069
    %7168 = vmatprep.subr.bf16.mxu0 0
    %7169 = vmatpush1.bf16.msra.mxu0 %v7070
    %7170 = vmatprep.subr.bf16.mxu0 0
    %7171 = vmatpush1.bf16.msra.mxu0 %v7071
    %7172 = vmatprep.subr.bf16.mxu0 0
    %7173 = vmatpush1.bf16.msra.mxu0 %v7072
    %7174 = vmatprep.subr.bf16.mxu0 0
    %7175 = vmatpush1.bf16.msra.mxu0 %v7073
    %7176 = vmatprep.subr.bf16.mxu0 0
    %7177 = vmatpush1.bf16.msra.mxu0 %v7074
    %7178 = vmatprep.subr.bf16.mxu0 0
    %7179 = vmatpush1.bf16.msra.mxu0 %v7075
    %7180 = vmatprep.subr.bf16.mxu0 0
    %7181 = vmatpush1.bf16.msra.mxu0 %v7076
    %7182 = vmatprep.subr.bf16.mxu0 0
    %7183 = vmatpush1.bf16.msra.mxu0 %v7077
    %7184 = vmatprep.subr.bf16.mxu0 0
    %7185 = vmatpush1.bf16.msra.mxu0 %v7078
    %7186 = vmatprep.subr.bf16.mxu0 0
    %7187 = vmatpush1.bf16.msra.mxu0 %v7079
    %7188 = vmatprep.subr.bf16.mxu0 0
    %7189 = vmatpush1.bf16.msra.mxu0 %v7080
    %7190 = vmatprep.subr.bf16.mxu0 0
    %7191 = vmatpush1.bf16.msra.mxu0 %v7081
    %7192 = vmatprep.subr.bf16.mxu0 0
    %7193 = vmatpush1.bf16.msra.mxu0 %v7082
    %7194 = vmatprep.subr.bf16.mxu0 0
    %7195 = vmatpush1.bf16.msra.mxu0 %v7083
    %7196 = vmatprep.mubr.bf16.mxu0 %v6768
    %7197 = vmatmul.mubr.bf16.gmra.mrb[0].mxu0 %v6767
    %v7198 = vpop.f32.mrb[0].mxu0
    %v7199 = vadd.f32 %v6874, %v7198
    %v7200 = vpop.f32.mrb[0].mxu0
    %v7201 = vpop.f32.mrb[0].mxu0
    %v7202 = vpop.f32.mrb[0].mxu0
    %7203 = vdwg.mxu0
    %7204 = vmatprep.subr.bf16.mxu0 0
    %7205 = vmatpush1.bf16.msra.mxu0 %v7084
    %7206 = vmatprep.subr.bf16.mxu0 0
    %7207 = vmatpush1.bf16.msra.mxu0 %v7085
    %7208 = vmatprep.subr.bf16.mxu0 0
    %7209 = vmatpush1.bf16.msra.mxu0 %v7086
    %7210 = vmatprep.subr.bf16.mxu0 0
    %7211 = vmatpush1.bf16.msra.mxu0 %v7087
    %7212 = vmatprep.subr.bf16.mxu0 0
    %7213 = vmatpush1.bf16.msra.mxu0 %v7088
    %7214 = vmatprep.subr.bf16.mxu0 0
    %7215 = vmatpush1.bf16.msra.mxu0 %v7089
    %7216 = vmatprep.subr.bf16.mxu0 0
    %7217 = vmatpush1.bf16.msra.mxu0 %v7090
    %7218 = vmatprep.subr.bf16.mxu0 0
    %7219 = vmatpush1.bf16.msra.mxu0 %v7091
    %7220 = vmatprep.subr.bf16.mxu0 0
    %7221 = vmatpush1.bf16.msra.mxu0 %v7092
    %7222 = vmatprep.subr.bf16.mxu0 0
    %7223 = vmatpush1.bf16.msra.mxu0 %v7093
    %7224 = vmatprep.subr.bf16.mxu0 0
    %7225 = vmatpush1.bf16.msra.mxu0 %v7094
    %7226 = vmatprep.subr.bf16.mxu0 0
    %7227 = vmatpush1.bf16.msra.mxu0 %v7095
    %7228 = vmatprep.subr.bf16.mxu0 0
    %7229 = vmatpush1.bf16.msra.mxu0 %v7096
    %7230 = vmatprep.subr.bf16.mxu0 0
    %7231 = vmatpush1.bf16.msra.mxu0 %v7097
    %7232 = vmatprep.subr.bf16.mxu0 0
    %7233 = vmatpush1.bf16.msra.mxu0 %v7098
    %7234 = vmatprep.subr.bf16.mxu0 0
    %7235 = vmatpush1.bf16.msra.mxu0 %v7099
    %7236 = vmatprep.mubr.bf16.mxu0 %v6770
    %7237 = vmatmul.mubr.bf16.gmra.mrb[0].mxu0 %v6769
    %v7238 = vpop.f32.mrb[0].mxu0
    %v7239 = vadd.f32 %v7199, %v7238
    %v7240 = vpop.f32.mrb[0].mxu0
    %v7241 = vpop.f32.mrb[0].mxu0
    %v7242 = vpop.f32.mrb[0].mxu0
    %7243 = vdwg.mxu0
    %7244 = vmatprep.subr.bf16.mxu0 0
    %7245 = vmatpush1.bf16.msra.mxu0 %v7100
    %7246 = vmatprep.subr.bf16.mxu0 0
    %7247 = vmatpush1.bf16.msra.mxu0 %v7101
    %7248 = vmatprep.subr.bf16.mxu0 0
    %7249 = vmatpush1.bf16.msra.mxu0 %v7102
    %7250 = vmatprep.subr.bf16.mxu0 0
    %7251 = vmatpush1.bf16.msra.mxu0 %v7103
    %7252 = vmatprep.subr.bf16.mxu0 0
    %7253 = vmatpush1.bf16.msra.mxu0 %v7104
    %7254 = vmatprep.subr.bf16.mxu0 0
    %7255 = vmatpush1.bf16.msra.mxu0 %v7105
    %7256 = vmatprep.subr.bf16.mxu0 0
    %7257 = vmatpush1.bf16.msra.mxu0 %v7106
    %7258 = vmatprep.subr.bf16.mxu0 0
    %7259 = vmatpush1.bf16.msra.mxu0 %v7107
    %7260 = vmatprep.subr.bf16.mxu0 0
    %7261 = vmatpush1.bf16.msra.mxu0 %v7108
    %7262 = vmatprep.subr.bf16.mxu0 0
    %7263 = vmatpush1.bf16.msra.mxu0 %v7109
    %7264 = vmatprep.subr.bf16.mxu0 0
    %7265 = vmatpush1.bf16.msra.mxu0 %v7110
    %7266 = vmatprep.subr.bf16.mxu0 0
    %7267 = vmatpush1.bf16.msra.mxu0 %v7111
    %7268 = vmatprep.subr.bf16.mxu0 0
    %7269 = vmatpush1.bf16.msra.mxu0 %v7112
    %7270 = vmatprep.subr.bf16.mxu0 0
    %7271 = vmatpush1.bf16.msra.mxu0 %v7113
    %7272 = vmatprep.subr.bf16.mxu0 0
    %7273 = vmatpush1.bf16.msra.mxu0 %v7114
    %7274 = vmatprep.subr.bf16.mxu0 0
    %7275 = vmatpush1.bf16.msra.mxu0 %v7115
    %7276 = vmatprep.mubr.bf16.mxu0 %v6772
    %7277 = vmatmul.mubr.bf16.gmra.mrb[0].mxu0 %v6771
    %v7278 = vpop.f32.mrb[0].mxu0
    %v7279 = vadd.f32 %v7239, %v7278
    %v7280 = vpop.f32.mrb[0].mxu0
    %v7281 = vpop.f32.mrb[0].mxu0
    %v7282 = vpop.f32.mrb[0].mxu0
    %7283 = vdwg.mxu0
    %7284 = vmax.xlane.f32.xlu0 %v7279
    %v7285 = vpop.xlane.xlu0 %7284
    %v7286 = vsub.f32 %v7279, %v7285
    %v7287 = vmul.f32 %v7286, 1.442695
    %v7288 = vpow.pop %v7287
    %7289 = vadd.xlane.f32.xlu0 %v7288
    %v7290 = vpop.xlane.xlu0 %7289
    %v7291 = vlog2.pop %v7290
    %v7292 = vmul.f32 %v7291, 0.6931472
    %v7293 = vsub.f32 %v7286, %v7292
    %7294 = vst [vmem:[#allocation14] sm:$0xff] %v7293
    // Predicated region
    $region58: #{tpu_custom_call.1} parent=1 // pred_check
      _
    $region59: #{tpu_custom_call.1} parent=1 // pred_check_branch
      %7296 = sbr.rel (0) target = $region61
    $region60: #{tpu_custom_call.1} parent=1 // pred_region
      %s7298 = ssub.s32 128, 128
      %7299 = vsyncadd [#allocation4], %s7298
      %s7301 = sshll.u32 [#allocation14], 4
      %s7302 = int_to_ptr.vmem [resolvable:$true] %s7301
      %7304 = dma.vmem_to_hbm [thread:$0]  %s7302, 128, %s7, [#allocation4]
    $region61: #{tpu_custom_call.1} parent=1 // pred_fallthru
      _
    // Predicated region
    $region62: #{tpu_custom_call.1} parent=1 // pred_check
      _
    $region63: #{tpu_custom_call.1} parent=1 // pred_check_branch
      %7306 = sbr.rel (0) target = $region65
    $region64: #{tpu_custom_call.1} parent=1 // pred_region
      %7307 = dma.done [#allocation4], 128
    $region65: #{tpu_custom_call.1} parent=1 // pred_fallthru
      _
    %7308 = vsyncpa [#allocation3], 1
    %7309 = vsyncpa [#allocation6], 1
    %7310 = vsyncpa [#allocation9], 1
    %7311 = vsyncpa [#allocation12], 1
    %7312 = vsyncpa [#allocation4], 1

</llo_original>
